<compile_context>
chip_gen: v7x
topology: tpu7x:2x2x1
jax: 0.10.0
libtpu: 0.0.40
codegen_flags: <defaults>
</compile_context>

<pallas_src>
import math
import functools

import jax
import jax.numpy as jnp
from jax.experimental import pallas as pl
from jax.experimental.pallas import tpu as pltpu


def _affine_coupling_kernel(n_hidden, mask_swap, H, W, mm_dtype, *refs):
    """Single-invocation forward pass (everything resident in VMEM).

    refs order:
      inputs : in_a_cm (B,Ca,HW), in_a_nhwc (B,H,W,Ca), in_b_cm (B,Cb,HW),
               (wmat_i (9*cin,hid), b_i, gamma_i, beta_i) * n_hidden,
               wmat_last (9*hid,C), b_last
      outputs: out (B,C,HW)  [channel-major, lane-dense], logdet (B,1)
      scratch: zero-bordered NHWC staging buffers (B,H+2,W+2,cin) * (n_hidden+1)
    """
    idx = 0
    in_a_cm_ref = refs[idx]; idx += 1
    in_a_sp_ref = refs[idx]; idx += 1
    in_b_ref = refs[idx]; idx += 1
    hidden_params = []
    for _ in range(n_hidden):
        hidden_params.append(tuple(refs[idx:idx + 4])); idx += 4
    w_last_ref = refs[idx]; idx += 1
    b_last_ref = refs[idx]; idx += 1
    out_ref = refs[idx]; idx += 1
    logdet_ref = refs[idx]; idx += 1
    pad_refs = refs[idx:idx + n_hidden + 1]

    B, Ca, HW = in_a_cm_ref.shape
    Cb = in_b_ref.shape[1]
    N = B * H * W
    eps = 1e-5
    inv_n = 1.0 / float(N)

    def stage_padded(pad_ref, h_nhwc):
        # Zero only the 1-pixel border strips; write the interior once.
        cin = pad_ref.shape[-1]
        zrow = jnp.zeros((B, 1, W + 2, cin), jnp.float32)
        zcol = jnp.zeros((B, H + 2, 1, cin), jnp.float32)
        pad_ref[:, 0:1, :, :] = zrow
        pad_ref[:, H + 1:H + 2, :, :] = zrow
        pad_ref[:, :, 0:1, :] = zcol
        pad_ref[:, :, W + 1:W + 2, :] = zcol
        pad_ref[:, 1:H + 1, 1:W + 1, :] = h_nhwc

    def conv3x3(pad_ref, wmat_ref, b_ref):
        # 3x3 'same' conv as a single im2col matmul (MXU, f32 accumulation).
        cin = pad_ref.shape[-1]
        taps = [pad_ref[:, di:di + H, dj:dj + W, :].reshape(N, cin)
                for di in range(3) for dj in range(3)]
        patch = jnp.concatenate(taps, axis=-1)               # (N, 9*cin)
        h = jnp.dot(patch.astype(mm_dtype), wmat_ref[...],
                    preferred_element_type=jnp.float32)      # (N, cout) f32
        return h + b_ref[...]                                # bias (1, cout)

    # Stage in_a (NHWC view supplied by the wrapper) for the first conv.
    stage_padded(pad_refs[0], in_a_sp_ref[...])
    src = pad_refs[0]

    # Hidden layers: conv -> BatchNorm (training-mode batch stats, fused
    # single-pass statistics) -> ReLU, restaged (padded) for the next conv.
    for li in range(n_hidden):
        w_ref, b_ref, g_ref, be_ref = hidden_params[li]
        h = conv3x3(src, w_ref, b_ref)                                # (N, hid)
        mean = jnp.sum(h, axis=0, keepdims=True) * inv_n              # (1, hid)
        ex2 = jnp.sum(h * h, axis=0, keepdims=True) * inv_n
        var = ex2 - mean * mean                                       # biased
        scale = g_ref[...] * jax.lax.rsqrt(var + eps)
        shift = be_ref[...] - mean * scale
        h = jnp.maximum(h * scale + shift, 0.0)                       # BN+ReLU
        stage_padded(pad_refs[li + 1], h.reshape(B, H, W, h.shape[-1]))
        src = pad_refs[li + 1]

    # Final conv (no BN / ReLU), then switch to channel-major (lane-dense).
    h2 = conv3x3(src, w_last_ref, b_last_ref)                         # (N, C)
    C = h2.shape[-1]
    Cs = (C + 1) // 2                                                 # chunk split
    h2_cm = jnp.swapaxes(h2.reshape(B, HW, C), 1, 2)                  # (B, C, HW)
    log_s = h2_cm[:, :Cs, :]                                          # (B, Cs, HW)
    t = h2_cm[:, Cs:, :]                                              # (B, Cb, HW)
    s = jax.nn.sigmoid(log_s)
    out_b = (in_b_ref[...] + t) * s                                   # (B, Cb, HW)

    # Lane-dense slab stores instead of an in-kernel concatenate.
    if mask_swap:
        out_ref[:, :Cb, :] = out_b
        out_ref[:, Cb:, :] = in_a_cm_ref[...]
    else:
        out_ref[:, :Ca, :] = in_a_cm_ref[...]
        out_ref[:, Ca:, :] = out_b

    # logdet = sum log(sigmoid(log_s)) = -softplus(-log_s)  (stable, no abs).
    ld = -(jnp.maximum(-log_s, 0.0) + jnp.log(1.0 + jnp.exp(-jnp.abs(log_s))))
    logdet_ref[...] = jnp.sum(jnp.sum(ld, axis=2), axis=1, keepdims=True)


def _vmem_bytes_estimate(B, C, H, W, hidden_channels, mm_bytes):
    """Rough working-set estimate (bytes) for the single-invocation kernel."""
    Ca = math.ceil(C / 2)
    HW = H * W
    total = 4 * (3 * B * Ca * HW + 2 * B * C * HW + B)    # inputs + output + logdet
    cins = [Ca] + list(hidden_channels)
    couts = list(hidden_channels) + [C]
    peak = 0
    for cin, cout in zip(cins, couts):
        total += B * (H + 2) * (W + 2) * cin * 4          # padded staging scratch
        total += 9 * cin * cout * mm_bytes + 3 * cout * 4 # weights + bn params
        peak = max(peak, B * HW * (9 * cin + 2 * cout) * 4)  # im2col patch + temps
    return total + peak


def affine_coupling_forward(x_nchw, params, hidden_channels, mask_swap=False,
                            use_bf16_matmul=False):
    """params: list of (w(3,3,cin,cout), b(1,cout), gamma(1,cout), beta(1,cout))."""
    B, C, H, W = x_nchw.shape
    Ca = math.ceil(C / 2)
    HW = H * W
    n_hidden = len(hidden_channels)
    mm_dtype = jnp.bfloat16 if use_bf16_matmul else jnp.float32
    mm_bytes = 2 if use_bf16_matmul else 4

    x4 = x_nchw.astype(jnp.float32)
    x3 = x4.reshape(B, C, HW)                      # channel-major, no pad/transpose
    a_lo, a_hi = (Ca, C) if mask_swap else (0, Ca)
    b_lo, b_hi = (0, Ca) if mask_swap else (Ca, C)
    in_a_cm = x3[:, a_lo:a_hi]                     # untouched half, channel-major
    in_b_cm = x3[:, b_lo:b_hi]                     # coupled half, channel-major
    in_a_nhwc = jnp.transpose(x4[:, a_lo:a_hi], (0, 2, 3, 1))  # conv staging view

    args = [in_a_cm, in_a_nhwc, in_b_cm]
    for i in range(n_hidden):
        w, b, g, be = params[i]
        cin, cout = w.shape[2], w.shape[3]
        args += [w.reshape(9 * cin, cout).astype(mm_dtype), b, g, be]
    wl, bl = params[-1][0], params[-1][1]
    args += [wl.reshape(9 * wl.shape[2], wl.shape[3]).astype(mm_dtype), bl]

    est = _vmem_bytes_estimate(B, C, H, W, hidden_channels, mm_bytes)
    if est > 40 * 2 ** 20:
        # TODO(synk): spatial tiling (grid over row-tiles with a halo + two-pass
        # BatchNorm statistics) for shapes whose working set exceeds VMEM.
        raise ValueError(
            f"AffineCoupling working set (~{est / 2**20:.1f} MiB) exceeds the "
            "single-invocation VMEM budget; spatial tiling required.")
    vmem_limit = int(max(32 * 2 ** 20, min(2 * est, 64 * 2 ** 20)))

    kernel = functools.partial(_affine_coupling_kernel, n_hidden, mask_swap,
                               H, W, mm_dtype)
    vmem = pl.BlockSpec(memory_space=pltpu.MemorySpace.VMEM)
    scratch = [pltpu.VMEM((B, H + 2, W + 2, a_hi - a_lo), jnp.float32)]
    scratch += [pltpu.VMEM((B, H + 2, W + 2, hc), jnp.float32)
                for hc in hidden_channels]

    out, logdet = pl.pallas_call(
        kernel,
        out_shape=(jax.ShapeDtypeStruct((B, C, HW), jnp.float32),
                   jax.ShapeDtypeStruct((B, 1), jnp.float32)),
        in_specs=[vmem] * len(args),
        out_specs=(vmem, vmem),
        scratch_shapes=scratch,
        compiler_params=pltpu.CompilerParams(vmem_limit_bytes=vmem_limit),
    )(*args)

    return out.reshape(B, C, H, W), logdet[:, 0]


def init_params(key, in_channel, hidden_channels, affine=True):
    """Deterministic parameter init (Conv2d 3x3 weights/biases, BN gamma/beta)."""
    Ca = math.ceil(in_channel / 2)
    vh = tuple(hidden_channels) + ((in_channel,) if affine else (Ca,))
    params = []
    last = Ca
    for h in vh:
        key, k1, k2 = jax.random.split(key, 3)
        fan_in = last * 9
        w = jax.random.normal(k1, (3, 3, last, h), jnp.float32) / math.sqrt(fan_in)
        b = 0.01 * jax.random.normal(k2, (1, h), jnp.float32)
        gamma = jnp.ones((1, h), jnp.float32)
        beta = jnp.zeros((1, h), jnp.float32)
        params.append((w, b, gamma, beta))
        last = h
    return params


def reference_forward(x_nchw, params, hidden_channels, mask_swap=False):
    """Pure-JAX reference mirroring the PyTorch forward (NCHW)."""
    B, C, H, W = x_nchw.shape
    Ca = math.ceil(C / 2)
    in_a, in_b = x_nchw[:, :Ca], x_nchw[:, Ca:]
    if mask_swap:
        in_a, in_b = in_b, in_a
    h = in_a
    for i in range(len(hidden_channels)):
        w, b, g, be = params[i]
        h = jax.lax.conv_general_dilated(
            h, w, (1, 1), 'SAME',
            dimension_numbers=('NCHW', 'HWIO', 'NCHW')) + b.reshape(1, -1, 1, 1)
        mean = jnp.mean(h, axis=(0, 2, 3), keepdims=True)
        var = jnp.mean((h - mean) ** 2, axis=(0, 2, 3), keepdims=True)
        h = (h - mean) * jax.lax.rsqrt(var + 1e-5) * g.reshape(1, -1, 1, 1) \
            + be.reshape(1, -1, 1, 1)
        h = jnp.maximum(h, 0.0)
    w, b = params[-1][0], params[-1][1]
    h = jax.lax.conv_general_dilated(
        h, w, (1, 1), 'SAME',
        dimension_numbers=('NCHW', 'HWIO', 'NCHW')) + b.reshape(1, -1, 1, 1)
    log_s, t = h[:, :Ca], h[:, Ca:]
    s = jax.nn.sigmoid(log_s)
    out_b = (in_b + t) * s
    logdet = jnp.sum(jnp.log(jnp.abs(s)).reshape(B, -1), axis=1)
    if mask_swap:
        res = jnp.concatenate([out_b, in_a], axis=1)
    else:
        res = jnp.concatenate([in_a, out_b], axis=1)
    return res, logdet


if __name__ == "__main__":
    B, C, H, W = 2, 4, 16, 16
    hidden_channels = (32,)

    key = jax.random.PRNGKey(0)
    kx, kp = jax.random.split(key)
    x = jax.random.normal(kx, (B, C, H, W), jnp.float32)
    params = init_params(kp, C, hidden_channels, affine=True)

    # f32 path (both mask_swap branches), strict tolerance.
    for swap in (False, True):
        out, logdet = affine_coupling_forward(x, params, hidden_channels,
                                              mask_swap=swap)
        out = jax.block_until_ready(out)
        logdet = jax.block_until_ready(logdet)
        ref_out, ref_ld = reference_forward(x, params, hidden_channels,
                                            mask_swap=swap)
        assert out.shape == (B, C, H, W) and logdet.shape == (B,)
        assert jnp.max(jnp.abs(out - ref_out)) < 1e-3, f"output mismatch swap={swap}"
        assert jnp.max(jnp.abs(logdet - ref_ld)) < 5e-3, f"logdet mismatch swap={swap}"

    # bf16 matmul-operand path (v6e/v7x MXU fast path), looser tolerance.
    out16, ld16 = affine_coupling_forward(x, params, hidden_channels,
                                          mask_swap=False, use_bf16_matmul=True)
    out16 = jax.block_until_ready(out16)
    ld16 = jax.block_until_ready(ld16)
    ref_out, ref_ld = reference_forward(x, params, hidden_channels,
                                        mask_swap=False)
    assert jnp.max(jnp.abs(out16 - ref_out)) < 1e-1, "bf16 output mismatch"
    assert (jnp.max(jnp.abs(ld16 - ref_ld))
            / (jnp.max(jnp.abs(ref_ld)) + 1.0)) < 5e-2, "bf16 logdet mismatch"

    print("KERNEL_OK")
</pallas_src>

<mosaic_0001>
module attributes {stable_mosaic.version = 11 : i64} {
  func.func @_affine_coupling_kernel(%arg0: memref<2x2x256xf32, #tpu.memory_space<vmem>>, %arg1: memref<2x16x16x2xf32, #tpu.memory_space<vmem>>, %arg2: memref<2x2x256xf32, #tpu.memory_space<vmem>>, %arg3: memref<18x32xf32, #tpu.memory_space<vmem>>, %arg4: memref<1x32xf32, #tpu.memory_space<vmem>>, %arg5: memref<1x32xf32, #tpu.memory_space<vmem>>, %arg6: memref<1x32xf32, #tpu.memory_space<vmem>>, %arg7: memref<288x4xf32, #tpu.memory_space<vmem>>, %arg8: memref<1x4xf32, #tpu.memory_space<vmem>>, %arg9: memref<2x4x256xf32, #tpu.memory_space<vmem>>, %arg10: memref<2x1xf32, #tpu.memory_space<vmem>>, %arg11: memref<2x18x18x2xf32, #tpu.memory_space<vmem>>, %arg12: memref<2x18x18x32xf32, #tpu.memory_space<vmem>>) attributes {dimension_semantics = [], scalar_prefetch = 0 : i64, scratch_operands = 2 : i64, tpu.core_type = #tpu.core_type<tc>} {
    %c0 = arith.constant 0 : index
    %c0_0 = arith.constant 0 : index
    %c0_1 = arith.constant 0 : index
    %c0_2 = arith.constant 0 : index
    %0 = vector.load %arg1[%c0, %c0_0, %c0_1, %c0_2] : memref<2x16x16x2xf32, #tpu.memory_space<vmem>>, vector<2x16x16x2xf32>
    %cst = arith.constant 0.000000e+00 : f32
    %1 = vector.broadcast %cst : f32 to vector<2x1x18x2xf32>
    %cst_3 = arith.constant 0.000000e+00 : f32
    %2 = vector.broadcast %cst_3 : f32 to vector<2x18x1x2xf32>
    %c0_4 = arith.constant 0 : index
    %c0_5 = arith.constant 0 : index
    %c0_6 = arith.constant 0 : index
    %c0_7 = arith.constant 0 : index
    %3 = vector.load %arg11[%c0_4, %c0_5, %c0_6, %c0_7] : memref<2x18x18x2xf32, #tpu.memory_space<vmem>>, vector<2x1x18x2xf32>
    tpu.vector_store %arg11[%c0_4, %c0_5, %c0_6, %c0_7], %1 {strides = array<i32>} : memref<2x18x18x2xf32, #tpu.memory_space<vmem>>, vector<2x1x18x2xf32>,
    %c0_8 = arith.constant 0 : index
    %c17 = arith.constant 17 : index
    %c0_9 = arith.constant 0 : index
    %c0_10 = arith.constant 0 : index
    %4 = vector.load %arg11[%c0_8, %c17, %c0_9, %c0_10] : memref<2x18x18x2xf32, #tpu.memory_space<vmem>>, vector<2x1x18x2xf32>
    tpu.vector_store %arg11[%c0_8, %c17, %c0_9, %c0_10], %1 {strides = array<i32>} : memref<2x18x18x2xf32, #tpu.memory_space<vmem>>, vector<2x1x18x2xf32>,
    %c0_11 = arith.constant 0 : index
    %c0_12 = arith.constant 0 : index
    %c0_13 = arith.constant 0 : index
    %c0_14 = arith.constant 0 : index
    %5 = vector.load %arg11[%c0_11, %c0_12, %c0_13, %c0_14] : memref<2x18x18x2xf32, #tpu.memory_space<vmem>>, vector<2x18x1x2xf32>
    tpu.vector_store %arg11[%c0_11, %c0_12, %c0_13, %c0_14], %2 {strides = array<i32>} : memref<2x18x18x2xf32, #tpu.memory_space<vmem>>, vector<2x18x1x2xf32>,
    %c0_15 = arith.constant 0 : index
    %c0_16 = arith.constant 0 : index
    %c17_17 = arith.constant 17 : index
    %c0_18 = arith.constant 0 : index
    %6 = vector.load %arg11[%c0_15, %c0_16, %c17_17, %c0_18] : memref<2x18x18x2xf32, #tpu.memory_space<vmem>>, vector<2x18x1x2xf32>
    tpu.vector_store %arg11[%c0_15, %c0_16, %c17_17, %c0_18], %2 {strides = array<i32>} : memref<2x18x18x2xf32, #tpu.memory_space<vmem>>, vector<2x18x1x2xf32>,
    %c0_19 = arith.constant 0 : index
    %c1 = arith.constant 1 : index
    %c1_20 = arith.constant 1 : index
    %c0_21 = arith.constant 0 : index
    %7 = vector.load %arg11[%c0_19, %c1, %c1_20, %c0_21] : memref<2x18x18x2xf32, #tpu.memory_space<vmem>>, vector<2x16x16x2xf32>
    tpu.vector_store %arg11[%c0_19, %c1, %c1_20, %c0_21], %0 {strides = array<i32>} : memref<2x18x18x2xf32, #tpu.memory_space<vmem>>, vector<2x16x16x2xf32>,
    %c0_22 = arith.constant 0 : index
    %c0_23 = arith.constant 0 : index
    %c0_24 = arith.constant 0 : index
    %c0_25 = arith.constant 0 : index
    %8 = vector.load %arg11[%c0_22, %c0_23, %c0_24, %c0_25] : memref<2x18x18x2xf32, #tpu.memory_space<vmem>>, vector<2x16x16x2xf32>
    %9 = vector.shape_cast %8 : vector<2x16x16x2xf32> to vector<512x2xf32>
    %c0_26 = arith.constant 0 : index
    %c0_27 = arith.constant 0 : index
    %c1_28 = arith.constant 1 : index
    %c0_29 = arith.constant 0 : index
    %10 = vector.load %arg11[%c0_26, %c0_27, %c1_28, %c0_29] : memref<2x18x18x2xf32, #tpu.memory_space<vmem>>, vector<2x16x16x2xf32>
    %11 = vector.shape_cast %10 : vector<2x16x16x2xf32> to vector<512x2xf32>
    %c0_30 = arith.constant 0 : index
    %c0_31 = arith.constant 0 : index
    %c2 = arith.constant 2 : index
    %c0_32 = arith.constant 0 : index
    %12 = vector.load %arg11[%c0_30, %c0_31, %c2, %c0_32] : memref<2x18x18x2xf32, #tpu.memory_space<vmem>>, vector<2x16x16x2xf32>
    %13 = vector.shape_cast %12 : vector<2x16x16x2xf32> to vector<512x2xf32>
    %c0_33 = arith.constant 0 : index
    %c1_34 = arith.constant 1 : index
    %c0_35 = arith.constant 0 : index
    %c0_36 = arith.constant 0 : index
    %14 = vector.load %arg11[%c0_33, %c1_34, %c0_35, %c0_36] : memref<2x18x18x2xf32, #tpu.memory_space<vmem>>, vector<2x16x16x2xf32>
    %15 = vector.shape_cast %14 : vector<2x16x16x2xf32> to vector<512x2xf32>
    %c0_37 = arith.constant 0 : index
    %c1_38 = arith.constant 1 : index
    %c1_39 = arith.constant 1 : index
    %c0_40 = arith.constant 0 : index
    %16 = vector.load %arg11[%c0_37, %c1_38, %c1_39, %c0_40] : memref<2x18x18x2xf32, #tpu.memory_space<vmem>>, vector<2x16x16x2xf32>
    %17 = vector.shape_cast %16 : vector<2x16x16x2xf32> to vector<512x2xf32>
    %c0_41 = arith.constant 0 : index
    %c1_42 = arith.constant 1 : index
    %c2_43 = arith.constant 2 : index
    %c0_44 = arith.constant 0 : index
    %18 = vector.load %arg11[%c0_41, %c1_42, %c2_43, %c0_44] : memref<2x18x18x2xf32, #tpu.memory_space<vmem>>, vector<2x16x16x2xf32>
    %19 = vector.shape_cast %18 : vector<2x16x16x2xf32> to vector<512x2xf32>
    %c0_45 = arith.constant 0 : index
    %c2_46 = arith.constant 2 : index
    %c0_47 = arith.constant 0 : index
    %c0_48 = arith.constant 0 : index
    %20 = vector.load %arg11[%c0_45, %c2_46, %c0_47, %c0_48] : memref<2x18x18x2xf32, #tpu.memory_space<vmem>>, vector<2x16x16x2xf32>
    %21 = vector.shape_cast %20 : vector<2x16x16x2xf32> to vector<512x2xf32>
    %c0_49 = arith.constant 0 : index
    %c2_50 = arith.constant 2 : index
    %c1_51 = arith.constant 1 : index
    %c0_52 = arith.constant 0 : index
    %22 = vector.load %arg11[%c0_49, %c2_50, %c1_51, %c0_52] : memref<2x18x18x2xf32, #tpu.memory_space<vmem>>, vector<2x16x16x2xf32>
    %23 = vector.shape_cast %22 : vector<2x16x16x2xf32> to vector<512x2xf32>
    %c0_53 = arith.constant 0 : index
    %c2_54 = arith.constant 2 : index
    %c2_55 = arith.constant 2 : index
    %c0_56 = arith.constant 0 : index
    %24 = vector.load %arg11[%c0_53, %c2_54, %c2_55, %c0_56] : memref<2x18x18x2xf32, #tpu.memory_space<vmem>>, vector<2x16x16x2xf32>
    %25 = vector.shape_cast %24 : vector<2x16x16x2xf32> to vector<512x2xf32>
    %26 = tpu.concatenate %9, %11, %13, %15, %17, %19, %21, %23, %25 in 1 : vector<512x2xf32>, vector<512x2xf32>, vector<512x2xf32>, vector<512x2xf32>, vector<512x2xf32>, vector<512x2xf32>, vector<512x2xf32>, vector<512x2xf32>, vector<512x2xf32> -> vector<512x18xf32>
    %c0_57 = arith.constant 0 : index
    %c0_58 = arith.constant 0 : index
    %27 = vector.load %arg3[%c0_57, %c0_58] : memref<18x32xf32, #tpu.memory_space<vmem>>, vector<18x32xf32>
    %cst_59 = arith.constant dense<0.000000e+00> : vector<512x32xf32>
    %28 = tpu.matmul %26, %27, %cst_59 {dimension_numbers = #tpu.dot_dimension_numbers<[1], [0], [0], [1], [0, 0, 1, 1], [], []>} : vector<512x18xf32>, vector<18x32xf32>, vector<512x32xf32> -> vector<512x32xf32>
    %c0_60 = arith.constant 0 : index
    %c0_61 = arith.constant 0 : index
    %29 = vector.load %arg4[%c0_60, %c0_61] : memref<1x32xf32, #tpu.memory_space<vmem>>, vector<1x32xf32>
    %30 = vector.broadcast %29 : vector<1x32xf32> to vector<512x32xf32>
    %31 = arith.addf %28, %30 : vector<512x32xf32>
    %cst_62 = arith.constant dense<0.000000e+00> : vector<32xf32>
    %32 = vector.multi_reduction <add>, %31, %cst_62 [0] : vector<512x32xf32> to vector<32xf32>
    %33 = vector.shape_cast %32 : vector<32xf32> to vector<1x32xf32>
    %cst_63 = arith.constant 0.001953125 : f32
    %34 = vector.broadcast %cst_63 : f32 to vector<1x32xf32>
    %35 = arith.mulf %33, %34 : vector<1x32xf32>
    %36 = arith.mulf %31, %31 : vector<512x32xf32>
    %cst_64 = arith.constant dense<0.000000e+00> : vector<32xf32>
    %37 = vector.multi_reduction <add>, %36, %cst_64 [0] : vector<512x32xf32> to vector<32xf32>
    %38 = vector.shape_cast %37 : vector<32xf32> to vector<1x32xf32>
    %cst_65 = arith.constant 0.001953125 : f32
    %39 = vector.broadcast %cst_65 : f32 to vector<1x32xf32>
    %40 = arith.mulf %38, %39 : vector<1x32xf32>
    %41 = arith.mulf %35, %35 : vector<1x32xf32>
    %42 = arith.subf %40, %41 : vector<1x32xf32>
    %c0_66 = arith.constant 0 : index
    %c0_67 = arith.constant 0 : index
    %43 = vector.load %arg5[%c0_66, %c0_67] : memref<1x32xf32, #tpu.memory_space<vmem>>, vector<1x32xf32>
    %cst_68 = arith.constant 9.99999974E-6 : f32
    %44 = vector.broadcast %cst_68 : f32 to vector<1x32xf32>
    %45 = arith.addf %42, %44 : vector<1x32xf32>
    %46 = math.rsqrt %45 : vector<1x32xf32>
    %47 = arith.mulf %43, %46 : vector<1x32xf32>
    %c0_69 = arith.constant 0 : index
    %c0_70 = arith.constant 0 : index
    %48 = vector.load %arg6[%c0_69, %c0_70] : memref<1x32xf32, #tpu.memory_space<vmem>>, vector<1x32xf32>
    %49 = arith.mulf %35, %47 : vector<1x32xf32>
    %50 = arith.subf %48, %49 : vector<1x32xf32>
    %51 = vector.broadcast %47 : vector<1x32xf32> to vector<512x32xf32>
    %52 = arith.mulf %31, %51 : vector<512x32xf32>
    %53 = vector.broadcast %50 : vector<1x32xf32> to vector<512x32xf32>
    %54 = arith.addf %52, %53 : vector<512x32xf32>
    %cst_71 = arith.constant 0.000000e+00 : f32
    %55 = vector.broadcast %cst_71 : f32 to vector<512x32xf32>
    %56 = arith.maximumf %54, %55 : vector<512x32xf32>
    %57 = vector.shape_cast %56 : vector<512x32xf32> to vector<2x16x16x32xf32>
    %cst_72 = arith.constant 0.000000e+00 : f32
    %58 = vector.broadcast %cst_72 : f32 to vector<2x1x18x32xf32>
    %cst_73 = arith.constant 0.000000e+00 : f32
    %59 = vector.broadcast %cst_73 : f32 to vector<2x18x1x32xf32>
    %c0_74 = arith.constant 0 : index
    %c0_75 = arith.constant 0 : index
    %c0_76 = arith.constant 0 : index
    %c0_77 = arith.constant 0 : index
    %60 = vector.load %arg12[%c0_74, %c0_75, %c0_76, %c0_77] : memref<2x18x18x32xf32, #tpu.memory_space<vmem>>, vector<2x1x18x32xf32>
    tpu.vector_store %arg12[%c0_74, %c0_75, %c0_76, %c0_77], %58 {strides = array<i32>} : memref<2x18x18x32xf32, #tpu.memory_space<vmem>>, vector<2x1x18x32xf32>,
    %c0_78 = arith.constant 0 : index
    %c17_79 = arith.constant 17 : index
    %c0_80 = arith.constant 0 : index
    %c0_81 = arith.constant 0 : index
    %61 = vector.load %arg12[%c0_78, %c17_79, %c0_80, %c0_81] : memref<2x18x18x32xf32, #tpu.memory_space<vmem>>, vector<2x1x18x32xf32>
    tpu.vector_store %arg12[%c0_78, %c17_79, %c0_80, %c0_81], %58 {strides = array<i32>} : memref<2x18x18x32xf32, #tpu.memory_space<vmem>>, vector<2x1x18x32xf32>,
    %c0_82 = arith.constant 0 : index
    %c0_83 = arith.constant 0 : index
    %c0_84 = arith.constant 0 : index
    %c0_85 = arith.constant 0 : index
    %62 = vector.load %arg12[%c0_82, %c0_83, %c0_84, %c0_85] : memref<2x18x18x32xf32, #tpu.memory_space<vmem>>, vector<2x18x1x32xf32>
    tpu.vector_store %arg12[%c0_82, %c0_83, %c0_84, %c0_85], %59 {strides = array<i32>} : memref<2x18x18x32xf32, #tpu.memory_space<vmem>>, vector<2x18x1x32xf32>,
    %c0_86 = arith.constant 0 : index
    %c0_87 = arith.constant 0 : index
    %c17_88 = arith.constant 17 : index
    %c0_89 = arith.constant 0 : index
    %63 = vector.load %arg12[%c0_86, %c0_87, %c17_88, %c0_89] : memref<2x18x18x32xf32, #tpu.memory_space<vmem>>, vector<2x18x1x32xf32>
    tpu.vector_store %arg12[%c0_86, %c0_87, %c17_88, %c0_89], %59 {strides = array<i32>} : memref<2x18x18x32xf32, #tpu.memory_space<vmem>>, vector<2x18x1x32xf32>,
    %c0_90 = arith.constant 0 : index
    %c1_91 = arith.constant 1 : index
    %c1_92 = arith.constant 1 : index
    %c0_93 = arith.constant 0 : index
    %64 = vector.load %arg12[%c0_90, %c1_91, %c1_92, %c0_93] : memref<2x18x18x32xf32, #tpu.memory_space<vmem>>, vector<2x16x16x32xf32>
    tpu.vector_store %arg12[%c0_90, %c1_91, %c1_92, %c0_93], %57 {strides = array<i32>} : memref<2x18x18x32xf32, #tpu.memory_space<vmem>>, vector<2x16x16x32xf32>,
    %c0_94 = arith.constant 0 : index
    %c0_95 = arith.constant 0 : index
    %c0_96 = arith.constant 0 : index
    %c0_97 = arith.constant 0 : index
    %65 = vector.load %arg12[%c0_94, %c0_95, %c0_96, %c0_97] : memref<2x18x18x32xf32, #tpu.memory_space<vmem>>, vector<2x16x16x32xf32>
    %66 = vector.shape_cast %65 : vector<2x16x16x32xf32> to vector<512x32xf32>
    %c0_98 = arith.constant 0 : index
    %c0_99 = arith.constant 0 : index
    %c1_100 = arith.constant 1 : index
    %c0_101 = arith.constant 0 : index
    %67 = vector.load %arg12[%c0_98, %c0_99, %c1_100, %c0_101] : memref<2x18x18x32xf32, #tpu.memory_space<vmem>>, vector<2x16x16x32xf32>
    %68 = vector.shape_cast %67 : vector<2x16x16x32xf32> to vector<512x32xf32>
    %c0_102 = arith.constant 0 : index
    %c0_103 = arith.constant 0 : index
    %c2_104 = arith.constant 2 : index
    %c0_105 = arith.constant 0 : index
    %69 = vector.load %arg12[%c0_102, %c0_103, %c2_104, %c0_105] : memref<2x18x18x32xf32, #tpu.memory_space<vmem>>, vector<2x16x16x32xf32>
    %70 = vector.shape_cast %69 : vector<2x16x16x32xf32> to vector<512x32xf32>
    %c0_106 = arith.constant 0 : index
    %c1_107 = arith.constant 1 : index
    %c0_108 = arith.constant 0 : index
    %c0_109 = arith.constant 0 : index
    %71 = vector.load %arg12[%c0_106, %c1_107, %c0_108, %c0_109] : memref<2x18x18x32xf32, #tpu.memory_space<vmem>>, vector<2x16x16x32xf32>
    %72 = vector.shape_cast %71 : vector<2x16x16x32xf32> to vector<512x32xf32>
    %c0_110 = arith.constant 0 : index
    %c1_111 = arith.constant 1 : index
    %c1_112 = arith.constant 1 : index
    %c0_113 = arith.constant 0 : index
    %73 = vector.load %arg12[%c0_110, %c1_111, %c1_112, %c0_113] : memref<2x18x18x32xf32, #tpu.memory_space<vmem>>, vector<2x16x16x32xf32>
    %74 = vector.shape_cast %73 : vector<2x16x16x32xf32> to vector<512x32xf32>
    %c0_114 = arith.constant 0 : index
    %c1_115 = arith.constant 1 : index
    %c2_116 = arith.constant 2 : index
    %c0_117 = arith.constant 0 : index
    %75 = vector.load %arg12[%c0_114, %c1_115, %c2_116, %c0_117] : memref<2x18x18x32xf32, #tpu.memory_space<vmem>>, vector<2x16x16x32xf32>
    %76 = vector.shape_cast %75 : vector<2x16x16x32xf32> to vector<512x32xf32>
    %c0_118 = arith.constant 0 : index
    %c2_119 = arith.constant 2 : index
    %c0_120 = arith.constant 0 : index
    %c0_121 = arith.constant 0 : index
    %77 = vector.load %arg12[%c0_118, %c2_119, %c0_120, %c0_121] : memref<2x18x18x32xf32, #tpu.memory_space<vmem>>, vector<2x16x16x32xf32>
    %78 = vector.shape_cast %77 : vector<2x16x16x32xf32> to vector<512x32xf32>
    %c0_122 = arith.constant 0 : index
    %c2_123 = arith.constant 2 : index
    %c1_124 = arith.constant 1 : index
    %c0_125 = arith.constant 0 : index
    %79 = vector.load %arg12[%c0_122, %c2_123, %c1_124, %c0_125] : memref<2x18x18x32xf32, #tpu.memory_space<vmem>>, vector<2x16x16x32xf32>
    %80 = vector.shape_cast %79 : vector<2x16x16x32xf32> to vector<512x32xf32>
    %c0_126 = arith.constant 0 : index
    %c2_127 = arith.constant 2 : index
    %c2_128 = arith.constant 2 : index
    %c0_129 = arith.constant 0 : index
    %81 = vector.load %arg12[%c0_126, %c2_127, %c2_128, %c0_129] : memref<2x18x18x32xf32, #tpu.memory_space<vmem>>, vector<2x16x16x32xf32>
    %82 = vector.shape_cast %81 : vector<2x16x16x32xf32> to vector<512x32xf32>
    %83 = tpu.concatenate %66, %68, %70, %72, %74, %76, %78, %80, %82 in 1 : vector<512x32xf32>, vector<512x32xf32>, vector<512x32xf32>, vector<512x32xf32>, vector<512x32xf32>, vector<512x32xf32>, vector<512x32xf32>, vector<512x32xf32>, vector<512x32xf32> -> vector<512x288xf32>
    %c0_130 = arith.constant 0 : index
    %c0_131 = arith.constant 0 : index
    %84 = vector.load %arg7[%c0_130, %c0_131] : memref<288x4xf32, #tpu.memory_space<vmem>>, vector<288x4xf32>
    %cst_132 = arith.constant dense<0.000000e+00> : vector<512x4xf32>
    %85 = tpu.matmul %83, %84, %cst_132 {dimension_numbers = #tpu.dot_dimension_numbers<[1], [0], [0], [1], [0, 0, 1, 1], [], []>} : vector<512x288xf32>, vector<288x4xf32>, vector<512x4xf32> -> vector<512x4xf32>
    %c0_133 = arith.constant 0 : index
    %c0_134 = arith.constant 0 : index
    %86 = vector.load %arg8[%c0_133, %c0_134] : memref<1x4xf32, #tpu.memory_space<vmem>>, vector<1x4xf32>
    %87 = vector.broadcast %86 : vector<1x4xf32> to vector<512x4xf32>
    %88 = arith.addf %85, %87 : vector<512x4xf32>
    %89 = vector.shape_cast %88 : vector<512x4xf32> to vector<2x256x4xf32>
    %90 = tpu.transpose %89, [0, 2, 1] : vector<2x256x4xf32> -> vector<2x4x256xf32>
    %91 = vector.extract_strided_slice %90 {offsets = [0, 0, 0], sizes = [2, 2, 256], strides = [1, 1, 1]} : vector<2x4x256xf32> to vector<2x2x256xf32>
    %92 = vector.extract_strided_slice %90 {offsets = [0, 2, 0], sizes = [2, 2, 256], strides = [1, 1, 1]} : vector<2x4x256xf32> to vector<2x2x256xf32>
    %93 = arith.negf %91 : vector<2x2x256xf32>
    %94 = math.exp %93 : vector<2x2x256xf32>
    %cst_135 = arith.constant 1.000000e+00 : f32
    %95 = vector.broadcast %cst_135 : f32 to vector<2x2x256xf32>
    %96 = arith.addf %95, %94 : vector<2x2x256xf32>
    %97 = arith.divf %95, %96 : vector<2x2x256xf32>
    %c0_136 = arith.constant 0 : index
    %c0_137 = arith.constant 0 : index
    %c0_138 = arith.constant 0 : index
    %98 = vector.load %arg2[%c0_136, %c0_137, %c0_138] : memref<2x2x256xf32, #tpu.memory_space<vmem>>, vector<2x2x256xf32>
    %99 = arith.addf %98, %92 : vector<2x2x256xf32>
    %100 = arith.mulf %99, %97 : vector<2x2x256xf32>
    %c0_139 = arith.constant 0 : index
    %c0_140 = arith.constant 0 : index
    %c0_141 = arith.constant 0 : index
    %101 = vector.load %arg0[%c0_139, %c0_140, %c0_141] : memref<2x2x256xf32, #tpu.memory_space<vmem>>, vector<2x2x256xf32>
    %c0_142 = arith.constant 0 : index
    %c0_143 = arith.constant 0 : index
    %c0_144 = arith.constant 0 : index
    %102 = vector.load %arg9[%c0_142, %c0_143, %c0_144] : memref<2x4x256xf32, #tpu.memory_space<vmem>>, vector<2x2x256xf32>
    tpu.vector_store %arg9[%c0_142, %c0_143, %c0_144], %101 {strides = array<i32>} : memref<2x4x256xf32, #tpu.memory_space<vmem>>, vector<2x2x256xf32>,
    %c0_145 = arith.constant 0 : index
    %c2_146 = arith.constant 2 : index
    %c0_147 = arith.constant 0 : index
    %103 = vector.load %arg9[%c0_145, %c2_146, %c0_147] : memref<2x4x256xf32, #tpu.memory_space<vmem>>, vector<2x2x256xf32>
    tpu.vector_store %arg9[%c0_145, %c2_146, %c0_147], %100 {strides = array<i32>} : memref<2x4x256xf32, #tpu.memory_space<vmem>>, vector<2x2x256xf32>,
    %cst_148 = arith.constant 0.000000e+00 : f32
    %104 = vector.broadcast %cst_148 : f32 to vector<2x2x256xf32>
    %105 = arith.subf %104, %91 : vector<2x2x256xf32>
    %cst_149 = arith.constant 0.000000e+00 : f32
    %106 = vector.broadcast %cst_149 : f32 to vector<2x2x256xf32>
    %107 = arith.maximumf %105, %106 : vector<2x2x256xf32>
    %108 = math.absf %91 : vector<2x2x256xf32>
    %cst_150 = arith.constant 0.000000e+00 : f32
    %109 = vector.broadcast %cst_150 : f32 to vector<2x2x256xf32>
    %110 = arith.subf %109, %108 : vector<2x2x256xf32>
    %111 = math.exp %110 : vector<2x2x256xf32>
    %cst_151 = arith.constant 1.000000e+00 : f32
    %112 = vector.broadcast %cst_151 : f32 to vector<2x2x256xf32>
    %113 = arith.addf %112, %111 : vector<2x2x256xf32>
    %114 = math.log %113 : vector<2x2x256xf32>
    %115 = arith.addf %107, %114 : vector<2x2x256xf32>
    %cst_152 = arith.constant 0.000000e+00 : f32
    %116 = vector.broadcast %cst_152 : f32 to vector<2x2x256xf32>
    %117 = arith.subf %116, %115 : vector<2x2x256xf32>
    %cst_153 = arith.constant dense<0.000000e+00> : vector<2x2xf32>
    %118 = vector.multi_reduction <add>, %117, %cst_153 [2] : vector<2x2x256xf32> to vector<2x2xf32>
    %cst_154 = arith.constant dense<0.000000e+00> : vector<2xf32>
    %119 = vector.multi_reduction <add>, %118, %cst_154 [1] : vector<2x2xf32> to vector<2xf32>
    %120 = vector.shape_cast %119 : vector<2xf32> to vector<2x1xf32>
    %c0_155 = arith.constant 0 : index
    %c0_156 = arith.constant 0 : index
    %121 = vector.load %arg10[%c0_155, %c0_156] : memref<2x1xf32, #tpu.memory_space<vmem>>, vector<2x1xf32>
    tpu.vector_store %arg10[%c0_155, %c0_156], %120 {strides = array<i32>} : memref<2x1xf32, #tpu.memory_space<vmem>>, vector<2x1xf32>,
    return
  }
}

</mosaic_0001>

<llo_original>
// kernel: tpu_custom_call.1
$region0: #{tpu_custom_call.1}
  #allocation0 [shape = 'u32[]', space=smem, size = 0x4, offset = 0x4, fixed_abs, tag = 'smem constant byte address 0x4 - core index']
  #allocation1 [shape = 'u32[144,128]{1,0:T(1,128)}', space=vmem, size = 0x12000, scoped, tag = 'internal scratch']
  #allocation2 [shape = 'f32[2,18,18,2]{3,2,1,0:T(8,128)}', space=vmem, size = 0x6c000, scoped, tag = 'scratch operand']
  #allocation3 [shape = 'f32[2,18,18,32]{3,2,1,0:T(8,128)}', space=vmem, size = 0x6c000, scoped, tag = 'scratch operand']
  %s0 = inlined_call_operand.vmem [shape: f32[2,2,256], index: 0, kind: input, shape index: {}]
  %s1 = inlined_call_operand.vmem [shape: f32[2,16,16,2], index: 1, kind: input, shape index: {}]
  %s2 = inlined_call_operand.vmem [shape: f32[2,2,256], index: 2, kind: input, shape index: {}]
  %s3 = inlined_call_operand.vmem [shape: f32[18,32], index: 3, kind: input, shape index: {}]
  %s4 = inlined_call_operand.vmem [shape: f32[1,32], index: 4, kind: input, shape index: {}]
  %s5 = inlined_call_operand.vmem [shape: f32[1,32], index: 5, kind: input, shape index: {}]
  %s6 = inlined_call_operand.vmem [shape: f32[1,32], index: 6, kind: input, shape index: {}]
  %s7 = inlined_call_operand.vmem [shape: f32[288,4], index: 7, kind: input, shape index: {}]
  %s8 = inlined_call_operand.vmem [shape: f32[1,4], index: 8, kind: input, shape index: {}]
  %s9 = inlined_call_operand.hbm [shape: f32[2,4,256], index: 9, kind: output, shape index: {0}]
  %s10 = inlined_call_operand.vmem [shape: f32[2,1], index: 10, kind: output, shape index: {1}]
  %11 = xla_tuple %s9, %s10
  %s12 = sld [smem:[#allocation0]]
  $region54: #{tpu_custom_call.1} parent=0
    _
  %s14 = ssub.s32 1, %s12
  %s15 = scalar_select 0, %s14, %s12
  $region1: #{tpu_custom_call.1} parent=0
    #allocation4 [shape = 'u8[8192]{0}', space=vmem, size = 0x2000, scoped, tag = 'output window, operand 0, single buffered']
    #allocation5 [shape = 's32[1]{0}', space=sflag, size = 0x4, scoped, tag = 'scoped memory for tpu_custom_call.1']
    %16 = vsyncpa [#allocation5], 0
    // Predicated region
    $region2: #{tpu_custom_call.1} parent=1 // pred_check
      _
    $region3: #{tpu_custom_call.1} parent=1 // pred_check_branch
      %18 = sbr.rel (0) target = $region5
    $region4: #{tpu_custom_call.1} parent=1 // pred_region
      _
    $region5: #{tpu_custom_call.1} parent=1 // pred_fallthru
      _
    // Predicated region
    $region6: #{tpu_custom_call.1} parent=1 // pred_check
      _
    $region7: #{tpu_custom_call.1} parent=1 // pred_check_branch
      %20 = sbr.rel (0) target = $region9
    $region8: #{tpu_custom_call.1} parent=1 // pred_region
      _
    $region9: #{tpu_custom_call.1} parent=1 // pred_fallthru
      _
    // Predicated region
    $region10: #{tpu_custom_call.1} parent=1 // pred_check
      _
    $region11: #{tpu_custom_call.1} parent=1 // pred_check_branch
      %22 = sbr.rel (0) target = $region13
    $region12: #{tpu_custom_call.1} parent=1 // pred_region
      _
    $region13: #{tpu_custom_call.1} parent=1 // pred_fallthru
      _
    // Predicated region
    $region14: #{tpu_custom_call.1} parent=1 // pred_check
      _
    $region15: #{tpu_custom_call.1} parent=1 // pred_check_branch
      %24 = sbr.rel (0) target = $region17
    $region16: #{tpu_custom_call.1} parent=1 // pred_region
      _
    $region17: #{tpu_custom_call.1} parent=1 // pred_fallthru
      _
    // Predicated region
    $region18: #{tpu_custom_call.1} parent=1 // pred_check
      _
    $region19: #{tpu_custom_call.1} parent=1 // pred_check_branch
      %26 = sbr.rel (0) target = $region21
    $region20: #{tpu_custom_call.1} parent=1 // pred_region
      _
    $region21: #{tpu_custom_call.1} parent=1 // pred_fallthru
      _
    // Predicated region
    $region22: #{tpu_custom_call.1} parent=1 // pred_check
      _
    $region23: #{tpu_custom_call.1} parent=1 // pred_check_branch
      %28 = sbr.rel (0) target = $region25
    $region24: #{tpu_custom_call.1} parent=1 // pred_region
      _
    $region25: #{tpu_custom_call.1} parent=1 // pred_fallthru
      _
    // Predicated region
    $region26: #{tpu_custom_call.1} parent=1 // pred_check
      _
    $region27: #{tpu_custom_call.1} parent=1 // pred_check_branch
      %30 = sbr.rel (0) target = $region29
    $region28: #{tpu_custom_call.1} parent=1 // pred_region
      _
    $region29: #{tpu_custom_call.1} parent=1 // pred_fallthru
      _
    // Predicated region
    $region30: #{tpu_custom_call.1} parent=1 // pred_check
      _
    $region31: #{tpu_custom_call.1} parent=1 // pred_check_branch
      %32 = sbr.rel (0) target = $region33
    $region32: #{tpu_custom_call.1} parent=1 // pred_region
      _
    $region33: #{tpu_custom_call.1} parent=1 // pred_fallthru
      _
    // Predicated region
    $region34: #{tpu_custom_call.1} parent=1 // pred_check
      _
    $region35: #{tpu_custom_call.1} parent=1 // pred_check_branch
      %34 = sbr.rel (0) target = $region37
    $region36: #{tpu_custom_call.1} parent=1 // pred_region
      _
    $region37: #{tpu_custom_call.1} parent=1 // pred_fallthru
      _
    %v35 = vld [vmem:[%s1] sm:$0xff]
    %v36 = vld [vmem:[%s1 + $0x8] sm:$0xff]
    %v37 = vld [vmem:[%s1 + $0x10] sm:$0xff]
    %v38 = vld [vmem:[%s1 + $0x18] sm:$0xff]
    %v39 = vld [vmem:[%s1 + $0x20] sm:$0xff]
    %v40 = vld [vmem:[%s1 + $0x28] sm:$0xff]
    %v41 = vld [vmem:[%s1 + $0x30] sm:$0xff]
    %v42 = vld [vmem:[%s1 + $0x38] sm:$0xff]
    %v43 = vld [vmem:[%s1 + $0x40] sm:$0xff]
    %v44 = vld [vmem:[%s1 + $0x48] sm:$0xff]
    %v45 = vld [vmem:[%s1 + $0x50] sm:$0xff]
    %v46 = vld [vmem:[%s1 + $0x58] sm:$0xff]
    %v47 = vld [vmem:[%s1 + $0x60] sm:$0xff]
    %v48 = vld [vmem:[%s1 + $0x68] sm:$0xff]
    %v49 = vld [vmem:[%s1 + $0x70] sm:$0xff]
    %v50 = vld [vmem:[%s1 + $0x78] sm:$0xff]
    %v51 = vld [vmem:[%s1 + $0x80] sm:$0xff]
    %v52 = vld [vmem:[%s1 + $0x88] sm:$0xff]
    %v53 = vld [vmem:[%s1 + $0x90] sm:$0xff]
    %v54 = vld [vmem:[%s1 + $0x98] sm:$0xff]
    %v55 = vld [vmem:[%s1 + $0xa0] sm:$0xff]
    %v56 = vld [vmem:[%s1 + $0xa8] sm:$0xff]
    %v57 = vld [vmem:[%s1 + $0xb0] sm:$0xff]
    %v58 = vld [vmem:[%s1 + $0xb8] sm:$0xff]
    %v59 = vld [vmem:[%s1 + $0xc0] sm:$0xff]
    %v60 = vld [vmem:[%s1 + $0xc8] sm:$0xff]
    %v61 = vld [vmem:[%s1 + $0xd0] sm:$0xff]
    %v62 = vld [vmem:[%s1 + $0xd8] sm:$0xff]
    %v63 = vld [vmem:[%s1 + $0xe0] sm:$0xff]
    %v64 = vld [vmem:[%s1 + $0xe8] sm:$0xff]
    %v65 = vld [vmem:[%s1 + $0xf0] sm:$0xff]
    %v66 = vld [vmem:[%s1 + $0xf8] sm:$0xff]
    %v67 = vld [vmem:[%s1 + $0x100] sm:$0xff]
    %v68 = vld [vmem:[%s1 + $0x108] sm:$0xff]
    %v69 = vld [vmem:[%s1 + $0x110] sm:$0xff]
    %v70 = vld [vmem:[%s1 + $0x118] sm:$0xff]
    %v71 = vld [vmem:[%s1 + $0x120] sm:$0xff]
    %v72 = vld [vmem:[%s1 + $0x128] sm:$0xff]
    %v73 = vld [vmem:[%s1 + $0x130] sm:$0xff]
    %v74 = vld [vmem:[%s1 + $0x138] sm:$0xff]
    %v75 = vld [vmem:[%s1 + $0x140] sm:$0xff]
    %v76 = vld [vmem:[%s1 + $0x148] sm:$0xff]
    %v77 = vld [vmem:[%s1 + $0x150] sm:$0xff]
    %v78 = vld [vmem:[%s1 + $0x158] sm:$0xff]
    %v79 = vld [vmem:[%s1 + $0x160] sm:$0xff]
    %v80 = vld [vmem:[%s1 + $0x168] sm:$0xff]
    %v81 = vld [vmem:[%s1 + $0x170] sm:$0xff]
    %v82 = vld [vmem:[%s1 + $0x178] sm:$0xff]
    %v83 = vld [vmem:[%s1 + $0x180] sm:$0xff]
    %v84 = vld [vmem:[%s1 + $0x188] sm:$0xff]
    %v85 = vld [vmem:[%s1 + $0x190] sm:$0xff]
    %v86 = vld [vmem:[%s1 + $0x198] sm:$0xff]
    %v87 = vld [vmem:[%s1 + $0x1a0] sm:$0xff]
    %v88 = vld [vmem:[%s1 + $0x1a8] sm:$0xff]
    %v89 = vld [vmem:[%s1 + $0x1b0] sm:$0xff]
    %v90 = vld [vmem:[%s1 + $0x1b8] sm:$0xff]
    %v91 = vld [vmem:[%s1 + $0x1c0] sm:$0xff]
    %v92 = vld [vmem:[%s1 + $0x1c8] sm:$0xff]
    %v93 = vld [vmem:[%s1 + $0x1d0] sm:$0xff]
    %v94 = vld [vmem:[%s1 + $0x1d8] sm:$0xff]
    %v95 = vld [vmem:[%s1 + $0x1e0] sm:$0xff]
    %v96 = vld [vmem:[%s1 + $0x1e8] sm:$0xff]
    %v97 = vld [vmem:[%s1 + $0x1f0] sm:$0xff]
    %v98 = vld [vmem:[%s1 + $0x1f8] sm:$0xff]
    %vm99 = vcmask 15360
    %100 = vst.msk [vmem:[#allocation2] sm:$0xff] %vm99, 0.0
    %101 = vst.msk [vmem:[#allocation2 + $0x8] sm:$0xff] %vm99, 0.0
    %vm102 = vcmask 9216
    %103 = vst.msk [vmem:[#allocation2 + $0x10] sm:$0x3] %vm102, 0.0
    %104 = vst.msk [vmem:[#allocation2 + $0x1b0] sm:$0xff] %vm99, 0.0
    %105 = vst.msk [vmem:[#allocation2 + $0x1b8] sm:$0xff] %vm99, 0.0
    %106 = vst.msk [vmem:[#allocation2 + $0x1c0] sm:$0x3] %vm102, 0.0
    %s107 = scalar_lea.vmem [#allocation2], 408
    %108 = vst.msk [vmem:[%s107] sm:$0xff] %vm99, 0.0
    %109 = vst.msk [vmem:[%s107 + $0x8] sm:$0xff] %vm99, 0.0
    %110 = vst.msk [vmem:[%s107 + $0x10] sm:$0x3] %vm102, 0.0
    %111 = vst.msk [vmem:[%s107 + $0x1b0] sm:$0xff] %vm99, 0.0
    %112 = vst.msk [vmem:[%s107 + $0x1b8] sm:$0xff] %vm99, 0.0
    %113 = vst.msk [vmem:[%s107 + $0x1c0] sm:$0x3] %vm102, 0.0
    %vm114 = vcmask 8192
    %115 = vst.msk [vmem:[#allocation2] sm:$0x1] %vm114, 0.0
    %116 = vst.msk [vmem:[#allocation2 + $0x18] sm:$0x1] %vm114, 0.0
    %117 = vst.msk [vmem:[#allocation2 + $0x30] sm:$0x1] %vm114, 0.0
    %118 = vst.msk [vmem:[#allocation2 + $0x48] sm:$0x1] %vm114, 0.0
    %119 = vst.msk [vmem:[#allocation2 + $0x60] sm:$0x1] %vm114, 0.0
    %120 = vst.msk [vmem:[#allocation2 + $0x78] sm:$0x1] %vm114, 0.0
    %121 = vst.msk [vmem:[#allocation2 + $0x90] sm:$0x1] %vm114, 0.0
    %122 = vst.msk [vmem:[#allocation2 + $0xa8] sm:$0x1] %vm114, 0.0
    %123 = vst.msk [vmem:[#allocation2 + $0xc0] sm:$0x1] %vm114, 0.0
    %124 = vst.msk [vmem:[#allocation2 + $0xd8] sm:$0x1] %vm114, 0.0
    %125 = vst.msk [vmem:[#allocation2 + $0xf0] sm:$0x1] %vm114, 0.0
    %126 = vst.msk [vmem:[#allocation2 + $0x108] sm:$0x1] %vm114, 0.0
    %127 = vst.msk [vmem:[#allocation2 + $0x120] sm:$0x1] %vm114, 0.0
    %128 = vst.msk [vmem:[#allocation2 + $0x138] sm:$0x1] %vm114, 0.0
    %129 = vst.msk [vmem:[#allocation2 + $0x150] sm:$0x1] %vm114, 0.0
    %130 = vst.msk [vmem:[#allocation2 + $0x168] sm:$0x1] %vm114, 0.0
    %131 = vst.msk [vmem:[#allocation2 + $0x180] sm:$0x1] %vm114, 0.0
    %132 = vst.msk [vmem:[#allocation2 + $0x198] sm:$0x1] %vm114, 0.0
    %133 = vst.msk [vmem:[#allocation2 + $0x1b0] sm:$0x1] %vm114, 0.0
    %134 = vst.msk [vmem:[#allocation2 + $0x1c8] sm:$0x1] %vm114, 0.0
    %135 = vst.msk [vmem:[#allocation2 + $0x1e0] sm:$0x1] %vm114, 0.0
    %136 = vst.msk [vmem:[#allocation2 + $0x1f8] sm:$0x1] %vm114, 0.0
    %137 = vst.msk [vmem:[#allocation2 + $0x210] sm:$0x1] %vm114, 0.0
    %138 = vst.msk [vmem:[#allocation2 + $0x228] sm:$0x1] %vm114, 0.0
    %139 = vst.msk [vmem:[#allocation2 + $0x240] sm:$0x1] %vm114, 0.0
    %140 = vst.msk [vmem:[#allocation2 + $0x258] sm:$0x1] %vm114, 0.0
    %141 = vst.msk [vmem:[#allocation2 + $0x270] sm:$0x1] %vm114, 0.0
    %142 = vst.msk [vmem:[#allocation2 + $0x288] sm:$0x1] %vm114, 0.0
    %143 = vst.msk [vmem:[#allocation2 + $0x2a0] sm:$0x1] %vm114, 0.0
    %144 = vst.msk [vmem:[#allocation2 + $0x2b8] sm:$0x1] %vm114, 0.0
    %145 = vst.msk [vmem:[#allocation2 + $0x2d0] sm:$0x1] %vm114, 0.0
    %146 = vst.msk [vmem:[#allocation2 + $0x2e8] sm:$0x1] %vm114, 0.0
    %147 = vst.msk [vmem:[#allocation2 + $0x300] sm:$0x1] %vm114, 0.0
    %148 = vst.msk [vmem:[#allocation2 + $0x318] sm:$0x1] %vm114, 0.0
    %149 = vst.msk [vmem:[#allocation2 + $0x330] sm:$0x1] %vm114, 0.0
    %150 = vst.msk [vmem:[#allocation2 + $0x348] sm:$0x1] %vm114, 0.0
    %151 = vst.msk [vmem:[#allocation2 + $0x11] sm:$0x1] %vm114, 0.0
    %152 = vst.msk [vmem:[#allocation2 + $0x29] sm:$0x1] %vm114, 0.0
    %153 = vst.msk [vmem:[#allocation2 + $0x41] sm:$0x1] %vm114, 0.0
    %154 = vst.msk [vmem:[#allocation2 + $0x59] sm:$0x1] %vm114, 0.0
    %155 = vst.msk [vmem:[#allocation2 + $0x71] sm:$0x1] %vm114, 0.0
    %156 = vst.msk [vmem:[#allocation2 + $0x89] sm:$0x1] %vm114, 0.0
    %157 = vst.msk [vmem:[#allocation2 + $0xa1] sm:$0x1] %vm114, 0.0
    %158 = vst.msk [vmem:[#allocation2 + $0xb9] sm:$0x1] %vm114, 0.0
    %159 = vst.msk [vmem:[#allocation2 + $0xd1] sm:$0x1] %vm114, 0.0
    %160 = vst.msk [vmem:[#allocation2 + $0xe9] sm:$0x1] %vm114, 0.0
    %161 = vst.msk [vmem:[#allocation2 + $0x101] sm:$0x1] %vm114, 0.0
    %162 = vst.msk [vmem:[#allocation2 + $0x119] sm:$0x1] %vm114, 0.0
    %163 = vst.msk [vmem:[#allocation2 + $0x131] sm:$0x1] %vm114, 0.0
    %164 = vst.msk [vmem:[#allocation2 + $0x149] sm:$0x1] %vm114, 0.0
    %165 = vst.msk [vmem:[#allocation2 + $0x161] sm:$0x1] %vm114, 0.0
    %166 = vst.msk [vmem:[#allocation2 + $0x179] sm:$0x1] %vm114, 0.0
    %167 = vst.msk [vmem:[#allocation2 + $0x191] sm:$0x1] %vm114, 0.0
    %168 = vst.msk [vmem:[#allocation2 + $0x1a9] sm:$0x1] %vm114, 0.0
    %169 = vst.msk [vmem:[#allocation2 + $0x1c1] sm:$0x1] %vm114, 0.0
    %170 = vst.msk [vmem:[#allocation2 + $0x1d9] sm:$0x1] %vm114, 0.0
    %171 = vst.msk [vmem:[#allocation2 + $0x1f1] sm:$0x1] %vm114, 0.0
    %172 = vst.msk [vmem:[#allocation2 + $0x209] sm:$0x1] %vm114, 0.0
    %173 = vst.msk [vmem:[#allocation2 + $0x221] sm:$0x1] %vm114, 0.0
    %174 = vst.msk [vmem:[#allocation2 + $0x239] sm:$0x1] %vm114, 0.0
    %175 = vst.msk [vmem:[#allocation2 + $0x251] sm:$0x1] %vm114, 0.0
    %176 = vst.msk [vmem:[#allocation2 + $0x269] sm:$0x1] %vm114, 0.0
    %177 = vst.msk [vmem:[#allocation2 + $0x281] sm:$0x1] %vm114, 0.0
    %178 = vst.msk [vmem:[#allocation2 + $0x299] sm:$0x1] %vm114, 0.0
    %179 = vst.msk [vmem:[#allocation2 + $0x2b1] sm:$0x1] %vm114, 0.0
    %180 = vst.msk [vmem:[#allocation2 + $0x2c9] sm:$0x1] %vm114, 0.0
    %181 = vst.msk [vmem:[#allocation2 + $0x2e1] sm:$0x1] %vm114, 0.0
    %182 = vst.msk [vmem:[#allocation2 + $0x2f9] sm:$0x1] %vm114, 0.0
    %183 = vst.msk [vmem:[#allocation2 + $0x311] sm:$0x1] %vm114, 0.0
    %184 = vst.msk [vmem:[#allocation2 + $0x329] sm:$0x1] %vm114, 0.0
    %185 = vst.msk [vmem:[#allocation2 + $0x341] sm:$0x1] %vm114, 0.0
    %186 = vst.msk [vmem:[#allocation2 + $0x359] sm:$0x1] %vm114, 0.0
    %s187 = scalar_lea.vmem [#allocation2], 24
    %188 = vst.msk [vmem:[%s187 + $0x1] sm:$0xff] %vm99, %v35
    %189 = vst.msk [vmem:[%s187 + $0x9] sm:$0xff] %vm99, %v36
    %190 = vst.msk [vmem:[%s187 + $0x19] sm:$0xff] %vm99, %v37
    %191 = vst.msk [vmem:[%s187 + $0x21] sm:$0xff] %vm99, %v38
    %192 = vst.msk [vmem:[%s187 + $0x31] sm:$0xff] %vm99, %v39
    %193 = vst.msk [vmem:[%s187 + $0x39] sm:$0xff] %vm99, %v40
    %194 = vst.msk [vmem:[%s187 + $0x49] sm:$0xff] %vm99, %v41
    %195 = vst.msk [vmem:[%s187 + $0x51] sm:$0xff] %vm99, %v42
    %196 = vst.msk [vmem:[%s187 + $0x61] sm:$0xff] %vm99, %v43
    %197 = vst.msk [vmem:[%s187 + $0x69] sm:$0xff] %vm99, %v44
    %198 = vst.msk [vmem:[%s187 + $0x79] sm:$0xff] %vm99, %v45
    %199 = vst.msk [vmem:[%s187 + $0x81] sm:$0xff] %vm99, %v46
    %200 = vst.msk [vmem:[%s187 + $0x91] sm:$0xff] %vm99, %v47
    %201 = vst.msk [vmem:[%s187 + $0x99] sm:$0xff] %vm99, %v48
    %202 = vst.msk [vmem:[%s187 + $0xa9] sm:$0xff] %vm99, %v49
    %203 = vst.msk [vmem:[%s187 + $0xb1] sm:$0xff] %vm99, %v50
    %204 = vst.msk [vmem:[%s187 + $0xc1] sm:$0xff] %vm99, %v51
    %205 = vst.msk [vmem:[%s187 + $0xc9] sm:$0xff] %vm99, %v52
    %206 = vst.msk [vmem:[%s187 + $0xd9] sm:$0xff] %vm99, %v53
    %207 = vst.msk [vmem:[%s187 + $0xe1] sm:$0xff] %vm99, %v54
    %208 = vst.msk [vmem:[%s187 + $0xf1] sm:$0xff] %vm99, %v55
    %209 = vst.msk [vmem:[%s187 + $0xf9] sm:$0xff] %vm99, %v56
    %210 = vst.msk [vmem:[%s187 + $0x109] sm:$0xff] %vm99, %v57
    %211 = vst.msk [vmem:[%s187 + $0x111] sm:$0xff] %vm99, %v58
    %212 = vst.msk [vmem:[%s187 + $0x121] sm:$0xff] %vm99, %v59
    %213 = vst.msk [vmem:[%s187 + $0x129] sm:$0xff] %vm99, %v60
    %214 = vst.msk [vmem:[%s187 + $0x139] sm:$0xff] %vm99, %v61
    %215 = vst.msk [vmem:[%s187 + $0x141] sm:$0xff] %vm99, %v62
    %216 = vst.msk [vmem:[%s187 + $0x151] sm:$0xff] %vm99, %v63
    %217 = vst.msk [vmem:[%s187 + $0x159] sm:$0xff] %vm99, %v64
    %218 = vst.msk [vmem:[%s187 + $0x169] sm:$0xff] %vm99, %v65
    %219 = vst.msk [vmem:[%s187 + $0x171] sm:$0xff] %vm99, %v66
    %220 = vst.msk [vmem:[%s187 + $0x1b1] sm:$0xff] %vm99, %v67
    %221 = vst.msk [vmem:[%s187 + $0x1b9] sm:$0xff] %vm99, %v68
    %222 = vst.msk [vmem:[%s187 + $0x1c9] sm:$0xff] %vm99, %v69
    %223 = vst.msk [vmem:[%s187 + $0x1d1] sm:$0xff] %vm99, %v70
    %224 = vst.msk [vmem:[%s187 + $0x1e1] sm:$0xff] %vm99, %v71
    %225 = vst.msk [vmem:[%s187 + $0x1e9] sm:$0xff] %vm99, %v72
    %226 = vst.msk [vmem:[%s187 + $0x1f9] sm:$0xff] %vm99, %v73
    %227 = vst.msk [vmem:[%s187 + $0x201] sm:$0xff] %vm99, %v74
    %228 = vst.msk [vmem:[%s187 + $0x211] sm:$0xff] %vm99, %v75
    %229 = vst.msk [vmem:[%s187 + $0x219] sm:$0xff] %vm99, %v76
    %230 = vst.msk [vmem:[%s187 + $0x229] sm:$0xff] %vm99, %v77
    %231 = vst.msk [vmem:[%s187 + $0x231] sm:$0xff] %vm99, %v78
    %232 = vst.msk [vmem:[%s187 + $0x241] sm:$0xff] %vm99, %v79
    %233 = vst.msk [vmem:[%s187 + $0x249] sm:$0xff] %vm99, %v80
    %234 = vst.msk [vmem:[%s187 + $0x259] sm:$0xff] %vm99, %v81
    %235 = vst.msk [vmem:[%s187 + $0x261] sm:$0xff] %vm99, %v82
    %236 = vst.msk [vmem:[%s187 + $0x271] sm:$0xff] %vm99, %v83
    %237 = vst.msk [vmem:[%s187 + $0x279] sm:$0xff] %vm99, %v84
    %238 = vst.msk [vmem:[%s187 + $0x289] sm:$0xff] %vm99, %v85
    %239 = vst.msk [vmem:[%s187 + $0x291] sm:$0xff] %vm99, %v86
    %240 = vst.msk [vmem:[%s187 + $0x2a1] sm:$0xff] %vm99, %v87
    %241 = vst.msk [vmem:[%s187 + $0x2a9] sm:$0xff] %vm99, %v88
    %242 = vst.msk [vmem:[%s187 + $0x2b9] sm:$0xff] %vm99, %v89
    %243 = vst.msk [vmem:[%s187 + $0x2c1] sm:$0xff] %vm99, %v90
    %244 = vst.msk [vmem:[%s187 + $0x2d1] sm:$0xff] %vm99, %v91
    %245 = vst.msk [vmem:[%s187 + $0x2d9] sm:$0xff] %vm99, %v92
    %246 = vst.msk [vmem:[%s187 + $0x2e9] sm:$0xff] %vm99, %v93
    %247 = vst.msk [vmem:[%s187 + $0x2f1] sm:$0xff] %vm99, %v94
    %248 = vst.msk [vmem:[%s187 + $0x301] sm:$0xff] %vm99, %v95
    %249 = vst.msk [vmem:[%s187 + $0x309] sm:$0xff] %vm99, %v96
    %250 = vst.msk [vmem:[%s187 + $0x319] sm:$0xff] %vm99, %v97
    %251 = vst.msk [vmem:[%s187 + $0x321] sm:$0xff] %vm99, %v98
    %v252 = vld [vmem:[#allocation2] sm:$0xff]
    %v253 = vld [vmem:[#allocation2 + $0x8] sm:$0xff]
    %v254 = vld [vmem:[#allocation2 + $0x18] sm:$0xff]
    %v255 = vld [vmem:[#allocation2 + $0x20] sm:$0xff]
    %v256 = vld [vmem:[#allocation2 + $0x30] sm:$0xff]
    %v257 = vld [vmem:[#allocation2 + $0x38] sm:$0xff]
    %v258 = vld [vmem:[#allocation2 + $0x48] sm:$0xff]
    %v259 = vld [vmem:[#allocation2 + $0x50] sm:$0xff]
    %v260 = vld [vmem:[#allocation2 + $0x60] sm:$0xff]
    %v261 = vld [vmem:[#allocation2 + $0x68] sm:$0xff]
    %v262 = vld [vmem:[#allocation2 + $0x78] sm:$0xff]
    %v263 = vld [vmem:[#allocation2 + $0x80] sm:$0xff]
    %v264 = vld [vmem:[#allocation2 + $0x90] sm:$0xff]
    %v265 = vld [vmem:[#allocation2 + $0x98] sm:$0xff]
    %v266 = vld [vmem:[#allocation2 + $0xa8] sm:$0xff]
    %v267 = vld [vmem:[#allocation2 + $0xb0] sm:$0xff]
    %v268 = vld [vmem:[#allocation2 + $0xc0] sm:$0xff]
    %v269 = vld [vmem:[#allocation2 + $0xc8] sm:$0xff]
    %v270 = vld [vmem:[#allocation2 + $0xd8] sm:$0xff]
    %v271 = vld [vmem:[#allocation2 + $0xe0] sm:$0xff]
    %v272 = vld [vmem:[#allocation2 + $0xf0] sm:$0xff]
    %v273 = vld [vmem:[#allocation2 + $0xf8] sm:$0xff]
    %v274 = vld [vmem:[#allocation2 + $0x108] sm:$0xff]
    %v275 = vld [vmem:[#allocation2 + $0x110] sm:$0xff]
    %v276 = vld [vmem:[#allocation2 + $0x120] sm:$0xff]
    %v277 = vld [vmem:[#allocation2 + $0x128] sm:$0xff]
    %v278 = vld [vmem:[#allocation2 + $0x138] sm:$0xff]
    %v279 = vld [vmem:[#allocation2 + $0x140] sm:$0xff]
    %v280 = vld [vmem:[#allocation2 + $0x150] sm:$0xff]
    %v281 = vld [vmem:[#allocation2 + $0x158] sm:$0xff]
    %v282 = vld [vmem:[#allocation2 + $0x168] sm:$0xff]
    %v283 = vld [vmem:[#allocation2 + $0x170] sm:$0xff]
    %v284 = vld [vmem:[#allocation2 + $0x1b0] sm:$0xff]
    %v285 = vld [vmem:[#allocation2 + $0x1b8] sm:$0xff]
    %v286 = vld [vmem:[#allocation2 + $0x1c8] sm:$0xff]
    %v287 = vld [vmem:[#allocation2 + $0x1d0] sm:$0xff]
    %v288 = vld [vmem:[#allocation2 + $0x1e0] sm:$0xff]
    %v289 = vld [vmem:[#allocation2 + $0x1e8] sm:$0xff]
    %v290 = vld [vmem:[#allocation2 + $0x1f8] sm:$0xff]
    %v291 = vld [vmem:[#allocation2 + $0x200] sm:$0xff]
    %v292 = vld [vmem:[#allocation2 + $0x210] sm:$0xff]
    %v293 = vld [vmem:[#allocation2 + $0x218] sm:$0xff]
    %v294 = vld [vmem:[#allocation2 + $0x228] sm:$0xff]
    %v295 = vld [vmem:[#allocation2 + $0x230] sm:$0xff]
    %v296 = vld [vmem:[#allocation2 + $0x240] sm:$0xff]
    %v297 = vld [vmem:[#allocation2 + $0x248] sm:$0xff]
    %v298 = vld [vmem:[#allocation2 + $0x258] sm:$0xff]
    %v299 = vld [vmem:[#allocation2 + $0x260] sm:$0xff]
    %v300 = vld [vmem:[#allocation2 + $0x270] sm:$0xff]
    %v301 = vld [vmem:[#allocation2 + $0x278] sm:$0xff]
    %v302 = vld [vmem:[#allocation2 + $0x288] sm:$0xff]
    %v303 = vld [vmem:[#allocation2 + $0x290] sm:$0xff]
    %v304 = vld [vmem:[#allocation2 + $0x2a0] sm:$0xff]
    %v305 = vld [vmem:[#allocation2 + $0x2a8] sm:$0xff]
    %v306 = vld [vmem:[#allocation2 + $0x2b8] sm:$0xff]
    %v307 = vld [vmem:[#allocation2 + $0x2c0] sm:$0xff]
    %v308 = vld [vmem:[#allocation2 + $0x2d0] sm:$0xff]
    %v309 = vld [vmem:[#allocation2 + $0x2d8] sm:$0xff]
    %v310 = vld [vmem:[#allocation2 + $0x2e8] sm:$0xff]
    %v311 = vld [vmem:[#allocation2 + $0x2f0] sm:$0xff]
    %v312 = vld [vmem:[#allocation2 + $0x300] sm:$0xff]
    %v313 = vld [vmem:[#allocation2 + $0x308] sm:$0xff]
    %v314 = vld [vmem:[#allocation2 + $0x318] sm:$0xff]
    %v315 = vld [vmem:[#allocation2 + $0x320] sm:$0xff]
    %v316 = vld [vmem:[#allocation2 + $0x1] sm:$0xff]
    %v317 = vld [vmem:[#allocation2 + $0x9] sm:$0xff]
    %v318 = vld [vmem:[#allocation2 + $0x19] sm:$0xff]
    %v319 = vld [vmem:[#allocation2 + $0x21] sm:$0xff]
    %v320 = vld [vmem:[#allocation2 + $0x31] sm:$0xff]
    %v321 = vld [vmem:[#allocation2 + $0x39] sm:$0xff]
    %v322 = vld [vmem:[#allocation2 + $0x49] sm:$0xff]
    %v323 = vld [vmem:[#allocation2 + $0x51] sm:$0xff]
    %v324 = vld [vmem:[#allocation2 + $0x61] sm:$0xff]
    %v325 = vld [vmem:[#allocation2 + $0x69] sm:$0xff]
    %v326 = vld [vmem:[#allocation2 + $0x79] sm:$0xff]
    %v327 = vld [vmem:[#allocation2 + $0x81] sm:$0xff]
    %v328 = vld [vmem:[#allocation2 + $0x91] sm:$0xff]
    %v329 = vld [vmem:[#allocation2 + $0x99] sm:$0xff]
    %v330 = vld [vmem:[#allocation2 + $0xa9] sm:$0xff]
    %v331 = vld [vmem:[#allocation2 + $0xb1] sm:$0xff]
    %v332 = vld [vmem:[#allocation2 + $0xc1] sm:$0xff]
    %v333 = vld [vmem:[#allocation2 + $0xc9] sm:$0xff]
    %v334 = vld [vmem:[#allocation2 + $0xd9] sm:$0xff]
    %v335 = vld [vmem:[#allocation2 + $0xe1] sm:$0xff]
    %v336 = vld [vmem:[#allocation2 + $0xf1] sm:$0xff]
    %v337 = vld [vmem:[#allocation2 + $0xf9] sm:$0xff]
    %v338 = vld [vmem:[#allocation2 + $0x109] sm:$0xff]
    %v339 = vld [vmem:[#allocation2 + $0x111] sm:$0xff]
    %v340 = vld [vmem:[#allocation2 + $0x121] sm:$0xff]
    %v341 = vld [vmem:[#allocation2 + $0x129] sm:$0xff]
    %v342 = vld [vmem:[#allocation2 + $0x139] sm:$0xff]
    %v343 = vld [vmem:[#allocation2 + $0x141] sm:$0xff]
    %v344 = vld [vmem:[#allocation2 + $0x151] sm:$0xff]
    %v345 = vld [vmem:[#allocation2 + $0x159] sm:$0xff]
    %v346 = vld [vmem:[#allocation2 + $0x169] sm:$0xff]
    %v347 = vld [vmem:[#allocation2 + $0x171] sm:$0xff]
    %v348 = vld [vmem:[#allocation2 + $0x1b1] sm:$0xff]
    %v349 = vld [vmem:[#allocation2 + $0x1b9] sm:$0xff]
    %v350 = vld [vmem:[#allocation2 + $0x1c9] sm:$0xff]
    %v351 = vld [vmem:[#allocation2 + $0x1d1] sm:$0xff]
    %v352 = vld [vmem:[#allocation2 + $0x1e1] sm:$0xff]
    %v353 = vld [vmem:[#allocation2 + $0x1e9] sm:$0xff]
    %v354 = vld [vmem:[#allocation2 + $0x1f9] sm:$0xff]
    %v355 = vld [vmem:[#allocation2 + $0x201] sm:$0xff]
    %v356 = vld [vmem:[#allocation2 + $0x211] sm:$0xff]
    %v357 = vld [vmem:[#allocation2 + $0x219] sm:$0xff]
    %v358 = vld [vmem:[#allocation2 + $0x229] sm:$0xff]
    %v359 = vld [vmem:[#allocation2 + $0x231] sm:$0xff]
    %v360 = vld [vmem:[#allocation2 + $0x241] sm:$0xff]
    %v361 = vld [vmem:[#allocation2 + $0x249] sm:$0xff]
    %v362 = vld [vmem:[#allocation2 + $0x259] sm:$0xff]
    %v363 = vld [vmem:[#allocation2 + $0x261] sm:$0xff]
    %v364 = vld [vmem:[#allocation2 + $0x271] sm:$0xff]
    %v365 = vld [vmem:[#allocation2 + $0x279] sm:$0xff]
    %v366 = vld [vmem:[#allocation2 + $0x289] sm:$0xff]
    %v367 = vld [vmem:[#allocation2 + $0x291] sm:$0xff]
    %v368 = vld [vmem:[#allocation2 + $0x2a1] sm:$0xff]
    %v369 = vld [vmem:[#allocation2 + $0x2a9] sm:$0xff]
    %v370 = vld [vmem:[#allocation2 + $0x2b9] sm:$0xff]
    %v371 = vld [vmem:[#allocation2 + $0x2c1] sm:$0xff]
    %v372 = vld [vmem:[#allocation2 + $0x2d1] sm:$0xff]
    %v373 = vld [vmem:[#allocation2 + $0x2d9] sm:$0xff]
    %v374 = vld [vmem:[#allocation2 + $0x2e9] sm:$0xff]
    %v375 = vld [vmem:[#allocation2 + $0x2f1] sm:$0xff]
    %v376 = vld [vmem:[#allocation2 + $0x301] sm:$0xff]
    %v377 = vld [vmem:[#allocation2 + $0x309] sm:$0xff]
    %v378 = vld [vmem:[#allocation2 + $0x319] sm:$0xff]
    %v379 = vld [vmem:[#allocation2 + $0x321] sm:$0xff]
    %v380 = vld [vmem:[#allocation2 + $0x2] sm:$0xff]
    %v381 = vld [vmem:[#allocation2 + $0xa] sm:$0xff]
    %v382 = vld [vmem:[#allocation2 + $0x1a] sm:$0xff]
    %v383 = vld [vmem:[#allocation2 + $0x22] sm:$0xff]
    %v384 = vld [vmem:[#allocation2 + $0x32] sm:$0xff]
    %v385 = vld [vmem:[#allocation2 + $0x3a] sm:$0xff]
    %v386 = vld [vmem:[#allocation2 + $0x4a] sm:$0xff]
    %v387 = vld [vmem:[#allocation2 + $0x52] sm:$0xff]
    %v388 = vld [vmem:[#allocation2 + $0x62] sm:$0xff]
    %v389 = vld [vmem:[#allocation2 + $0x6a] sm:$0xff]
    %v390 = vld [vmem:[#allocation2 + $0x7a] sm:$0xff]
    %v391 = vld [vmem:[#allocation2 + $0x82] sm:$0xff]
    %v392 = vld [vmem:[#allocation2 + $0x92] sm:$0xff]
    %v393 = vld [vmem:[#allocation2 + $0x9a] sm:$0xff]
    %v394 = vld [vmem:[#allocation2 + $0xaa] sm:$0xff]
    %v395 = vld [vmem:[#allocation2 + $0xb2] sm:$0xff]
    %v396 = vld [vmem:[#allocation2 + $0xc2] sm:$0xff]
    %v397 = vld [vmem:[#allocation2 + $0xca] sm:$0xff]
    %v398 = vld [vmem:[#allocation2 + $0xda] sm:$0xff]
    %v399 = vld [vmem:[#allocation2 + $0xe2] sm:$0xff]
    %v400 = vld [vmem:[#allocation2 + $0xf2] sm:$0xff]
    %v401 = vld [vmem:[#allocation2 + $0xfa] sm:$0xff]
    %v402 = vld [vmem:[#allocation2 + $0x10a] sm:$0xff]
    %v403 = vld [vmem:[#allocation2 + $0x112] sm:$0xff]
    %v404 = vld [vmem:[#allocation2 + $0x122] sm:$0xff]
    %v405 = vld [vmem:[#allocation2 + $0x12a] sm:$0xff]
    %v406 = vld [vmem:[#allocation2 + $0x13a] sm:$0xff]
    %v407 = vld [vmem:[#allocation2 + $0x142] sm:$0xff]
    %v408 = vld [vmem:[#allocation2 + $0x152] sm:$0xff]
    %v409 = vld [vmem:[#allocation2 + $0x15a] sm:$0xff]
    %v410 = vld [vmem:[#allocation2 + $0x16a] sm:$0xff]
    %v411 = vld [vmem:[#allocation2 + $0x172] sm:$0xff]
    %v412 = vld [vmem:[#allocation2 + $0x1b2] sm:$0xff]
    %v413 = vld [vmem:[#allocation2 + $0x1ba] sm:$0xff]
    %v414 = vld [vmem:[#allocation2 + $0x1ca] sm:$0xff]
    %v415 = vld [vmem:[#allocation2 + $0x1d2] sm:$0xff]
    %v416 = vld [vmem:[#allocation2 + $0x1e2] sm:$0xff]
    %v417 = vld [vmem:[#allocation2 + $0x1ea] sm:$0xff]
    %v418 = vld [vmem:[#allocation2 + $0x1fa] sm:$0xff]
    %v419 = vld [vmem:[#allocation2 + $0x202] sm:$0xff]
    %v420 = vld [vmem:[#allocation2 + $0x212] sm:$0xff]
    %v421 = vld [vmem:[#allocation2 + $0x21a] sm:$0xff]
    %v422 = vld [vmem:[#allocation2 + $0x22a] sm:$0xff]
    %v423 = vld [vmem:[#allocation2 + $0x232] sm:$0xff]
    %v424 = vld [vmem:[#allocation2 + $0x242] sm:$0xff]
    %v425 = vld [vmem:[#allocation2 + $0x24a] sm:$0xff]
    %v426 = vld [vmem:[#allocation2 + $0x25a] sm:$0xff]
    %v427 = vld [vmem:[#allocation2 + $0x262] sm:$0xff]
    %v428 = vld [vmem:[#allocation2 + $0x272] sm:$0xff]
    %v429 = vld [vmem:[#allocation2 + $0x27a] sm:$0xff]
    %v430 = vld [vmem:[#allocation2 + $0x28a] sm:$0xff]
    %v431 = vld [vmem:[#allocation2 + $0x292] sm:$0xff]
    %v432 = vld [vmem:[#allocation2 + $0x2a2] sm:$0xff]
    %v433 = vld [vmem:[#allocation2 + $0x2aa] sm:$0xff]
    %v434 = vld [vmem:[#allocation2 + $0x2ba] sm:$0xff]
    %v435 = vld [vmem:[#allocation2 + $0x2c2] sm:$0xff]
    %v436 = vld [vmem:[#allocation2 + $0x2d2] sm:$0xff]
    %v437 = vld [vmem:[#allocation2 + $0x2da] sm:$0xff]
    %v438 = vld [vmem:[#allocation2 + $0x2ea] sm:$0xff]
    %v439 = vld [vmem:[#allocation2 + $0x2f2] sm:$0xff]
    %v440 = vld [vmem:[#allocation2 + $0x302] sm:$0xff]
    %v441 = vld [vmem:[#allocation2 + $0x30a] sm:$0xff]
    %v442 = vld [vmem:[#allocation2 + $0x31a] sm:$0xff]
    %v443 = vld [vmem:[#allocation2 + $0x322] sm:$0xff]
    %v444 = vld [vmem:[%s187] sm:$0xff]
    %v445 = vld [vmem:[%s187 + $0x8] sm:$0xff]
    %v446 = vld [vmem:[%s187 + $0x18] sm:$0xff]
    %v447 = vld [vmem:[%s187 + $0x20] sm:$0xff]
    %v448 = vld [vmem:[%s187 + $0x30] sm:$0xff]
    %v449 = vld [vmem:[%s187 + $0x38] sm:$0xff]
    %v450 = vld [vmem:[%s187 + $0x48] sm:$0xff]
    %v451 = vld [vmem:[%s187 + $0x50] sm:$0xff]
    %v452 = vld [vmem:[%s187 + $0x60] sm:$0xff]
    %v453 = vld [vmem:[%s187 + $0x68] sm:$0xff]
    %v454 = vld [vmem:[%s187 + $0x78] sm:$0xff]
    %v455 = vld [vmem:[%s187 + $0x80] sm:$0xff]
    %v456 = vld [vmem:[%s187 + $0x90] sm:$0xff]
    %v457 = vld [vmem:[%s187 + $0x98] sm:$0xff]
    %v458 = vld [vmem:[%s187 + $0xa8] sm:$0xff]
    %v459 = vld [vmem:[%s187 + $0xb0] sm:$0xff]
    %v460 = vld [vmem:[%s187 + $0xc0] sm:$0xff]
    %v461 = vld [vmem:[%s187 + $0xc8] sm:$0xff]
    %v462 = vld [vmem:[%s187 + $0xd8] sm:$0xff]
    %v463 = vld [vmem:[%s187 + $0xe0] sm:$0xff]
    %v464 = vld [vmem:[%s187 + $0xf0] sm:$0xff]
    %v465 = vld [vmem:[%s187 + $0xf8] sm:$0xff]
    %v466 = vld [vmem:[%s187 + $0x108] sm:$0xff]
    %v467 = vld [vmem:[%s187 + $0x110] sm:$0xff]
    %v468 = vld [vmem:[%s187 + $0x120] sm:$0xff]
    %v469 = vld [vmem:[%s187 + $0x128] sm:$0xff]
    %v470 = vld [vmem:[%s187 + $0x138] sm:$0xff]
    %v471 = vld [vmem:[%s187 + $0x140] sm:$0xff]
    %v472 = vld [vmem:[%s187 + $0x150] sm:$0xff]
    %v473 = vld [vmem:[%s187 + $0x158] sm:$0xff]
    %v474 = vld [vmem:[%s187 + $0x168] sm:$0xff]
    %v475 = vld [vmem:[%s187 + $0x170] sm:$0xff]
    %v476 = vld [vmem:[%s187 + $0x1b0] sm:$0xff]
    %v477 = vld [vmem:[%s187 + $0x1b8] sm:$0xff]
    %v478 = vld [vmem:[%s187 + $0x1c8] sm:$0xff]
    %v479 = vld [vmem:[%s187 + $0x1d0] sm:$0xff]
    %v480 = vld [vmem:[%s187 + $0x1e0] sm:$0xff]
    %v481 = vld [vmem:[%s187 + $0x1e8] sm:$0xff]
    %v482 = vld [vmem:[%s187 + $0x1f8] sm:$0xff]
    %v483 = vld [vmem:[%s187 + $0x200] sm:$0xff]
    %v484 = vld [vmem:[%s187 + $0x210] sm:$0xff]
    %v485 = vld [vmem:[%s187 + $0x218] sm:$0xff]
    %v486 = vld [vmem:[%s187 + $0x228] sm:$0xff]
    %v487 = vld [vmem:[%s187 + $0x230] sm:$0xff]
    %v488 = vld [vmem:[%s187 + $0x240] sm:$0xff]
    %v489 = vld [vmem:[%s187 + $0x248] sm:$0xff]
    %v490 = vld [vmem:[%s187 + $0x258] sm:$0xff]
    %v491 = vld [vmem:[%s187 + $0x260] sm:$0xff]
    %v492 = vld [vmem:[%s187 + $0x270] sm:$0xff]
    %v493 = vld [vmem:[%s187 + $0x278] sm:$0xff]
    %v494 = vld [vmem:[%s187 + $0x288] sm:$0xff]
    %v495 = vld [vmem:[%s187 + $0x290] sm:$0xff]
    %v496 = vld [vmem:[%s187 + $0x2a0] sm:$0xff]
    %v497 = vld [vmem:[%s187 + $0x2a8] sm:$0xff]
    %v498 = vld [vmem:[%s187 + $0x2b8] sm:$0xff]
    %v499 = vld [vmem:[%s187 + $0x2c0] sm:$0xff]
    %v500 = vld [vmem:[%s187 + $0x2d0] sm:$0xff]
    %v501 = vld [vmem:[%s187 + $0x2d8] sm:$0xff]
    %v502 = vld [vmem:[%s187 + $0x2e8] sm:$0xff]
    %v503 = vld [vmem:[%s187 + $0x2f0] sm:$0xff]
    %v504 = vld [vmem:[%s187 + $0x300] sm:$0xff]
    %v505 = vld [vmem:[%s187 + $0x308] sm:$0xff]
    %v506 = vld [vmem:[%s187 + $0x318] sm:$0xff]
    %v507 = vld [vmem:[%s187 + $0x320] sm:$0xff]
    %v508 = vld [vmem:[%s187 + $0x1] sm:$0xff]
    %v509 = vld [vmem:[%s187 + $0x9] sm:$0xff]
    %v510 = vld [vmem:[%s187 + $0x19] sm:$0xff]
    %v511 = vld [vmem:[%s187 + $0x21] sm:$0xff]
    %v512 = vld [vmem:[%s187 + $0x31] sm:$0xff]
    %v513 = vld [vmem:[%s187 + $0x39] sm:$0xff]
    %v514 = vld [vmem:[%s187 + $0x49] sm:$0xff]
    %v515 = vld [vmem:[%s187 + $0x51] sm:$0xff]
    %v516 = vld [vmem:[%s187 + $0x61] sm:$0xff]
    %v517 = vld [vmem:[%s187 + $0x69] sm:$0xff]
    %v518 = vld [vmem:[%s187 + $0x79] sm:$0xff]
    %v519 = vld [vmem:[%s187 + $0x81] sm:$0xff]
    %v520 = vld [vmem:[%s187 + $0x91] sm:$0xff]
    %v521 = vld [vmem:[%s187 + $0x99] sm:$0xff]
    %v522 = vld [vmem:[%s187 + $0xa9] sm:$0xff]
    %v523 = vld [vmem:[%s187 + $0xb1] sm:$0xff]
    %v524 = vld [vmem:[%s187 + $0xc1] sm:$0xff]
    %v525 = vld [vmem:[%s187 + $0xc9] sm:$0xff]
    %v526 = vld [vmem:[%s187 + $0xd9] sm:$0xff]
    %v527 = vld [vmem:[%s187 + $0xe1] sm:$0xff]
    %v528 = vld [vmem:[%s187 + $0xf1] sm:$0xff]
    %v529 = vld [vmem:[%s187 + $0xf9] sm:$0xff]
    %v530 = vld [vmem:[%s187 + $0x109] sm:$0xff]
    %v531 = vld [vmem:[%s187 + $0x111] sm:$0xff]
    %v532 = vld [vmem:[%s187 + $0x121] sm:$0xff]
    %v533 = vld [vmem:[%s187 + $0x129] sm:$0xff]
    %v534 = vld [vmem:[%s187 + $0x139] sm:$0xff]
    %v535 = vld [vmem:[%s187 + $0x141] sm:$0xff]
    %v536 = vld [vmem:[%s187 + $0x151] sm:$0xff]
    %v537 = vld [vmem:[%s187 + $0x159] sm:$0xff]
    %v538 = vld [vmem:[%s187 + $0x169] sm:$0xff]
    %v539 = vld [vmem:[%s187 + $0x171] sm:$0xff]
    %v540 = vld [vmem:[%s187 + $0x1b1] sm:$0xff]
    %v541 = vld [vmem:[%s187 + $0x1b9] sm:$0xff]
    %v542 = vld [vmem:[%s187 + $0x1c9] sm:$0xff]
    %v543 = vld [vmem:[%s187 + $0x1d1] sm:$0xff]
    %v544 = vld [vmem:[%s187 + $0x1e1] sm:$0xff]
    %v545 = vld [vmem:[%s187 + $0x1e9] sm:$0xff]
    %v546 = vld [vmem:[%s187 + $0x1f9] sm:$0xff]
    %v547 = vld [vmem:[%s187 + $0x201] sm:$0xff]
    %v548 = vld [vmem:[%s187 + $0x211] sm:$0xff]
    %v549 = vld [vmem:[%s187 + $0x219] sm:$0xff]
    %v550 = vld [vmem:[%s187 + $0x229] sm:$0xff]
    %v551 = vld [vmem:[%s187 + $0x231] sm:$0xff]
    %v552 = vld [vmem:[%s187 + $0x241] sm:$0xff]
    %v553 = vld [vmem:[%s187 + $0x249] sm:$0xff]
    %v554 = vld [vmem:[%s187 + $0x259] sm:$0xff]
    %v555 = vld [vmem:[%s187 + $0x261] sm:$0xff]
    %v556 = vld [vmem:[%s187 + $0x271] sm:$0xff]
    %v557 = vld [vmem:[%s187 + $0x279] sm:$0xff]
    %v558 = vld [vmem:[%s187 + $0x289] sm:$0xff]
    %v559 = vld [vmem:[%s187 + $0x291] sm:$0xff]
    %v560 = vld [vmem:[%s187 + $0x2a1] sm:$0xff]
    %v561 = vld [vmem:[%s187 + $0x2a9] sm:$0xff]
    %v562 = vld [vmem:[%s187 + $0x2b9] sm:$0xff]
    %v563 = vld [vmem:[%s187 + $0x2c1] sm:$0xff]
    %v564 = vld [vmem:[%s187 + $0x2d1] sm:$0xff]
    %v565 = vld [vmem:[%s187 + $0x2d9] sm:$0xff]
    %v566 = vld [vmem:[%s187 + $0x2e9] sm:$0xff]
    %v567 = vld [vmem:[%s187 + $0x2f1] sm:$0xff]
    %v568 = vld [vmem:[%s187 + $0x301] sm:$0xff]
    %v569 = vld [vmem:[%s187 + $0x309] sm:$0xff]
    %v570 = vld [vmem:[%s187 + $0x319] sm:$0xff]
    %v571 = vld [vmem:[%s187 + $0x321] sm:$0xff]
    %v572 = vld [vmem:[%s187 + $0x2] sm:$0xff]
    %v573 = vld [vmem:[%s187 + $0xa] sm:$0xff]
    %v574 = vld [vmem:[%s187 + $0x1a] sm:$0xff]
    %v575 = vld [vmem:[%s187 + $0x22] sm:$0xff]
    %v576 = vld [vmem:[%s187 + $0x32] sm:$0xff]
    %v577 = vld [vmem:[%s187 + $0x3a] sm:$0xff]
    %v578 = vld [vmem:[%s187 + $0x4a] sm:$0xff]
    %v579 = vld [vmem:[%s187 + $0x52] sm:$0xff]
    %v580 = vld [vmem:[%s187 + $0x62] sm:$0xff]
    %v581 = vld [vmem:[%s187 + $0x6a] sm:$0xff]
    %v582 = vld [vmem:[%s187 + $0x7a] sm:$0xff]
    %v583 = vld [vmem:[%s187 + $0x82] sm:$0xff]
    %v584 = vld [vmem:[%s187 + $0x92] sm:$0xff]
    %v585 = vld [vmem:[%s187 + $0x9a] sm:$0xff]
    %v586 = vld [vmem:[%s187 + $0xaa] sm:$0xff]
    %v587 = vld [vmem:[%s187 + $0xb2] sm:$0xff]
    %v588 = vld [vmem:[%s187 + $0xc2] sm:$0xff]
    %v589 = vld [vmem:[%s187 + $0xca] sm:$0xff]
    %v590 = vld [vmem:[%s187 + $0xda] sm:$0xff]
    %v591 = vld [vmem:[%s187 + $0xe2] sm:$0xff]
    %v592 = vld [vmem:[%s187 + $0xf2] sm:$0xff]
    %v593 = vld [vmem:[%s187 + $0xfa] sm:$0xff]
    %v594 = vld [vmem:[%s187 + $0x10a] sm:$0xff]
    %v595 = vld [vmem:[%s187 + $0x112] sm:$0xff]
    %v596 = vld [vmem:[%s187 + $0x122] sm:$0xff]
    %v597 = vld [vmem:[%s187 + $0x12a] sm:$0xff]
    %v598 = vld [vmem:[%s187 + $0x13a] sm:$0xff]
    %v599 = vld [vmem:[%s187 + $0x142] sm:$0xff]
    %v600 = vld [vmem:[%s187 + $0x152] sm:$0xff]
    %v601 = vld [vmem:[%s187 + $0x15a] sm:$0xff]
    %v602 = vld [vmem:[%s187 + $0x16a] sm:$0xff]
    %v603 = vld [vmem:[%s187 + $0x172] sm:$0xff]
    %v604 = vld [vmem:[%s187 + $0x1b2] sm:$0xff]
    %v605 = vld [vmem:[%s187 + $0x1ba] sm:$0xff]
    %v606 = vld [vmem:[%s187 + $0x1ca] sm:$0xff]
    %v607 = vld [vmem:[%s187 + $0x1d2] sm:$0xff]
    %v608 = vld [vmem:[%s187 + $0x1e2] sm:$0xff]
    %v609 = vld [vmem:[%s187 + $0x1ea] sm:$0xff]
    %v610 = vld [vmem:[%s187 + $0x1fa] sm:$0xff]
    %v611 = vld [vmem:[%s187 + $0x202] sm:$0xff]
    %v612 = vld [vmem:[%s187 + $0x212] sm:$0xff]
    %v613 = vld [vmem:[%s187 + $0x21a] sm:$0xff]
    %v614 = vld [vmem:[%s187 + $0x22a] sm:$0xff]
    %v615 = vld [vmem:[%s187 + $0x232] sm:$0xff]
    %v616 = vld [vmem:[%s187 + $0x242] sm:$0xff]
    %v617 = vld [vmem:[%s187 + $0x24a] sm:$0xff]
    %v618 = vld [vmem:[%s187 + $0x25a] sm:$0xff]
    %v619 = vld [vmem:[%s187 + $0x262] sm:$0xff]
    %v620 = vld [vmem:[%s187 + $0x272] sm:$0xff]
    %v621 = vld [vmem:[%s187 + $0x27a] sm:$0xff]
    %v622 = vld [vmem:[%s187 + $0x28a] sm:$0xff]
    %v623 = vld [vmem:[%s187 + $0x292] sm:$0xff]
    %v624 = vld [vmem:[%s187 + $0x2a2] sm:$0xff]
    %v625 = vld [vmem:[%s187 + $0x2aa] sm:$0xff]
    %v626 = vld [vmem:[%s187 + $0x2ba] sm:$0xff]
    %v627 = vld [vmem:[%s187 + $0x2c2] sm:$0xff]
    %v628 = vld [vmem:[%s187 + $0x2d2] sm:$0xff]
    %v629 = vld [vmem:[%s187 + $0x2da] sm:$0xff]
    %v630 = vld [vmem:[%s187 + $0x2ea] sm:$0xff]
    %v631 = vld [vmem:[%s187 + $0x2f2] sm:$0xff]
    %v632 = vld [vmem:[%s187 + $0x302] sm:$0xff]
    %v633 = vld [vmem:[%s187 + $0x30a] sm:$0xff]
    %v634 = vld [vmem:[%s187 + $0x31a] sm:$0xff]
    %v635 = vld [vmem:[%s187 + $0x322] sm:$0xff]
    %s636 = scalar_lea.vmem [#allocation2], 48
    %v637 = vld [vmem:[%s636] sm:$0xff]
    %v638 = vld [vmem:[%s636 + $0x8] sm:$0xff]
    %v639 = vld [vmem:[%s636 + $0x18] sm:$0xff]
    %v640 = vld [vmem:[%s636 + $0x20] sm:$0xff]
    %v641 = vld [vmem:[%s636 + $0x30] sm:$0xff]
    %v642 = vld [vmem:[%s636 + $0x38] sm:$0xff]
    %v643 = vld [vmem:[%s636 + $0x48] sm:$0xff]
    %v644 = vld [vmem:[%s636 + $0x50] sm:$0xff]
    %v645 = vld [vmem:[%s636 + $0x60] sm:$0xff]
    %v646 = vld [vmem:[%s636 + $0x68] sm:$0xff]
    %v647 = vld [vmem:[%s636 + $0x78] sm:$0xff]
    %v648 = vld [vmem:[%s636 + $0x80] sm:$0xff]
    %v649 = vld [vmem:[%s636 + $0x90] sm:$0xff]
    %v650 = vld [vmem:[%s636 + $0x98] sm:$0xff]
    %v651 = vld [vmem:[%s636 + $0xa8] sm:$0xff]
    %v652 = vld [vmem:[%s636 + $0xb0] sm:$0xff]
    %v653 = vld [vmem:[%s636 + $0xc0] sm:$0xff]
    %v654 = vld [vmem:[%s636 + $0xc8] sm:$0xff]
    %v655 = vld [vmem:[%s636 + $0xd8] sm:$0xff]
    %v656 = vld [vmem:[%s636 + $0xe0] sm:$0xff]
    %v657 = vld [vmem:[%s636 + $0xf0] sm:$0xff]
    %v658 = vld [vmem:[%s636 + $0xf8] sm:$0xff]
    %v659 = vld [vmem:[%s636 + $0x108] sm:$0xff]
    %v660 = vld [vmem:[%s636 + $0x110] sm:$0xff]
    %v661 = vld [vmem:[%s636 + $0x120] sm:$0xff]
    %v662 = vld [vmem:[%s636 + $0x128] sm:$0xff]
    %v663 = vld [vmem:[%s636 + $0x138] sm:$0xff]
    %v664 = vld [vmem:[%s636 + $0x140] sm:$0xff]
    %v665 = vld [vmem:[%s636 + $0x150] sm:$0xff]
    %v666 = vld [vmem:[%s636 + $0x158] sm:$0xff]
    %v667 = vld [vmem:[%s636 + $0x168] sm:$0xff]
    %v668 = vld [vmem:[%s636 + $0x170] sm:$0xff]
    %v669 = vld [vmem:[%s636 + $0x1b0] sm:$0xff]
    %v670 = vld [vmem:[%s636 + $0x1b8] sm:$0xff]
    %v671 = vld [vmem:[%s636 + $0x1c8] sm:$0xff]
    %v672 = vld [vmem:[%s636 + $0x1d0] sm:$0xff]
    %v673 = vld [vmem:[%s636 + $0x1e0] sm:$0xff]
    %v674 = vld [vmem:[%s636 + $0x1e8] sm:$0xff]
    %v675 = vld [vmem:[%s636 + $0x1f8] sm:$0xff]
    %v676 = vld [vmem:[%s636 + $0x200] sm:$0xff]
    %v677 = vld [vmem:[%s636 + $0x210] sm:$0xff]
    %v678 = vld [vmem:[%s636 + $0x218] sm:$0xff]
    %v679 = vld [vmem:[%s636 + $0x228] sm:$0xff]
    %v680 = vld [vmem:[%s636 + $0x230] sm:$0xff]
    %v681 = vld [vmem:[%s636 + $0x240] sm:$0xff]
    %v682 = vld [vmem:[%s636 + $0x248] sm:$0xff]
    %v683 = vld [vmem:[%s636 + $0x258] sm:$0xff]
    %v684 = vld [vmem:[%s636 + $0x260] sm:$0xff]
    %v685 = vld [vmem:[%s636 + $0x270] sm:$0xff]
    %v686 = vld [vmem:[%s636 + $0x278] sm:$0xff]
    %v687 = vld [vmem:[%s636 + $0x288] sm:$0xff]
    %v688 = vld [vmem:[%s636 + $0x290] sm:$0xff]
    %v689 = vld [vmem:[%s636 + $0x2a0] sm:$0xff]
    %v690 = vld [vmem:[%s636 + $0x2a8] sm:$0xff]
    %v691 = vld [vmem:[%s636 + $0x2b8] sm:$0xff]
    %v692 = vld [vmem:[%s636 + $0x2c0] sm:$0xff]
    %v693 = vld [vmem:[%s636 + $0x2d0] sm:$0xff]
    %v694 = vld [vmem:[%s636 + $0x2d8] sm:$0xff]
    %v695 = vld [vmem:[%s636 + $0x2e8] sm:$0xff]
    %v696 = vld [vmem:[%s636 + $0x2f0] sm:$0xff]
    %v697 = vld [vmem:[%s636 + $0x300] sm:$0xff]
    %v698 = vld [vmem:[%s636 + $0x308] sm:$0xff]
    %v699 = vld [vmem:[%s636 + $0x318] sm:$0xff]
    %v700 = vld [vmem:[%s636 + $0x320] sm:$0xff]
    %v701 = vld [vmem:[%s636 + $0x1] sm:$0xff]
    %v702 = vld [vmem:[%s636 + $0x9] sm:$0xff]
    %v703 = vld [vmem:[%s636 + $0x19] sm:$0xff]
    %v704 = vld [vmem:[%s636 + $0x21] sm:$0xff]
    %v705 = vld [vmem:[%s636 + $0x31] sm:$0xff]
    %v706 = vld [vmem:[%s636 + $0x39] sm:$0xff]
    %v707 = vld [vmem:[%s636 + $0x49] sm:$0xff]
    %v708 = vld [vmem:[%s636 + $0x51] sm:$0xff]
    %v709 = vld [vmem:[%s636 + $0x61] sm:$0xff]
    %v710 = vld [vmem:[%s636 + $0x69] sm:$0xff]
    %v711 = vld [vmem:[%s636 + $0x79] sm:$0xff]
    %v712 = vld [vmem:[%s636 + $0x81] sm:$0xff]
    %v713 = vld [vmem:[%s636 + $0x91] sm:$0xff]
    %v714 = vld [vmem:[%s636 + $0x99] sm:$0xff]
    %v715 = vld [vmem:[%s636 + $0xa9] sm:$0xff]
    %v716 = vld [vmem:[%s636 + $0xb1] sm:$0xff]
    %v717 = vld [vmem:[%s636 + $0xc1] sm:$0xff]
    %v718 = vld [vmem:[%s636 + $0xc9] sm:$0xff]
    %v719 = vld [vmem:[%s636 + $0xd9] sm:$0xff]
    %v720 = vld [vmem:[%s636 + $0xe1] sm:$0xff]
    %v721 = vld [vmem:[%s636 + $0xf1] sm:$0xff]
    %v722 = vld [vmem:[%s636 + $0xf9] sm:$0xff]
    %v723 = vld [vmem:[%s636 + $0x109] sm:$0xff]
    %v724 = vld [vmem:[%s636 + $0x111] sm:$0xff]
    %v725 = vld [vmem:[%s636 + $0x121] sm:$0xff]
    %v726 = vld [vmem:[%s636 + $0x129] sm:$0xff]
    %v727 = vld [vmem:[%s636 + $0x139] sm:$0xff]
    %v728 = vld [vmem:[%s636 + $0x141] sm:$0xff]
    %v729 = vld [vmem:[%s636 + $0x151] sm:$0xff]
    %v730 = vld [vmem:[%s636 + $0x159] sm:$0xff]
    %v731 = vld [vmem:[%s636 + $0x169] sm:$0xff]
    %v732 = vld [vmem:[%s636 + $0x171] sm:$0xff]
    %v733 = vld [vmem:[%s636 + $0x1b1] sm:$0xff]
    %v734 = vld [vmem:[%s636 + $0x1b9] sm:$0xff]
    %v735 = vld [vmem:[%s636 + $0x1c9] sm:$0xff]
    %v736 = vld [vmem:[%s636 + $0x1d1] sm:$0xff]
    %v737 = vld [vmem:[%s636 + $0x1e1] sm:$0xff]
    %v738 = vld [vmem:[%s636 + $0x1e9] sm:$0xff]
    %v739 = vld [vmem:[%s636 + $0x1f9] sm:$0xff]
    %v740 = vld [vmem:[%s636 + $0x201] sm:$0xff]
    %v741 = vld [vmem:[%s636 + $0x211] sm:$0xff]
    %v742 = vld [vmem:[%s636 + $0x219] sm:$0xff]
    %v743 = vld [vmem:[%s636 + $0x229] sm:$0xff]
    %v744 = vld [vmem:[%s636 + $0x231] sm:$0xff]
    %v745 = vld [vmem:[%s636 + $0x241] sm:$0xff]
    %v746 = vld [vmem:[%s636 + $0x249] sm:$0xff]
    %v747 = vld [vmem:[%s636 + $0x259] sm:$0xff]
    %v748 = vld [vmem:[%s636 + $0x261] sm:$0xff]
    %v749 = vld [vmem:[%s636 + $0x271] sm:$0xff]
    %v750 = vld [vmem:[%s636 + $0x279] sm:$0xff]
    %v751 = vld [vmem:[%s636 + $0x289] sm:$0xff]
    %v752 = vld [vmem:[%s636 + $0x291] sm:$0xff]
    %v753 = vld [vmem:[%s636 + $0x2a1] sm:$0xff]
    %v754 = vld [vmem:[%s636 + $0x2a9] sm:$0xff]
    %v755 = vld [vmem:[%s636 + $0x2b9] sm:$0xff]
    %v756 = vld [vmem:[%s636 + $0x2c1] sm:$0xff]
    %v757 = vld [vmem:[%s636 + $0x2d1] sm:$0xff]
    %v758 = vld [vmem:[%s636 + $0x2d9] sm:$0xff]
    %v759 = vld [vmem:[%s636 + $0x2e9] sm:$0xff]
    %v760 = vld [vmem:[%s636 + $0x2f1] sm:$0xff]
    %v761 = vld [vmem:[%s636 + $0x301] sm:$0xff]
    %v762 = vld [vmem:[%s636 + $0x309] sm:$0xff]
    %v763 = vld [vmem:[%s636 + $0x319] sm:$0xff]
    %v764 = vld [vmem:[%s636 + $0x321] sm:$0xff]
    %v765 = vld [vmem:[%s636 + $0x2] sm:$0xff]
    %v766 = vld [vmem:[%s636 + $0xa] sm:$0xff]
    %v767 = vld [vmem:[%s636 + $0x1a] sm:$0xff]
    %v768 = vld [vmem:[%s636 + $0x22] sm:$0xff]
    %v769 = vld [vmem:[%s636 + $0x32] sm:$0xff]
    %v770 = vld [vmem:[%s636 + $0x3a] sm:$0xff]
    %v771 = vld [vmem:[%s636 + $0x4a] sm:$0xff]
    %v772 = vld [vmem:[%s636 + $0x52] sm:$0xff]
    %v773 = vld [vmem:[%s636 + $0x62] sm:$0xff]
    %v774 = vld [vmem:[%s636 + $0x6a] sm:$0xff]
    %v775 = vld [vmem:[%s636 + $0x7a] sm:$0xff]
    %v776 = vld [vmem:[%s636 + $0x82] sm:$0xff]
    %v777 = vld [vmem:[%s636 + $0x92] sm:$0xff]
    %v778 = vld [vmem:[%s636 + $0x9a] sm:$0xff]
    %v779 = vld [vmem:[%s636 + $0xaa] sm:$0xff]
    %v780 = vld [vmem:[%s636 + $0xb2] sm:$0xff]
    %v781 = vld [vmem:[%s636 + $0xc2] sm:$0xff]
    %v782 = vld [vmem:[%s636 + $0xca] sm:$0xff]
    %v783 = vld [vmem:[%s636 + $0xda] sm:$0xff]
    %v784 = vld [vmem:[%s636 + $0xe2] sm:$0xff]
    %v785 = vld [vmem:[%s636 + $0xf2] sm:$0xff]
    %v786 = vld [vmem:[%s636 + $0xfa] sm:$0xff]
    %v787 = vld [vmem:[%s636 + $0x10a] sm:$0xff]
    %v788 = vld [vmem:[%s636 + $0x112] sm:$0xff]
    %v789 = vld [vmem:[%s636 + $0x122] sm:$0xff]
    %v790 = vld [vmem:[%s636 + $0x12a] sm:$0xff]
    %v791 = vld [vmem:[%s636 + $0x13a] sm:$0xff]
    %v792 = vld [vmem:[%s636 + $0x142] sm:$0xff]
    %v793 = vld [vmem:[%s636 + $0x152] sm:$0xff]
    %v794 = vld [vmem:[%s636 + $0x15a] sm:$0xff]
    %v795 = vld [vmem:[%s636 + $0x16a] sm:$0xff]
    %v796 = vld [vmem:[%s636 + $0x172] sm:$0xff]
    %v797 = vld [vmem:[%s636 + $0x1b2] sm:$0xff]
    %v798 = vld [vmem:[%s636 + $0x1ba] sm:$0xff]
    %v799 = vld [vmem:[%s636 + $0x1ca] sm:$0xff]
    %v800 = vld [vmem:[%s636 + $0x1d2] sm:$0xff]
    %v801 = vld [vmem:[%s636 + $0x1e2] sm:$0xff]
    %v802 = vld [vmem:[%s636 + $0x1ea] sm:$0xff]
    %v803 = vld [vmem:[%s636 + $0x1fa] sm:$0xff]
    %v804 = vld [vmem:[%s636 + $0x202] sm:$0xff]
    %v805 = vld [vmem:[%s636 + $0x212] sm:$0xff]
    %v806 = vld [vmem:[%s636 + $0x21a] sm:$0xff]
    %v807 = vld [vmem:[%s636 + $0x22a] sm:$0xff]
    %v808 = vld [vmem:[%s636 + $0x232] sm:$0xff]
    %v809 = vld [vmem:[%s636 + $0x242] sm:$0xff]
    %v810 = vld [vmem:[%s636 + $0x24a] sm:$0xff]
    %v811 = vld [vmem:[%s636 + $0x25a] sm:$0xff]
    %v812 = vld [vmem:[%s636 + $0x262] sm:$0xff]
    %v813 = vld [vmem:[%s636 + $0x272] sm:$0xff]
    %v814 = vld [vmem:[%s636 + $0x27a] sm:$0xff]
    %v815 = vld [vmem:[%s636 + $0x28a] sm:$0xff]
    %v816 = vld [vmem:[%s636 + $0x292] sm:$0xff]
    %v817 = vld [vmem:[%s636 + $0x2a2] sm:$0xff]
    %v818 = vld [vmem:[%s636 + $0x2aa] sm:$0xff]
    %v819 = vld [vmem:[%s636 + $0x2ba] sm:$0xff]
    %v820 = vld [vmem:[%s636 + $0x2c2] sm:$0xff]
    %v821 = vld [vmem:[%s636 + $0x2d2] sm:$0xff]
    %v822 = vld [vmem:[%s636 + $0x2da] sm:$0xff]
    %v823 = vld [vmem:[%s636 + $0x2ea] sm:$0xff]
    %v824 = vld [vmem:[%s636 + $0x2f2] sm:$0xff]
    %v825 = vld [vmem:[%s636 + $0x302] sm:$0xff]
    %v826 = vld [vmem:[%s636 + $0x30a] sm:$0xff]
    %v827 = vld [vmem:[%s636 + $0x31a] sm:$0xff]
    %v828 = vld [vmem:[%s636 + $0x322] sm:$0xff]
    %893 = vrot.lane.b32.xlu0 %v316, 2
    %v894 = vpop.permute.xlu0 %893
    %895 = vrot.lane.b32.xlu0 %v317, 2
    %v896 = vpop.permute.xlu0 %895
    %897 = vrot.lane.b32.xlu0 %v318, 2
    %v898 = vpop.permute.xlu0 %897
    %899 = vrot.lane.b32.xlu0 %v319, 2
    %v900 = vpop.permute.xlu0 %899
    %901 = vrot.lane.b32.xlu0 %v320, 2
    %v902 = vpop.permute.xlu0 %901
    %903 = vrot.lane.b32.xlu0 %v321, 2
    %v904 = vpop.permute.xlu0 %903
    %905 = vrot.lane.b32.xlu0 %v322, 2
    %v906 = vpop.permute.xlu0 %905
    %907 = vrot.lane.b32.xlu0 %v323, 2
    %v908 = vpop.permute.xlu0 %907
    %909 = vrot.lane.b32.xlu0 %v324, 2
    %v910 = vpop.permute.xlu0 %909
    %911 = vrot.lane.b32.xlu0 %v325, 2
    %v912 = vpop.permute.xlu0 %911
    %913 = vrot.lane.b32.xlu0 %v326, 2
    %v914 = vpop.permute.xlu0 %913
    %915 = vrot.lane.b32.xlu0 %v327, 2
    %v916 = vpop.permute.xlu0 %915
    %917 = vrot.lane.b32.xlu0 %v328, 2
    %v918 = vpop.permute.xlu0 %917
    %919 = vrot.lane.b32.xlu0 %v329, 2
    %v920 = vpop.permute.xlu0 %919
    %921 = vrot.lane.b32.xlu0 %v330, 2
    %v922 = vpop.permute.xlu0 %921
    %923 = vrot.lane.b32.xlu0 %v331, 2
    %v924 = vpop.permute.xlu0 %923
    %925 = vrot.lane.b32.xlu0 %v332, 2
    %v926 = vpop.permute.xlu0 %925
    %927 = vrot.lane.b32.xlu0 %v333, 2
    %v928 = vpop.permute.xlu0 %927
    %929 = vrot.lane.b32.xlu0 %v334, 2
    %v930 = vpop.permute.xlu0 %929
    %931 = vrot.lane.b32.xlu0 %v335, 2
    %v932 = vpop.permute.xlu0 %931
    %933 = vrot.lane.b32.xlu0 %v336, 2
    %v934 = vpop.permute.xlu0 %933
    %935 = vrot.lane.b32.xlu0 %v337, 2
    %v936 = vpop.permute.xlu0 %935
    %937 = vrot.lane.b32.xlu0 %v338, 2
    %v938 = vpop.permute.xlu0 %937
    %939 = vrot.lane.b32.xlu0 %v339, 2
    %v940 = vpop.permute.xlu0 %939
    %941 = vrot.lane.b32.xlu0 %v340, 2
    %v942 = vpop.permute.xlu0 %941
    %943 = vrot.lane.b32.xlu0 %v341, 2
    %v944 = vpop.permute.xlu0 %943
    %945 = vrot.lane.b32.xlu0 %v342, 2
    %v946 = vpop.permute.xlu0 %945
    %947 = vrot.lane.b32.xlu0 %v343, 2
    %v948 = vpop.permute.xlu0 %947
    %949 = vrot.lane.b32.xlu0 %v344, 2
    %v950 = vpop.permute.xlu0 %949
    %951 = vrot.lane.b32.xlu0 %v345, 2
    %v952 = vpop.permute.xlu0 %951
    %953 = vrot.lane.b32.xlu0 %v346, 2
    %v954 = vpop.permute.xlu0 %953
    %955 = vrot.lane.b32.xlu0 %v347, 2
    %v956 = vpop.permute.xlu0 %955
    %957 = vrot.lane.b32.xlu0 %v348, 2
    %v958 = vpop.permute.xlu0 %957
    %959 = vrot.lane.b32.xlu0 %v349, 2
    %v960 = vpop.permute.xlu0 %959
    %961 = vrot.lane.b32.xlu0 %v350, 2
    %v962 = vpop.permute.xlu0 %961
    %963 = vrot.lane.b32.xlu0 %v351, 2
    %v964 = vpop.permute.xlu0 %963
    %965 = vrot.lane.b32.xlu0 %v352, 2
    %v966 = vpop.permute.xlu0 %965
    %967 = vrot.lane.b32.xlu0 %v353, 2
    %v968 = vpop.permute.xlu0 %967
    %969 = vrot.lane.b32.xlu0 %v354, 2
    %v970 = vpop.permute.xlu0 %969
    %971 = vrot.lane.b32.xlu0 %v355, 2
    %v972 = vpop.permute.xlu0 %971
    %973 = vrot.lane.b32.xlu0 %v356, 2
    %v974 = vpop.permute.xlu0 %973
    %975 = vrot.lane.b32.xlu0 %v357, 2
    %v976 = vpop.permute.xlu0 %975
    %977 = vrot.lane.b32.xlu0 %v358, 2
    %v978 = vpop.permute.xlu0 %977
    %979 = vrot.lane.b32.xlu0 %v359, 2
    %v980 = vpop.permute.xlu0 %979
    %981 = vrot.lane.b32.xlu0 %v360, 2
    %v982 = vpop.permute.xlu0 %981
    %983 = vrot.lane.b32.xlu0 %v361, 2
    %v984 = vpop.permute.xlu0 %983
    %985 = vrot.lane.b32.xlu0 %v362, 2
    %v986 = vpop.permute.xlu0 %985
    %987 = vrot.lane.b32.xlu0 %v363, 2
    %v988 = vpop.permute.xlu0 %987
    %989 = vrot.lane.b32.xlu0 %v364, 2
    %v990 = vpop.permute.xlu0 %989
    %991 = vrot.lane.b32.xlu0 %v365, 2
    %v992 = vpop.permute.xlu0 %991
    %993 = vrot.lane.b32.xlu0 %v366, 2
    %v994 = vpop.permute.xlu0 %993
    %995 = vrot.lane.b32.xlu0 %v367, 2
    %v996 = vpop.permute.xlu0 %995
    %997 = vrot.lane.b32.xlu0 %v368, 2
    %v998 = vpop.permute.xlu0 %997
    %999 = vrot.lane.b32.xlu0 %v369, 2
    %v1000 = vpop.permute.xlu0 %999
    %1001 = vrot.lane.b32.xlu0 %v370, 2
    %v1002 = vpop.permute.xlu0 %1001
    %1003 = vrot.lane.b32.xlu0 %v371, 2
    %v1004 = vpop.permute.xlu0 %1003
    %1005 = vrot.lane.b32.xlu0 %v372, 2
    %v1006 = vpop.permute.xlu0 %1005
    %1007 = vrot.lane.b32.xlu0 %v373, 2
    %v1008 = vpop.permute.xlu0 %1007
    %1009 = vrot.lane.b32.xlu0 %v374, 2
    %v1010 = vpop.permute.xlu0 %1009
    %1011 = vrot.lane.b32.xlu0 %v375, 2
    %v1012 = vpop.permute.xlu0 %1011
    %1013 = vrot.lane.b32.xlu0 %v376, 2
    %v1014 = vpop.permute.xlu0 %1013
    %1015 = vrot.lane.b32.xlu0 %v377, 2
    %v1016 = vpop.permute.xlu0 %1015
    %1017 = vrot.lane.b32.xlu0 %v378, 2
    %v1018 = vpop.permute.xlu0 %1017
    %1019 = vrot.lane.b32.xlu0 %v379, 2
    %v1020 = vpop.permute.xlu0 %1019
    %1149 = vrot.lane.b32.xlu0 %v380, 4
    %v1150 = vpop.permute.xlu0 %1149
    %1151 = vrot.lane.b32.xlu0 %v381, 4
    %v1152 = vpop.permute.xlu0 %1151
    %1153 = vrot.lane.b32.xlu0 %v382, 4
    %v1154 = vpop.permute.xlu0 %1153
    %1155 = vrot.lane.b32.xlu0 %v383, 4
    %v1156 = vpop.permute.xlu0 %1155
    %1157 = vrot.lane.b32.xlu0 %v384, 4
    %v1158 = vpop.permute.xlu0 %1157
    %1159 = vrot.lane.b32.xlu0 %v385, 4
    %v1160 = vpop.permute.xlu0 %1159
    %1161 = vrot.lane.b32.xlu0 %v386, 4
    %v1162 = vpop.permute.xlu0 %1161
    %1163 = vrot.lane.b32.xlu0 %v387, 4
    %v1164 = vpop.permute.xlu0 %1163
    %1165 = vrot.lane.b32.xlu0 %v388, 4
    %v1166 = vpop.permute.xlu0 %1165
    %1167 = vrot.lane.b32.xlu0 %v389, 4
    %v1168 = vpop.permute.xlu0 %1167
    %1169 = vrot.lane.b32.xlu0 %v390, 4
    %v1170 = vpop.permute.xlu0 %1169
    %1171 = vrot.lane.b32.xlu0 %v391, 4
    %v1172 = vpop.permute.xlu0 %1171
    %1173 = vrot.lane.b32.xlu0 %v392, 4
    %v1174 = vpop.permute.xlu0 %1173
    %1175 = vrot.lane.b32.xlu0 %v393, 4
    %v1176 = vpop.permute.xlu0 %1175
    %1177 = vrot.lane.b32.xlu0 %v394, 4
    %v1178 = vpop.permute.xlu0 %1177
    %1179 = vrot.lane.b32.xlu0 %v395, 4
    %v1180 = vpop.permute.xlu0 %1179
    %1181 = vrot.lane.b32.xlu0 %v396, 4
    %v1182 = vpop.permute.xlu0 %1181
    %1183 = vrot.lane.b32.xlu0 %v397, 4
    %v1184 = vpop.permute.xlu0 %1183
    %1185 = vrot.lane.b32.xlu0 %v398, 4
    %v1186 = vpop.permute.xlu0 %1185
    %1187 = vrot.lane.b32.xlu0 %v399, 4
    %v1188 = vpop.permute.xlu0 %1187
    %1189 = vrot.lane.b32.xlu0 %v400, 4
    %v1190 = vpop.permute.xlu0 %1189
    %1191 = vrot.lane.b32.xlu0 %v401, 4
    %v1192 = vpop.permute.xlu0 %1191
    %1193 = vrot.lane.b32.xlu0 %v402, 4
    %v1194 = vpop.permute.xlu0 %1193
    %1195 = vrot.lane.b32.xlu0 %v403, 4
    %v1196 = vpop.permute.xlu0 %1195
    %1197 = vrot.lane.b32.xlu0 %v404, 4
    %v1198 = vpop.permute.xlu0 %1197
    %1199 = vrot.lane.b32.xlu0 %v405, 4
    %v1200 = vpop.permute.xlu0 %1199
    %1201 = vrot.lane.b32.xlu0 %v406, 4
    %v1202 = vpop.permute.xlu0 %1201
    %1203 = vrot.lane.b32.xlu0 %v407, 4
    %v1204 = vpop.permute.xlu0 %1203
    %1205 = vrot.lane.b32.xlu0 %v408, 4
    %v1206 = vpop.permute.xlu0 %1205
    %1207 = vrot.lane.b32.xlu0 %v409, 4
    %v1208 = vpop.permute.xlu0 %1207
    %1209 = vrot.lane.b32.xlu0 %v410, 4
    %v1210 = vpop.permute.xlu0 %1209
    %1211 = vrot.lane.b32.xlu0 %v411, 4
    %v1212 = vpop.permute.xlu0 %1211
    %1213 = vrot.lane.b32.xlu0 %v412, 4
    %v1214 = vpop.permute.xlu0 %1213
    %1215 = vrot.lane.b32.xlu0 %v413, 4
    %v1216 = vpop.permute.xlu0 %1215
    %1217 = vrot.lane.b32.xlu0 %v414, 4
    %v1218 = vpop.permute.xlu0 %1217
    %1219 = vrot.lane.b32.xlu0 %v415, 4
    %v1220 = vpop.permute.xlu0 %1219
    %1221 = vrot.lane.b32.xlu0 %v416, 4
    %v1222 = vpop.permute.xlu0 %1221
    %1223 = vrot.lane.b32.xlu0 %v417, 4
    %v1224 = vpop.permute.xlu0 %1223
    %1225 = vrot.lane.b32.xlu0 %v418, 4
    %v1226 = vpop.permute.xlu0 %1225
    %1227 = vrot.lane.b32.xlu0 %v419, 4
    %v1228 = vpop.permute.xlu0 %1227
    %1229 = vrot.lane.b32.xlu0 %v420, 4
    %v1230 = vpop.permute.xlu0 %1229
    %1231 = vrot.lane.b32.xlu0 %v421, 4
    %v1232 = vpop.permute.xlu0 %1231
    %1233 = vrot.lane.b32.xlu0 %v422, 4
    %v1234 = vpop.permute.xlu0 %1233
    %1235 = vrot.lane.b32.xlu0 %v423, 4
    %v1236 = vpop.permute.xlu0 %1235
    %1237 = vrot.lane.b32.xlu0 %v424, 4
    %v1238 = vpop.permute.xlu0 %1237
    %1239 = vrot.lane.b32.xlu0 %v425, 4
    %v1240 = vpop.permute.xlu0 %1239
    %1241 = vrot.lane.b32.xlu0 %v426, 4
    %v1242 = vpop.permute.xlu0 %1241
    %1243 = vrot.lane.b32.xlu0 %v427, 4
    %v1244 = vpop.permute.xlu0 %1243
    %1245 = vrot.lane.b32.xlu0 %v428, 4
    %v1246 = vpop.permute.xlu0 %1245
    %1247 = vrot.lane.b32.xlu0 %v429, 4
    %v1248 = vpop.permute.xlu0 %1247
    %1249 = vrot.lane.b32.xlu0 %v430, 4
    %v1250 = vpop.permute.xlu0 %1249
    %1251 = vrot.lane.b32.xlu0 %v431, 4
    %v1252 = vpop.permute.xlu0 %1251
    %1253 = vrot.lane.b32.xlu0 %v432, 4
    %v1254 = vpop.permute.xlu0 %1253
    %1255 = vrot.lane.b32.xlu0 %v433, 4
    %v1256 = vpop.permute.xlu0 %1255
    %1257 = vrot.lane.b32.xlu0 %v434, 4
    %v1258 = vpop.permute.xlu0 %1257
    %1259 = vrot.lane.b32.xlu0 %v435, 4
    %v1260 = vpop.permute.xlu0 %1259
    %1261 = vrot.lane.b32.xlu0 %v436, 4
    %v1262 = vpop.permute.xlu0 %1261
    %1263 = vrot.lane.b32.xlu0 %v437, 4
    %v1264 = vpop.permute.xlu0 %1263
    %1265 = vrot.lane.b32.xlu0 %v438, 4
    %v1266 = vpop.permute.xlu0 %1265
    %1267 = vrot.lane.b32.xlu0 %v439, 4
    %v1268 = vpop.permute.xlu0 %1267
    %1269 = vrot.lane.b32.xlu0 %v440, 4
    %v1270 = vpop.permute.xlu0 %1269
    %1271 = vrot.lane.b32.xlu0 %v441, 4
    %v1272 = vpop.permute.xlu0 %1271
    %1273 = vrot.lane.b32.xlu0 %v442, 4
    %v1274 = vpop.permute.xlu0 %1273
    %1275 = vrot.lane.b32.xlu0 %v443, 4
    %v1276 = vpop.permute.xlu0 %1275
    %1405 = vrot.lane.b32.xlu0 %v444, 6
    %v1406 = vpop.permute.xlu0 %1405
    %1407 = vrot.lane.b32.xlu0 %v445, 6
    %v1408 = vpop.permute.xlu0 %1407
    %1409 = vrot.lane.b32.xlu0 %v446, 6
    %v1410 = vpop.permute.xlu0 %1409
    %1411 = vrot.lane.b32.xlu0 %v447, 6
    %v1412 = vpop.permute.xlu0 %1411
    %1413 = vrot.lane.b32.xlu0 %v448, 6
    %v1414 = vpop.permute.xlu0 %1413
    %1415 = vrot.lane.b32.xlu0 %v449, 6
    %v1416 = vpop.permute.xlu0 %1415
    %1417 = vrot.lane.b32.xlu0 %v450, 6
    %v1418 = vpop.permute.xlu0 %1417
    %1419 = vrot.lane.b32.xlu0 %v451, 6
    %v1420 = vpop.permute.xlu0 %1419
    %1421 = vrot.lane.b32.xlu0 %v452, 6
    %v1422 = vpop.permute.xlu0 %1421
    %1423 = vrot.lane.b32.xlu0 %v453, 6
    %v1424 = vpop.permute.xlu0 %1423
    %1425 = vrot.lane.b32.xlu0 %v454, 6
    %v1426 = vpop.permute.xlu0 %1425
    %1427 = vrot.lane.b32.xlu0 %v455, 6
    %v1428 = vpop.permute.xlu0 %1427
    %1429 = vrot.lane.b32.xlu0 %v456, 6
    %v1430 = vpop.permute.xlu0 %1429
    %1431 = vrot.lane.b32.xlu0 %v457, 6
    %v1432 = vpop.permute.xlu0 %1431
    %1433 = vrot.lane.b32.xlu0 %v458, 6
    %v1434 = vpop.permute.xlu0 %1433
    %1435 = vrot.lane.b32.xlu0 %v459, 6
    %v1436 = vpop.permute.xlu0 %1435
    %1437 = vrot.lane.b32.xlu0 %v460, 6
    %v1438 = vpop.permute.xlu0 %1437
    %1439 = vrot.lane.b32.xlu0 %v461, 6
    %v1440 = vpop.permute.xlu0 %1439
    %1441 = vrot.lane.b32.xlu0 %v462, 6
    %v1442 = vpop.permute.xlu0 %1441
    %1443 = vrot.lane.b32.xlu0 %v463, 6
    %v1444 = vpop.permute.xlu0 %1443
    %1445 = vrot.lane.b32.xlu0 %v464, 6
    %v1446 = vpop.permute.xlu0 %1445
    %1447 = vrot.lane.b32.xlu0 %v465, 6
    %v1448 = vpop.permute.xlu0 %1447
    %1449 = vrot.lane.b32.xlu0 %v466, 6
    %v1450 = vpop.permute.xlu0 %1449
    %1451 = vrot.lane.b32.xlu0 %v467, 6
    %v1452 = vpop.permute.xlu0 %1451
    %1453 = vrot.lane.b32.xlu0 %v468, 6
    %v1454 = vpop.permute.xlu0 %1453
    %1455 = vrot.lane.b32.xlu0 %v469, 6
    %v1456 = vpop.permute.xlu0 %1455
    %1457 = vrot.lane.b32.xlu0 %v470, 6
    %v1458 = vpop.permute.xlu0 %1457
    %1459 = vrot.lane.b32.xlu0 %v471, 6
    %v1460 = vpop.permute.xlu0 %1459
    %1461 = vrot.lane.b32.xlu0 %v472, 6
    %v1462 = vpop.permute.xlu0 %1461
    %1463 = vrot.lane.b32.xlu0 %v473, 6
    %v1464 = vpop.permute.xlu0 %1463
    %1465 = vrot.lane.b32.xlu0 %v474, 6
    %v1466 = vpop.permute.xlu0 %1465
    %1467 = vrot.lane.b32.xlu0 %v475, 6
    %v1468 = vpop.permute.xlu0 %1467
    %1469 = vrot.lane.b32.xlu0 %v476, 6
    %v1470 = vpop.permute.xlu0 %1469
    %1471 = vrot.lane.b32.xlu0 %v477, 6
    %v1472 = vpop.permute.xlu0 %1471
    %1473 = vrot.lane.b32.xlu0 %v478, 6
    %v1474 = vpop.permute.xlu0 %1473
    %1475 = vrot.lane.b32.xlu0 %v479, 6
    %v1476 = vpop.permute.xlu0 %1475
    %1477 = vrot.lane.b32.xlu0 %v480, 6
    %v1478 = vpop.permute.xlu0 %1477
    %1479 = vrot.lane.b32.xlu0 %v481, 6
    %v1480 = vpop.permute.xlu0 %1479
    %1481 = vrot.lane.b32.xlu0 %v482, 6
    %v1482 = vpop.permute.xlu0 %1481
    %1483 = vrot.lane.b32.xlu0 %v483, 6
    %v1484 = vpop.permute.xlu0 %1483
    %1485 = vrot.lane.b32.xlu0 %v484, 6
    %v1486 = vpop.permute.xlu0 %1485
    %1487 = vrot.lane.b32.xlu0 %v485, 6
    %v1488 = vpop.permute.xlu0 %1487
    %1489 = vrot.lane.b32.xlu0 %v486, 6
    %v1490 = vpop.permute.xlu0 %1489
    %1491 = vrot.lane.b32.xlu0 %v487, 6
    %v1492 = vpop.permute.xlu0 %1491
    %1493 = vrot.lane.b32.xlu0 %v488, 6
    %v1494 = vpop.permute.xlu0 %1493
    %1495 = vrot.lane.b32.xlu0 %v489, 6
    %v1496 = vpop.permute.xlu0 %1495
    %1497 = vrot.lane.b32.xlu0 %v490, 6
    %v1498 = vpop.permute.xlu0 %1497
    %1499 = vrot.lane.b32.xlu0 %v491, 6
    %v1500 = vpop.permute.xlu0 %1499
    %1501 = vrot.lane.b32.xlu0 %v492, 6
    %v1502 = vpop.permute.xlu0 %1501
    %1503 = vrot.lane.b32.xlu0 %v493, 6
    %v1504 = vpop.permute.xlu0 %1503
    %1505 = vrot.lane.b32.xlu0 %v494, 6
    %v1506 = vpop.permute.xlu0 %1505
    %1507 = vrot.lane.b32.xlu0 %v495, 6
    %v1508 = vpop.permute.xlu0 %1507
    %1509 = vrot.lane.b32.xlu0 %v496, 6
    %v1510 = vpop.permute.xlu0 %1509
    %1511 = vrot.lane.b32.xlu0 %v497, 6
    %v1512 = vpop.permute.xlu0 %1511
    %1513 = vrot.lane.b32.xlu0 %v498, 6
    %v1514 = vpop.permute.xlu0 %1513
    %1515 = vrot.lane.b32.xlu0 %v499, 6
    %v1516 = vpop.permute.xlu0 %1515
    %1517 = vrot.lane.b32.xlu0 %v500, 6
    %v1518 = vpop.permute.xlu0 %1517
    %1519 = vrot.lane.b32.xlu0 %v501, 6
    %v1520 = vpop.permute.xlu0 %1519
    %1521 = vrot.lane.b32.xlu0 %v502, 6
    %v1522 = vpop.permute.xlu0 %1521
    %1523 = vrot.lane.b32.xlu0 %v503, 6
    %v1524 = vpop.permute.xlu0 %1523
    %1525 = vrot.lane.b32.xlu0 %v504, 6
    %v1526 = vpop.permute.xlu0 %1525
    %1527 = vrot.lane.b32.xlu0 %v505, 6
    %v1528 = vpop.permute.xlu0 %1527
    %1529 = vrot.lane.b32.xlu0 %v506, 6
    %v1530 = vpop.permute.xlu0 %1529
    %1531 = vrot.lane.b32.xlu0 %v507, 6
    %v1532 = vpop.permute.xlu0 %1531
    %1661 = vrot.lane.b32.xlu0 %v508, 8
    %v1662 = vpop.permute.xlu0 %1661
    %1663 = vrot.lane.b32.xlu0 %v509, 8
    %v1664 = vpop.permute.xlu0 %1663
    %1665 = vrot.lane.b32.xlu0 %v510, 8
    %v1666 = vpop.permute.xlu0 %1665
    %1667 = vrot.lane.b32.xlu0 %v511, 8
    %v1668 = vpop.permute.xlu0 %1667
    %1669 = vrot.lane.b32.xlu0 %v512, 8
    %v1670 = vpop.permute.xlu0 %1669
    %1671 = vrot.lane.b32.xlu0 %v513, 8
    %v1672 = vpop.permute.xlu0 %1671
    %1673 = vrot.lane.b32.xlu0 %v514, 8
    %v1674 = vpop.permute.xlu0 %1673
    %1675 = vrot.lane.b32.xlu0 %v515, 8
    %v1676 = vpop.permute.xlu0 %1675
    %1677 = vrot.lane.b32.xlu0 %v516, 8
    %v1678 = vpop.permute.xlu0 %1677
    %1679 = vrot.lane.b32.xlu0 %v517, 8
    %v1680 = vpop.permute.xlu0 %1679
    %1681 = vrot.lane.b32.xlu0 %v518, 8
    %v1682 = vpop.permute.xlu0 %1681
    %1683 = vrot.lane.b32.xlu0 %v519, 8
    %v1684 = vpop.permute.xlu0 %1683
    %1685 = vrot.lane.b32.xlu0 %v520, 8
    %v1686 = vpop.permute.xlu0 %1685
    %1687 = vrot.lane.b32.xlu0 %v521, 8
    %v1688 = vpop.permute.xlu0 %1687
    %1689 = vrot.lane.b32.xlu0 %v522, 8
    %v1690 = vpop.permute.xlu0 %1689
    %1691 = vrot.lane.b32.xlu0 %v523, 8
    %v1692 = vpop.permute.xlu0 %1691
    %1693 = vrot.lane.b32.xlu0 %v524, 8
    %v1694 = vpop.permute.xlu0 %1693
    %1695 = vrot.lane.b32.xlu0 %v525, 8
    %v1696 = vpop.permute.xlu0 %1695
    %1697 = vrot.lane.b32.xlu0 %v526, 8
    %v1698 = vpop.permute.xlu0 %1697
    %1699 = vrot.lane.b32.xlu0 %v527, 8
    %v1700 = vpop.permute.xlu0 %1699
    %1701 = vrot.lane.b32.xlu0 %v528, 8
    %v1702 = vpop.permute.xlu0 %1701
    %1703 = vrot.lane.b32.xlu0 %v529, 8
    %v1704 = vpop.permute.xlu0 %1703
    %1705 = vrot.lane.b32.xlu0 %v530, 8
    %v1706 = vpop.permute.xlu0 %1705
    %1707 = vrot.lane.b32.xlu0 %v531, 8
    %v1708 = vpop.permute.xlu0 %1707
    %1709 = vrot.lane.b32.xlu0 %v532, 8
    %v1710 = vpop.permute.xlu0 %1709
    %1711 = vrot.lane.b32.xlu0 %v533, 8
    %v1712 = vpop.permute.xlu0 %1711
    %1713 = vrot.lane.b32.xlu0 %v534, 8
    %v1714 = vpop.permute.xlu0 %1713
    %1715 = vrot.lane.b32.xlu0 %v535, 8
    %v1716 = vpop.permute.xlu0 %1715
    %1717 = vrot.lane.b32.xlu0 %v536, 8
    %v1718 = vpop.permute.xlu0 %1717
    %1719 = vrot.lane.b32.xlu0 %v537, 8
    %v1720 = vpop.permute.xlu0 %1719
    %1721 = vrot.lane.b32.xlu0 %v538, 8
    %v1722 = vpop.permute.xlu0 %1721
    %1723 = vrot.lane.b32.xlu0 %v539, 8
    %v1724 = vpop.permute.xlu0 %1723
    %1725 = vrot.lane.b32.xlu0 %v540, 8
    %v1726 = vpop.permute.xlu0 %1725
    %1727 = vrot.lane.b32.xlu0 %v541, 8
    %v1728 = vpop.permute.xlu0 %1727
    %1729 = vrot.lane.b32.xlu0 %v542, 8
    %v1730 = vpop.permute.xlu0 %1729
    %1731 = vrot.lane.b32.xlu0 %v543, 8
    %v1732 = vpop.permute.xlu0 %1731
    %1733 = vrot.lane.b32.xlu0 %v544, 8
    %v1734 = vpop.permute.xlu0 %1733
    %1735 = vrot.lane.b32.xlu0 %v545, 8
    %v1736 = vpop.permute.xlu0 %1735
    %1737 = vrot.lane.b32.xlu0 %v546, 8
    %v1738 = vpop.permute.xlu0 %1737
    %1739 = vrot.lane.b32.xlu0 %v547, 8
    %v1740 = vpop.permute.xlu0 %1739
    %1741 = vrot.lane.b32.xlu0 %v548, 8
    %v1742 = vpop.permute.xlu0 %1741
    %1743 = vrot.lane.b32.xlu0 %v549, 8
    %v1744 = vpop.permute.xlu0 %1743
    %1745 = vrot.lane.b32.xlu0 %v550, 8
    %v1746 = vpop.permute.xlu0 %1745
    %1747 = vrot.lane.b32.xlu0 %v551, 8
    %v1748 = vpop.permute.xlu0 %1747
    %1749 = vrot.lane.b32.xlu0 %v552, 8
    %v1750 = vpop.permute.xlu0 %1749
    %1751 = vrot.lane.b32.xlu0 %v553, 8
    %v1752 = vpop.permute.xlu0 %1751
    %1753 = vrot.lane.b32.xlu0 %v554, 8
    %v1754 = vpop.permute.xlu0 %1753
    %1755 = vrot.lane.b32.xlu0 %v555, 8
    %v1756 = vpop.permute.xlu0 %1755
    %1757 = vrot.lane.b32.xlu0 %v556, 8
    %v1758 = vpop.permute.xlu0 %1757
    %1759 = vrot.lane.b32.xlu0 %v557, 8
    %v1760 = vpop.permute.xlu0 %1759
    %1761 = vrot.lane.b32.xlu0 %v558, 8
    %v1762 = vpop.permute.xlu0 %1761
    %1763 = vrot.lane.b32.xlu0 %v559, 8
    %v1764 = vpop.permute.xlu0 %1763
    %1765 = vrot.lane.b32.xlu0 %v560, 8
    %v1766 = vpop.permute.xlu0 %1765
    %1767 = vrot.lane.b32.xlu0 %v561, 8
    %v1768 = vpop.permute.xlu0 %1767
    %1769 = vrot.lane.b32.xlu0 %v562, 8
    %v1770 = vpop.permute.xlu0 %1769
    %1771 = vrot.lane.b32.xlu0 %v563, 8
    %v1772 = vpop.permute.xlu0 %1771
    %1773 = vrot.lane.b32.xlu0 %v564, 8
    %v1774 = vpop.permute.xlu0 %1773
    %1775 = vrot.lane.b32.xlu0 %v565, 8
    %v1776 = vpop.permute.xlu0 %1775
    %1777 = vrot.lane.b32.xlu0 %v566, 8
    %v1778 = vpop.permute.xlu0 %1777
    %1779 = vrot.lane.b32.xlu0 %v567, 8
    %v1780 = vpop.permute.xlu0 %1779
    %1781 = vrot.lane.b32.xlu0 %v568, 8
    %v1782 = vpop.permute.xlu0 %1781
    %1783 = vrot.lane.b32.xlu0 %v569, 8
    %v1784 = vpop.permute.xlu0 %1783
    %1785 = vrot.lane.b32.xlu0 %v570, 8
    %v1786 = vpop.permute.xlu0 %1785
    %1787 = vrot.lane.b32.xlu0 %v571, 8
    %v1788 = vpop.permute.xlu0 %1787
    %1917 = vrot.lane.b32.xlu0 %v572, 10
    %v1918 = vpop.permute.xlu0 %1917
    %1919 = vrot.lane.b32.xlu0 %v573, 10
    %v1920 = vpop.permute.xlu0 %1919
    %1921 = vrot.lane.b32.xlu0 %v574, 10
    %v1922 = vpop.permute.xlu0 %1921
    %1923 = vrot.lane.b32.xlu0 %v575, 10
    %v1924 = vpop.permute.xlu0 %1923
    %1925 = vrot.lane.b32.xlu0 %v576, 10
    %v1926 = vpop.permute.xlu0 %1925
    %1927 = vrot.lane.b32.xlu0 %v577, 10
    %v1928 = vpop.permute.xlu0 %1927
    %1929 = vrot.lane.b32.xlu0 %v578, 10
    %v1930 = vpop.permute.xlu0 %1929
    %1931 = vrot.lane.b32.xlu0 %v579, 10
    %v1932 = vpop.permute.xlu0 %1931
    %1933 = vrot.lane.b32.xlu0 %v580, 10
    %v1934 = vpop.permute.xlu0 %1933
    %1935 = vrot.lane.b32.xlu0 %v581, 10
    %v1936 = vpop.permute.xlu0 %1935
    %1937 = vrot.lane.b32.xlu0 %v582, 10
    %v1938 = vpop.permute.xlu0 %1937
    %1939 = vrot.lane.b32.xlu0 %v583, 10
    %v1940 = vpop.permute.xlu0 %1939
    %1941 = vrot.lane.b32.xlu0 %v584, 10
    %v1942 = vpop.permute.xlu0 %1941
    %1943 = vrot.lane.b32.xlu0 %v585, 10
    %v1944 = vpop.permute.xlu0 %1943
    %1945 = vrot.lane.b32.xlu0 %v586, 10
    %v1946 = vpop.permute.xlu0 %1945
    %1947 = vrot.lane.b32.xlu0 %v587, 10
    %v1948 = vpop.permute.xlu0 %1947
    %1949 = vrot.lane.b32.xlu0 %v588, 10
    %v1950 = vpop.permute.xlu0 %1949
    %1951 = vrot.lane.b32.xlu0 %v589, 10
    %v1952 = vpop.permute.xlu0 %1951
    %1953 = vrot.lane.b32.xlu0 %v590, 10
    %v1954 = vpop.permute.xlu0 %1953
    %1955 = vrot.lane.b32.xlu0 %v591, 10
    %v1956 = vpop.permute.xlu0 %1955
    %1957 = vrot.lane.b32.xlu0 %v592, 10
    %v1958 = vpop.permute.xlu0 %1957
    %1959 = vrot.lane.b32.xlu0 %v593, 10
    %v1960 = vpop.permute.xlu0 %1959
    %1961 = vrot.lane.b32.xlu0 %v594, 10
    %v1962 = vpop.permute.xlu0 %1961
    %1963 = vrot.lane.b32.xlu0 %v595, 10
    %v1964 = vpop.permute.xlu0 %1963
    %1965 = vrot.lane.b32.xlu0 %v596, 10
    %v1966 = vpop.permute.xlu0 %1965
    %1967 = vrot.lane.b32.xlu0 %v597, 10
    %v1968 = vpop.permute.xlu0 %1967
    %1969 = vrot.lane.b32.xlu0 %v598, 10
    %v1970 = vpop.permute.xlu0 %1969
    %1971 = vrot.lane.b32.xlu0 %v599, 10
    %v1972 = vpop.permute.xlu0 %1971
    %1973 = vrot.lane.b32.xlu0 %v600, 10
    %v1974 = vpop.permute.xlu0 %1973
    %1975 = vrot.lane.b32.xlu0 %v601, 10
    %v1976 = vpop.permute.xlu0 %1975
    %1977 = vrot.lane.b32.xlu0 %v602, 10
    %v1978 = vpop.permute.xlu0 %1977
    %1979 = vrot.lane.b32.xlu0 %v603, 10
    %v1980 = vpop.permute.xlu0 %1979
    %1981 = vrot.lane.b32.xlu0 %v604, 10
    %v1982 = vpop.permute.xlu0 %1981
    %1983 = vrot.lane.b32.xlu0 %v605, 10
    %v1984 = vpop.permute.xlu0 %1983
    %1985 = vrot.lane.b32.xlu0 %v606, 10
    %v1986 = vpop.permute.xlu0 %1985
    %1987 = vrot.lane.b32.xlu0 %v607, 10
    %v1988 = vpop.permute.xlu0 %1987
    %1989 = vrot.lane.b32.xlu0 %v608, 10
    %v1990 = vpop.permute.xlu0 %1989
    %1991 = vrot.lane.b32.xlu0 %v609, 10
    %v1992 = vpop.permute.xlu0 %1991
    %1993 = vrot.lane.b32.xlu0 %v610, 10
    %v1994 = vpop.permute.xlu0 %1993
    %1995 = vrot.lane.b32.xlu0 %v611, 10
    %v1996 = vpop.permute.xlu0 %1995
    %1997 = vrot.lane.b32.xlu0 %v612, 10
    %v1998 = vpop.permute.xlu0 %1997
    %1999 = vrot.lane.b32.xlu0 %v613, 10
    %v2000 = vpop.permute.xlu0 %1999
    %2001 = vrot.lane.b32.xlu0 %v614, 10
    %v2002 = vpop.permute.xlu0 %2001
    %2003 = vrot.lane.b32.xlu0 %v615, 10
    %v2004 = vpop.permute.xlu0 %2003
    %2005 = vrot.lane.b32.xlu0 %v616, 10
    %v2006 = vpop.permute.xlu0 %2005
    %2007 = vrot.lane.b32.xlu0 %v617, 10
    %v2008 = vpop.permute.xlu0 %2007
    %2009 = vrot.lane.b32.xlu0 %v618, 10
    %v2010 = vpop.permute.xlu0 %2009
    %2011 = vrot.lane.b32.xlu0 %v619, 10
    %v2012 = vpop.permute.xlu0 %2011
    %2013 = vrot.lane.b32.xlu0 %v620, 10
    %v2014 = vpop.permute.xlu0 %2013
    %2015 = vrot.lane.b32.xlu0 %v621, 10
    %v2016 = vpop.permute.xlu0 %2015
    %2017 = vrot.lane.b32.xlu0 %v622, 10
    %v2018 = vpop.permute.xlu0 %2017
    %2019 = vrot.lane.b32.xlu0 %v623, 10
    %v2020 = vpop.permute.xlu0 %2019
    %2021 = vrot.lane.b32.xlu0 %v624, 10
    %v2022 = vpop.permute.xlu0 %2021
    %2023 = vrot.lane.b32.xlu0 %v625, 10
    %v2024 = vpop.permute.xlu0 %2023
    %2025 = vrot.lane.b32.xlu0 %v626, 10
    %v2026 = vpop.permute.xlu0 %2025
    %2027 = vrot.lane.b32.xlu0 %v627, 10
    %v2028 = vpop.permute.xlu0 %2027
    %2029 = vrot.lane.b32.xlu0 %v628, 10
    %v2030 = vpop.permute.xlu0 %2029
    %2031 = vrot.lane.b32.xlu0 %v629, 10
    %v2032 = vpop.permute.xlu0 %2031
    %2033 = vrot.lane.b32.xlu0 %v630, 10
    %v2034 = vpop.permute.xlu0 %2033
    %2035 = vrot.lane.b32.xlu0 %v631, 10
    %v2036 = vpop.permute.xlu0 %2035
    %2037 = vrot.lane.b32.xlu0 %v632, 10
    %v2038 = vpop.permute.xlu0 %2037
    %2039 = vrot.lane.b32.xlu0 %v633, 10
    %v2040 = vpop.permute.xlu0 %2039
    %2041 = vrot.lane.b32.xlu0 %v634, 10
    %v2042 = vpop.permute.xlu0 %2041
    %2043 = vrot.lane.b32.xlu0 %v635, 10
    %v2044 = vpop.permute.xlu0 %2043
    %2173 = vrot.lane.b32.xlu0 %v637, 12
    %v2174 = vpop.permute.xlu0 %2173
    %2175 = vrot.lane.b32.xlu0 %v638, 12
    %v2176 = vpop.permute.xlu0 %2175
    %2177 = vrot.lane.b32.xlu0 %v639, 12
    %v2178 = vpop.permute.xlu0 %2177
    %2179 = vrot.lane.b32.xlu0 %v640, 12
    %v2180 = vpop.permute.xlu0 %2179
    %2181 = vrot.lane.b32.xlu0 %v641, 12
    %v2182 = vpop.permute.xlu0 %2181
    %2183 = vrot.lane.b32.xlu0 %v642, 12
    %v2184 = vpop.permute.xlu0 %2183
    %2185 = vrot.lane.b32.xlu0 %v643, 12
    %v2186 = vpop.permute.xlu0 %2185
    %2187 = vrot.lane.b32.xlu0 %v644, 12
    %v2188 = vpop.permute.xlu0 %2187
    %2189 = vrot.lane.b32.xlu0 %v645, 12
    %v2190 = vpop.permute.xlu0 %2189
    %2191 = vrot.lane.b32.xlu0 %v646, 12
    %v2192 = vpop.permute.xlu0 %2191
    %2193 = vrot.lane.b32.xlu0 %v647, 12
    %v2194 = vpop.permute.xlu0 %2193
    %2195 = vrot.lane.b32.xlu0 %v648, 12
    %v2196 = vpop.permute.xlu0 %2195
    %2197 = vrot.lane.b32.xlu0 %v649, 12
    %v2198 = vpop.permute.xlu0 %2197
    %2199 = vrot.lane.b32.xlu0 %v650, 12
    %v2200 = vpop.permute.xlu0 %2199
    %2201 = vrot.lane.b32.xlu0 %v651, 12
    %v2202 = vpop.permute.xlu0 %2201
    %2203 = vrot.lane.b32.xlu0 %v652, 12
    %v2204 = vpop.permute.xlu0 %2203
    %2205 = vrot.lane.b32.xlu0 %v653, 12
    %v2206 = vpop.permute.xlu0 %2205
    %2207 = vrot.lane.b32.xlu0 %v654, 12
    %v2208 = vpop.permute.xlu0 %2207
    %2209 = vrot.lane.b32.xlu0 %v655, 12
    %v2210 = vpop.permute.xlu0 %2209
    %2211 = vrot.lane.b32.xlu0 %v656, 12
    %v2212 = vpop.permute.xlu0 %2211
    %2213 = vrot.lane.b32.xlu0 %v657, 12
    %v2214 = vpop.permute.xlu0 %2213
    %2215 = vrot.lane.b32.xlu0 %v658, 12
    %v2216 = vpop.permute.xlu0 %2215
    %2217 = vrot.lane.b32.xlu0 %v659, 12
    %v2218 = vpop.permute.xlu0 %2217
    %2219 = vrot.lane.b32.xlu0 %v660, 12
    %v2220 = vpop.permute.xlu0 %2219
    %2221 = vrot.lane.b32.xlu0 %v661, 12
    %v2222 = vpop.permute.xlu0 %2221
    %2223 = vrot.lane.b32.xlu0 %v662, 12
    %v2224 = vpop.permute.xlu0 %2223
    %2225 = vrot.lane.b32.xlu0 %v663, 12
    %v2226 = vpop.permute.xlu0 %2225
    %2227 = vrot.lane.b32.xlu0 %v664, 12
    %v2228 = vpop.permute.xlu0 %2227
    %2229 = vrot.lane.b32.xlu0 %v665, 12
    %v2230 = vpop.permute.xlu0 %2229
    %2231 = vrot.lane.b32.xlu0 %v666, 12
    %v2232 = vpop.permute.xlu0 %2231
    %2233 = vrot.lane.b32.xlu0 %v667, 12
    %v2234 = vpop.permute.xlu0 %2233
    %2235 = vrot.lane.b32.xlu0 %v668, 12
    %v2236 = vpop.permute.xlu0 %2235
    %2237 = vrot.lane.b32.xlu0 %v669, 12
    %v2238 = vpop.permute.xlu0 %2237
    %2239 = vrot.lane.b32.xlu0 %v670, 12
    %v2240 = vpop.permute.xlu0 %2239
    %2241 = vrot.lane.b32.xlu0 %v671, 12
    %v2242 = vpop.permute.xlu0 %2241
    %2243 = vrot.lane.b32.xlu0 %v672, 12
    %v2244 = vpop.permute.xlu0 %2243
    %2245 = vrot.lane.b32.xlu0 %v673, 12
    %v2246 = vpop.permute.xlu0 %2245
    %2247 = vrot.lane.b32.xlu0 %v674, 12
    %v2248 = vpop.permute.xlu0 %2247
    %2249 = vrot.lane.b32.xlu0 %v675, 12
    %v2250 = vpop.permute.xlu0 %2249
    %2251 = vrot.lane.b32.xlu0 %v676, 12
    %v2252 = vpop.permute.xlu0 %2251
    %2253 = vrot.lane.b32.xlu0 %v677, 12
    %v2254 = vpop.permute.xlu0 %2253
    %2255 = vrot.lane.b32.xlu0 %v678, 12
    %v2256 = vpop.permute.xlu0 %2255
    %2257 = vrot.lane.b32.xlu0 %v679, 12
    %v2258 = vpop.permute.xlu0 %2257
    %2259 = vrot.lane.b32.xlu0 %v680, 12
    %v2260 = vpop.permute.xlu0 %2259
    %2261 = vrot.lane.b32.xlu0 %v681, 12
    %v2262 = vpop.permute.xlu0 %2261
    %2263 = vrot.lane.b32.xlu0 %v682, 12
    %v2264 = vpop.permute.xlu0 %2263
    %2265 = vrot.lane.b32.xlu0 %v683, 12
    %v2266 = vpop.permute.xlu0 %2265
    %2267 = vrot.lane.b32.xlu0 %v684, 12
    %v2268 = vpop.permute.xlu0 %2267
    %2269 = vrot.lane.b32.xlu0 %v685, 12
    %v2270 = vpop.permute.xlu0 %2269
    %2271 = vrot.lane.b32.xlu0 %v686, 12
    %v2272 = vpop.permute.xlu0 %2271
    %2273 = vrot.lane.b32.xlu0 %v687, 12
    %v2274 = vpop.permute.xlu0 %2273
    %2275 = vrot.lane.b32.xlu0 %v688, 12
    %v2276 = vpop.permute.xlu0 %2275
    %2277 = vrot.lane.b32.xlu0 %v689, 12
    %v2278 = vpop.permute.xlu0 %2277
    %2279 = vrot.lane.b32.xlu0 %v690, 12
    %v2280 = vpop.permute.xlu0 %2279
    %2281 = vrot.lane.b32.xlu0 %v691, 12
    %v2282 = vpop.permute.xlu0 %2281
    %2283 = vrot.lane.b32.xlu0 %v692, 12
    %v2284 = vpop.permute.xlu0 %2283
    %2285 = vrot.lane.b32.xlu0 %v693, 12
    %v2286 = vpop.permute.xlu0 %2285
    %2287 = vrot.lane.b32.xlu0 %v694, 12
    %v2288 = vpop.permute.xlu0 %2287
    %2289 = vrot.lane.b32.xlu0 %v695, 12
    %v2290 = vpop.permute.xlu0 %2289
    %2291 = vrot.lane.b32.xlu0 %v696, 12
    %v2292 = vpop.permute.xlu0 %2291
    %2293 = vrot.lane.b32.xlu0 %v697, 12
    %v2294 = vpop.permute.xlu0 %2293
    %2295 = vrot.lane.b32.xlu0 %v698, 12
    %v2296 = vpop.permute.xlu0 %2295
    %2297 = vrot.lane.b32.xlu0 %v699, 12
    %v2298 = vpop.permute.xlu0 %2297
    %2299 = vrot.lane.b32.xlu0 %v700, 12
    %v2300 = vpop.permute.xlu0 %2299
    %2429 = vrot.lane.b32.xlu0 %v701, 14
    %v2430 = vpop.permute.xlu0 %2429
    %2431 = vrot.lane.b32.xlu0 %v702, 14
    %v2432 = vpop.permute.xlu0 %2431
    %2433 = vrot.lane.b32.xlu0 %v703, 14
    %v2434 = vpop.permute.xlu0 %2433
    %2435 = vrot.lane.b32.xlu0 %v704, 14
    %v2436 = vpop.permute.xlu0 %2435
    %2437 = vrot.lane.b32.xlu0 %v705, 14
    %v2438 = vpop.permute.xlu0 %2437
    %2439 = vrot.lane.b32.xlu0 %v706, 14
    %v2440 = vpop.permute.xlu0 %2439
    %2441 = vrot.lane.b32.xlu0 %v707, 14
    %v2442 = vpop.permute.xlu0 %2441
    %2443 = vrot.lane.b32.xlu0 %v708, 14
    %v2444 = vpop.permute.xlu0 %2443
    %2445 = vrot.lane.b32.xlu0 %v709, 14
    %v2446 = vpop.permute.xlu0 %2445
    %2447 = vrot.lane.b32.xlu0 %v710, 14
    %v2448 = vpop.permute.xlu0 %2447
    %2449 = vrot.lane.b32.xlu0 %v711, 14
    %v2450 = vpop.permute.xlu0 %2449
    %2451 = vrot.lane.b32.xlu0 %v712, 14
    %v2452 = vpop.permute.xlu0 %2451
    %2453 = vrot.lane.b32.xlu0 %v713, 14
    %v2454 = vpop.permute.xlu0 %2453
    %2455 = vrot.lane.b32.xlu0 %v714, 14
    %v2456 = vpop.permute.xlu0 %2455
    %2457 = vrot.lane.b32.xlu0 %v715, 14
    %v2458 = vpop.permute.xlu0 %2457
    %2459 = vrot.lane.b32.xlu0 %v716, 14
    %v2460 = vpop.permute.xlu0 %2459
    %2461 = vrot.lane.b32.xlu0 %v717, 14
    %v2462 = vpop.permute.xlu0 %2461
    %2463 = vrot.lane.b32.xlu0 %v718, 14
    %v2464 = vpop.permute.xlu0 %2463
    %2465 = vrot.lane.b32.xlu0 %v719, 14
    %v2466 = vpop.permute.xlu0 %2465
    %2467 = vrot.lane.b32.xlu0 %v720, 14
    %v2468 = vpop.permute.xlu0 %2467
    %2469 = vrot.lane.b32.xlu0 %v721, 14
    %v2470 = vpop.permute.xlu0 %2469
    %2471 = vrot.lane.b32.xlu0 %v722, 14
    %v2472 = vpop.permute.xlu0 %2471
    %2473 = vrot.lane.b32.xlu0 %v723, 14
    %v2474 = vpop.permute.xlu0 %2473
    %2475 = vrot.lane.b32.xlu0 %v724, 14
    %v2476 = vpop.permute.xlu0 %2475
    %2477 = vrot.lane.b32.xlu0 %v725, 14
    %v2478 = vpop.permute.xlu0 %2477
    %2479 = vrot.lane.b32.xlu0 %v726, 14
    %v2480 = vpop.permute.xlu0 %2479
    %2481 = vrot.lane.b32.xlu0 %v727, 14
    %v2482 = vpop.permute.xlu0 %2481
    %2483 = vrot.lane.b32.xlu0 %v728, 14
    %v2484 = vpop.permute.xlu0 %2483
    %2485 = vrot.lane.b32.xlu0 %v729, 14
    %v2486 = vpop.permute.xlu0 %2485
    %2487 = vrot.lane.b32.xlu0 %v730, 14
    %v2488 = vpop.permute.xlu0 %2487
    %2489 = vrot.lane.b32.xlu0 %v731, 14
    %v2490 = vpop.permute.xlu0 %2489
    %2491 = vrot.lane.b32.xlu0 %v732, 14
    %v2492 = vpop.permute.xlu0 %2491
    %2493 = vrot.lane.b32.xlu0 %v733, 14
    %v2494 = vpop.permute.xlu0 %2493
    %2495 = vrot.lane.b32.xlu0 %v734, 14
    %v2496 = vpop.permute.xlu0 %2495
    %2497 = vrot.lane.b32.xlu0 %v735, 14
    %v2498 = vpop.permute.xlu0 %2497
    %2499 = vrot.lane.b32.xlu0 %v736, 14
    %v2500 = vpop.permute.xlu0 %2499
    %2501 = vrot.lane.b32.xlu0 %v737, 14
    %v2502 = vpop.permute.xlu0 %2501
    %2503 = vrot.lane.b32.xlu0 %v738, 14
    %v2504 = vpop.permute.xlu0 %2503
    %2505 = vrot.lane.b32.xlu0 %v739, 14
    %v2506 = vpop.permute.xlu0 %2505
    %2507 = vrot.lane.b32.xlu0 %v740, 14
    %v2508 = vpop.permute.xlu0 %2507
    %2509 = vrot.lane.b32.xlu0 %v741, 14
    %v2510 = vpop.permute.xlu0 %2509
    %2511 = vrot.lane.b32.xlu0 %v742, 14
    %v2512 = vpop.permute.xlu0 %2511
    %2513 = vrot.lane.b32.xlu0 %v743, 14
    %v2514 = vpop.permute.xlu0 %2513
    %2515 = vrot.lane.b32.xlu0 %v744, 14
    %v2516 = vpop.permute.xlu0 %2515
    %2517 = vrot.lane.b32.xlu0 %v745, 14
    %v2518 = vpop.permute.xlu0 %2517
    %2519 = vrot.lane.b32.xlu0 %v746, 14
    %v2520 = vpop.permute.xlu0 %2519
    %2521 = vrot.lane.b32.xlu0 %v747, 14
    %v2522 = vpop.permute.xlu0 %2521
    %2523 = vrot.lane.b32.xlu0 %v748, 14
    %v2524 = vpop.permute.xlu0 %2523
    %2525 = vrot.lane.b32.xlu0 %v749, 14
    %v2526 = vpop.permute.xlu0 %2525
    %2527 = vrot.lane.b32.xlu0 %v750, 14
    %v2528 = vpop.permute.xlu0 %2527
    %2529 = vrot.lane.b32.xlu0 %v751, 14
    %v2530 = vpop.permute.xlu0 %2529
    %2531 = vrot.lane.b32.xlu0 %v752, 14
    %v2532 = vpop.permute.xlu0 %2531
    %2533 = vrot.lane.b32.xlu0 %v753, 14
    %v2534 = vpop.permute.xlu0 %2533
    %2535 = vrot.lane.b32.xlu0 %v754, 14
    %v2536 = vpop.permute.xlu0 %2535
    %2537 = vrot.lane.b32.xlu0 %v755, 14
    %v2538 = vpop.permute.xlu0 %2537
    %2539 = vrot.lane.b32.xlu0 %v756, 14
    %v2540 = vpop.permute.xlu0 %2539
    %2541 = vrot.lane.b32.xlu0 %v757, 14
    %v2542 = vpop.permute.xlu0 %2541
    %2543 = vrot.lane.b32.xlu0 %v758, 14
    %v2544 = vpop.permute.xlu0 %2543
    %2545 = vrot.lane.b32.xlu0 %v759, 14
    %v2546 = vpop.permute.xlu0 %2545
    %2547 = vrot.lane.b32.xlu0 %v760, 14
    %v2548 = vpop.permute.xlu0 %2547
    %2549 = vrot.lane.b32.xlu0 %v761, 14
    %v2550 = vpop.permute.xlu0 %2549
    %2551 = vrot.lane.b32.xlu0 %v762, 14
    %v2552 = vpop.permute.xlu0 %2551
    %2553 = vrot.lane.b32.xlu0 %v763, 14
    %v2554 = vpop.permute.xlu0 %2553
    %2555 = vrot.lane.b32.xlu0 %v764, 14
    %v2556 = vpop.permute.xlu0 %2555
    %2685 = vrot.lane.b32.xlu0 %v765, 16
    %v2686 = vpop.permute.xlu0 %2685
    %2687 = vrot.lane.b32.xlu0 %v766, 16
    %v2688 = vpop.permute.xlu0 %2687
    %2689 = vrot.lane.b32.xlu0 %v767, 16
    %v2690 = vpop.permute.xlu0 %2689
    %2691 = vrot.lane.b32.xlu0 %v768, 16
    %v2692 = vpop.permute.xlu0 %2691
    %2693 = vrot.lane.b32.xlu0 %v769, 16
    %v2694 = vpop.permute.xlu0 %2693
    %2695 = vrot.lane.b32.xlu0 %v770, 16
    %v2696 = vpop.permute.xlu0 %2695
    %2697 = vrot.lane.b32.xlu0 %v771, 16
    %v2698 = vpop.permute.xlu0 %2697
    %2699 = vrot.lane.b32.xlu0 %v772, 16
    %v2700 = vpop.permute.xlu0 %2699
    %2701 = vrot.lane.b32.xlu0 %v773, 16
    %v2702 = vpop.permute.xlu0 %2701
    %2703 = vrot.lane.b32.xlu0 %v774, 16
    %v2704 = vpop.permute.xlu0 %2703
    %2705 = vrot.lane.b32.xlu0 %v775, 16
    %v2706 = vpop.permute.xlu0 %2705
    %2707 = vrot.lane.b32.xlu0 %v776, 16
    %v2708 = vpop.permute.xlu0 %2707
    %2709 = vrot.lane.b32.xlu0 %v777, 16
    %v2710 = vpop.permute.xlu0 %2709
    %2711 = vrot.lane.b32.xlu0 %v778, 16
    %v2712 = vpop.permute.xlu0 %2711
    %2713 = vrot.lane.b32.xlu0 %v779, 16
    %v2714 = vpop.permute.xlu0 %2713
    %2715 = vrot.lane.b32.xlu0 %v780, 16
    %v2716 = vpop.permute.xlu0 %2715
    %2717 = vrot.lane.b32.xlu0 %v781, 16
    %v2718 = vpop.permute.xlu0 %2717
    %2719 = vrot.lane.b32.xlu0 %v782, 16
    %v2720 = vpop.permute.xlu0 %2719
    %2721 = vrot.lane.b32.xlu0 %v783, 16
    %v2722 = vpop.permute.xlu0 %2721
    %2723 = vrot.lane.b32.xlu0 %v784, 16
    %v2724 = vpop.permute.xlu0 %2723
    %2725 = vrot.lane.b32.xlu0 %v785, 16
    %v2726 = vpop.permute.xlu0 %2725
    %2727 = vrot.lane.b32.xlu0 %v786, 16
    %v2728 = vpop.permute.xlu0 %2727
    %2729 = vrot.lane.b32.xlu0 %v787, 16
    %v2730 = vpop.permute.xlu0 %2729
    %2731 = vrot.lane.b32.xlu0 %v788, 16
    %v2732 = vpop.permute.xlu0 %2731
    %2733 = vrot.lane.b32.xlu0 %v789, 16
    %v2734 = vpop.permute.xlu0 %2733
    %2735 = vrot.lane.b32.xlu0 %v790, 16
    %v2736 = vpop.permute.xlu0 %2735
    %2737 = vrot.lane.b32.xlu0 %v791, 16
    %v2738 = vpop.permute.xlu0 %2737
    %2739 = vrot.lane.b32.xlu0 %v792, 16
    %v2740 = vpop.permute.xlu0 %2739
    %2741 = vrot.lane.b32.xlu0 %v793, 16
    %v2742 = vpop.permute.xlu0 %2741
    %2743 = vrot.lane.b32.xlu0 %v794, 16
    %v2744 = vpop.permute.xlu0 %2743
    %2745 = vrot.lane.b32.xlu0 %v795, 16
    %v2746 = vpop.permute.xlu0 %2745
    %2747 = vrot.lane.b32.xlu0 %v796, 16
    %v2748 = vpop.permute.xlu0 %2747
    %2749 = vrot.lane.b32.xlu0 %v797, 16
    %v2750 = vpop.permute.xlu0 %2749
    %2751 = vrot.lane.b32.xlu0 %v798, 16
    %v2752 = vpop.permute.xlu0 %2751
    %2753 = vrot.lane.b32.xlu0 %v799, 16
    %v2754 = vpop.permute.xlu0 %2753
    %2755 = vrot.lane.b32.xlu0 %v800, 16
    %v2756 = vpop.permute.xlu0 %2755
    %2757 = vrot.lane.b32.xlu0 %v801, 16
    %v2758 = vpop.permute.xlu0 %2757
    %2759 = vrot.lane.b32.xlu0 %v802, 16
    %v2760 = vpop.permute.xlu0 %2759
    %2761 = vrot.lane.b32.xlu0 %v803, 16
    %v2762 = vpop.permute.xlu0 %2761
    %2763 = vrot.lane.b32.xlu0 %v804, 16
    %v2764 = vpop.permute.xlu0 %2763
    %2765 = vrot.lane.b32.xlu0 %v805, 16
    %v2766 = vpop.permute.xlu0 %2765
    %2767 = vrot.lane.b32.xlu0 %v806, 16
    %v2768 = vpop.permute.xlu0 %2767
    %2769 = vrot.lane.b32.xlu0 %v807, 16
    %v2770 = vpop.permute.xlu0 %2769
    %2771 = vrot.lane.b32.xlu0 %v808, 16
    %v2772 = vpop.permute.xlu0 %2771
    %2773 = vrot.lane.b32.xlu0 %v809, 16
    %v2774 = vpop.permute.xlu0 %2773
    %2775 = vrot.lane.b32.xlu0 %v810, 16
    %v2776 = vpop.permute.xlu0 %2775
    %2777 = vrot.lane.b32.xlu0 %v811, 16
    %v2778 = vpop.permute.xlu0 %2777
    %2779 = vrot.lane.b32.xlu0 %v812, 16
    %v2780 = vpop.permute.xlu0 %2779
    %2781 = vrot.lane.b32.xlu0 %v813, 16
    %v2782 = vpop.permute.xlu0 %2781
    %2783 = vrot.lane.b32.xlu0 %v814, 16
    %v2784 = vpop.permute.xlu0 %2783
    %2785 = vrot.lane.b32.xlu0 %v815, 16
    %v2786 = vpop.permute.xlu0 %2785
    %2787 = vrot.lane.b32.xlu0 %v816, 16
    %v2788 = vpop.permute.xlu0 %2787
    %2789 = vrot.lane.b32.xlu0 %v817, 16
    %v2790 = vpop.permute.xlu0 %2789
    %2791 = vrot.lane.b32.xlu0 %v818, 16
    %v2792 = vpop.permute.xlu0 %2791
    %2793 = vrot.lane.b32.xlu0 %v819, 16
    %v2794 = vpop.permute.xlu0 %2793
    %2795 = vrot.lane.b32.xlu0 %v820, 16
    %v2796 = vpop.permute.xlu0 %2795
    %2797 = vrot.lane.b32.xlu0 %v821, 16
    %v2798 = vpop.permute.xlu0 %2797
    %2799 = vrot.lane.b32.xlu0 %v822, 16
    %v2800 = vpop.permute.xlu0 %2799
    %2801 = vrot.lane.b32.xlu0 %v823, 16
    %v2802 = vpop.permute.xlu0 %2801
    %2803 = vrot.lane.b32.xlu0 %v824, 16
    %v2804 = vpop.permute.xlu0 %2803
    %2805 = vrot.lane.b32.xlu0 %v825, 16
    %v2806 = vpop.permute.xlu0 %2805
    %2807 = vrot.lane.b32.xlu0 %v826, 16
    %v2808 = vpop.permute.xlu0 %2807
    %2809 = vrot.lane.b32.xlu0 %v827, 16
    %v2810 = vpop.permute.xlu0 %2809
    %2811 = vrot.lane.b32.xlu0 %v828, 16
    %v2812 = vpop.permute.xlu0 %2811
    %v2877 = vsel %vm99, %v252, %v894
    %v2878 = vsel %vm99, %v253, %v896
    %v2879 = vsel %vm99, %v254, %v898
    %v2880 = vsel %vm99, %v255, %v900
    %v2881 = vsel %vm99, %v256, %v902
    %v2882 = vsel %vm99, %v257, %v904
    %v2883 = vsel %vm99, %v258, %v906
    %v2884 = vsel %vm99, %v259, %v908
    %v2885 = vsel %vm99, %v260, %v910
    %v2886 = vsel %vm99, %v261, %v912
    %v2887 = vsel %vm99, %v262, %v914
    %v2888 = vsel %vm99, %v263, %v916
    %v2889 = vsel %vm99, %v264, %v918
    %v2890 = vsel %vm99, %v265, %v920
    %v2891 = vsel %vm99, %v266, %v922
    %v2892 = vsel %vm99, %v267, %v924
    %v2893 = vsel %vm99, %v268, %v926
    %v2894 = vsel %vm99, %v269, %v928
    %v2895 = vsel %vm99, %v270, %v930
    %v2896 = vsel %vm99, %v271, %v932
    %v2897 = vsel %vm99, %v272, %v934
    %v2898 = vsel %vm99, %v273, %v936
    %v2899 = vsel %vm99, %v274, %v938
    %v2900 = vsel %vm99, %v275, %v940
    %v2901 = vsel %vm99, %v276, %v942
    %v2902 = vsel %vm99, %v277, %v944
    %v2903 = vsel %vm99, %v278, %v946
    %v2904 = vsel %vm99, %v279, %v948
    %v2905 = vsel %vm99, %v280, %v950
    %v2906 = vsel %vm99, %v281, %v952
    %v2907 = vsel %vm99, %v282, %v954
    %v2908 = vsel %vm99, %v283, %v956
    %v2909 = vsel %vm99, %v284, %v958
    %v2910 = vsel %vm99, %v285, %v960
    %v2911 = vsel %vm99, %v286, %v962
    %v2912 = vsel %vm99, %v287, %v964
    %v2913 = vsel %vm99, %v288, %v966
    %v2914 = vsel %vm99, %v289, %v968
    %v2915 = vsel %vm99, %v290, %v970
    %v2916 = vsel %vm99, %v291, %v972
    %v2917 = vsel %vm99, %v292, %v974
    %v2918 = vsel %vm99, %v293, %v976
    %v2919 = vsel %vm99, %v294, %v978
    %v2920 = vsel %vm99, %v295, %v980
    %v2921 = vsel %vm99, %v296, %v982
    %v2922 = vsel %vm99, %v297, %v984
    %v2923 = vsel %vm99, %v298, %v986
    %v2924 = vsel %vm99, %v299, %v988
    %v2925 = vsel %vm99, %v300, %v990
    %v2926 = vsel %vm99, %v301, %v992
    %v2927 = vsel %vm99, %v302, %v994
    %v2928 = vsel %vm99, %v303, %v996
    %v2929 = vsel %vm99, %v304, %v998
    %v2930 = vsel %vm99, %v305, %v1000
    %v2931 = vsel %vm99, %v306, %v1002
    %v2932 = vsel %vm99, %v307, %v1004
    %v2933 = vsel %vm99, %v308, %v1006
    %v2934 = vsel %vm99, %v309, %v1008
    %v2935 = vsel %vm99, %v310, %v1010
    %v2936 = vsel %vm99, %v311, %v1012
    %v2937 = vsel %vm99, %v312, %v1014
    %v2938 = vsel %vm99, %v313, %v1016
    %v2939 = vsel %vm99, %v314, %v1018
    %v2940 = vsel %vm99, %v315, %v1020
    %vm2941 = vcmask 31744
    %v2942 = vsel %vm2941, %v2877, %v1150
    %v2943 = vsel %vm2941, %v2878, %v1152
    %v2944 = vsel %vm2941, %v2879, %v1154
    %v2945 = vsel %vm2941, %v2880, %v1156
    %v2946 = vsel %vm2941, %v2881, %v1158
    %v2947 = vsel %vm2941, %v2882, %v1160
    %v2948 = vsel %vm2941, %v2883, %v1162
    %v2949 = vsel %vm2941, %v2884, %v1164
    %v2950 = vsel %vm2941, %v2885, %v1166
    %v2951 = vsel %vm2941, %v2886, %v1168
    %v2952 = vsel %vm2941, %v2887, %v1170
    %v2953 = vsel %vm2941, %v2888, %v1172
    %v2954 = vsel %vm2941, %v2889, %v1174
    %v2955 = vsel %vm2941, %v2890, %v1176
    %v2956 = vsel %vm2941, %v2891, %v1178
    %v2957 = vsel %vm2941, %v2892, %v1180
    %v2958 = vsel %vm2941, %v2893, %v1182
    %v2959 = vsel %vm2941, %v2894, %v1184
    %v2960 = vsel %vm2941, %v2895, %v1186
    %v2961 = vsel %vm2941, %v2896, %v1188
    %v2962 = vsel %vm2941, %v2897, %v1190
    %v2963 = vsel %vm2941, %v2898, %v1192
    %v2964 = vsel %vm2941, %v2899, %v1194
    %v2965 = vsel %vm2941, %v2900, %v1196
    %v2966 = vsel %vm2941, %v2901, %v1198
    %v2967 = vsel %vm2941, %v2902, %v1200
    %v2968 = vsel %vm2941, %v2903, %v1202
    %v2969 = vsel %vm2941, %v2904, %v1204
    %v2970 = vsel %vm2941, %v2905, %v1206
    %v2971 = vsel %vm2941, %v2906, %v1208
    %v2972 = vsel %vm2941, %v2907, %v1210
    %v2973 = vsel %vm2941, %v2908, %v1212
    %v2974 = vsel %vm2941, %v2909, %v1214
    %v2975 = vsel %vm2941, %v2910, %v1216
    %v2976 = vsel %vm2941, %v2911, %v1218
    %v2977 = vsel %vm2941, %v2912, %v1220
    %v2978 = vsel %vm2941, %v2913, %v1222
    %v2979 = vsel %vm2941, %v2914, %v1224
    %v2980 = vsel %vm2941, %v2915, %v1226
    %v2981 = vsel %vm2941, %v2916, %v1228
    %v2982 = vsel %vm2941, %v2917, %v1230
    %v2983 = vsel %vm2941, %v2918, %v1232
    %v2984 = vsel %vm2941, %v2919, %v1234
    %v2985 = vsel %vm2941, %v2920, %v1236
    %v2986 = vsel %vm2941, %v2921, %v1238
    %v2987 = vsel %vm2941, %v2922, %v1240
    %v2988 = vsel %vm2941, %v2923, %v1242
    %v2989 = vsel %vm2941, %v2924, %v1244
    %v2990 = vsel %vm2941, %v2925, %v1246
    %v2991 = vsel %vm2941, %v2926, %v1248
    %v2992 = vsel %vm2941, %v2927, %v1250
    %v2993 = vsel %vm2941, %v2928, %v1252
    %v2994 = vsel %vm2941, %v2929, %v1254
    %v2995 = vsel %vm2941, %v2930, %v1256
    %v2996 = vsel %vm2941, %v2931, %v1258
    %v2997 = vsel %vm2941, %v2932, %v1260
    %v2998 = vsel %vm2941, %v2933, %v1262
    %v2999 = vsel %vm2941, %v2934, %v1264
    %v3000 = vsel %vm2941, %v2935, %v1266
    %v3001 = vsel %vm2941, %v2936, %v1268
    %v3002 = vsel %vm2941, %v2937, %v1270
    %v3003 = vsel %vm2941, %v2938, %v1272
    %v3004 = vsel %vm2941, %v2939, %v1274
    %v3005 = vsel %vm2941, %v2940, %v1276
    %vm3006 = vcmask 48128
    %v3007 = vsel %vm3006, %v2942, %v1406
    %v3008 = vsel %vm3006, %v2943, %v1408
    %v3009 = vsel %vm3006, %v2944, %v1410
    %v3010 = vsel %vm3006, %v2945, %v1412
    %v3011 = vsel %vm3006, %v2946, %v1414
    %v3012 = vsel %vm3006, %v2947, %v1416
    %v3013 = vsel %vm3006, %v2948, %v1418
    %v3014 = vsel %vm3006, %v2949, %v1420
    %v3015 = vsel %vm3006, %v2950, %v1422
    %v3016 = vsel %vm3006, %v2951, %v1424
    %v3017 = vsel %vm3006, %v2952, %v1426
    %v3018 = vsel %vm3006, %v2953, %v1428
    %v3019 = vsel %vm3006, %v2954, %v1430
    %v3020 = vsel %vm3006, %v2955, %v1432
    %v3021 = vsel %vm3006, %v2956, %v1434
    %v3022 = vsel %vm3006, %v2957, %v1436
    %v3023 = vsel %vm3006, %v2958, %v1438
    %v3024 = vsel %vm3006, %v2959, %v1440
    %v3025 = vsel %vm3006, %v2960, %v1442
    %v3026 = vsel %vm3006, %v2961, %v1444
    %v3027 = vsel %vm3006, %v2962, %v1446
    %v3028 = vsel %vm3006, %v2963, %v1448
    %v3029 = vsel %vm3006, %v2964, %v1450
    %v3030 = vsel %vm3006, %v2965, %v1452
    %v3031 = vsel %vm3006, %v2966, %v1454
    %v3032 = vsel %vm3006, %v2967, %v1456
    %v3033 = vsel %vm3006, %v2968, %v1458
    %v3034 = vsel %vm3006, %v2969, %v1460
    %v3035 = vsel %vm3006, %v2970, %v1462
    %v3036 = vsel %vm3006, %v2971, %v1464
    %v3037 = vsel %vm3006, %v2972, %v1466
    %v3038 = vsel %vm3006, %v2973, %v1468
    %v3039 = vsel %vm3006, %v2974, %v1470
    %v3040 = vsel %vm3006, %v2975, %v1472
    %v3041 = vsel %vm3006, %v2976, %v1474
    %v3042 = vsel %vm3006, %v2977, %v1476
    %v3043 = vsel %vm3006, %v2978, %v1478
    %v3044 = vsel %vm3006, %v2979, %v1480
    %v3045 = vsel %vm3006, %v2980, %v1482
    %v3046 = vsel %vm3006, %v2981, %v1484
    %v3047 = vsel %vm3006, %v2982, %v1486
    %v3048 = vsel %vm3006, %v2983, %v1488
    %v3049 = vsel %vm3006, %v2984, %v1490
    %v3050 = vsel %vm3006, %v2985, %v1492
    %v3051 = vsel %vm3006, %v2986, %v1494
    %v3052 = vsel %vm3006, %v2987, %v1496
    %v3053 = vsel %vm3006, %v2988, %v1498
    %v3054 = vsel %vm3006, %v2989, %v1500
    %v3055 = vsel %vm3006, %v2990, %v1502
    %v3056 = vsel %vm3006, %v2991, %v1504
    %v3057 = vsel %vm3006, %v2992, %v1506
    %v3058 = vsel %vm3006, %v2993, %v1508
    %v3059 = vsel %vm3006, %v2994, %v1510
    %v3060 = vsel %vm3006, %v2995, %v1512
    %v3061 = vsel %vm3006, %v2996, %v1514
    %v3062 = vsel %vm3006, %v2997, %v1516
    %v3063 = vsel %vm3006, %v2998, %v1518
    %v3064 = vsel %vm3006, %v2999, %v1520
    %v3065 = vsel %vm3006, %v3000, %v1522
    %v3066 = vsel %vm3006, %v3001, %v1524
    %v3067 = vsel %vm3006, %v3002, %v1526
    %v3068 = vsel %vm3006, %v3003, %v1528
    %v3069 = vsel %vm3006, %v3004, %v1530
    %v3070 = vsel %vm3006, %v3005, %v1532
    %vm3071 = vcmask 64512
    %v3072 = vsel %vm3071, %v3007, %v1662
    %v3073 = vsel %vm3071, %v3008, %v1664
    %v3074 = vsel %vm3071, %v3009, %v1666
    %v3075 = vsel %vm3071, %v3010, %v1668
    %v3076 = vsel %vm3071, %v3011, %v1670
    %v3077 = vsel %vm3071, %v3012, %v1672
    %v3078 = vsel %vm3071, %v3013, %v1674
    %v3079 = vsel %vm3071, %v3014, %v1676
    %v3080 = vsel %vm3071, %v3015, %v1678
    %v3081 = vsel %vm3071, %v3016, %v1680
    %v3082 = vsel %vm3071, %v3017, %v1682
    %v3083 = vsel %vm3071, %v3018, %v1684
    %v3084 = vsel %vm3071, %v3019, %v1686
    %v3085 = vsel %vm3071, %v3020, %v1688
    %v3086 = vsel %vm3071, %v3021, %v1690
    %v3087 = vsel %vm3071, %v3022, %v1692
    %v3088 = vsel %vm3071, %v3023, %v1694
    %v3089 = vsel %vm3071, %v3024, %v1696
    %v3090 = vsel %vm3071, %v3025, %v1698
    %v3091 = vsel %vm3071, %v3026, %v1700
    %v3092 = vsel %vm3071, %v3027, %v1702
    %v3093 = vsel %vm3071, %v3028, %v1704
    %v3094 = vsel %vm3071, %v3029, %v1706
    %v3095 = vsel %vm3071, %v3030, %v1708
    %v3096 = vsel %vm3071, %v3031, %v1710
    %v3097 = vsel %vm3071, %v3032, %v1712
    %v3098 = vsel %vm3071, %v3033, %v1714
    %v3099 = vsel %vm3071, %v3034, %v1716
    %v3100 = vsel %vm3071, %v3035, %v1718
    %v3101 = vsel %vm3071, %v3036, %v1720
    %v3102 = vsel %vm3071, %v3037, %v1722
    %v3103 = vsel %vm3071, %v3038, %v1724
    %v3104 = vsel %vm3071, %v3039, %v1726
    %v3105 = vsel %vm3071, %v3040, %v1728
    %v3106 = vsel %vm3071, %v3041, %v1730
    %v3107 = vsel %vm3071, %v3042, %v1732
    %v3108 = vsel %vm3071, %v3043, %v1734
    %v3109 = vsel %vm3071, %v3044, %v1736
    %v3110 = vsel %vm3071, %v3045, %v1738
    %v3111 = vsel %vm3071, %v3046, %v1740
    %v3112 = vsel %vm3071, %v3047, %v1742
    %v3113 = vsel %vm3071, %v3048, %v1744
    %v3114 = vsel %vm3071, %v3049, %v1746
    %v3115 = vsel %vm3071, %v3050, %v1748
    %v3116 = vsel %vm3071, %v3051, %v1750
    %v3117 = vsel %vm3071, %v3052, %v1752
    %v3118 = vsel %vm3071, %v3053, %v1754
    %v3119 = vsel %vm3071, %v3054, %v1756
    %v3120 = vsel %vm3071, %v3055, %v1758
    %v3121 = vsel %vm3071, %v3056, %v1760
    %v3122 = vsel %vm3071, %v3057, %v1762
    %v3123 = vsel %vm3071, %v3058, %v1764
    %v3124 = vsel %vm3071, %v3059, %v1766
    %v3125 = vsel %vm3071, %v3060, %v1768
    %v3126 = vsel %vm3071, %v3061, %v1770
    %v3127 = vsel %vm3071, %v3062, %v1772
    %v3128 = vsel %vm3071, %v3063, %v1774
    %v3129 = vsel %vm3071, %v3064, %v1776
    %v3130 = vsel %vm3071, %v3065, %v1778
    %v3131 = vsel %vm3071, %v3066, %v1780
    %v3132 = vsel %vm3071, %v3067, %v1782
    %v3133 = vsel %vm3071, %v3068, %v1784
    %v3134 = vsel %vm3071, %v3069, %v1786
    %v3135 = vsel %vm3071, %v3070, %v1788
    %vm3136 = vcmask 80896
    %v3137 = vsel %vm3136, %v3072, %v1918
    %v3138 = vsel %vm3136, %v3073, %v1920
    %v3139 = vsel %vm3136, %v3074, %v1922
    %v3140 = vsel %vm3136, %v3075, %v1924
    %v3141 = vsel %vm3136, %v3076, %v1926
    %v3142 = vsel %vm3136, %v3077, %v1928
    %v3143 = vsel %vm3136, %v3078, %v1930
    %v3144 = vsel %vm3136, %v3079, %v1932
    %v3145 = vsel %vm3136, %v3080, %v1934
    %v3146 = vsel %vm3136, %v3081, %v1936
    %v3147 = vsel %vm3136, %v3082, %v1938
    %v3148 = vsel %vm3136, %v3083, %v1940
    %v3149 = vsel %vm3136, %v3084, %v1942
    %v3150 = vsel %vm3136, %v3085, %v1944
    %v3151 = vsel %vm3136, %v3086, %v1946
    %v3152 = vsel %vm3136, %v3087, %v1948
    %v3153 = vsel %vm3136, %v3088, %v1950
    %v3154 = vsel %vm3136, %v3089, %v1952
    %v3155 = vsel %vm3136, %v3090, %v1954
    %v3156 = vsel %vm3136, %v3091, %v1956
    %v3157 = vsel %vm3136, %v3092, %v1958
    %v3158 = vsel %vm3136, %v3093, %v1960
    %v3159 = vsel %vm3136, %v3094, %v1962
    %v3160 = vsel %vm3136, %v3095, %v1964
    %v3161 = vsel %vm3136, %v3096, %v1966
    %v3162 = vsel %vm3136, %v3097, %v1968
    %v3163 = vsel %vm3136, %v3098, %v1970
    %v3164 = vsel %vm3136, %v3099, %v1972
    %v3165 = vsel %vm3136, %v3100, %v1974
    %v3166 = vsel %vm3136, %v3101, %v1976
    %v3167 = vsel %vm3136, %v3102, %v1978
    %v3168 = vsel %vm3136, %v3103, %v1980
    %v3169 = vsel %vm3136, %v3104, %v1982
    %v3170 = vsel %vm3136, %v3105, %v1984
    %v3171 = vsel %vm3136, %v3106, %v1986
    %v3172 = vsel %vm3136, %v3107, %v1988
    %v3173 = vsel %vm3136, %v3108, %v1990
    %v3174 = vsel %vm3136, %v3109, %v1992
    %v3175 = vsel %vm3136, %v3110, %v1994
    %v3176 = vsel %vm3136, %v3111, %v1996
    %v3177 = vsel %vm3136, %v3112, %v1998
    %v3178 = vsel %vm3136, %v3113, %v2000
    %v3179 = vsel %vm3136, %v3114, %v2002
    %v3180 = vsel %vm3136, %v3115, %v2004
    %v3181 = vsel %vm3136, %v3116, %v2006
    %v3182 = vsel %vm3136, %v3117, %v2008
    %v3183 = vsel %vm3136, %v3118, %v2010
    %v3184 = vsel %vm3136, %v3119, %v2012
    %v3185 = vsel %vm3136, %v3120, %v2014
    %v3186 = vsel %vm3136, %v3121, %v2016
    %v3187 = vsel %vm3136, %v3122, %v2018
    %v3188 = vsel %vm3136, %v3123, %v2020
    %v3189 = vsel %vm3136, %v3124, %v2022
    %v3190 = vsel %vm3136, %v3125, %v2024
    %v3191 = vsel %vm3136, %v3126, %v2026
    %v3192 = vsel %vm3136, %v3127, %v2028
    %v3193 = vsel %vm3136, %v3128, %v2030
    %v3194 = vsel %vm3136, %v3129, %v2032
    %v3195 = vsel %vm3136, %v3130, %v2034
    %v3196 = vsel %vm3136, %v3131, %v2036
    %v3197 = vsel %vm3136, %v3132, %v2038
    %v3198 = vsel %vm3136, %v3133, %v2040
    %v3199 = vsel %vm3136, %v3134, %v2042
    %v3200 = vsel %vm3136, %v3135, %v2044
    %vm3201 = vcmask 97280
    %v3202 = vsel %vm3201, %v3137, %v2174
    %v3203 = vsel %vm3201, %v3138, %v2176
    %v3204 = vsel %vm3201, %v3139, %v2178
    %v3205 = vsel %vm3201, %v3140, %v2180
    %v3206 = vsel %vm3201, %v3141, %v2182
    %v3207 = vsel %vm3201, %v3142, %v2184
    %v3208 = vsel %vm3201, %v3143, %v2186
    %v3209 = vsel %vm3201, %v3144, %v2188
    %v3210 = vsel %vm3201, %v3145, %v2190
    %v3211 = vsel %vm3201, %v3146, %v2192
    %v3212 = vsel %vm3201, %v3147, %v2194
    %v3213 = vsel %vm3201, %v3148, %v2196
    %v3214 = vsel %vm3201, %v3149, %v2198
    %v3215 = vsel %vm3201, %v3150, %v2200
    %v3216 = vsel %vm3201, %v3151, %v2202
    %v3217 = vsel %vm3201, %v3152, %v2204
    %v3218 = vsel %vm3201, %v3153, %v2206
    %v3219 = vsel %vm3201, %v3154, %v2208
    %v3220 = vsel %vm3201, %v3155, %v2210
    %v3221 = vsel %vm3201, %v3156, %v2212
    %v3222 = vsel %vm3201, %v3157, %v2214
    %v3223 = vsel %vm3201, %v3158, %v2216
    %v3224 = vsel %vm3201, %v3159, %v2218
    %v3225 = vsel %vm3201, %v3160, %v2220
    %v3226 = vsel %vm3201, %v3161, %v2222
    %v3227 = vsel %vm3201, %v3162, %v2224
    %v3228 = vsel %vm3201, %v3163, %v2226
    %v3229 = vsel %vm3201, %v3164, %v2228
    %v3230 = vsel %vm3201, %v3165, %v2230
    %v3231 = vsel %vm3201, %v3166, %v2232
    %v3232 = vsel %vm3201, %v3167, %v2234
    %v3233 = vsel %vm3201, %v3168, %v2236
    %v3234 = vsel %vm3201, %v3169, %v2238
    %v3235 = vsel %vm3201, %v3170, %v2240
    %v3236 = vsel %vm3201, %v3171, %v2242
    %v3237 = vsel %vm3201, %v3172, %v2244
    %v3238 = vsel %vm3201, %v3173, %v2246
    %v3239 = vsel %vm3201, %v3174, %v2248
    %v3240 = vsel %vm3201, %v3175, %v2250
    %v3241 = vsel %vm3201, %v3176, %v2252
    %v3242 = vsel %vm3201, %v3177, %v2254
    %v3243 = vsel %vm3201, %v3178, %v2256
    %v3244 = vsel %vm3201, %v3179, %v2258
    %v3245 = vsel %vm3201, %v3180, %v2260
    %v3246 = vsel %vm3201, %v3181, %v2262
    %v3247 = vsel %vm3201, %v3182, %v2264
    %v3248 = vsel %vm3201, %v3183, %v2266
    %v3249 = vsel %vm3201, %v3184, %v2268
    %v3250 = vsel %vm3201, %v3185, %v2270
    %v3251 = vsel %vm3201, %v3186, %v2272
    %v3252 = vsel %vm3201, %v3187, %v2274
    %v3253 = vsel %vm3201, %v3188, %v2276
    %v3254 = vsel %vm3201, %v3189, %v2278
    %v3255 = vsel %vm3201, %v3190, %v2280
    %v3256 = vsel %vm3201, %v3191, %v2282
    %v3257 = vsel %vm3201, %v3192, %v2284
    %v3258 = vsel %vm3201, %v3193, %v2286
    %v3259 = vsel %vm3201, %v3194, %v2288
    %v3260 = vsel %vm3201, %v3195, %v2290
    %v3261 = vsel %vm3201, %v3196, %v2292
    %v3262 = vsel %vm3201, %v3197, %v2294
    %v3263 = vsel %vm3201, %v3198, %v2296
    %v3264 = vsel %vm3201, %v3199, %v2298
    %v3265 = vsel %vm3201, %v3200, %v2300
    %vm3266 = vcmask 113664
    %v3267 = vsel %vm3266, %v3202, %v2430
    %v3268 = vsel %vm3266, %v3203, %v2432
    %v3269 = vsel %vm3266, %v3204, %v2434
    %v3270 = vsel %vm3266, %v3205, %v2436
    %v3271 = vsel %vm3266, %v3206, %v2438
    %v3272 = vsel %vm3266, %v3207, %v2440
    %v3273 = vsel %vm3266, %v3208, %v2442
    %v3274 = vsel %vm3266, %v3209, %v2444
    %v3275 = vsel %vm3266, %v3210, %v2446
    %v3276 = vsel %vm3266, %v3211, %v2448
    %v3277 = vsel %vm3266, %v3212, %v2450
    %v3278 = vsel %vm3266, %v3213, %v2452
    %v3279 = vsel %vm3266, %v3214, %v2454
    %v3280 = vsel %vm3266, %v3215, %v2456
    %v3281 = vsel %vm3266, %v3216, %v2458
    %v3282 = vsel %vm3266, %v3217, %v2460
    %v3283 = vsel %vm3266, %v3218, %v2462
    %v3284 = vsel %vm3266, %v3219, %v2464
    %v3285 = vsel %vm3266, %v3220, %v2466
    %v3286 = vsel %vm3266, %v3221, %v2468
    %v3287 = vsel %vm3266, %v3222, %v2470
    %v3288 = vsel %vm3266, %v3223, %v2472
    %v3289 = vsel %vm3266, %v3224, %v2474
    %v3290 = vsel %vm3266, %v3225, %v2476
    %v3291 = vsel %vm3266, %v3226, %v2478
    %v3292 = vsel %vm3266, %v3227, %v2480
    %v3293 = vsel %vm3266, %v3228, %v2482
    %v3294 = vsel %vm3266, %v3229, %v2484
    %v3295 = vsel %vm3266, %v3230, %v2486
    %v3296 = vsel %vm3266, %v3231, %v2488
    %v3297 = vsel %vm3266, %v3232, %v2490
    %v3298 = vsel %vm3266, %v3233, %v2492
    %v3299 = vsel %vm3266, %v3234, %v2494
    %v3300 = vsel %vm3266, %v3235, %v2496
    %v3301 = vsel %vm3266, %v3236, %v2498
    %v3302 = vsel %vm3266, %v3237, %v2500
    %v3303 = vsel %vm3266, %v3238, %v2502
    %v3304 = vsel %vm3266, %v3239, %v2504
    %v3305 = vsel %vm3266, %v3240, %v2506
    %v3306 = vsel %vm3266, %v3241, %v2508
    %v3307 = vsel %vm3266, %v3242, %v2510
    %v3308 = vsel %vm3266, %v3243, %v2512
    %v3309 = vsel %vm3266, %v3244, %v2514
    %v3310 = vsel %vm3266, %v3245, %v2516
    %v3311 = vsel %vm3266, %v3246, %v2518
    %v3312 = vsel %vm3266, %v3247, %v2520
    %v3313 = vsel %vm3266, %v3248, %v2522
    %v3314 = vsel %vm3266, %v3249, %v2524
    %v3315 = vsel %vm3266, %v3250, %v2526
    %v3316 = vsel %vm3266, %v3251, %v2528
    %v3317 = vsel %vm3266, %v3252, %v2530
    %v3318 = vsel %vm3266, %v3253, %v2532
    %v3319 = vsel %vm3266, %v3254, %v2534
    %v3320 = vsel %vm3266, %v3255, %v2536
    %v3321 = vsel %vm3266, %v3256, %v2538
    %v3322 = vsel %vm3266, %v3257, %v2540
    %v3323 = vsel %vm3266, %v3258, %v2542
    %v3324 = vsel %vm3266, %v3259, %v2544
    %v3325 = vsel %vm3266, %v3260, %v2546
    %v3326 = vsel %vm3266, %v3261, %v2548
    %v3327 = vsel %vm3266, %v3262, %v2550
    %v3328 = vsel %vm3266, %v3263, %v2552
    %v3329 = vsel %vm3266, %v3264, %v2554
    %v3330 = vsel %vm3266, %v3265, %v2556
    %vm3331 = vcmask 130048
    %v3332 = vsel %vm3331, %v3267, %v2686
    %v3333 = vsel %vm3331, %v3268, %v2688
    %v3334 = vsel %vm3331, %v3269, %v2690
    %v3335 = vsel %vm3331, %v3270, %v2692
    %v3336 = vsel %vm3331, %v3271, %v2694
    %v3337 = vsel %vm3331, %v3272, %v2696
    %v3338 = vsel %vm3331, %v3273, %v2698
    %v3339 = vsel %vm3331, %v3274, %v2700
    %v3340 = vsel %vm3331, %v3275, %v2702
    %v3341 = vsel %vm3331, %v3276, %v2704
    %v3342 = vsel %vm3331, %v3277, %v2706
    %v3343 = vsel %vm3331, %v3278, %v2708
    %v3344 = vsel %vm3331, %v3279, %v2710
    %v3345 = vsel %vm3331, %v3280, %v2712
    %v3346 = vsel %vm3331, %v3281, %v2714
    %v3347 = vsel %vm3331, %v3282, %v2716
    %v3348 = vsel %vm3331, %v3283, %v2718
    %v3349 = vsel %vm3331, %v3284, %v2720
    %v3350 = vsel %vm3331, %v3285, %v2722
    %v3351 = vsel %vm3331, %v3286, %v2724
    %v3352 = vsel %vm3331, %v3287, %v2726
    %v3353 = vsel %vm3331, %v3288, %v2728
    %v3354 = vsel %vm3331, %v3289, %v2730
    %v3355 = vsel %vm3331, %v3290, %v2732
    %v3356 = vsel %vm3331, %v3291, %v2734
    %v3357 = vsel %vm3331, %v3292, %v2736
    %v3358 = vsel %vm3331, %v3293, %v2738
    %v3359 = vsel %vm3331, %v3294, %v2740
    %v3360 = vsel %vm3331, %v3295, %v2742
    %v3361 = vsel %vm3331, %v3296, %v2744
    %v3362 = vsel %vm3331, %v3297, %v2746
    %v3363 = vsel %vm3331, %v3298, %v2748
    %v3364 = vsel %vm3331, %v3299, %v2750
    %v3365 = vsel %vm3331, %v3300, %v2752
    %v3366 = vsel %vm3331, %v3301, %v2754
    %v3367 = vsel %vm3331, %v3302, %v2756
    %v3368 = vsel %vm3331, %v3303, %v2758
    %v3369 = vsel %vm3331, %v3304, %v2760
    %v3370 = vsel %vm3331, %v3305, %v2762
    %v3371 = vsel %vm3331, %v3306, %v2764
    %v3372 = vsel %vm3331, %v3307, %v2766
    %v3373 = vsel %vm3331, %v3308, %v2768
    %v3374 = vsel %vm3331, %v3309, %v2770
    %v3375 = vsel %vm3331, %v3310, %v2772
    %v3376 = vsel %vm3331, %v3311, %v2774
    %v3377 = vsel %vm3331, %v3312, %v2776
    %v3378 = vsel %vm3331, %v3313, %v2778
    %v3379 = vsel %vm3331, %v3314, %v2780
    %v3380 = vsel %vm3331, %v3315, %v2782
    %v3381 = vsel %vm3331, %v3316, %v2784
    %v3382 = vsel %vm3331, %v3317, %v2786
    %v3383 = vsel %vm3331, %v3318, %v2788
    %v3384 = vsel %vm3331, %v3319, %v2790
    %v3385 = vsel %vm3331, %v3320, %v2792
    %v3386 = vsel %vm3331, %v3321, %v2794
    %v3387 = vsel %vm3331, %v3322, %v2796
    %v3388 = vsel %vm3331, %v3323, %v2798
    %v3389 = vsel %vm3331, %v3324, %v2800
    %v3390 = vsel %vm3331, %v3325, %v2802
    %v3391 = vsel %vm3331, %v3326, %v2804
    %v3392 = vsel %vm3331, %v3327, %v2806
    %v3393 = vsel %vm3331, %v3328, %v2808
    %v3394 = vsel %vm3331, %v3329, %v2810
    %v3395 = vsel %vm3331, %v3330, %v2812
    %v3396 = vld [vmem:[%s3] sm:$0xff]
    %v3397 = vld [vmem:[%s3 + $0x8] sm:$0xff]
    %v3398 = vld [vmem:[%s3 + $0x10] sm:$0x3]
    %v3399 = vld [vmem:[%s4] sm:$0x1]
    %v3401 = vlaneseq
    %v3402 = vshrl.u32 %v3401, 7
    %v3403 = vsub.s32 0, %v3402
    %v3404 = vrot.slane %v3399, %v3403
    %vm3406 = vcmask 146432
    %v3408 = vsel %vm3406, %v3332, 0
    %v3411 = vsel %vm3406, %v3333, 0
    %v3414 = vsel %vm3406, %v3334, 0
    %v3417 = vsel %vm3406, %v3335, 0
    %v3420 = vsel %vm3406, %v3336, 0
    %v3423 = vsel %vm3406, %v3337, 0
    %v3426 = vsel %vm3406, %v3338, 0
    %v3429 = vsel %vm3406, %v3339, 0
    %v3432 = vsel %vm3406, %v3340, 0
    %v3435 = vsel %vm3406, %v3341, 0
    %v3438 = vsel %vm3406, %v3342, 0
    %v3441 = vsel %vm3406, %v3343, 0
    %v3444 = vsel %vm3406, %v3344, 0
    %v3447 = vsel %vm3406, %v3345, 0
    %v3450 = vsel %vm3406, %v3346, 0
    %v3453 = vsel %vm3406, %v3347, 0
    %v3456 = vsel %vm3406, %v3348, 0
    %v3459 = vsel %vm3406, %v3349, 0
    %v3462 = vsel %vm3406, %v3350, 0
    %v3465 = vsel %vm3406, %v3351, 0
    %v3468 = vsel %vm3406, %v3352, 0
    %v3471 = vsel %vm3406, %v3353, 0
    %v3474 = vsel %vm3406, %v3354, 0
    %v3477 = vsel %vm3406, %v3355, 0
    %v3480 = vsel %vm3406, %v3356, 0
    %v3483 = vsel %vm3406, %v3357, 0
    %v3486 = vsel %vm3406, %v3358, 0
    %v3489 = vsel %vm3406, %v3359, 0
    %v3492 = vsel %vm3406, %v3360, 0
    %v3495 = vsel %vm3406, %v3361, 0
    %v3498 = vsel %vm3406, %v3362, 0
    %v3501 = vsel %vm3406, %v3363, 0
    %v3504 = vsel %vm3406, %v3364, 0
    %v3507 = vsel %vm3406, %v3365, 0
    %v3510 = vsel %vm3406, %v3366, 0
    %v3513 = vsel %vm3406, %v3367, 0
    %v3516 = vsel %vm3406, %v3368, 0
    %v3519 = vsel %vm3406, %v3369, 0
    %v3522 = vsel %vm3406, %v3370, 0
    %v3525 = vsel %vm3406, %v3371, 0
    %v3528 = vsel %vm3406, %v3372, 0
    %v3531 = vsel %vm3406, %v3373, 0
    %v3534 = vsel %vm3406, %v3374, 0
    %v3537 = vsel %vm3406, %v3375, 0
    %v3540 = vsel %vm3406, %v3376, 0
    %v3543 = vsel %vm3406, %v3377, 0
    %v3546 = vsel %vm3406, %v3378, 0
    %v3549 = vsel %vm3406, %v3379, 0
    %v3552 = vsel %vm3406, %v3380, 0
    %v3555 = vsel %vm3406, %v3381, 0
    %v3558 = vsel %vm3406, %v3382, 0
    %v3561 = vsel %vm3406, %v3383, 0
    %v3564 = vsel %vm3406, %v3384, 0
    %v3567 = vsel %vm3406, %v3385, 0
    %v3570 = vsel %vm3406, %v3386, 0
    %v3573 = vsel %vm3406, %v3387, 0
    %v3576 = vsel %vm3406, %v3388, 0
    %v3579 = vsel %vm3406, %v3389, 0
    %v3582 = vsel %vm3406, %v3390, 0
    %v3585 = vsel %vm3406, %v3391, 0
    %v3588 = vsel %vm3406, %v3392, 0
    %v3591 = vsel %vm3406, %v3393, 0
    %v3594 = vsel %vm3406, %v3394, 0
    %v3597 = vsel %vm3406, %v3395, 0
    %vm3599 = vcmask 1041408
    %v3601 = vsel %vm3599, %v3398, 0
    %3603 = vmatprep.subr.mxu0 0.0
    %3604 = vmatpush1.msra.mxu0 %v3396
    %3605 = vmatprep.subr.mxu0 0.0
    %3606 = vmatpush1.msra.mxu0 %v3397
    %3607 = vmatprep.subr.mxu0 0.0
    %3608 = vmatpush1.msra.mxu0 %v3601
    %3609 = vmatprep.subr.mxu0 0.0
    %3610 = vmatpush1.msra.mxu0 0.0
    %3611 = vmatprep.subr.mxu0 0.0
    %3612 = vmatpush1.msra.mxu0 0.0
    %3613 = vmatprep.subr.mxu0 0.0
    %3614 = vmatpush1.msra.mxu0 0.0
    %3615 = vmatprep.subr.mxu0 0.0
    %3616 = vmatpush1.msra.mxu0 0.0
    %3617 = vmatprep.subr.mxu0 0.0
    %3618 = vmatpush1.msra.mxu0 0.0
    %3619 = vmatprep.subr.mxu0 0.0
    %3620 = vmatpush1.msra.mxu0 0.0
    %3621 = vmatprep.subr.mxu0 0.0
    %3622 = vmatpush1.msra.mxu0 0.0
    %3623 = vmatprep.subr.mxu0 0.0
    %3624 = vmatpush1.msra.mxu0 0.0
    %3625 = vmatprep.subr.mxu0 0.0
    %3626 = vmatpush1.msra.mxu0 0.0
    %3627 = vmatprep.subr.mxu0 0.0
    %3628 = vmatpush1.msra.mxu0 0.0
    %3629 = vmatprep.subr.mxu0 0.0
    %3630 = vmatpush1.msra.mxu0 0.0
    %3631 = vmatprep.subr.mxu0 0.0
    %3632 = vmatpush1.msra.mxu0 0.0
    %3633 = vmatprep.subr.mxu0 0.0
    %3634 = vmatpush1.msra.mxu0 0.0
    %3635 = vmatprep.subr.mxu0 0.0
    %3636 = vmatpush1.msra.mxu0 0.0
    %3637 = vmatprep.subr.mxu0 0.0
    %3638 = vmatpush1.msra.mxu0 0.0
    %3639 = vmatprep.subr.mxu0 0.0
    %3640 = vmatpush1.msra.mxu0 0.0
    %3641 = vmatprep.subr.mxu0 0.0
    %3642 = vmatpush1.msra.mxu0 0.0
    %3643 = vmatprep.subr.mxu0 0.0
    %3644 = vmatpush1.msra.mxu0 0.0
    %3645 = vmatprep.subr.mxu0 0.0
    %3646 = vmatpush1.msra.mxu0 0.0
    %3647 = vmatprep.subr.mxu0 0.0
    %3648 = vmatpush1.msra.mxu0 0.0
    %3649 = vmatprep.subr.mxu0 0.0
    %3650 = vmatpush1.msra.mxu0 0.0
    %3651 = vmatprep.subr.mxu0 0.0
    %3652 = vmatpush1.msra.mxu0 0.0
    %3653 = vmatprep.subr.mxu0 0.0
    %3654 = vmatpush1.msra.mxu0 0.0
    %3655 = vmatprep.subr.mxu0 0.0
    %3656 = vmatpush1.msra.mxu0 0.0
    %3657 = vmatprep.subr.mxu0 0.0
    %3658 = vmatpush1.msra.mxu0 0.0
    %3659 = vmatprep.subr.mxu0 0.0
    %3660 = vmatpush1.msra.mxu0 0.0
    %3661 = vmatprep.subr.mxu0 0.0
    %3662 = vmatpush1.msra.mxu0 0.0
    %3663 = vmatprep.subr.mxu0 0.0
    %3664 = vmatpush1.msra.mxu0 0.0
    %3665 = vmatprep.subr.mxu0 0.0
    %3666 = vmatpush1.msra.mxu0 0.0
    %3667 = vmatprep.mubr.f32.mxu0 0.0
    %3668 = vmatmul.mubr.f32.gmra.mrb[0].mxu0 %v3408
    %v3669 = vpop.f32.mrb[0].mxu0
    %v3670 = vadd.f32 %v3404, %v3669
    %v3671 = vpop.f32.mrb[0].mxu0
    %3672 = vmatprep.mubr.f32.mxu0 0.0
    %3673 = vmatmul.mubr.f32.gmra.mrb[0].mxu0 %v3411
    %v3674 = vpop.f32.mrb[0].mxu0
    %v3675 = vadd.f32 %v3404, %v3674
    %v3676 = vpop.f32.mrb[0].mxu0
    %3677 = vmatprep.mubr.f32.mxu0 0.0
    %3678 = vmatmul.mubr.f32.gmra.mrb[0].mxu0 %v3414
    %v3679 = vpop.f32.mrb[0].mxu0
    %v3680 = vadd.f32 %v3404, %v3679
    %v3681 = vpop.f32.mrb[0].mxu0
    %3682 = vmatprep.mubr.f32.mxu0 0.0
    %3683 = vmatmul.mubr.f32.gmra.mrb[0].mxu0 %v3417
    %v3684 = vpop.f32.mrb[0].mxu0
    %v3685 = vadd.f32 %v3404, %v3684
    %v3686 = vpop.f32.mrb[0].mxu0
    %3687 = vmatprep.mubr.f32.mxu0 0.0
    %3688 = vmatmul.mubr.f32.gmra.mrb[0].mxu0 %v3420
    %v3689 = vpop.f32.mrb[0].mxu0
    %v3690 = vadd.f32 %v3404, %v3689
    %v3691 = vpop.f32.mrb[0].mxu0
    %3692 = vmatprep.mubr.f32.mxu0 0.0
    %3693 = vmatmul.mubr.f32.gmra.mrb[0].mxu0 %v3423
    %v3694 = vpop.f32.mrb[0].mxu0
    %v3695 = vadd.f32 %v3404, %v3694
    %v3696 = vpop.f32.mrb[0].mxu0
    %3697 = vmatprep.mubr.f32.mxu0 0.0
    %3698 = vmatmul.mubr.f32.gmra.mrb[0].mxu0 %v3426
    %v3699 = vpop.f32.mrb[0].mxu0
    %v3700 = vadd.f32 %v3404, %v3699
    %v3701 = vpop.f32.mrb[0].mxu0
    %3702 = vmatprep.mubr.f32.mxu0 0.0
    %3703 = vmatmul.mubr.f32.gmra.mrb[0].mxu0 %v3429
    %v3704 = vpop.f32.mrb[0].mxu0
    %v3705 = vadd.f32 %v3404, %v3704
    %v3706 = vpop.f32.mrb[0].mxu0
    %3707 = vmatprep.mubr.f32.mxu0 0.0
    %3708 = vmatmul.mubr.f32.gmra.mrb[0].mxu0 %v3432
    %v3709 = vpop.f32.mrb[0].mxu0
    %v3710 = vadd.f32 %v3404, %v3709
    %v3711 = vpop.f32.mrb[0].mxu0
    %3712 = vmatprep.mubr.f32.mxu0 0.0
    %3713 = vmatmul.mubr.f32.gmra.mrb[0].mxu0 %v3435
    %v3714 = vpop.f32.mrb[0].mxu0
    %v3715 = vadd.f32 %v3404, %v3714
    %v3716 = vpop.f32.mrb[0].mxu0
    %3717 = vmatprep.mubr.f32.mxu0 0.0
    %3718 = vmatmul.mubr.f32.gmra.mrb[0].mxu0 %v3438
    %v3719 = vpop.f32.mrb[0].mxu0
    %v3720 = vadd.f32 %v3404, %v3719
    %v3721 = vpop.f32.mrb[0].mxu0
    %3722 = vmatprep.mubr.f32.mxu0 0.0
    %3723 = vmatmul.mubr.f32.gmra.mrb[0].mxu0 %v3441
    %v3724 = vpop.f32.mrb[0].mxu0
    %v3725 = vadd.f32 %v3404, %v3724
    %v3726 = vpop.f32.mrb[0].mxu0
    %3727 = vmatprep.mubr.f32.mxu0 0.0
    %3728 = vmatmul.mubr.f32.gmra.mrb[0].mxu0 %v3444
    %v3729 = vpop.f32.mrb[0].mxu0
    %v3730 = vadd.f32 %v3404, %v3729
    %v3731 = vpop.f32.mrb[0].mxu0
    %3732 = vmatprep.mubr.f32.mxu0 0.0
    %3733 = vmatmul.mubr.f32.gmra.mrb[0].mxu0 %v3447
    %v3734 = vpop.f32.mrb[0].mxu0
    %v3735 = vadd.f32 %v3404, %v3734
    %v3736 = vpop.f32.mrb[0].mxu0
    %3737 = vmatprep.mubr.f32.mxu0 0.0
    %3738 = vmatmul.mubr.f32.gmra.mrb[0].mxu0 %v3450
    %v3739 = vpop.f32.mrb[0].mxu0
    %v3740 = vadd.f32 %v3404, %v3739
    %v3741 = vpop.f32.mrb[0].mxu0
    %3742 = vmatprep.mubr.f32.mxu0 0.0
    %3743 = vmatmul.mubr.f32.gmra.mrb[0].mxu0 %v3453
    %v3744 = vpop.f32.mrb[0].mxu0
    %v3745 = vadd.f32 %v3404, %v3744
    %v3746 = vpop.f32.mrb[0].mxu0
    %3747 = vmatprep.mubr.f32.mxu0 0.0
    %3748 = vmatmul.mubr.f32.gmra.mrb[0].mxu0 %v3456
    %v3749 = vpop.f32.mrb[0].mxu0
    %v3750 = vadd.f32 %v3404, %v3749
    %v3751 = vpop.f32.mrb[0].mxu0
    %3752 = vmatprep.mubr.f32.mxu0 0.0
    %3753 = vmatmul.mubr.f32.gmra.mrb[0].mxu0 %v3459
    %v3754 = vpop.f32.mrb[0].mxu0
    %v3755 = vadd.f32 %v3404, %v3754
    %v3756 = vpop.f32.mrb[0].mxu0
    %3757 = vmatprep.mubr.f32.mxu0 0.0
    %3758 = vmatmul.mubr.f32.gmra.mrb[0].mxu0 %v3462
    %v3759 = vpop.f32.mrb[0].mxu0
    %v3760 = vadd.f32 %v3404, %v3759
    %v3761 = vpop.f32.mrb[0].mxu0
    %3762 = vmatprep.mubr.f32.mxu0 0.0
    %3763 = vmatmul.mubr.f32.gmra.mrb[0].mxu0 %v3465
    %v3764 = vpop.f32.mrb[0].mxu0
    %v3765 = vadd.f32 %v3404, %v3764
    %v3766 = vpop.f32.mrb[0].mxu0
    %3767 = vmatprep.mubr.f32.mxu0 0.0
    %3768 = vmatmul.mubr.f32.gmra.mrb[0].mxu0 %v3468
    %v3769 = vpop.f32.mrb[0].mxu0
    %v3770 = vadd.f32 %v3404, %v3769
    %v3771 = vpop.f32.mrb[0].mxu0
    %3772 = vmatprep.mubr.f32.mxu0 0.0
    %3773 = vmatmul.mubr.f32.gmra.mrb[0].mxu0 %v3471
    %v3774 = vpop.f32.mrb[0].mxu0
    %v3775 = vadd.f32 %v3404, %v3774
    %v3776 = vpop.f32.mrb[0].mxu0
    %3777 = vmatprep.mubr.f32.mxu0 0.0
    %3778 = vmatmul.mubr.f32.gmra.mrb[0].mxu0 %v3474
    %v3779 = vpop.f32.mrb[0].mxu0
    %v3780 = vadd.f32 %v3404, %v3779
    %v3781 = vpop.f32.mrb[0].mxu0
    %3782 = vmatprep.mubr.f32.mxu0 0.0
    %3783 = vmatmul.mubr.f32.gmra.mrb[0].mxu0 %v3477
    %v3784 = vpop.f32.mrb[0].mxu0
    %v3785 = vadd.f32 %v3404, %v3784
    %v3786 = vpop.f32.mrb[0].mxu0
    %3787 = vmatprep.mubr.f32.mxu0 0.0
    %3788 = vmatmul.mubr.f32.gmra.mrb[0].mxu0 %v3480
    %v3789 = vpop.f32.mrb[0].mxu0
    %v3790 = vadd.f32 %v3404, %v3789
    %v3791 = vpop.f32.mrb[0].mxu0
    %3792 = vmatprep.mubr.f32.mxu0 0.0
    %3793 = vmatmul.mubr.f32.gmra.mrb[0].mxu0 %v3483
    %v3794 = vpop.f32.mrb[0].mxu0
    %v3795 = vadd.f32 %v3404, %v3794
    %v3796 = vpop.f32.mrb[0].mxu0
    %3797 = vmatprep.mubr.f32.mxu0 0.0
    %3798 = vmatmul.mubr.f32.gmra.mrb[0].mxu0 %v3486
    %v3799 = vpop.f32.mrb[0].mxu0
    %v3800 = vadd.f32 %v3404, %v3799
    %v3801 = vpop.f32.mrb[0].mxu0
    %3802 = vmatprep.mubr.f32.mxu0 0.0
    %3803 = vmatmul.mubr.f32.gmra.mrb[0].mxu0 %v3489
    %v3804 = vpop.f32.mrb[0].mxu0
    %v3805 = vadd.f32 %v3404, %v3804
    %v3806 = vpop.f32.mrb[0].mxu0
    %3807 = vmatprep.mubr.f32.mxu0 0.0
    %3808 = vmatmul.mubr.f32.gmra.mrb[0].mxu0 %v3492
    %v3809 = vpop.f32.mrb[0].mxu0
    %v3810 = vadd.f32 %v3404, %v3809
    %v3811 = vpop.f32.mrb[0].mxu0
    %3812 = vmatprep.mubr.f32.mxu0 0.0
    %3813 = vmatmul.mubr.f32.gmra.mrb[0].mxu0 %v3495
    %v3814 = vpop.f32.mrb[0].mxu0
    %v3815 = vadd.f32 %v3404, %v3814
    %v3816 = vpop.f32.mrb[0].mxu0
    %3817 = vmatprep.mubr.f32.mxu0 0.0
    %3818 = vmatmul.mubr.f32.gmra.mrb[0].mxu0 %v3498
    %v3819 = vpop.f32.mrb[0].mxu0
    %v3820 = vadd.f32 %v3404, %v3819
    %v3821 = vpop.f32.mrb[0].mxu0
    %3822 = vmatprep.mubr.f32.mxu0 0.0
    %3823 = vmatmul.mubr.f32.gmra.mrb[0].mxu0 %v3501
    %v3824 = vpop.f32.mrb[0].mxu0
    %v3825 = vadd.f32 %v3404, %v3824
    %v3826 = vpop.f32.mrb[0].mxu0
    %3827 = vmatprep.mubr.f32.mxu0 0.0
    %3828 = vmatmul.mubr.f32.gmra.mrb[0].mxu0 %v3504
    %v3829 = vpop.f32.mrb[0].mxu0
    %v3830 = vadd.f32 %v3404, %v3829
    %v3831 = vpop.f32.mrb[0].mxu0
    %3832 = vmatprep.mubr.f32.mxu0 0.0
    %3833 = vmatmul.mubr.f32.gmra.mrb[0].mxu0 %v3507
    %v3834 = vpop.f32.mrb[0].mxu0
    %v3835 = vadd.f32 %v3404, %v3834
    %v3836 = vpop.f32.mrb[0].mxu0
    %3837 = vmatprep.mubr.f32.mxu0 0.0
    %3838 = vmatmul.mubr.f32.gmra.mrb[0].mxu0 %v3510
    %v3839 = vpop.f32.mrb[0].mxu0
    %v3840 = vadd.f32 %v3404, %v3839
    %v3841 = vpop.f32.mrb[0].mxu0
    %3842 = vmatprep.mubr.f32.mxu0 0.0
    %3843 = vmatmul.mubr.f32.gmra.mrb[0].mxu0 %v3513
    %v3844 = vpop.f32.mrb[0].mxu0
    %v3845 = vadd.f32 %v3404, %v3844
    %v3846 = vpop.f32.mrb[0].mxu0
    %3847 = vmatprep.mubr.f32.mxu0 0.0
    %3848 = vmatmul.mubr.f32.gmra.mrb[0].mxu0 %v3516
    %v3849 = vpop.f32.mrb[0].mxu0
    %v3850 = vadd.f32 %v3404, %v3849
    %v3851 = vpop.f32.mrb[0].mxu0
    %3852 = vmatprep.mubr.f32.mxu0 0.0
    %3853 = vmatmul.mubr.f32.gmra.mrb[0].mxu0 %v3519
    %v3854 = vpop.f32.mrb[0].mxu0
    %v3855 = vadd.f32 %v3404, %v3854
    %v3856 = vpop.f32.mrb[0].mxu0
    %3857 = vmatprep.mubr.f32.mxu0 0.0
    %3858 = vmatmul.mubr.f32.gmra.mrb[0].mxu0 %v3522
    %v3859 = vpop.f32.mrb[0].mxu0
    %v3860 = vadd.f32 %v3404, %v3859
    %v3861 = vpop.f32.mrb[0].mxu0
    %3862 = vmatprep.mubr.f32.mxu0 0.0
    %3863 = vmatmul.mubr.f32.gmra.mrb[0].mxu0 %v3525
    %v3864 = vpop.f32.mrb[0].mxu0
    %v3865 = vadd.f32 %v3404, %v3864
    %v3866 = vpop.f32.mrb[0].mxu0
    %3867 = vmatprep.mubr.f32.mxu0 0.0
    %3868 = vmatmul.mubr.f32.gmra.mrb[0].mxu0 %v3528
    %v3869 = vpop.f32.mrb[0].mxu0
    %v3870 = vadd.f32 %v3404, %v3869
    %v3871 = vpop.f32.mrb[0].mxu0
    %3872 = vmatprep.mubr.f32.mxu0 0.0
    %3873 = vmatmul.mubr.f32.gmra.mrb[0].mxu0 %v3531
    %v3874 = vpop.f32.mrb[0].mxu0
    %v3875 = vadd.f32 %v3404, %v3874
    %v3876 = vpop.f32.mrb[0].mxu0
    %3877 = vmatprep.mubr.f32.mxu0 0.0
    %3878 = vmatmul.mubr.f32.gmra.mrb[0].mxu0 %v3534
    %v3879 = vpop.f32.mrb[0].mxu0
    %v3880 = vadd.f32 %v3404, %v3879
    %v3881 = vpop.f32.mrb[0].mxu0
    %3882 = vmatprep.mubr.f32.mxu0 0.0
    %3883 = vmatmul.mubr.f32.gmra.mrb[0].mxu0 %v3537
    %v3884 = vpop.f32.mrb[0].mxu0
    %v3885 = vadd.f32 %v3404, %v3884
    %v3886 = vpop.f32.mrb[0].mxu0
    %3887 = vmatprep.mubr.f32.mxu0 0.0
    %3888 = vmatmul.mubr.f32.gmra.mrb[0].mxu0 %v3540
    %v3889 = vpop.f32.mrb[0].mxu0
    %v3890 = vadd.f32 %v3404, %v3889
    %v3891 = vpop.f32.mrb[0].mxu0
    %3892 = vmatprep.mubr.f32.mxu0 0.0
    %3893 = vmatmul.mubr.f32.gmra.mrb[0].mxu0 %v3543
    %v3894 = vpop.f32.mrb[0].mxu0
    %v3895 = vadd.f32 %v3404, %v3894
    %v3896 = vpop.f32.mrb[0].mxu0
    %3897 = vmatprep.mubr.f32.mxu0 0.0
    %3898 = vmatmul.mubr.f32.gmra.mrb[0].mxu0 %v3546
    %v3899 = vpop.f32.mrb[0].mxu0
    %v3900 = vadd.f32 %v3404, %v3899
    %v3901 = vpop.f32.mrb[0].mxu0
    %3902 = vmatprep.mubr.f32.mxu0 0.0
    %3903 = vmatmul.mubr.f32.gmra.mrb[0].mxu0 %v3549
    %v3904 = vpop.f32.mrb[0].mxu0
    %v3905 = vadd.f32 %v3404, %v3904
    %v3906 = vpop.f32.mrb[0].mxu0
    %3907 = vmatprep.mubr.f32.mxu0 0.0
    %3908 = vmatmul.mubr.f32.gmra.mrb[0].mxu0 %v3552
    %v3909 = vpop.f32.mrb[0].mxu0
    %v3910 = vadd.f32 %v3404, %v3909
    %v3911 = vpop.f32.mrb[0].mxu0
    %3912 = vmatprep.mubr.f32.mxu0 0.0
    %3913 = vmatmul.mubr.f32.gmra.mrb[0].mxu0 %v3555
    %v3914 = vpop.f32.mrb[0].mxu0
    %v3915 = vadd.f32 %v3404, %v3914
    %v3916 = vpop.f32.mrb[0].mxu0
    %3917 = vmatprep.mubr.f32.mxu0 0.0
    %3918 = vmatmul.mubr.f32.gmra.mrb[0].mxu0 %v3558
    %v3919 = vpop.f32.mrb[0].mxu0
    %v3920 = vadd.f32 %v3404, %v3919
    %v3921 = vpop.f32.mrb[0].mxu0
    %3922 = vmatprep.mubr.f32.mxu0 0.0
    %3923 = vmatmul.mubr.f32.gmra.mrb[0].mxu0 %v3561
    %v3924 = vpop.f32.mrb[0].mxu0
    %v3925 = vadd.f32 %v3404, %v3924
    %v3926 = vpop.f32.mrb[0].mxu0
    %3927 = vmatprep.mubr.f32.mxu0 0.0
    %3928 = vmatmul.mubr.f32.gmra.mrb[0].mxu0 %v3564
    %v3929 = vpop.f32.mrb[0].mxu0
    %v3930 = vadd.f32 %v3404, %v3929
    %v3931 = vpop.f32.mrb[0].mxu0
    %3932 = vmatprep.mubr.f32.mxu0 0.0
    %3933 = vmatmul.mubr.f32.gmra.mrb[0].mxu0 %v3567
    %v3934 = vpop.f32.mrb[0].mxu0
    %v3935 = vadd.f32 %v3404, %v3934
    %v3936 = vpop.f32.mrb[0].mxu0
    %3937 = vmatprep.mubr.f32.mxu0 0.0
    %3938 = vmatmul.mubr.f32.gmra.mrb[0].mxu0 %v3570
    %v3939 = vpop.f32.mrb[0].mxu0
    %v3940 = vadd.f32 %v3404, %v3939
    %v3941 = vpop.f32.mrb[0].mxu0
    %3942 = vmatprep.mubr.f32.mxu0 0.0
    %3943 = vmatmul.mubr.f32.gmra.mrb[0].mxu0 %v3573
    %v3944 = vpop.f32.mrb[0].mxu0
    %v3945 = vadd.f32 %v3404, %v3944
    %v3946 = vpop.f32.mrb[0].mxu0
    %3947 = vmatprep.mubr.f32.mxu0 0.0
    %3948 = vmatmul.mubr.f32.gmra.mrb[0].mxu0 %v3576
    %v3949 = vpop.f32.mrb[0].mxu0
    %v3950 = vadd.f32 %v3404, %v3949
    %v3951 = vpop.f32.mrb[0].mxu0
    %3952 = vmatprep.mubr.f32.mxu0 0.0
    %3953 = vmatmul.mubr.f32.gmra.mrb[0].mxu0 %v3579
    %v3954 = vpop.f32.mrb[0].mxu0
    %v3955 = vadd.f32 %v3404, %v3954
    %v3956 = vpop.f32.mrb[0].mxu0
    %3957 = vmatprep.mubr.f32.mxu0 0.0
    %3958 = vmatmul.mubr.f32.gmra.mrb[0].mxu0 %v3582
    %v3959 = vpop.f32.mrb[0].mxu0
    %v3960 = vadd.f32 %v3404, %v3959
    %v3961 = vpop.f32.mrb[0].mxu0
    %3962 = vmatprep.mubr.f32.mxu0 0.0
    %3963 = vmatmul.mubr.f32.gmra.mrb[0].mxu0 %v3585
    %v3964 = vpop.f32.mrb[0].mxu0
    %v3965 = vadd.f32 %v3404, %v3964
    %v3966 = vpop.f32.mrb[0].mxu0
    %3967 = vmatprep.mubr.f32.mxu0 0.0
    %3968 = vmatmul.mubr.f32.gmra.mrb[0].mxu0 %v3588
    %v3969 = vpop.f32.mrb[0].mxu0
    %v3970 = vadd.f32 %v3404, %v3969
    %v3971 = vpop.f32.mrb[0].mxu0
    %3972 = vmatprep.mubr.f32.mxu0 0.0
    %3973 = vmatmul.mubr.f32.gmra.mrb[0].mxu0 %v3591
    %v3974 = vpop.f32.mrb[0].mxu0
    %v3975 = vadd.f32 %v3404, %v3974
    %v3976 = vpop.f32.mrb[0].mxu0
    %3977 = vmatprep.mubr.f32.mxu0 0.0
    %3978 = vmatmul.mubr.f32.gmra.mrb[0].mxu0 %v3594
    %v3979 = vpop.f32.mrb[0].mxu0
    %v3980 = vadd.f32 %v3404, %v3979
    %v3981 = vpop.f32.mrb[0].mxu0
    %3982 = vmatprep.mubr.f32.mxu0 0.0
    %3983 = vmatmul.mubr.f32.gmra.mrb[0].mxu0 %v3597
    %v3984 = vpop.f32.mrb[0].mxu0
    %v3985 = vadd.f32 %v3404, %v3984
    %v3986 = vpop.f32.mrb[0].mxu0
    %3987 = vdwg.mxu0
    %vm3988 = vcmask 261120
    %v3989 = vsel %vm3988, %v3670, 0.0
    %v3990 = vsel %vm3988, %v3675, 0.0
    %v3991 = vadd.f32 %v3989, %v3990
    %v3992 = vsel %vm3988, %v3680, 0.0
    %v3993 = vadd.f32 %v3991, %v3992
    %v3994 = vsel %vm3988, %v3685, 0.0
    %v3995 = vadd.f32 %v3993, %v3994
    %v3996 = vsel %vm3988, %v3690, 0.0
    %v3997 = vadd.f32 %v3995, %v3996
    %v3998 = vsel %vm3988, %v3695, 0.0
    %v3999 = vadd.f32 %v3997, %v3998
    %v4000 = vsel %vm3988, %v3700, 0.0
    %v4001 = vadd.f32 %v3999, %v4000
    %v4002 = vsel %vm3988, %v3705, 0.0
    %v4003 = vadd.f32 %v4001, %v4002
    %v4004 = vsel %vm3988, %v3710, 0.0
    %v4005 = vadd.f32 %v4003, %v4004
    %v4006 = vsel %vm3988, %v3715, 0.0
    %v4007 = vadd.f32 %v4005, %v4006
    %v4008 = vsel %vm3988, %v3720, 0.0
    %v4009 = vadd.f32 %v4007, %v4008
    %v4010 = vsel %vm3988, %v3725, 0.0
    %v4011 = vadd.f32 %v4009, %v4010
    %v4012 = vsel %vm3988, %v3730, 0.0
    %v4013 = vadd.f32 %v4011, %v4012
    %v4014 = vsel %vm3988, %v3735, 0.0
    %v4015 = vadd.f32 %v4013, %v4014
    %v4016 = vsel %vm3988, %v3740, 0.0
    %v4017 = vadd.f32 %v4015, %v4016
    %v4018 = vsel %vm3988, %v3745, 0.0
    %v4019 = vadd.f32 %v4017, %v4018
    %v4020 = vsel %vm3988, %v3750, 0.0
    %v4021 = vadd.f32 %v4019, %v4020
    %v4022 = vsel %vm3988, %v3755, 0.0
    %v4023 = vadd.f32 %v4021, %v4022
    %v4024 = vsel %vm3988, %v3760, 0.0
    %v4025 = vadd.f32 %v4023, %v4024
    %v4026 = vsel %vm3988, %v3765, 0.0
    %v4027 = vadd.f32 %v4025, %v4026
    %v4028 = vsel %vm3988, %v3770, 0.0
    %v4029 = vadd.f32 %v4027, %v4028
    %v4030 = vsel %vm3988, %v3775, 0.0
    %v4031 = vadd.f32 %v4029, %v4030
    %v4032 = vsel %vm3988, %v3780, 0.0
    %v4033 = vadd.f32 %v4031, %v4032
    %v4034 = vsel %vm3988, %v3785, 0.0
    %v4035 = vadd.f32 %v4033, %v4034
    %v4036 = vsel %vm3988, %v3790, 0.0
    %v4037 = vadd.f32 %v4035, %v4036
    %v4038 = vsel %vm3988, %v3795, 0.0
    %v4039 = vadd.f32 %v4037, %v4038
    %v4040 = vsel %vm3988, %v3800, 0.0
    %v4041 = vadd.f32 %v4039, %v4040
    %v4042 = vsel %vm3988, %v3805, 0.0
    %v4043 = vadd.f32 %v4041, %v4042
    %v4044 = vsel %vm3988, %v3810, 0.0
    %v4045 = vadd.f32 %v4043, %v4044
    %v4046 = vsel %vm3988, %v3815, 0.0
    %v4047 = vadd.f32 %v4045, %v4046
    %v4048 = vsel %vm3988, %v3820, 0.0
    %v4049 = vadd.f32 %v4047, %v4048
    %v4050 = vsel %vm3988, %v3825, 0.0
    %v4051 = vadd.f32 %v4049, %v4050
    %v4052 = vsel %vm3988, %v3830, 0.0
    %v4053 = vadd.f32 %v4051, %v4052
    %v4054 = vsel %vm3988, %v3835, 0.0
    %v4055 = vadd.f32 %v4053, %v4054
    %v4056 = vsel %vm3988, %v3840, 0.0
    %v4057 = vadd.f32 %v4055, %v4056
    %v4058 = vsel %vm3988, %v3845, 0.0
    %v4059 = vadd.f32 %v4057, %v4058
    %v4060 = vsel %vm3988, %v3850, 0.0
    %v4061 = vadd.f32 %v4059, %v4060
    %v4062 = vsel %vm3988, %v3855, 0.0
    %v4063 = vadd.f32 %v4061, %v4062
    %v4064 = vsel %vm3988, %v3860, 0.0
    %v4065 = vadd.f32 %v4063, %v4064
    %v4066 = vsel %vm3988, %v3865, 0.0
    %v4067 = vadd.f32 %v4065, %v4066
    %v4068 = vsel %vm3988, %v3870, 0.0
    %v4069 = vadd.f32 %v4067, %v4068
    %v4070 = vsel %vm3988, %v3875, 0.0
    %v4071 = vadd.f32 %v4069, %v4070
    %v4072 = vsel %vm3988, %v3880, 0.0
    %v4073 = vadd.f32 %v4071, %v4072
    %v4074 = vsel %vm3988, %v3885, 0.0
    %v4075 = vadd.f32 %v4073, %v4074
    %v4076 = vsel %vm3988, %v3890, 0.0
    %v4077 = vadd.f32 %v4075, %v4076
    %v4078 = vsel %vm3988, %v3895, 0.0
    %v4079 = vadd.f32 %v4077, %v4078
    %v4080 = vsel %vm3988, %v3900, 0.0
    %v4081 = vadd.f32 %v4079, %v4080
    %v4082 = vsel %vm3988, %v3905, 0.0
    %v4083 = vadd.f32 %v4081, %v4082
    %v4084 = vsel %vm3988, %v3910, 0.0
    %v4085 = vadd.f32 %v4083, %v4084
    %v4086 = vsel %vm3988, %v3915, 0.0
    %v4087 = vadd.f32 %v4085, %v4086
    %v4088 = vsel %vm3988, %v3920, 0.0
    %v4089 = vadd.f32 %v4087, %v4088
    %v4090 = vsel %vm3988, %v3925, 0.0
    %v4091 = vadd.f32 %v4089, %v4090
    %v4092 = vsel %vm3988, %v3930, 0.0
    %v4093 = vadd.f32 %v4091, %v4092
    %v4094 = vsel %vm3988, %v3935, 0.0
    %v4095 = vadd.f32 %v4093, %v4094
    %v4096 = vsel %vm3988, %v3940, 0.0
    %v4097 = vadd.f32 %v4095, %v4096
    %v4098 = vsel %vm3988, %v3945, 0.0
    %v4099 = vadd.f32 %v4097, %v4098
    %v4100 = vsel %vm3988, %v3950, 0.0
    %v4101 = vadd.f32 %v4099, %v4100
    %v4102 = vsel %vm3988, %v3955, 0.0
    %v4103 = vadd.f32 %v4101, %v4102
    %v4104 = vsel %vm3988, %v3960, 0.0
    %v4105 = vadd.f32 %v4103, %v4104
    %v4106 = vsel %vm3988, %v3965, 0.0
    %v4107 = vadd.f32 %v4105, %v4106
    %v4108 = vsel %vm3988, %v3970, 0.0
    %v4109 = vadd.f32 %v4107, %v4108
    %v4110 = vsel %vm3988, %v3975, 0.0
    %v4111 = vadd.f32 %v4109, %v4110
    %v4112 = vsel %vm3988, %v3980, 0.0
    %v4113 = vadd.f32 %v4111, %v4112
    %v4114 = vsel %vm3988, %v3985, 0.0
    %v4115 = vadd.f32 %v4113, %v4114
    %v4116 = vrot.slane %v4115, 4
    %v4117 = vadd.f32 %v4115, %v4116
    %v4118 = vrot.slane %v4117, 2
    %v4119 = vadd.f32 %v4117, %v4118
    %v4120 = vrot.slane %v4119, 1
    %v4121 = vadd.f32 %v4119, %v4120
    %v4122 = vmul.f32 %v4121, 0.001953125
    %v4123 = vmul.f32 %v3670, %v3670
    %v4124 = vmul.f32 %v3675, %v3675
    %v4125 = vmul.f32 %v3680, %v3680
    %v4126 = vmul.f32 %v3685, %v3685
    %v4127 = vmul.f32 %v3690, %v3690
    %v4128 = vmul.f32 %v3695, %v3695
    %v4129 = vmul.f32 %v3700, %v3700
    %v4130 = vmul.f32 %v3705, %v3705
    %v4131 = vmul.f32 %v3710, %v3710
    %v4132 = vmul.f32 %v3715, %v3715
    %v4133 = vmul.f32 %v3720, %v3720
    %v4134 = vmul.f32 %v3725, %v3725
    %v4135 = vmul.f32 %v3730, %v3730
    %v4136 = vmul.f32 %v3735, %v3735
    %v4137 = vmul.f32 %v3740, %v3740
    %v4138 = vmul.f32 %v3745, %v3745
    %v4139 = vmul.f32 %v3750, %v3750
    %v4140 = vmul.f32 %v3755, %v3755
    %v4141 = vmul.f32 %v3760, %v3760
    %v4142 = vmul.f32 %v3765, %v3765
    %v4143 = vmul.f32 %v3770, %v3770
    %v4144 = vmul.f32 %v3775, %v3775
    %v4145 = vmul.f32 %v3780, %v3780
    %v4146 = vmul.f32 %v3785, %v3785
    %v4147 = vmul.f32 %v3790, %v3790
    %v4148 = vmul.f32 %v3795, %v3795
    %v4149 = vmul.f32 %v3800, %v3800
    %v4150 = vmul.f32 %v3805, %v3805
    %v4151 = vmul.f32 %v3810, %v3810
    %v4152 = vmul.f32 %v3815, %v3815
    %v4153 = vmul.f32 %v3820, %v3820
    %v4154 = vmul.f32 %v3825, %v3825
    %v4155 = vmul.f32 %v3830, %v3830
    %v4156 = vmul.f32 %v3835, %v3835
    %v4157 = vmul.f32 %v3840, %v3840
    %v4158 = vmul.f32 %v3845, %v3845
    %v4159 = vmul.f32 %v3850, %v3850
    %v4160 = vmul.f32 %v3855, %v3855
    %v4161 = vmul.f32 %v3860, %v3860
    %v4162 = vmul.f32 %v3865, %v3865
    %v4163 = vmul.f32 %v3870, %v3870
    %v4164 = vmul.f32 %v3875, %v3875
    %v4165 = vmul.f32 %v3880, %v3880
    %v4166 = vmul.f32 %v3885, %v3885
    %v4167 = vmul.f32 %v3890, %v3890
    %v4168 = vmul.f32 %v3895, %v3895
    %v4169 = vmul.f32 %v3900, %v3900
    %v4170 = vmul.f32 %v3905, %v3905
    %v4171 = vmul.f32 %v3910, %v3910
    %v4172 = vmul.f32 %v3915, %v3915
    %v4173 = vmul.f32 %v3920, %v3920
    %v4174 = vmul.f32 %v3925, %v3925
    %v4175 = vmul.f32 %v3930, %v3930
    %v4176 = vmul.f32 %v3935, %v3935
    %v4177 = vmul.f32 %v3940, %v3940
    %v4178 = vmul.f32 %v3945, %v3945
    %v4179 = vmul.f32 %v3950, %v3950
    %v4180 = vmul.f32 %v3955, %v3955
    %v4181 = vmul.f32 %v3960, %v3960
    %v4182 = vmul.f32 %v3965, %v3965
    %v4183 = vmul.f32 %v3970, %v3970
    %v4184 = vmul.f32 %v3975, %v3975
    %v4185 = vmul.f32 %v3980, %v3980
    %v4186 = vmul.f32 %v3985, %v3985
    %v4187 = vsel %vm3988, %v4123, 0.0
    %v4188 = vsel %vm3988, %v4124, 0.0
    %v4189 = vadd.f32 %v4187, %v4188
    %v4190 = vsel %vm3988, %v4125, 0.0
    %v4191 = vadd.f32 %v4189, %v4190
    %v4192 = vsel %vm3988, %v4126, 0.0
    %v4193 = vadd.f32 %v4191, %v4192
    %v4194 = vsel %vm3988, %v4127, 0.0
    %v4195 = vadd.f32 %v4193, %v4194
    %v4196 = vsel %vm3988, %v4128, 0.0
    %v4197 = vadd.f32 %v4195, %v4196
    %v4198 = vsel %vm3988, %v4129, 0.0
    %v4199 = vadd.f32 %v4197, %v4198
    %v4200 = vsel %vm3988, %v4130, 0.0
    %v4201 = vadd.f32 %v4199, %v4200
    %v4202 = vsel %vm3988, %v4131, 0.0
    %v4203 = vadd.f32 %v4201, %v4202
    %v4204 = vsel %vm3988, %v4132, 0.0
    %v4205 = vadd.f32 %v4203, %v4204
    %v4206 = vsel %vm3988, %v4133, 0.0
    %v4207 = vadd.f32 %v4205, %v4206
    %v4208 = vsel %vm3988, %v4134, 0.0
    %v4209 = vadd.f32 %v4207, %v4208
    %v4210 = vsel %vm3988, %v4135, 0.0
    %v4211 = vadd.f32 %v4209, %v4210
    %v4212 = vsel %vm3988, %v4136, 0.0
    %v4213 = vadd.f32 %v4211, %v4212
    %v4214 = vsel %vm3988, %v4137, 0.0
    %v4215 = vadd.f32 %v4213, %v4214
    %v4216 = vsel %vm3988, %v4138, 0.0
    %v4217 = vadd.f32 %v4215, %v4216
    %v4218 = vsel %vm3988, %v4139, 0.0
    %v4219 = vadd.f32 %v4217, %v4218
    %v4220 = vsel %vm3988, %v4140, 0.0
    %v4221 = vadd.f32 %v4219, %v4220
    %v4222 = vsel %vm3988, %v4141, 0.0
    %v4223 = vadd.f32 %v4221, %v4222
    %v4224 = vsel %vm3988, %v4142, 0.0
    %v4225 = vadd.f32 %v4223, %v4224
    %v4226 = vsel %vm3988, %v4143, 0.0
    %v4227 = vadd.f32 %v4225, %v4226
    %v4228 = vsel %vm3988, %v4144, 0.0
    %v4229 = vadd.f32 %v4227, %v4228
    %v4230 = vsel %vm3988, %v4145, 0.0
    %v4231 = vadd.f32 %v4229, %v4230
    %v4232 = vsel %vm3988, %v4146, 0.0
    %v4233 = vadd.f32 %v4231, %v4232
    %v4234 = vsel %vm3988, %v4147, 0.0
    %v4235 = vadd.f32 %v4233, %v4234
    %v4236 = vsel %vm3988, %v4148, 0.0
    %v4237 = vadd.f32 %v4235, %v4236
    %v4238 = vsel %vm3988, %v4149, 0.0
    %v4239 = vadd.f32 %v4237, %v4238
    %v4240 = vsel %vm3988, %v4150, 0.0
    %v4241 = vadd.f32 %v4239, %v4240
    %v4242 = vsel %vm3988, %v4151, 0.0
    %v4243 = vadd.f32 %v4241, %v4242
    %v4244 = vsel %vm3988, %v4152, 0.0
    %v4245 = vadd.f32 %v4243, %v4244
    %v4246 = vsel %vm3988, %v4153, 0.0
    %v4247 = vadd.f32 %v4245, %v4246
    %v4248 = vsel %vm3988, %v4154, 0.0
    %v4249 = vadd.f32 %v4247, %v4248
    %v4250 = vsel %vm3988, %v4155, 0.0
    %v4251 = vadd.f32 %v4249, %v4250
    %v4252 = vsel %vm3988, %v4156, 0.0
    %v4253 = vadd.f32 %v4251, %v4252
    %v4254 = vsel %vm3988, %v4157, 0.0
    %v4255 = vadd.f32 %v4253, %v4254
    %v4256 = vsel %vm3988, %v4158, 0.0
    %v4257 = vadd.f32 %v4255, %v4256
    %v4258 = vsel %vm3988, %v4159, 0.0
    %v4259 = vadd.f32 %v4257, %v4258
    %v4260 = vsel %vm3988, %v4160, 0.0
    %v4261 = vadd.f32 %v4259, %v4260
    %v4262 = vsel %vm3988, %v4161, 0.0
    %v4263 = vadd.f32 %v4261, %v4262
    %v4264 = vsel %vm3988, %v4162, 0.0
    %v4265 = vadd.f32 %v4263, %v4264
    %v4266 = vsel %vm3988, %v4163, 0.0
    %v4267 = vadd.f32 %v4265, %v4266
    %v4268 = vsel %vm3988, %v4164, 0.0
    %v4269 = vadd.f32 %v4267, %v4268
    %v4270 = vsel %vm3988, %v4165, 0.0
    %v4271 = vadd.f32 %v4269, %v4270
    %v4272 = vsel %vm3988, %v4166, 0.0
    %v4273 = vadd.f32 %v4271, %v4272
    %v4274 = vsel %vm3988, %v4167, 0.0
    %v4275 = vadd.f32 %v4273, %v4274
    %v4276 = vsel %vm3988, %v4168, 0.0
    %v4277 = vadd.f32 %v4275, %v4276
    %v4278 = vsel %vm3988, %v4169, 0.0
    %v4279 = vadd.f32 %v4277, %v4278
    %v4280 = vsel %vm3988, %v4170, 0.0
    %v4281 = vadd.f32 %v4279, %v4280
    %v4282 = vsel %vm3988, %v4171, 0.0
    %v4283 = vadd.f32 %v4281, %v4282
    %v4284 = vsel %vm3988, %v4172, 0.0
    %v4285 = vadd.f32 %v4283, %v4284
    %v4286 = vsel %vm3988, %v4173, 0.0
    %v4287 = vadd.f32 %v4285, %v4286
    %v4288 = vsel %vm3988, %v4174, 0.0
    %v4289 = vadd.f32 %v4287, %v4288
    %v4290 = vsel %vm3988, %v4175, 0.0
    %v4291 = vadd.f32 %v4289, %v4290
    %v4292 = vsel %vm3988, %v4176, 0.0
    %v4293 = vadd.f32 %v4291, %v4292
    %v4294 = vsel %vm3988, %v4177, 0.0
    %v4295 = vadd.f32 %v4293, %v4294
    %v4296 = vsel %vm3988, %v4178, 0.0
    %v4297 = vadd.f32 %v4295, %v4296
    %v4298 = vsel %vm3988, %v4179, 0.0
    %v4299 = vadd.f32 %v4297, %v4298
    %v4300 = vsel %vm3988, %v4180, 0.0
    %v4301 = vadd.f32 %v4299, %v4300
    %v4302 = vsel %vm3988, %v4181, 0.0
    %v4303 = vadd.f32 %v4301, %v4302
    %v4304 = vsel %vm3988, %v4182, 0.0
    %v4305 = vadd.f32 %v4303, %v4304
    %v4306 = vsel %vm3988, %v4183, 0.0
    %v4307 = vadd.f32 %v4305, %v4306
    %v4308 = vsel %vm3988, %v4184, 0.0
    %v4309 = vadd.f32 %v4307, %v4308
    %v4310 = vsel %vm3988, %v4185, 0.0
    %v4311 = vadd.f32 %v4309, %v4310
    %v4312 = vsel %vm3988, %v4186, 0.0
    %v4313 = vadd.f32 %v4311, %v4312
    %v4314 = vrot.slane %v4313, 4
    %v4315 = vadd.f32 %v4313, %v4314
    %v4316 = vrot.slane %v4315, 2
    %v4317 = vadd.f32 %v4315, %v4316
    %v4318 = vrot.slane %v4317, 1
    %v4319 = vadd.f32 %v4317, %v4318
    %v4320 = vmul.f32 %v4319, 0.001953125
    %v4321 = vmul.f32 %v4122, %v4122
    %v4322 = vsub.f32 %v4320, %v4321
    %v4323 = vld [vmem:[%s5] sm:$0x1]
    %v4324 = vadd.f32 %v4322, 1e-05
    %v4325 = vrsqrt.pop %v4324
    %v4326 = vmul.f32 %v4323, %v4325
    %v4327 = vld [vmem:[%s6] sm:$0x1]
    %v4328 = vmul.f32 %v4122, %v4326
    %v4329 = vsub.f32 %v4327, %v4328
    %v4331 = vlaneseq
    %v4332 = vshrl.u32 %v4331, 7
    %v4333 = vsub.s32 0, %v4332
    %v4334 = vrot.slane %v4326, %v4333
    %v4336 = vmul.f32 %v3670, %v4334
    %v4337 = vmul.f32 %v3675, %v4334
    %v4338 = vmul.f32 %v3680, %v4334
    %v4339 = vmul.f32 %v3685, %v4334
    %v4340 = vmul.f32 %v3690, %v4334
    %v4341 = vmul.f32 %v3695, %v4334
    %v4342 = vmul.f32 %v3700, %v4334
    %v4343 = vmul.f32 %v3705, %v4334
    %v4344 = vmul.f32 %v3710, %v4334
    %v4345 = vmul.f32 %v3715, %v4334
    %v4346 = vmul.f32 %v3720, %v4334
    %v4347 = vmul.f32 %v3725, %v4334
    %v4348 = vmul.f32 %v3730, %v4334
    %v4349 = vmul.f32 %v3735, %v4334
    %v4350 = vmul.f32 %v3740, %v4334
    %v4351 = vmul.f32 %v3745, %v4334
    %v4352 = vmul.f32 %v3750, %v4334
    %v4353 = vmul.f32 %v3755, %v4334
    %v4354 = vmul.f32 %v3760, %v4334
    %v4355 = vmul.f32 %v3765, %v4334
    %v4356 = vmul.f32 %v3770, %v4334
    %v4357 = vmul.f32 %v3775, %v4334
    %v4358 = vmul.f32 %v3780, %v4334
    %v4359 = vmul.f32 %v3785, %v4334
    %v4360 = vmul.f32 %v3790, %v4334
    %v4361 = vmul.f32 %v3795, %v4334
    %v4362 = vmul.f32 %v3800, %v4334
    %v4363 = vmul.f32 %v3805, %v4334
    %v4364 = vmul.f32 %v3810, %v4334
    %v4365 = vmul.f32 %v3815, %v4334
    %v4366 = vmul.f32 %v3820, %v4334
    %v4367 = vmul.f32 %v3825, %v4334
    %v4368 = vmul.f32 %v3830, %v4334
    %v4369 = vmul.f32 %v3835, %v4334
    %v4370 = vmul.f32 %v3840, %v4334
    %v4371 = vmul.f32 %v3845, %v4334
    %v4372 = vmul.f32 %v3850, %v4334
    %v4373 = vmul.f32 %v3855, %v4334
    %v4374 = vmul.f32 %v3860, %v4334
    %v4375 = vmul.f32 %v3865, %v4334
    %v4376 = vmul.f32 %v3870, %v4334
    %v4377 = vmul.f32 %v3875, %v4334
    %v4378 = vmul.f32 %v3880, %v4334
    %v4379 = vmul.f32 %v3885, %v4334
    %v4380 = vmul.f32 %v3890, %v4334
    %v4381 = vmul.f32 %v3895, %v4334
    %v4382 = vmul.f32 %v3900, %v4334
    %v4383 = vmul.f32 %v3905, %v4334
    %v4384 = vmul.f32 %v3910, %v4334
    %v4385 = vmul.f32 %v3915, %v4334
    %v4386 = vmul.f32 %v3920, %v4334
    %v4387 = vmul.f32 %v3925, %v4334
    %v4388 = vmul.f32 %v3930, %v4334
    %v4389 = vmul.f32 %v3935, %v4334
    %v4390 = vmul.f32 %v3940, %v4334
    %v4391 = vmul.f32 %v3945, %v4334
    %v4392 = vmul.f32 %v3950, %v4334
    %v4393 = vmul.f32 %v3955, %v4334
    %v4394 = vmul.f32 %v3960, %v4334
    %v4395 = vmul.f32 %v3965, %v4334
    %v4396 = vmul.f32 %v3970, %v4334
    %v4397 = vmul.f32 %v3975, %v4334
    %v4398 = vmul.f32 %v3980, %v4334
    %v4399 = vmul.f32 %v3985, %v4334
    %v4401 = vlaneseq
    %v4402 = vshrl.u32 %v4401, 7
    %v4403 = vsub.s32 0, %v4402
    %v4404 = vrot.slane %v4329, %v4403
    %v4406 = vadd.f32 %v4336, %v4404
    %v4407 = vadd.f32 %v4337, %v4404
    %v4408 = vadd.f32 %v4338, %v4404
    %v4409 = vadd.f32 %v4339, %v4404
    %v4410 = vadd.f32 %v4340, %v4404
    %v4411 = vadd.f32 %v4341, %v4404
    %v4412 = vadd.f32 %v4342, %v4404
    %v4413 = vadd.f32 %v4343, %v4404
    %v4414 = vadd.f32 %v4344, %v4404
    %v4415 = vadd.f32 %v4345, %v4404
    %v4416 = vadd.f32 %v4346, %v4404
    %v4417 = vadd.f32 %v4347, %v4404
    %v4418 = vadd.f32 %v4348, %v4404
    %v4419 = vadd.f32 %v4349, %v4404
    %v4420 = vadd.f32 %v4350, %v4404
    %v4421 = vadd.f32 %v4351, %v4404
    %v4422 = vadd.f32 %v4352, %v4404
    %v4423 = vadd.f32 %v4353, %v4404
    %v4424 = vadd.f32 %v4354, %v4404
    %v4425 = vadd.f32 %v4355, %v4404
    %v4426 = vadd.f32 %v4356, %v4404
    %v4427 = vadd.f32 %v4357, %v4404
    %v4428 = vadd.f32 %v4358, %v4404
    %v4429 = vadd.f32 %v4359, %v4404
    %v4430 = vadd.f32 %v4360, %v4404
    %v4431 = vadd.f32 %v4361, %v4404
    %v4432 = vadd.f32 %v4362, %v4404
    %v4433 = vadd.f32 %v4363, %v4404
    %v4434 = vadd.f32 %v4364, %v4404
    %v4435 = vadd.f32 %v4365, %v4404
    %v4436 = vadd.f32 %v4366, %v4404
    %v4437 = vadd.f32 %v4367, %v4404
    %v4438 = vadd.f32 %v4368, %v4404
    %v4439 = vadd.f32 %v4369, %v4404
    %v4440 = vadd.f32 %v4370, %v4404
    %v4441 = vadd.f32 %v4371, %v4404
    %v4442 = vadd.f32 %v4372, %v4404
    %v4443 = vadd.f32 %v4373, %v4404
    %v4444 = vadd.f32 %v4374, %v4404
    %v4445 = vadd.f32 %v4375, %v4404
    %v4446 = vadd.f32 %v4376, %v4404
    %v4447 = vadd.f32 %v4377, %v4404
    %v4448 = vadd.f32 %v4378, %v4404
    %v4449 = vadd.f32 %v4379, %v4404
    %v4450 = vadd.f32 %v4380, %v4404
    %v4451 = vadd.f32 %v4381, %v4404
    %v4452 = vadd.f32 %v4382, %v4404
    %v4453 = vadd.f32 %v4383, %v4404
    %v4454 = vadd.f32 %v4384, %v4404
    %v4455 = vadd.f32 %v4385, %v4404
    %v4456 = vadd.f32 %v4386, %v4404
    %v4457 = vadd.f32 %v4387, %v4404
    %v4458 = vadd.f32 %v4388, %v4404
    %v4459 = vadd.f32 %v4389, %v4404
    %v4460 = vadd.f32 %v4390, %v4404
    %v4461 = vadd.f32 %v4391, %v4404
    %v4462 = vadd.f32 %v4392, %v4404
    %v4463 = vadd.f32 %v4393, %v4404
    %v4464 = vadd.f32 %v4394, %v4404
    %v4465 = vadd.f32 %v4395, %v4404
    %v4466 = vadd.f32 %v4396, %v4404
    %v4467 = vadd.f32 %v4397, %v4404
    %v4468 = vadd.f32 %v4398, %v4404
    %v4469 = vadd.f32 %v4399, %v4404
    %v4470 = vmax.f32 %v4406, 0.0
    %v4471 = vmax.f32 %v4407, 0.0
    %v4472 = vmax.f32 %v4408, 0.0
    %v4473 = vmax.f32 %v4409, 0.0
    %v4474 = vmax.f32 %v4410, 0.0
    %v4475 = vmax.f32 %v4411, 0.0
    %v4476 = vmax.f32 %v4412, 0.0
    %v4477 = vmax.f32 %v4413, 0.0
    %v4478 = vmax.f32 %v4414, 0.0
    %v4479 = vmax.f32 %v4415, 0.0
    %v4480 = vmax.f32 %v4416, 0.0
    %v4481 = vmax.f32 %v4417, 0.0
    %v4482 = vmax.f32 %v4418, 0.0
    %v4483 = vmax.f32 %v4419, 0.0
    %v4484 = vmax.f32 %v4420, 0.0
    %v4485 = vmax.f32 %v4421, 0.0
    %v4486 = vmax.f32 %v4422, 0.0
    %v4487 = vmax.f32 %v4423, 0.0
    %v4488 = vmax.f32 %v4424, 0.0
    %v4489 = vmax.f32 %v4425, 0.0
    %v4490 = vmax.f32 %v4426, 0.0
    %v4491 = vmax.f32 %v4427, 0.0
    %v4492 = vmax.f32 %v4428, 0.0
    %v4493 = vmax.f32 %v4429, 0.0
    %v4494 = vmax.f32 %v4430, 0.0
    %v4495 = vmax.f32 %v4431, 0.0
    %v4496 = vmax.f32 %v4432, 0.0
    %v4497 = vmax.f32 %v4433, 0.0
    %v4498 = vmax.f32 %v4434, 0.0
    %v4499 = vmax.f32 %v4435, 0.0
    %v4500 = vmax.f32 %v4436, 0.0
    %v4501 = vmax.f32 %v4437, 0.0
    %v4502 = vmax.f32 %v4438, 0.0
    %v4503 = vmax.f32 %v4439, 0.0
    %v4504 = vmax.f32 %v4440, 0.0
    %v4505 = vmax.f32 %v4441, 0.0
    %v4506 = vmax.f32 %v4442, 0.0
    %v4507 = vmax.f32 %v4443, 0.0
    %v4508 = vmax.f32 %v4444, 0.0
    %v4509 = vmax.f32 %v4445, 0.0
    %v4510 = vmax.f32 %v4446, 0.0
    %v4511 = vmax.f32 %v4447, 0.0
    %v4512 = vmax.f32 %v4448, 0.0
    %v4513 = vmax.f32 %v4449, 0.0
    %v4514 = vmax.f32 %v4450, 0.0
    %v4515 = vmax.f32 %v4451, 0.0
    %v4516 = vmax.f32 %v4452, 0.0
    %v4517 = vmax.f32 %v4453, 0.0
    %v4518 = vmax.f32 %v4454, 0.0
    %v4519 = vmax.f32 %v4455, 0.0
    %v4520 = vmax.f32 %v4456, 0.0
    %v4521 = vmax.f32 %v4457, 0.0
    %v4522 = vmax.f32 %v4458, 0.0
    %v4523 = vmax.f32 %v4459, 0.0
    %v4524 = vmax.f32 %v4460, 0.0
    %v4525 = vmax.f32 %v4461, 0.0
    %v4526 = vmax.f32 %v4462, 0.0
    %v4527 = vmax.f32 %v4463, 0.0
    %v4528 = vmax.f32 %v4464, 0.0
    %v4529 = vmax.f32 %v4465, 0.0
    %v4530 = vmax.f32 %v4466, 0.0
    %v4531 = vmax.f32 %v4467, 0.0
    %v4532 = vmax.f32 %v4468, 0.0
    %v4533 = vmax.f32 %v4469, 0.0
    %4534 = vst.msk [vmem:[#allocation3] sm:$0xff] %vm3988, 0.0
    %4535 = vst.msk [vmem:[#allocation3 + $0x8] sm:$0xff] %vm3988, 0.0
    %vm4536 = vcmask 254976
    %4537 = vst.msk [vmem:[#allocation3 + $0x10] sm:$0x3] %vm4536, 0.0
    %4538 = vst.msk [vmem:[#allocation3 + $0x1b0] sm:$0xff] %vm3988, 0.0
    %4539 = vst.msk [vmem:[#allocation3 + $0x1b8] sm:$0xff] %vm3988, 0.0
    %4540 = vst.msk [vmem:[#allocation3 + $0x1c0] sm:$0x3] %vm4536, 0.0
    %s4541 = scalar_lea.vmem [#allocation3], 408
    %4542 = vst.msk [vmem:[%s4541] sm:$0xff] %vm3988, 0.0
    %4543 = vst.msk [vmem:[%s4541 + $0x8] sm:$0xff] %vm3988, 0.0
    %4544 = vst.msk [vmem:[%s4541 + $0x10] sm:$0x3] %vm4536, 0.0
    %4545 = vst.msk [vmem:[%s4541 + $0x1b0] sm:$0xff] %vm3988, 0.0
    %4546 = vst.msk [vmem:[%s4541 + $0x1b8] sm:$0xff] %vm3988, 0.0
    %4547 = vst.msk [vmem:[%s4541 + $0x1c0] sm:$0x3] %vm4536, 0.0
    %vm4548 = vcmask 253952
    %4549 = vst.msk [vmem:[#allocation3] sm:$0x1] %vm4548, 0.0
    %4550 = vst.msk [vmem:[#allocation3 + $0x18] sm:$0x1] %vm4548, 0.0
    %4551 = vst.msk [vmem:[#allocation3 + $0x30] sm:$0x1] %vm4548, 0.0
    %4552 = vst.msk [vmem:[#allocation3 + $0x48] sm:$0x1] %vm4548, 0.0
    %4553 = vst.msk [vmem:[#allocation3 + $0x60] sm:$0x1] %vm4548, 0.0
    %4554 = vst.msk [vmem:[#allocation3 + $0x78] sm:$0x1] %vm4548, 0.0
    %4555 = vst.msk [vmem:[#allocation3 + $0x90] sm:$0x1] %vm4548, 0.0
    %4556 = vst.msk [vmem:[#allocation3 + $0xa8] sm:$0x1] %vm4548, 0.0
    %4557 = vst.msk [vmem:[#allocation3 + $0xc0] sm:$0x1] %vm4548, 0.0
    %4558 = vst.msk [vmem:[#allocation3 + $0xd8] sm:$0x1] %vm4548, 0.0
    %4559 = vst.msk [vmem:[#allocation3 + $0xf0] sm:$0x1] %vm4548, 0.0
    %4560 = vst.msk [vmem:[#allocation3 + $0x108] sm:$0x1] %vm4548, 0.0
    %4561 = vst.msk [vmem:[#allocation3 + $0x120] sm:$0x1] %vm4548, 0.0
    %4562 = vst.msk [vmem:[#allocation3 + $0x138] sm:$0x1] %vm4548, 0.0
    %4563 = vst.msk [vmem:[#allocation3 + $0x150] sm:$0x1] %vm4548, 0.0
    %4564 = vst.msk [vmem:[#allocation3 + $0x168] sm:$0x1] %vm4548, 0.0
    %4565 = vst.msk [vmem:[#allocation3 + $0x180] sm:$0x1] %vm4548, 0.0
    %4566 = vst.msk [vmem:[#allocation3 + $0x198] sm:$0x1] %vm4548, 0.0
    %4567 = vst.msk [vmem:[#allocation3 + $0x1b0] sm:$0x1] %vm4548, 0.0
    %4568 = vst.msk [vmem:[#allocation3 + $0x1c8] sm:$0x1] %vm4548, 0.0
    %4569 = vst.msk [vmem:[#allocation3 + $0x1e0] sm:$0x1] %vm4548, 0.0
    %4570 = vst.msk [vmem:[#allocation3 + $0x1f8] sm:$0x1] %vm4548, 0.0
    %4571 = vst.msk [vmem:[#allocation3 + $0x210] sm:$0x1] %vm4548, 0.0
    %4572 = vst.msk [vmem:[#allocation3 + $0x228] sm:$0x1] %vm4548, 0.0
    %4573 = vst.msk [vmem:[#allocation3 + $0x240] sm:$0x1] %vm4548, 0.0
    %4574 = vst.msk [vmem:[#allocation3 + $0x258] sm:$0x1] %vm4548, 0.0
    %4575 = vst.msk [vmem:[#allocation3 + $0x270] sm:$0x1] %vm4548, 0.0
    %4576 = vst.msk [vmem:[#allocation3 + $0x288] sm:$0x1] %vm4548, 0.0
    %4577 = vst.msk [vmem:[#allocation3 + $0x2a0] sm:$0x1] %vm4548, 0.0
    %4578 = vst.msk [vmem:[#allocation3 + $0x2b8] sm:$0x1] %vm4548, 0.0
    %4579 = vst.msk [vmem:[#allocation3 + $0x2d0] sm:$0x1] %vm4548, 0.0
    %4580 = vst.msk [vmem:[#allocation3 + $0x2e8] sm:$0x1] %vm4548, 0.0
    %4581 = vst.msk [vmem:[#allocation3 + $0x300] sm:$0x1] %vm4548, 0.0
    %4582 = vst.msk [vmem:[#allocation3 + $0x318] sm:$0x1] %vm4548, 0.0
    %4583 = vst.msk [vmem:[#allocation3 + $0x330] sm:$0x1] %vm4548, 0.0
    %4584 = vst.msk [vmem:[#allocation3 + $0x348] sm:$0x1] %vm4548, 0.0
    %4585 = vst.msk [vmem:[#allocation3 + $0x11] sm:$0x1] %vm4548, 0.0
    %4586 = vst.msk [vmem:[#allocation3 + $0x29] sm:$0x1] %vm4548, 0.0
    %4587 = vst.msk [vmem:[#allocation3 + $0x41] sm:$0x1] %vm4548, 0.0
    %4588 = vst.msk [vmem:[#allocation3 + $0x59] sm:$0x1] %vm4548, 0.0
    %4589 = vst.msk [vmem:[#allocation3 + $0x71] sm:$0x1] %vm4548, 0.0
    %4590 = vst.msk [vmem:[#allocation3 + $0x89] sm:$0x1] %vm4548, 0.0
    %4591 = vst.msk [vmem:[#allocation3 + $0xa1] sm:$0x1] %vm4548, 0.0
    %4592 = vst.msk [vmem:[#allocation3 + $0xb9] sm:$0x1] %vm4548, 0.0
    %4593 = vst.msk [vmem:[#allocation3 + $0xd1] sm:$0x1] %vm4548, 0.0
    %4594 = vst.msk [vmem:[#allocation3 + $0xe9] sm:$0x1] %vm4548, 0.0
    %4595 = vst.msk [vmem:[#allocation3 + $0x101] sm:$0x1] %vm4548, 0.0
    %4596 = vst.msk [vmem:[#allocation3 + $0x119] sm:$0x1] %vm4548, 0.0
    %4597 = vst.msk [vmem:[#allocation3 + $0x131] sm:$0x1] %vm4548, 0.0
    %4598 = vst.msk [vmem:[#allocation3 + $0x149] sm:$0x1] %vm4548, 0.0
    %4599 = vst.msk [vmem:[#allocation3 + $0x161] sm:$0x1] %vm4548, 0.0
    %4600 = vst.msk [vmem:[#allocation3 + $0x179] sm:$0x1] %vm4548, 0.0
    %4601 = vst.msk [vmem:[#allocation3 + $0x191] sm:$0x1] %vm4548, 0.0
    %4602 = vst.msk [vmem:[#allocation3 + $0x1a9] sm:$0x1] %vm4548, 0.0
    %4603 = vst.msk [vmem:[#allocation3 + $0x1c1] sm:$0x1] %vm4548, 0.0
    %4604 = vst.msk [vmem:[#allocation3 + $0x1d9] sm:$0x1] %vm4548, 0.0
    %4605 = vst.msk [vmem:[#allocation3 + $0x1f1] sm:$0x1] %vm4548, 0.0
    %4606 = vst.msk [vmem:[#allocation3 + $0x209] sm:$0x1] %vm4548, 0.0
    %4607 = vst.msk [vmem:[#allocation3 + $0x221] sm:$0x1] %vm4548, 0.0
    %4608 = vst.msk [vmem:[#allocation3 + $0x239] sm:$0x1] %vm4548, 0.0
    %4609 = vst.msk [vmem:[#allocation3 + $0x251] sm:$0x1] %vm4548, 0.0
    %4610 = vst.msk [vmem:[#allocation3 + $0x269] sm:$0x1] %vm4548, 0.0
    %4611 = vst.msk [vmem:[#allocation3 + $0x281] sm:$0x1] %vm4548, 0.0
    %4612 = vst.msk [vmem:[#allocation3 + $0x299] sm:$0x1] %vm4548, 0.0
    %4613 = vst.msk [vmem:[#allocation3 + $0x2b1] sm:$0x1] %vm4548, 0.0
    %4614 = vst.msk [vmem:[#allocation3 + $0x2c9] sm:$0x1] %vm4548, 0.0
    %4615 = vst.msk [vmem:[#allocation3 + $0x2e1] sm:$0x1] %vm4548, 0.0
    %4616 = vst.msk [vmem:[#allocation3 + $0x2f9] sm:$0x1] %vm4548, 0.0
    %4617 = vst.msk [vmem:[#allocation3 + $0x311] sm:$0x1] %vm4548, 0.0
    %4618 = vst.msk [vmem:[#allocation3 + $0x329] sm:$0x1] %vm4548, 0.0
    %4619 = vst.msk [vmem:[#allocation3 + $0x341] sm:$0x1] %vm4548, 0.0
    %4620 = vst.msk [vmem:[#allocation3 + $0x359] sm:$0x1] %vm4548, 0.0
    %s4621 = scalar_lea.vmem [#allocation3], 24
    %4622 = vst.msk [vmem:[%s4621 + $0x1] sm:$0xff] %vm3988, %v4470
    %4623 = vst.msk [vmem:[%s4621 + $0x9] sm:$0xff] %vm3988, %v4471
    %4624 = vst.msk [vmem:[%s4621 + $0x19] sm:$0xff] %vm3988, %v4472
    %4625 = vst.msk [vmem:[%s4621 + $0x21] sm:$0xff] %vm3988, %v4473
    %4626 = vst.msk [vmem:[%s4621 + $0x31] sm:$0xff] %vm3988, %v4474
    %4627 = vst.msk [vmem:[%s4621 + $0x39] sm:$0xff] %vm3988, %v4475
    %4628 = vst.msk [vmem:[%s4621 + $0x49] sm:$0xff] %vm3988, %v4476
    %4629 = vst.msk [vmem:[%s4621 + $0x51] sm:$0xff] %vm3988, %v4477
    %4630 = vst.msk [vmem:[%s4621 + $0x61] sm:$0xff] %vm3988, %v4478
    %4631 = vst.msk [vmem:[%s4621 + $0x69] sm:$0xff] %vm3988, %v4479
    %4632 = vst.msk [vmem:[%s4621 + $0x79] sm:$0xff] %vm3988, %v4480
    %4633 = vst.msk [vmem:[%s4621 + $0x81] sm:$0xff] %vm3988, %v4481
    %4634 = vst.msk [vmem:[%s4621 + $0x91] sm:$0xff] %vm3988, %v4482
    %4635 = vst.msk [vmem:[%s4621 + $0x99] sm:$0xff] %vm3988, %v4483
    %4636 = vst.msk [vmem:[%s4621 + $0xa9] sm:$0xff] %vm3988, %v4484
    %4637 = vst.msk [vmem:[%s4621 + $0xb1] sm:$0xff] %vm3988, %v4485
    %4638 = vst.msk [vmem:[%s4621 + $0xc1] sm:$0xff] %vm3988, %v4486
    %4639 = vst.msk [vmem:[%s4621 + $0xc9] sm:$0xff] %vm3988, %v4487
    %4640 = vst.msk [vmem:[%s4621 + $0xd9] sm:$0xff] %vm3988, %v4488
    %4641 = vst.msk [vmem:[%s4621 + $0xe1] sm:$0xff] %vm3988, %v4489
    %4642 = vst.msk [vmem:[%s4621 + $0xf1] sm:$0xff] %vm3988, %v4490
    %4643 = vst.msk [vmem:[%s4621 + $0xf9] sm:$0xff] %vm3988, %v4491
    %4644 = vst.msk [vmem:[%s4621 + $0x109] sm:$0xff] %vm3988, %v4492
    %4645 = vst.msk [vmem:[%s4621 + $0x111] sm:$0xff] %vm3988, %v4493
    %4646 = vst.msk [vmem:[%s4621 + $0x121] sm:$0xff] %vm3988, %v4494
    %4647 = vst.msk [vmem:[%s4621 + $0x129] sm:$0xff] %vm3988, %v4495
    %4648 = vst.msk [vmem:[%s4621 + $0x139] sm:$0xff] %vm3988, %v4496
    %4649 = vst.msk [vmem:[%s4621 + $0x141] sm:$0xff] %vm3988, %v4497
    %4650 = vst.msk [vmem:[%s4621 + $0x151] sm:$0xff] %vm3988, %v4498
    %4651 = vst.msk [vmem:[%s4621 + $0x159] sm:$0xff] %vm3988, %v4499
    %4652 = vst.msk [vmem:[%s4621 + $0x169] sm:$0xff] %vm3988, %v4500
    %4653 = vst.msk [vmem:[%s4621 + $0x171] sm:$0xff] %vm3988, %v4501
    %4654 = vst.msk [vmem:[%s4621 + $0x1b1] sm:$0xff] %vm3988, %v4502
    %4655 = vst.msk [vmem:[%s4621 + $0x1b9] sm:$0xff] %vm3988, %v4503
    %4656 = vst.msk [vmem:[%s4621 + $0x1c9] sm:$0xff] %vm3988, %v4504
    %4657 = vst.msk [vmem:[%s4621 + $0x1d1] sm:$0xff] %vm3988, %v4505
    %4658 = vst.msk [vmem:[%s4621 + $0x1e1] sm:$0xff] %vm3988, %v4506
    %4659 = vst.msk [vmem:[%s4621 + $0x1e9] sm:$0xff] %vm3988, %v4507
    %4660 = vst.msk [vmem:[%s4621 + $0x1f9] sm:$0xff] %vm3988, %v4508
    %4661 = vst.msk [vmem:[%s4621 + $0x201] sm:$0xff] %vm3988, %v4509
    %4662 = vst.msk [vmem:[%s4621 + $0x211] sm:$0xff] %vm3988, %v4510
    %4663 = vst.msk [vmem:[%s4621 + $0x219] sm:$0xff] %vm3988, %v4511
    %4664 = vst.msk [vmem:[%s4621 + $0x229] sm:$0xff] %vm3988, %v4512
    %4665 = vst.msk [vmem:[%s4621 + $0x231] sm:$0xff] %vm3988, %v4513
    %4666 = vst.msk [vmem:[%s4621 + $0x241] sm:$0xff] %vm3988, %v4514
    %4667 = vst.msk [vmem:[%s4621 + $0x249] sm:$0xff] %vm3988, %v4515
    %4668 = vst.msk [vmem:[%s4621 + $0x259] sm:$0xff] %vm3988, %v4516
    %4669 = vst.msk [vmem:[%s4621 + $0x261] sm:$0xff] %vm3988, %v4517
    %4670 = vst.msk [vmem:[%s4621 + $0x271] sm:$0xff] %vm3988, %v4518
    %4671 = vst.msk [vmem:[%s4621 + $0x279] sm:$0xff] %vm3988, %v4519
    %4672 = vst.msk [vmem:[%s4621 + $0x289] sm:$0xff] %vm3988, %v4520
    %4673 = vst.msk [vmem:[%s4621 + $0x291] sm:$0xff] %vm3988, %v4521
    %4674 = vst.msk [vmem:[%s4621 + $0x2a1] sm:$0xff] %vm3988, %v4522
    %4675 = vst.msk [vmem:[%s4621 + $0x2a9] sm:$0xff] %vm3988, %v4523
    %4676 = vst.msk [vmem:[%s4621 + $0x2b9] sm:$0xff] %vm3988, %v4524
    %4677 = vst.msk [vmem:[%s4621 + $0x2c1] sm:$0xff] %vm3988, %v4525
    %4678 = vst.msk [vmem:[%s4621 + $0x2d1] sm:$0xff] %vm3988, %v4526
    %4679 = vst.msk [vmem:[%s4621 + $0x2d9] sm:$0xff] %vm3988, %v4527
    %4680 = vst.msk [vmem:[%s4621 + $0x2e9] sm:$0xff] %vm3988, %v4528
    %4681 = vst.msk [vmem:[%s4621 + $0x2f1] sm:$0xff] %vm3988, %v4529
    %4682 = vst.msk [vmem:[%s4621 + $0x301] sm:$0xff] %vm3988, %v4530
    %4683 = vst.msk [vmem:[%s4621 + $0x309] sm:$0xff] %vm3988, %v4531
    %4684 = vst.msk [vmem:[%s4621 + $0x319] sm:$0xff] %vm3988, %v4532
    %4685 = vst.msk [vmem:[%s4621 + $0x321] sm:$0xff] %vm3988, %v4533
    %v4686 = vld [vmem:[#allocation3] sm:$0xff]
    %v4687 = vld [vmem:[#allocation3 + $0x8] sm:$0xff]
    %v4688 = vld [vmem:[#allocation3 + $0x18] sm:$0xff]
    %v4689 = vld [vmem:[#allocation3 + $0x20] sm:$0xff]
    %v4690 = vld [vmem:[#allocation3 + $0x30] sm:$0xff]
    %v4691 = vld [vmem:[#allocation3 + $0x38] sm:$0xff]
    %v4692 = vld [vmem:[#allocation3 + $0x48] sm:$0xff]
    %v4693 = vld [vmem:[#allocation3 + $0x50] sm:$0xff]
    %v4694 = vld [vmem:[#allocation3 + $0x60] sm:$0xff]
    %v4695 = vld [vmem:[#allocation3 + $0x68] sm:$0xff]
    %v4696 = vld [vmem:[#allocation3 + $0x78] sm:$0xff]
    %v4697 = vld [vmem:[#allocation3 + $0x80] sm:$0xff]
    %v4698 = vld [vmem:[#allocation3 + $0x90] sm:$0xff]
    %v4699 = vld [vmem:[#allocation3 + $0x98] sm:$0xff]
    %v4700 = vld [vmem:[#allocation3 + $0xa8] sm:$0xff]
    %v4701 = vld [vmem:[#allocation3 + $0xb0] sm:$0xff]
    %v4702 = vld [vmem:[#allocation3 + $0xc0] sm:$0xff]
    %v4703 = vld [vmem:[#allocation3 + $0xc8] sm:$0xff]
    %v4704 = vld [vmem:[#allocation3 + $0xd8] sm:$0xff]
    %v4705 = vld [vmem:[#allocation3 + $0xe0] sm:$0xff]
    %v4706 = vld [vmem:[#allocation3 + $0xf0] sm:$0xff]
    %v4707 = vld [vmem:[#allocation3 + $0xf8] sm:$0xff]
    %v4708 = vld [vmem:[#allocation3 + $0x108] sm:$0xff]
    %v4709 = vld [vmem:[#allocation3 + $0x110] sm:$0xff]
    %v4710 = vld [vmem:[#allocation3 + $0x120] sm:$0xff]
    %v4711 = vld [vmem:[#allocation3 + $0x128] sm:$0xff]
    %v4712 = vld [vmem:[#allocation3 + $0x138] sm:$0xff]
    %v4713 = vld [vmem:[#allocation3 + $0x140] sm:$0xff]
    %v4714 = vld [vmem:[#allocation3 + $0x150] sm:$0xff]
    %v4715 = vld [vmem:[#allocation3 + $0x158] sm:$0xff]
    %v4716 = vld [vmem:[#allocation3 + $0x168] sm:$0xff]
    %v4717 = vld [vmem:[#allocation3 + $0x170] sm:$0xff]
    %v4718 = vld [vmem:[#allocation3 + $0x1b0] sm:$0xff]
    %v4719 = vld [vmem:[#allocation3 + $0x1b8] sm:$0xff]
    %v4720 = vld [vmem:[#allocation3 + $0x1c8] sm:$0xff]
    %v4721 = vld [vmem:[#allocation3 + $0x1d0] sm:$0xff]
    %v4722 = vld [vmem:[#allocation3 + $0x1e0] sm:$0xff]
    %v4723 = vld [vmem:[#allocation3 + $0x1e8] sm:$0xff]
    %v4724 = vld [vmem:[#allocation3 + $0x1f8] sm:$0xff]
    %v4725 = vld [vmem:[#allocation3 + $0x200] sm:$0xff]
    %v4726 = vld [vmem:[#allocation3 + $0x210] sm:$0xff]
    %v4727 = vld [vmem:[#allocation3 + $0x218] sm:$0xff]
    %v4728 = vld [vmem:[#allocation3 + $0x228] sm:$0xff]
    %v4729 = vld [vmem:[#allocation3 + $0x230] sm:$0xff]
    %v4730 = vld [vmem:[#allocation3 + $0x240] sm:$0xff]
    %v4731 = vld [vmem:[#allocation3 + $0x248] sm:$0xff]
    %v4732 = vld [vmem:[#allocation3 + $0x258] sm:$0xff]
    %v4733 = vld [vmem:[#allocation3 + $0x260] sm:$0xff]
    %v4734 = vld [vmem:[#allocation3 + $0x270] sm:$0xff]
    %v4735 = vld [vmem:[#allocation3 + $0x278] sm:$0xff]
    %v4736 = vld [vmem:[#allocation3 + $0x288] sm:$0xff]
    %v4737 = vld [vmem:[#allocation3 + $0x290] sm:$0xff]
    %v4738 = vld [vmem:[#allocation3 + $0x2a0] sm:$0xff]
    %v4739 = vld [vmem:[#allocation3 + $0x2a8] sm:$0xff]
    %v4740 = vld [vmem:[#allocation3 + $0x2b8] sm:$0xff]
    %v4741 = vld [vmem:[#allocation3 + $0x2c0] sm:$0xff]
    %v4742 = vld [vmem:[#allocation3 + $0x2d0] sm:$0xff]
    %v4743 = vld [vmem:[#allocation3 + $0x2d8] sm:$0xff]
    %v4744 = vld [vmem:[#allocation3 + $0x2e8] sm:$0xff]
    %v4745 = vld [vmem:[#allocation3 + $0x2f0] sm:$0xff]
    %v4746 = vld [vmem:[#allocation3 + $0x300] sm:$0xff]
    %v4747 = vld [vmem:[#allocation3 + $0x308] sm:$0xff]
    %v4748 = vld [vmem:[#allocation3 + $0x318] sm:$0xff]
    %v4749 = vld [vmem:[#allocation3 + $0x320] sm:$0xff]
    %v4750 = vld [vmem:[#allocation3 + $0x1] sm:$0xff]
    %v4751 = vld [vmem:[#allocation3 + $0x9] sm:$0xff]
    %v4752 = vld [vmem:[#allocation3 + $0x19] sm:$0xff]
    %v4753 = vld [vmem:[#allocation3 + $0x21] sm:$0xff]
    %v4754 = vld [vmem:[#allocation3 + $0x31] sm:$0xff]
    %v4755 = vld [vmem:[#allocation3 + $0x39] sm:$0xff]
    %v4756 = vld [vmem:[#allocation3 + $0x49] sm:$0xff]
    %v4757 = vld [vmem:[#allocation3 + $0x51] sm:$0xff]
    %v4758 = vld [vmem:[#allocation3 + $0x61] sm:$0xff]
    %v4759 = vld [vmem:[#allocation3 + $0x69] sm:$0xff]
    %v4760 = vld [vmem:[#allocation3 + $0x79] sm:$0xff]
    %v4761 = vld [vmem:[#allocation3 + $0x81] sm:$0xff]
    %v4762 = vld [vmem:[#allocation3 + $0x91] sm:$0xff]
    %v4763 = vld [vmem:[#allocation3 + $0x99] sm:$0xff]
    %v4764 = vld [vmem:[#allocation3 + $0xa9] sm:$0xff]
    %v4765 = vld [vmem:[#allocation3 + $0xb1] sm:$0xff]
    %v4766 = vld [vmem:[#allocation3 + $0xc1] sm:$0xff]
    %v4767 = vld [vmem:[#allocation3 + $0xc9] sm:$0xff]
    %v4768 = vld [vmem:[#allocation3 + $0xd9] sm:$0xff]
    %v4769 = vld [vmem:[#allocation3 + $0xe1] sm:$0xff]
    %v4770 = vld [vmem:[#allocation3 + $0xf1] sm:$0xff]
    %v4771 = vld [vmem:[#allocation3 + $0xf9] sm:$0xff]
    %v4772 = vld [vmem:[#allocation3 + $0x109] sm:$0xff]
    %v4773 = vld [vmem:[#allocation3 + $0x111] sm:$0xff]
    %v4774 = vld [vmem:[#allocation3 + $0x121] sm:$0xff]
    %v4775 = vld [vmem:[#allocation3 + $0x129] sm:$0xff]
    %v4776 = vld [vmem:[#allocation3 + $0x139] sm:$0xff]
    %v4777 = vld [vmem:[#allocation3 + $0x141] sm:$0xff]
    %v4778 = vld [vmem:[#allocation3 + $0x151] sm:$0xff]
    %v4779 = vld [vmem:[#allocation3 + $0x159] sm:$0xff]
    %v4780 = vld [vmem:[#allocation3 + $0x169] sm:$0xff]
    %v4781 = vld [vmem:[#allocation3 + $0x171] sm:$0xff]
    %v4782 = vld [vmem:[#allocation3 + $0x1b1] sm:$0xff]
    %v4783 = vld [vmem:[#allocation3 + $0x1b9] sm:$0xff]
    %v4784 = vld [vmem:[#allocation3 + $0x1c9] sm:$0xff]
    %v4785 = vld [vmem:[#allocation3 + $0x1d1] sm:$0xff]
    %v4786 = vld [vmem:[#allocation3 + $0x1e1] sm:$0xff]
    %v4787 = vld [vmem:[#allocation3 + $0x1e9] sm:$0xff]
    %v4788 = vld [vmem:[#allocation3 + $0x1f9] sm:$0xff]
    %v4789 = vld [vmem:[#allocation3 + $0x201] sm:$0xff]
    %v4790 = vld [vmem:[#allocation3 + $0x211] sm:$0xff]
    %v4791 = vld [vmem:[#allocation3 + $0x219] sm:$0xff]
    %v4792 = vld [vmem:[#allocation3 + $0x229] sm:$0xff]
    %v4793 = vld [vmem:[#allocation3 + $0x231] sm:$0xff]
    %v4794 = vld [vmem:[#allocation3 + $0x241] sm:$0xff]
    %v4795 = vld [vmem:[#allocation3 + $0x249] sm:$0xff]
    %v4796 = vld [vmem:[#allocation3 + $0x259] sm:$0xff]
    %v4797 = vld [vmem:[#allocation3 + $0x261] sm:$0xff]
    %v4798 = vld [vmem:[#allocation3 + $0x271] sm:$0xff]
    %v4799 = vld [vmem:[#allocation3 + $0x279] sm:$0xff]
    %v4800 = vld [vmem:[#allocation3 + $0x289] sm:$0xff]
    %v4801 = vld [vmem:[#allocation3 + $0x291] sm:$0xff]
    %v4802 = vld [vmem:[#allocation3 + $0x2a1] sm:$0xff]
    %v4803 = vld [vmem:[#allocation3 + $0x2a9] sm:$0xff]
    %v4804 = vld [vmem:[#allocation3 + $0x2b9] sm:$0xff]
    %v4805 = vld [vmem:[#allocation3 + $0x2c1] sm:$0xff]
    %v4806 = vld [vmem:[#allocation3 + $0x2d1] sm:$0xff]
    %v4807 = vld [vmem:[#allocation3 + $0x2d9] sm:$0xff]
    %v4808 = vld [vmem:[#allocation3 + $0x2e9] sm:$0xff]
    %v4809 = vld [vmem:[#allocation3 + $0x2f1] sm:$0xff]
    %v4810 = vld [vmem:[#allocation3 + $0x301] sm:$0xff]
    %v4811 = vld [vmem:[#allocation3 + $0x309] sm:$0xff]
    %v4812 = vld [vmem:[#allocation3 + $0x319] sm:$0xff]
    %v4813 = vld [vmem:[#allocation3 + $0x321] sm:$0xff]
    %v4814 = vld [vmem:[#allocation3 + $0x2] sm:$0xff]
    %v4815 = vld [vmem:[#allocation3 + $0xa] sm:$0xff]
    %v4816 = vld [vmem:[#allocation3 + $0x1a] sm:$0xff]
    %v4817 = vld [vmem:[#allocation3 + $0x22] sm:$0xff]
    %v4818 = vld [vmem:[#allocation3 + $0x32] sm:$0xff]
    %v4819 = vld [vmem:[#allocation3 + $0x3a] sm:$0xff]
    %v4820 = vld [vmem:[#allocation3 + $0x4a] sm:$0xff]
    %v4821 = vld [vmem:[#allocation3 + $0x52] sm:$0xff]
    %v4822 = vld [vmem:[#allocation3 + $0x62] sm:$0xff]
    %v4823 = vld [vmem:[#allocation3 + $0x6a] sm:$0xff]
    %v4824 = vld [vmem:[#allocation3 + $0x7a] sm:$0xff]
    %v4825 = vld [vmem:[#allocation3 + $0x82] sm:$0xff]
    %v4826 = vld [vmem:[#allocation3 + $0x92] sm:$0xff]
    %v4827 = vld [vmem:[#allocation3 + $0x9a] sm:$0xff]
    %v4828 = vld [vmem:[#allocation3 + $0xaa] sm:$0xff]
    %v4829 = vld [vmem:[#allocation3 + $0xb2] sm:$0xff]
    %v4830 = vld [vmem:[#allocation3 + $0xc2] sm:$0xff]
    %v4831 = vld [vmem:[#allocation3 + $0xca] sm:$0xff]
    %v4832 = vld [vmem:[#allocation3 + $0xda] sm:$0xff]
    %v4833 = vld [vmem:[#allocation3 + $0xe2] sm:$0xff]
    %v4834 = vld [vmem:[#allocation3 + $0xf2] sm:$0xff]
    %v4835 = vld [vmem:[#allocation3 + $0xfa] sm:$0xff]
    %v4836 = vld [vmem:[#allocation3 + $0x10a] sm:$0xff]
    %v4837 = vld [vmem:[#allocation3 + $0x112] sm:$0xff]
    %v4838 = vld [vmem:[#allocation3 + $0x122] sm:$0xff]
    %v4839 = vld [vmem:[#allocation3 + $0x12a] sm:$0xff]
    %v4840 = vld [vmem:[#allocation3 + $0x13a] sm:$0xff]
    %v4841 = vld [vmem:[#allocation3 + $0x142] sm:$0xff]
    %v4842 = vld [vmem:[#allocation3 + $0x152] sm:$0xff]
    %v4843 = vld [vmem:[#allocation3 + $0x15a] sm:$0xff]
    %v4844 = vld [vmem:[#allocation3 + $0x16a] sm:$0xff]
    %v4845 = vld [vmem:[#allocation3 + $0x172] sm:$0xff]
    %v4846 = vld [vmem:[#allocation3 + $0x1b2] sm:$0xff]
    %v4847 = vld [vmem:[#allocation3 + $0x1ba] sm:$0xff]
    %v4848 = vld [vmem:[#allocation3 + $0x1ca] sm:$0xff]
    %v4849 = vld [vmem:[#allocation3 + $0x1d2] sm:$0xff]
    %v4850 = vld [vmem:[#allocation3 + $0x1e2] sm:$0xff]
    %v4851 = vld [vmem:[#allocation3 + $0x1ea] sm:$0xff]
    %v4852 = vld [vmem:[#allocation3 + $0x1fa] sm:$0xff]
    %v4853 = vld [vmem:[#allocation3 + $0x202] sm:$0xff]
    %v4854 = vld [vmem:[#allocation3 + $0x212] sm:$0xff]
    %v4855 = vld [vmem:[#allocation3 + $0x21a] sm:$0xff]
    %v4856 = vld [vmem:[#allocation3 + $0x22a] sm:$0xff]
    %v4857 = vld [vmem:[#allocation3 + $0x232] sm:$0xff]
    %v4858 = vld [vmem:[#allocation3 + $0x242] sm:$0xff]
    %v4859 = vld [vmem:[#allocation3 + $0x24a] sm:$0xff]
    %v4860 = vld [vmem:[#allocation3 + $0x25a] sm:$0xff]
    %v4861 = vld [vmem:[#allocation3 + $0x262] sm:$0xff]
    %v4862 = vld [vmem:[#allocation3 + $0x272] sm:$0xff]
    %v4863 = vld [vmem:[#allocation3 + $0x27a] sm:$0xff]
    %v4864 = vld [vmem:[#allocation3 + $0x28a] sm:$0xff]
    %v4865 = vld [vmem:[#allocation3 + $0x292] sm:$0xff]
    %v4866 = vld [vmem:[#allocation3 + $0x2a2] sm:$0xff]
    %v4867 = vld [vmem:[#allocation3 + $0x2aa] sm:$0xff]
    %v4868 = vld [vmem:[#allocation3 + $0x2ba] sm:$0xff]
    %v4869 = vld [vmem:[#allocation3 + $0x2c2] sm:$0xff]
    %v4870 = vld [vmem:[#allocation3 + $0x2d2] sm:$0xff]
    %v4871 = vld [vmem:[#allocation3 + $0x2da] sm:$0xff]
    %v4872 = vld [vmem:[#allocation3 + $0x2ea] sm:$0xff]
    %v4873 = vld [vmem:[#allocation3 + $0x2f2] sm:$0xff]
    %v4874 = vld [vmem:[#allocation3 + $0x302] sm:$0xff]
    %v4875 = vld [vmem:[#allocation3 + $0x30a] sm:$0xff]
    %v4876 = vld [vmem:[#allocation3 + $0x31a] sm:$0xff]
    %v4877 = vld [vmem:[#allocation3 + $0x322] sm:$0xff]
    %v4878 = vld [vmem:[%s4621] sm:$0xff]
    %v4879 = vld [vmem:[%s4621 + $0x8] sm:$0xff]
    %v4880 = vld [vmem:[%s4621 + $0x18] sm:$0xff]
    %v4881 = vld [vmem:[%s4621 + $0x20] sm:$0xff]
    %v4882 = vld [vmem:[%s4621 + $0x30] sm:$0xff]
    %v4883 = vld [vmem:[%s4621 + $0x38] sm:$0xff]
    %v4884 = vld [vmem:[%s4621 + $0x48] sm:$0xff]
    %v4885 = vld [vmem:[%s4621 + $0x50] sm:$0xff]
    %v4886 = vld [vmem:[%s4621 + $0x60] sm:$0xff]
    %v4887 = vld [vmem:[%s4621 + $0x68] sm:$0xff]
    %v4888 = vld [vmem:[%s4621 + $0x78] sm:$0xff]
    %v4889 = vld [vmem:[%s4621 + $0x80] sm:$0xff]
    %v4890 = vld [vmem:[%s4621 + $0x90] sm:$0xff]
    %v4891 = vld [vmem:[%s4621 + $0x98] sm:$0xff]
    %v4892 = vld [vmem:[%s4621 + $0xa8] sm:$0xff]
    %v4893 = vld [vmem:[%s4621 + $0xb0] sm:$0xff]
    %v4894 = vld [vmem:[%s4621 + $0xc0] sm:$0xff]
    %v4895 = vld [vmem:[%s4621 + $0xc8] sm:$0xff]
    %v4896 = vld [vmem:[%s4621 + $0xd8] sm:$0xff]
    %v4897 = vld [vmem:[%s4621 + $0xe0] sm:$0xff]
    %v4898 = vld [vmem:[%s4621 + $0xf0] sm:$0xff]
    %v4899 = vld [vmem:[%s4621 + $0xf8] sm:$0xff]
    %v4900 = vld [vmem:[%s4621 + $0x108] sm:$0xff]
    %v4901 = vld [vmem:[%s4621 + $0x110] sm:$0xff]
    %v4902 = vld [vmem:[%s4621 + $0x120] sm:$0xff]
    %v4903 = vld [vmem:[%s4621 + $0x128] sm:$0xff]
    %v4904 = vld [vmem:[%s4621 + $0x138] sm:$0xff]
    %v4905 = vld [vmem:[%s4621 + $0x140] sm:$0xff]
    %v4906 = vld [vmem:[%s4621 + $0x150] sm:$0xff]
    %v4907 = vld [vmem:[%s4621 + $0x158] sm:$0xff]
    %v4908 = vld [vmem:[%s4621 + $0x168] sm:$0xff]
    %v4909 = vld [vmem:[%s4621 + $0x170] sm:$0xff]
    %v4910 = vld [vmem:[%s4621 + $0x1b0] sm:$0xff]
    %v4911 = vld [vmem:[%s4621 + $0x1b8] sm:$0xff]
    %v4912 = vld [vmem:[%s4621 + $0x1c8] sm:$0xff]
    %v4913 = vld [vmem:[%s4621 + $0x1d0] sm:$0xff]
    %v4914 = vld [vmem:[%s4621 + $0x1e0] sm:$0xff]
    %v4915 = vld [vmem:[%s4621 + $0x1e8] sm:$0xff]
    %v4916 = vld [vmem:[%s4621 + $0x1f8] sm:$0xff]
    %v4917 = vld [vmem:[%s4621 + $0x200] sm:$0xff]
    %v4918 = vld [vmem:[%s4621 + $0x210] sm:$0xff]
    %v4919 = vld [vmem:[%s4621 + $0x218] sm:$0xff]
    %v4920 = vld [vmem:[%s4621 + $0x228] sm:$0xff]
    %v4921 = vld [vmem:[%s4621 + $0x230] sm:$0xff]
    %v4922 = vld [vmem:[%s4621 + $0x240] sm:$0xff]
    %v4923 = vld [vmem:[%s4621 + $0x248] sm:$0xff]
    %v4924 = vld [vmem:[%s4621 + $0x258] sm:$0xff]
    %v4925 = vld [vmem:[%s4621 + $0x260] sm:$0xff]
    %v4926 = vld [vmem:[%s4621 + $0x270] sm:$0xff]
    %v4927 = vld [vmem:[%s4621 + $0x278] sm:$0xff]
    %v4928 = vld [vmem:[%s4621 + $0x288] sm:$0xff]
    %v4929 = vld [vmem:[%s4621 + $0x290] sm:$0xff]
    %v4930 = vld [vmem:[%s4621 + $0x2a0] sm:$0xff]
    %v4931 = vld [vmem:[%s4621 + $0x2a8] sm:$0xff]
    %v4932 = vld [vmem:[%s4621 + $0x2b8] sm:$0xff]
    %v4933 = vld [vmem:[%s4621 + $0x2c0] sm:$0xff]
    %v4934 = vld [vmem:[%s4621 + $0x2d0] sm:$0xff]
    %v4935 = vld [vmem:[%s4621 + $0x2d8] sm:$0xff]
    %v4936 = vld [vmem:[%s4621 + $0x2e8] sm:$0xff]
    %v4937 = vld [vmem:[%s4621 + $0x2f0] sm:$0xff]
    %v4938 = vld [vmem:[%s4621 + $0x300] sm:$0xff]
    %v4939 = vld [vmem:[%s4621 + $0x308] sm:$0xff]
    %v4940 = vld [vmem:[%s4621 + $0x318] sm:$0xff]
    %v4941 = vld [vmem:[%s4621 + $0x320] sm:$0xff]
    %v4942 = vld [vmem:[%s4621 + $0x1] sm:$0xff]
    %v4943 = vld [vmem:[%s4621 + $0x9] sm:$0xff]
    %v4944 = vld [vmem:[%s4621 + $0x19] sm:$0xff]
    %v4945 = vld [vmem:[%s4621 + $0x21] sm:$0xff]
    %v4946 = vld [vmem:[%s4621 + $0x31] sm:$0xff]
    %v4947 = vld [vmem:[%s4621 + $0x39] sm:$0xff]
    %v4948 = vld [vmem:[%s4621 + $0x49] sm:$0xff]
    %v4949 = vld [vmem:[%s4621 + $0x51] sm:$0xff]
    %v4950 = vld [vmem:[%s4621 + $0x61] sm:$0xff]
    %v4951 = vld [vmem:[%s4621 + $0x69] sm:$0xff]
    %v4952 = vld [vmem:[%s4621 + $0x79] sm:$0xff]
    %v4953 = vld [vmem:[%s4621 + $0x81] sm:$0xff]
    %v4954 = vld [vmem:[%s4621 + $0x91] sm:$0xff]
    %v4955 = vld [vmem:[%s4621 + $0x99] sm:$0xff]
    %v4956 = vld [vmem:[%s4621 + $0xa9] sm:$0xff]
    %v4957 = vld [vmem:[%s4621 + $0xb1] sm:$0xff]
    %v4958 = vld [vmem:[%s4621 + $0xc1] sm:$0xff]
    %v4959 = vld [vmem:[%s4621 + $0xc9] sm:$0xff]
    %v4960 = vld [vmem:[%s4621 + $0xd9] sm:$0xff]
    %v4961 = vld [vmem:[%s4621 + $0xe1] sm:$0xff]
    %v4962 = vld [vmem:[%s4621 + $0xf1] sm:$0xff]
    %v4963 = vld [vmem:[%s4621 + $0xf9] sm:$0xff]
    %v4964 = vld [vmem:[%s4621 + $0x109] sm:$0xff]
    %v4965 = vld [vmem:[%s4621 + $0x111] sm:$0xff]
    %v4966 = vld [vmem:[%s4621 + $0x121] sm:$0xff]
    %v4967 = vld [vmem:[%s4621 + $0x129] sm:$0xff]
    %v4968 = vld [vmem:[%s4621 + $0x139] sm:$0xff]
    %v4969 = vld [vmem:[%s4621 + $0x141] sm:$0xff]
    %v4970 = vld [vmem:[%s4621 + $0x151] sm:$0xff]
    %v4971 = vld [vmem:[%s4621 + $0x159] sm:$0xff]
    %v4972 = vld [vmem:[%s4621 + $0x169] sm:$0xff]
    %v4973 = vld [vmem:[%s4621 + $0x171] sm:$0xff]
    %v4974 = vld [vmem:[%s4621 + $0x1b1] sm:$0xff]
    %v4975 = vld [vmem:[%s4621 + $0x1b9] sm:$0xff]
    %v4976 = vld [vmem:[%s4621 + $0x1c9] sm:$0xff]
    %v4977 = vld [vmem:[%s4621 + $0x1d1] sm:$0xff]
    %v4978 = vld [vmem:[%s4621 + $0x1e1] sm:$0xff]
    %v4979 = vld [vmem:[%s4621 + $0x1e9] sm:$0xff]
    %v4980 = vld [vmem:[%s4621 + $0x1f9] sm:$0xff]
    %v4981 = vld [vmem:[%s4621 + $0x201] sm:$0xff]
    %v4982 = vld [vmem:[%s4621 + $0x211] sm:$0xff]
    %v4983 = vld [vmem:[%s4621 + $0x219] sm:$0xff]
    %v4984 = vld [vmem:[%s4621 + $0x229] sm:$0xff]
    %v4985 = vld [vmem:[%s4621 + $0x231] sm:$0xff]
    %v4986 = vld [vmem:[%s4621 + $0x241] sm:$0xff]
    %v4987 = vld [vmem:[%s4621 + $0x249] sm:$0xff]
    %v4988 = vld [vmem:[%s4621 + $0x259] sm:$0xff]
    %v4989 = vld [vmem:[%s4621 + $0x261] sm:$0xff]
    %v4990 = vld [vmem:[%s4621 + $0x271] sm:$0xff]
    %v4991 = vld [vmem:[%s4621 + $0x279] sm:$0xff]
    %v4992 = vld [vmem:[%s4621 + $0x289] sm:$0xff]
    %v4993 = vld [vmem:[%s4621 + $0x291] sm:$0xff]
    %v4994 = vld [vmem:[%s4621 + $0x2a1] sm:$0xff]
    %v4995 = vld [vmem:[%s4621 + $0x2a9] sm:$0xff]
    %v4996 = vld [vmem:[%s4621 + $0x2b9] sm:$0xff]
    %v4997 = vld [vmem:[%s4621 + $0x2c1] sm:$0xff]
    %v4998 = vld [vmem:[%s4621 + $0x2d1] sm:$0xff]
    %v4999 = vld [vmem:[%s4621 + $0x2d9] sm:$0xff]
    %v5000 = vld [vmem:[%s4621 + $0x2e9] sm:$0xff]
    %v5001 = vld [vmem:[%s4621 + $0x2f1] sm:$0xff]
    %v5002 = vld [vmem:[%s4621 + $0x301] sm:$0xff]
    %v5003 = vld [vmem:[%s4621 + $0x309] sm:$0xff]
    %v5004 = vld [vmem:[%s4621 + $0x319] sm:$0xff]
    %v5005 = vld [vmem:[%s4621 + $0x321] sm:$0xff]
    %v5006 = vld [vmem:[%s4621 + $0x2] sm:$0xff]
    %v5007 = vld [vmem:[%s4621 + $0xa] sm:$0xff]
    %v5008 = vld [vmem:[%s4621 + $0x1a] sm:$0xff]
    %v5009 = vld [vmem:[%s4621 + $0x22] sm:$0xff]
    %v5010 = vld [vmem:[%s4621 + $0x32] sm:$0xff]
    %v5011 = vld [vmem:[%s4621 + $0x3a] sm:$0xff]
    %v5012 = vld [vmem:[%s4621 + $0x4a] sm:$0xff]
    %v5013 = vld [vmem:[%s4621 + $0x52] sm:$0xff]
    %v5014 = vld [vmem:[%s4621 + $0x62] sm:$0xff]
    %v5015 = vld [vmem:[%s4621 + $0x6a] sm:$0xff]
    %v5016 = vld [vmem:[%s4621 + $0x7a] sm:$0xff]
    %v5017 = vld [vmem:[%s4621 + $0x82] sm:$0xff]
    %v5018 = vld [vmem:[%s4621 + $0x92] sm:$0xff]
    %v5019 = vld [vmem:[%s4621 + $0x9a] sm:$0xff]
    %v5020 = vld [vmem:[%s4621 + $0xaa] sm:$0xff]
    %v5021 = vld [vmem:[%s4621 + $0xb2] sm:$0xff]
    %v5022 = vld [vmem:[%s4621 + $0xc2] sm:$0xff]
    %v5023 = vld [vmem:[%s4621 + $0xca] sm:$0xff]
    %v5024 = vld [vmem:[%s4621 + $0xda] sm:$0xff]
    %v5025 = vld [vmem:[%s4621 + $0xe2] sm:$0xff]
    %v5026 = vld [vmem:[%s4621 + $0xf2] sm:$0xff]
    %v5027 = vld [vmem:[%s4621 + $0xfa] sm:$0xff]
    %v5028 = vld [vmem:[%s4621 + $0x10a] sm:$0xff]
    %v5029 = vld [vmem:[%s4621 + $0x112] sm:$0xff]
    %v5030 = vld [vmem:[%s4621 + $0x122] sm:$0xff]
    %v5031 = vld [vmem:[%s4621 + $0x12a] sm:$0xff]
    %v5032 = vld [vmem:[%s4621 + $0x13a] sm:$0xff]
    %v5033 = vld [vmem:[%s4621 + $0x142] sm:$0xff]
    %v5034 = vld [vmem:[%s4621 + $0x152] sm:$0xff]
    %v5035 = vld [vmem:[%s4621 + $0x15a] sm:$0xff]
    %v5036 = vld [vmem:[%s4621 + $0x16a] sm:$0xff]
    %v5037 = vld [vmem:[%s4621 + $0x172] sm:$0xff]
    %v5038 = vld [vmem:[%s4621 + $0x1b2] sm:$0xff]
    %v5039 = vld [vmem:[%s4621 + $0x1ba] sm:$0xff]
    %v5040 = vld [vmem:[%s4621 + $0x1ca] sm:$0xff]
    %v5041 = vld [vmem:[%s4621 + $0x1d2] sm:$0xff]
    %v5042 = vld [vmem:[%s4621 + $0x1e2] sm:$0xff]
    %v5043 = vld [vmem:[%s4621 + $0x1ea] sm:$0xff]
    %v5044 = vld [vmem:[%s4621 + $0x1fa] sm:$0xff]
    %v5045 = vld [vmem:[%s4621 + $0x202] sm:$0xff]
    %v5046 = vld [vmem:[%s4621 + $0x212] sm:$0xff]
    %v5047 = vld [vmem:[%s4621 + $0x21a] sm:$0xff]
    %v5048 = vld [vmem:[%s4621 + $0x22a] sm:$0xff]
    %v5049 = vld [vmem:[%s4621 + $0x232] sm:$0xff]
    %v5050 = vld [vmem:[%s4621 + $0x242] sm:$0xff]
    %v5051 = vld [vmem:[%s4621 + $0x24a] sm:$0xff]
    %v5052 = vld [vmem:[%s4621 + $0x25a] sm:$0xff]
    %v5053 = vld [vmem:[%s4621 + $0x262] sm:$0xff]
    %v5054 = vld [vmem:[%s4621 + $0x272] sm:$0xff]
    %v5055 = vld [vmem:[%s4621 + $0x27a] sm:$0xff]
    %v5056 = vld [vmem:[%s4621 + $0x28a] sm:$0xff]
    %v5057 = vld [vmem:[%s4621 + $0x292] sm:$0xff]
    %v5058 = vld [vmem:[%s4621 + $0x2a2] sm:$0xff]
    %v5059 = vld [vmem:[%s4621 + $0x2aa] sm:$0xff]
    %v5060 = vld [vmem:[%s4621 + $0x2ba] sm:$0xff]
    %v5061 = vld [vmem:[%s4621 + $0x2c2] sm:$0xff]
    %v5062 = vld [vmem:[%s4621 + $0x2d2] sm:$0xff]
    %v5063 = vld [vmem:[%s4621 + $0x2da] sm:$0xff]
    %v5064 = vld [vmem:[%s4621 + $0x2ea] sm:$0xff]
    %v5065 = vld [vmem:[%s4621 + $0x2f2] sm:$0xff]
    %v5066 = vld [vmem:[%s4621 + $0x302] sm:$0xff]
    %v5067 = vld [vmem:[%s4621 + $0x30a] sm:$0xff]
    %v5068 = vld [vmem:[%s4621 + $0x31a] sm:$0xff]
    %v5069 = vld [vmem:[%s4621 + $0x322] sm:$0xff]
    %s5070 = scalar_lea.vmem [#allocation3], 48
    %v5071 = vld [vmem:[%s5070] sm:$0xff]
    %v5072 = vld [vmem:[%s5070 + $0x8] sm:$0xff]
    %v5073 = vld [vmem:[%s5070 + $0x18] sm:$0xff]
    %v5074 = vld [vmem:[%s5070 + $0x20] sm:$0xff]
    %v5075 = vld [vmem:[%s5070 + $0x30] sm:$0xff]
    %v5076 = vld [vmem:[%s5070 + $0x38] sm:$0xff]
    %v5077 = vld [vmem:[%s5070 + $0x48] sm:$0xff]
    %v5078 = vld [vmem:[%s5070 + $0x50] sm:$0xff]
    %v5079 = vld [vmem:[%s5070 + $0x60] sm:$0xff]
    %v5080 = vld [vmem:[%s5070 + $0x68] sm:$0xff]
    %v5081 = vld [vmem:[%s5070 + $0x78] sm:$0xff]
    %v5082 = vld [vmem:[%s5070 + $0x80] sm:$0xff]
    %v5083 = vld [vmem:[%s5070 + $0x90] sm:$0xff]
    %v5084 = vld [vmem:[%s5070 + $0x98] sm:$0xff]
    %v5085 = vld [vmem:[%s5070 + $0xa8] sm:$0xff]
    %v5086 = vld [vmem:[%s5070 + $0xb0] sm:$0xff]
    %v5087 = vld [vmem:[%s5070 + $0xc0] sm:$0xff]
    %v5088 = vld [vmem:[%s5070 + $0xc8] sm:$0xff]
    %v5089 = vld [vmem:[%s5070 + $0xd8] sm:$0xff]
    %v5090 = vld [vmem:[%s5070 + $0xe0] sm:$0xff]
    %v5091 = vld [vmem:[%s5070 + $0xf0] sm:$0xff]
    %v5092 = vld [vmem:[%s5070 + $0xf8] sm:$0xff]
    %v5093 = vld [vmem:[%s5070 + $0x108] sm:$0xff]
    %v5094 = vld [vmem:[%s5070 + $0x110] sm:$0xff]
    %v5095 = vld [vmem:[%s5070 + $0x120] sm:$0xff]
    %v5096 = vld [vmem:[%s5070 + $0x128] sm:$0xff]
    %v5097 = vld [vmem:[%s5070 + $0x138] sm:$0xff]
    %v5098 = vld [vmem:[%s5070 + $0x140] sm:$0xff]
    %v5099 = vld [vmem:[%s5070 + $0x150] sm:$0xff]
    %v5100 = vld [vmem:[%s5070 + $0x158] sm:$0xff]
    %v5101 = vld [vmem:[%s5070 + $0x168] sm:$0xff]
    %v5102 = vld [vmem:[%s5070 + $0x170] sm:$0xff]
    %v5103 = vld [vmem:[%s5070 + $0x1b0] sm:$0xff]
    %v5104 = vld [vmem:[%s5070 + $0x1b8] sm:$0xff]
    %v5105 = vld [vmem:[%s5070 + $0x1c8] sm:$0xff]
    %v5106 = vld [vmem:[%s5070 + $0x1d0] sm:$0xff]
    %v5107 = vld [vmem:[%s5070 + $0x1e0] sm:$0xff]
    %v5108 = vld [vmem:[%s5070 + $0x1e8] sm:$0xff]
    %v5109 = vld [vmem:[%s5070 + $0x1f8] sm:$0xff]
    %v5110 = vld [vmem:[%s5070 + $0x200] sm:$0xff]
    %v5111 = vld [vmem:[%s5070 + $0x210] sm:$0xff]
    %v5112 = vld [vmem:[%s5070 + $0x218] sm:$0xff]
    %v5113 = vld [vmem:[%s5070 + $0x228] sm:$0xff]
    %v5114 = vld [vmem:[%s5070 + $0x230] sm:$0xff]
    %v5115 = vld [vmem:[%s5070 + $0x240] sm:$0xff]
    %v5116 = vld [vmem:[%s5070 + $0x248] sm:$0xff]
    %v5117 = vld [vmem:[%s5070 + $0x258] sm:$0xff]
    %v5118 = vld [vmem:[%s5070 + $0x260] sm:$0xff]
    %v5119 = vld [vmem:[%s5070 + $0x270] sm:$0xff]
    %v5120 = vld [vmem:[%s5070 + $0x278] sm:$0xff]
    %v5121 = vld [vmem:[%s5070 + $0x288] sm:$0xff]
    %v5122 = vld [vmem:[%s5070 + $0x290] sm:$0xff]
    %v5123 = vld [vmem:[%s5070 + $0x2a0] sm:$0xff]
    %v5124 = vld [vmem:[%s5070 + $0x2a8] sm:$0xff]
    %v5125 = vld [vmem:[%s5070 + $0x2b8] sm:$0xff]
    %v5126 = vld [vmem:[%s5070 + $0x2c0] sm:$0xff]
    %v5127 = vld [vmem:[%s5070 + $0x2d0] sm:$0xff]
    %v5128 = vld [vmem:[%s5070 + $0x2d8] sm:$0xff]
    %v5129 = vld [vmem:[%s5070 + $0x2e8] sm:$0xff]
    %v5130 = vld [vmem:[%s5070 + $0x2f0] sm:$0xff]
    %v5131 = vld [vmem:[%s5070 + $0x300] sm:$0xff]
    %v5132 = vld [vmem:[%s5070 + $0x308] sm:$0xff]
    %v5133 = vld [vmem:[%s5070 + $0x318] sm:$0xff]
    %v5134 = vld [vmem:[%s5070 + $0x320] sm:$0xff]
    %v5135 = vld [vmem:[%s5070 + $0x1] sm:$0xff]
    %v5136 = vld [vmem:[%s5070 + $0x9] sm:$0xff]
    %v5137 = vld [vmem:[%s5070 + $0x19] sm:$0xff]
    %v5138 = vld [vmem:[%s5070 + $0x21] sm:$0xff]
    %v5139 = vld [vmem:[%s5070 + $0x31] sm:$0xff]
    %v5140 = vld [vmem:[%s5070 + $0x39] sm:$0xff]
    %v5141 = vld [vmem:[%s5070 + $0x49] sm:$0xff]
    %v5142 = vld [vmem:[%s5070 + $0x51] sm:$0xff]
    %v5143 = vld [vmem:[%s5070 + $0x61] sm:$0xff]
    %v5144 = vld [vmem:[%s5070 + $0x69] sm:$0xff]
    %v5145 = vld [vmem:[%s5070 + $0x79] sm:$0xff]
    %v5146 = vld [vmem:[%s5070 + $0x81] sm:$0xff]
    %v5147 = vld [vmem:[%s5070 + $0x91] sm:$0xff]
    %v5148 = vld [vmem:[%s5070 + $0x99] sm:$0xff]
    %v5149 = vld [vmem:[%s5070 + $0xa9] sm:$0xff]
    %v5150 = vld [vmem:[%s5070 + $0xb1] sm:$0xff]
    %v5151 = vld [vmem:[%s5070 + $0xc1] sm:$0xff]
    %v5152 = vld [vmem:[%s5070 + $0xc9] sm:$0xff]
    %v5153 = vld [vmem:[%s5070 + $0xd9] sm:$0xff]
    %v5154 = vld [vmem:[%s5070 + $0xe1] sm:$0xff]
    %v5155 = vld [vmem:[%s5070 + $0xf1] sm:$0xff]
    %v5156 = vld [vmem:[%s5070 + $0xf9] sm:$0xff]
    %v5157 = vld [vmem:[%s5070 + $0x109] sm:$0xff]
    %v5158 = vld [vmem:[%s5070 + $0x111] sm:$0xff]
    %v5159 = vld [vmem:[%s5070 + $0x121] sm:$0xff]
    %v5160 = vld [vmem:[%s5070 + $0x129] sm:$0xff]
    %v5161 = vld [vmem:[%s5070 + $0x139] sm:$0xff]
    %v5162 = vld [vmem:[%s5070 + $0x141] sm:$0xff]
    %v5163 = vld [vmem:[%s5070 + $0x151] sm:$0xff]
    %v5164 = vld [vmem:[%s5070 + $0x159] sm:$0xff]
    %v5165 = vld [vmem:[%s5070 + $0x169] sm:$0xff]
    %v5166 = vld [vmem:[%s5070 + $0x171] sm:$0xff]
    %v5167 = vld [vmem:[%s5070 + $0x1b1] sm:$0xff]
    %v5168 = vld [vmem:[%s5070 + $0x1b9] sm:$0xff]
    %v5169 = vld [vmem:[%s5070 + $0x1c9] sm:$0xff]
    %v5170 = vld [vmem:[%s5070 + $0x1d1] sm:$0xff]
    %v5171 = vld [vmem:[%s5070 + $0x1e1] sm:$0xff]
    %v5172 = vld [vmem:[%s5070 + $0x1e9] sm:$0xff]
    %v5173 = vld [vmem:[%s5070 + $0x1f9] sm:$0xff]
    %v5174 = vld [vmem:[%s5070 + $0x201] sm:$0xff]
    %v5175 = vld [vmem:[%s5070 + $0x211] sm:$0xff]
    %v5176 = vld [vmem:[%s5070 + $0x219] sm:$0xff]
    %v5177 = vld [vmem:[%s5070 + $0x229] sm:$0xff]
    %v5178 = vld [vmem:[%s5070 + $0x231] sm:$0xff]
    %v5179 = vld [vmem:[%s5070 + $0x241] sm:$0xff]
    %v5180 = vld [vmem:[%s5070 + $0x249] sm:$0xff]
    %v5181 = vld [vmem:[%s5070 + $0x259] sm:$0xff]
    %v5182 = vld [vmem:[%s5070 + $0x261] sm:$0xff]
    %v5183 = vld [vmem:[%s5070 + $0x271] sm:$0xff]
    %v5184 = vld [vmem:[%s5070 + $0x279] sm:$0xff]
    %v5185 = vld [vmem:[%s5070 + $0x289] sm:$0xff]
    %v5186 = vld [vmem:[%s5070 + $0x291] sm:$0xff]
    %v5187 = vld [vmem:[%s5070 + $0x2a1] sm:$0xff]
    %v5188 = vld [vmem:[%s5070 + $0x2a9] sm:$0xff]
    %v5189 = vld [vmem:[%s5070 + $0x2b9] sm:$0xff]
    %v5190 = vld [vmem:[%s5070 + $0x2c1] sm:$0xff]
    %v5191 = vld [vmem:[%s5070 + $0x2d1] sm:$0xff]
    %v5192 = vld [vmem:[%s5070 + $0x2d9] sm:$0xff]
    %v5193 = vld [vmem:[%s5070 + $0x2e9] sm:$0xff]
    %v5194 = vld [vmem:[%s5070 + $0x2f1] sm:$0xff]
    %v5195 = vld [vmem:[%s5070 + $0x301] sm:$0xff]
    %v5196 = vld [vmem:[%s5070 + $0x309] sm:$0xff]
    %v5197 = vld [vmem:[%s5070 + $0x319] sm:$0xff]
    %v5198 = vld [vmem:[%s5070 + $0x321] sm:$0xff]
    %v5199 = vld [vmem:[%s5070 + $0x2] sm:$0xff]
    %v5200 = vld [vmem:[%s5070 + $0xa] sm:$0xff]
    %v5201 = vld [vmem:[%s5070 + $0x1a] sm:$0xff]
    %v5202 = vld [vmem:[%s5070 + $0x22] sm:$0xff]
    %v5203 = vld [vmem:[%s5070 + $0x32] sm:$0xff]
    %v5204 = vld [vmem:[%s5070 + $0x3a] sm:$0xff]
    %v5205 = vld [vmem:[%s5070 + $0x4a] sm:$0xff]
    %v5206 = vld [vmem:[%s5070 + $0x52] sm:$0xff]
    %v5207 = vld [vmem:[%s5070 + $0x62] sm:$0xff]
    %v5208 = vld [vmem:[%s5070 + $0x6a] sm:$0xff]
    %v5209 = vld [vmem:[%s5070 + $0x7a] sm:$0xff]
    %v5210 = vld [vmem:[%s5070 + $0x82] sm:$0xff]
    %v5211 = vld [vmem:[%s5070 + $0x92] sm:$0xff]
    %v5212 = vld [vmem:[%s5070 + $0x9a] sm:$0xff]
    %v5213 = vld [vmem:[%s5070 + $0xaa] sm:$0xff]
    %v5214 = vld [vmem:[%s5070 + $0xb2] sm:$0xff]
    %v5215 = vld [vmem:[%s5070 + $0xc2] sm:$0xff]
    %v5216 = vld [vmem:[%s5070 + $0xca] sm:$0xff]
    %v5217 = vld [vmem:[%s5070 + $0xda] sm:$0xff]
    %v5218 = vld [vmem:[%s5070 + $0xe2] sm:$0xff]
    %v5219 = vld [vmem:[%s5070 + $0xf2] sm:$0xff]
    %v5220 = vld [vmem:[%s5070 + $0xfa] sm:$0xff]
    %v5221 = vld [vmem:[%s5070 + $0x10a] sm:$0xff]
    %v5222 = vld [vmem:[%s5070 + $0x112] sm:$0xff]
    %v5223 = vld [vmem:[%s5070 + $0x122] sm:$0xff]
    %v5224 = vld [vmem:[%s5070 + $0x12a] sm:$0xff]
    %v5225 = vld [vmem:[%s5070 + $0x13a] sm:$0xff]
    %v5226 = vld [vmem:[%s5070 + $0x142] sm:$0xff]
    %v5227 = vld [vmem:[%s5070 + $0x152] sm:$0xff]
    %v5228 = vld [vmem:[%s5070 + $0x15a] sm:$0xff]
    %v5229 = vld [vmem:[%s5070 + $0x16a] sm:$0xff]
    %v5230 = vld [vmem:[%s5070 + $0x172] sm:$0xff]
    %v5231 = vld [vmem:[%s5070 + $0x1b2] sm:$0xff]
    %v5232 = vld [vmem:[%s5070 + $0x1ba] sm:$0xff]
    %v5233 = vld [vmem:[%s5070 + $0x1ca] sm:$0xff]
    %v5234 = vld [vmem:[%s5070 + $0x1d2] sm:$0xff]
    %v5235 = vld [vmem:[%s5070 + $0x1e2] sm:$0xff]
    %v5236 = vld [vmem:[%s5070 + $0x1ea] sm:$0xff]
    %v5237 = vld [vmem:[%s5070 + $0x1fa] sm:$0xff]
    %v5238 = vld [vmem:[%s5070 + $0x202] sm:$0xff]
    %v5239 = vld [vmem:[%s5070 + $0x212] sm:$0xff]
    %v5240 = vld [vmem:[%s5070 + $0x21a] sm:$0xff]
    %v5241 = vld [vmem:[%s5070 + $0x22a] sm:$0xff]
    %v5242 = vld [vmem:[%s5070 + $0x232] sm:$0xff]
    %v5243 = vld [vmem:[%s5070 + $0x242] sm:$0xff]
    %v5244 = vld [vmem:[%s5070 + $0x24a] sm:$0xff]
    %v5245 = vld [vmem:[%s5070 + $0x25a] sm:$0xff]
    %v5246 = vld [vmem:[%s5070 + $0x262] sm:$0xff]
    %v5247 = vld [vmem:[%s5070 + $0x272] sm:$0xff]
    %v5248 = vld [vmem:[%s5070 + $0x27a] sm:$0xff]
    %v5249 = vld [vmem:[%s5070 + $0x28a] sm:$0xff]
    %v5250 = vld [vmem:[%s5070 + $0x292] sm:$0xff]
    %v5251 = vld [vmem:[%s5070 + $0x2a2] sm:$0xff]
    %v5252 = vld [vmem:[%s5070 + $0x2aa] sm:$0xff]
    %v5253 = vld [vmem:[%s5070 + $0x2ba] sm:$0xff]
    %v5254 = vld [vmem:[%s5070 + $0x2c2] sm:$0xff]
    %v5255 = vld [vmem:[%s5070 + $0x2d2] sm:$0xff]
    %v5256 = vld [vmem:[%s5070 + $0x2da] sm:$0xff]
    %v5257 = vld [vmem:[%s5070 + $0x2ea] sm:$0xff]
    %v5258 = vld [vmem:[%s5070 + $0x2f2] sm:$0xff]
    %v5259 = vld [vmem:[%s5070 + $0x302] sm:$0xff]
    %v5260 = vld [vmem:[%s5070 + $0x30a] sm:$0xff]
    %v5261 = vld [vmem:[%s5070 + $0x31a] sm:$0xff]
    %v5262 = vld [vmem:[%s5070 + $0x322] sm:$0xff]
    %5327 = vrot.lane.b32.xlu0 %v4750, 32
    %v5328 = vpop.permute.xlu0 %5327
    %5329 = vrot.lane.b32.xlu0 %v4751, 32
    %v5330 = vpop.permute.xlu0 %5329
    %5331 = vrot.lane.b32.xlu0 %v4752, 32
    %v5332 = vpop.permute.xlu0 %5331
    %5333 = vrot.lane.b32.xlu0 %v4753, 32
    %v5334 = vpop.permute.xlu0 %5333
    %5335 = vrot.lane.b32.xlu0 %v4754, 32
    %v5336 = vpop.permute.xlu0 %5335
    %5337 = vrot.lane.b32.xlu0 %v4755, 32
    %v5338 = vpop.permute.xlu0 %5337
    %5339 = vrot.lane.b32.xlu0 %v4756, 32
    %v5340 = vpop.permute.xlu0 %5339
    %5341 = vrot.lane.b32.xlu0 %v4757, 32
    %v5342 = vpop.permute.xlu0 %5341
    %5343 = vrot.lane.b32.xlu0 %v4758, 32
    %v5344 = vpop.permute.xlu0 %5343
    %5345 = vrot.lane.b32.xlu0 %v4759, 32
    %v5346 = vpop.permute.xlu0 %5345
    %5347 = vrot.lane.b32.xlu0 %v4760, 32
    %v5348 = vpop.permute.xlu0 %5347
    %5349 = vrot.lane.b32.xlu0 %v4761, 32
    %v5350 = vpop.permute.xlu0 %5349
    %5351 = vrot.lane.b32.xlu0 %v4762, 32
    %v5352 = vpop.permute.xlu0 %5351
    %5353 = vrot.lane.b32.xlu0 %v4763, 32
    %v5354 = vpop.permute.xlu0 %5353
    %5355 = vrot.lane.b32.xlu0 %v4764, 32
    %v5356 = vpop.permute.xlu0 %5355
    %5357 = vrot.lane.b32.xlu0 %v4765, 32
    %v5358 = vpop.permute.xlu0 %5357
    %5359 = vrot.lane.b32.xlu0 %v4766, 32
    %v5360 = vpop.permute.xlu0 %5359
    %5361 = vrot.lane.b32.xlu0 %v4767, 32
    %v5362 = vpop.permute.xlu0 %5361
    %5363 = vrot.lane.b32.xlu0 %v4768, 32
    %v5364 = vpop.permute.xlu0 %5363
    %5365 = vrot.lane.b32.xlu0 %v4769, 32
    %v5366 = vpop.permute.xlu0 %5365
    %5367 = vrot.lane.b32.xlu0 %v4770, 32
    %v5368 = vpop.permute.xlu0 %5367
    %5369 = vrot.lane.b32.xlu0 %v4771, 32
    %v5370 = vpop.permute.xlu0 %5369
    %5371 = vrot.lane.b32.xlu0 %v4772, 32
    %v5372 = vpop.permute.xlu0 %5371
    %5373 = vrot.lane.b32.xlu0 %v4773, 32
    %v5374 = vpop.permute.xlu0 %5373
    %5375 = vrot.lane.b32.xlu0 %v4774, 32
    %v5376 = vpop.permute.xlu0 %5375
    %5377 = vrot.lane.b32.xlu0 %v4775, 32
    %v5378 = vpop.permute.xlu0 %5377
    %5379 = vrot.lane.b32.xlu0 %v4776, 32
    %v5380 = vpop.permute.xlu0 %5379
    %5381 = vrot.lane.b32.xlu0 %v4777, 32
    %v5382 = vpop.permute.xlu0 %5381
    %5383 = vrot.lane.b32.xlu0 %v4778, 32
    %v5384 = vpop.permute.xlu0 %5383
    %5385 = vrot.lane.b32.xlu0 %v4779, 32
    %v5386 = vpop.permute.xlu0 %5385
    %5387 = vrot.lane.b32.xlu0 %v4780, 32
    %v5388 = vpop.permute.xlu0 %5387
    %5389 = vrot.lane.b32.xlu0 %v4781, 32
    %v5390 = vpop.permute.xlu0 %5389
    %5391 = vrot.lane.b32.xlu0 %v4782, 32
    %v5392 = vpop.permute.xlu0 %5391
    %5393 = vrot.lane.b32.xlu0 %v4783, 32
    %v5394 = vpop.permute.xlu0 %5393
    %5395 = vrot.lane.b32.xlu0 %v4784, 32
    %v5396 = vpop.permute.xlu0 %5395
    %5397 = vrot.lane.b32.xlu0 %v4785, 32
    %v5398 = vpop.permute.xlu0 %5397
    %5399 = vrot.lane.b32.xlu0 %v4786, 32
    %v5400 = vpop.permute.xlu0 %5399
    %5401 = vrot.lane.b32.xlu0 %v4787, 32
    %v5402 = vpop.permute.xlu0 %5401
    %5403 = vrot.lane.b32.xlu0 %v4788, 32
    %v5404 = vpop.permute.xlu0 %5403
    %5405 = vrot.lane.b32.xlu0 %v4789, 32
    %v5406 = vpop.permute.xlu0 %5405
    %5407 = vrot.lane.b32.xlu0 %v4790, 32
    %v5408 = vpop.permute.xlu0 %5407
    %5409 = vrot.lane.b32.xlu0 %v4791, 32
    %v5410 = vpop.permute.xlu0 %5409
    %5411 = vrot.lane.b32.xlu0 %v4792, 32
    %v5412 = vpop.permute.xlu0 %5411
    %5413 = vrot.lane.b32.xlu0 %v4793, 32
    %v5414 = vpop.permute.xlu0 %5413
    %5415 = vrot.lane.b32.xlu0 %v4794, 32
    %v5416 = vpop.permute.xlu0 %5415
    %5417 = vrot.lane.b32.xlu0 %v4795, 32
    %v5418 = vpop.permute.xlu0 %5417
    %5419 = vrot.lane.b32.xlu0 %v4796, 32
    %v5420 = vpop.permute.xlu0 %5419
    %5421 = vrot.lane.b32.xlu0 %v4797, 32
    %v5422 = vpop.permute.xlu0 %5421
    %5423 = vrot.lane.b32.xlu0 %v4798, 32
    %v5424 = vpop.permute.xlu0 %5423
    %5425 = vrot.lane.b32.xlu0 %v4799, 32
    %v5426 = vpop.permute.xlu0 %5425
    %5427 = vrot.lane.b32.xlu0 %v4800, 32
    %v5428 = vpop.permute.xlu0 %5427
    %5429 = vrot.lane.b32.xlu0 %v4801, 32
    %v5430 = vpop.permute.xlu0 %5429
    %5431 = vrot.lane.b32.xlu0 %v4802, 32
    %v5432 = vpop.permute.xlu0 %5431
    %5433 = vrot.lane.b32.xlu0 %v4803, 32
    %v5434 = vpop.permute.xlu0 %5433
    %5435 = vrot.lane.b32.xlu0 %v4804, 32
    %v5436 = vpop.permute.xlu0 %5435
    %5437 = vrot.lane.b32.xlu0 %v4805, 32
    %v5438 = vpop.permute.xlu0 %5437
    %5439 = vrot.lane.b32.xlu0 %v4806, 32
    %v5440 = vpop.permute.xlu0 %5439
    %5441 = vrot.lane.b32.xlu0 %v4807, 32
    %v5442 = vpop.permute.xlu0 %5441
    %5443 = vrot.lane.b32.xlu0 %v4808, 32
    %v5444 = vpop.permute.xlu0 %5443
    %5445 = vrot.lane.b32.xlu0 %v4809, 32
    %v5446 = vpop.permute.xlu0 %5445
    %5447 = vrot.lane.b32.xlu0 %v4810, 32
    %v5448 = vpop.permute.xlu0 %5447
    %5449 = vrot.lane.b32.xlu0 %v4811, 32
    %v5450 = vpop.permute.xlu0 %5449
    %5451 = vrot.lane.b32.xlu0 %v4812, 32
    %v5452 = vpop.permute.xlu0 %5451
    %5453 = vrot.lane.b32.xlu0 %v4813, 32
    %v5454 = vpop.permute.xlu0 %5453
    %5583 = vrot.lane.b32.xlu0 %v4814, 64
    %v5584 = vpop.permute.xlu0 %5583
    %5585 = vrot.lane.b32.xlu0 %v4815, 64
    %v5586 = vpop.permute.xlu0 %5585
    %5587 = vrot.lane.b32.xlu0 %v4816, 64
    %v5588 = vpop.permute.xlu0 %5587
    %5589 = vrot.lane.b32.xlu0 %v4817, 64
    %v5590 = vpop.permute.xlu0 %5589
    %5591 = vrot.lane.b32.xlu0 %v4818, 64
    %v5592 = vpop.permute.xlu0 %5591
    %5593 = vrot.lane.b32.xlu0 %v4819, 64
    %v5594 = vpop.permute.xlu0 %5593
    %5595 = vrot.lane.b32.xlu0 %v4820, 64
    %v5596 = vpop.permute.xlu0 %5595
    %5597 = vrot.lane.b32.xlu0 %v4821, 64
    %v5598 = vpop.permute.xlu0 %5597
    %5599 = vrot.lane.b32.xlu0 %v4822, 64
    %v5600 = vpop.permute.xlu0 %5599
    %5601 = vrot.lane.b32.xlu0 %v4823, 64
    %v5602 = vpop.permute.xlu0 %5601
    %5603 = vrot.lane.b32.xlu0 %v4824, 64
    %v5604 = vpop.permute.xlu0 %5603
    %5605 = vrot.lane.b32.xlu0 %v4825, 64
    %v5606 = vpop.permute.xlu0 %5605
    %5607 = vrot.lane.b32.xlu0 %v4826, 64
    %v5608 = vpop.permute.xlu0 %5607
    %5609 = vrot.lane.b32.xlu0 %v4827, 64
    %v5610 = vpop.permute.xlu0 %5609
    %5611 = vrot.lane.b32.xlu0 %v4828, 64
    %v5612 = vpop.permute.xlu0 %5611
    %5613 = vrot.lane.b32.xlu0 %v4829, 64
    %v5614 = vpop.permute.xlu0 %5613
    %5615 = vrot.lane.b32.xlu0 %v4830, 64
    %v5616 = vpop.permute.xlu0 %5615
    %5617 = vrot.lane.b32.xlu0 %v4831, 64
    %v5618 = vpop.permute.xlu0 %5617
    %5619 = vrot.lane.b32.xlu0 %v4832, 64
    %v5620 = vpop.permute.xlu0 %5619
    %5621 = vrot.lane.b32.xlu0 %v4833, 64
    %v5622 = vpop.permute.xlu0 %5621
    %5623 = vrot.lane.b32.xlu0 %v4834, 64
    %v5624 = vpop.permute.xlu0 %5623
    %5625 = vrot.lane.b32.xlu0 %v4835, 64
    %v5626 = vpop.permute.xlu0 %5625
    %5627 = vrot.lane.b32.xlu0 %v4836, 64
    %v5628 = vpop.permute.xlu0 %5627
    %5629 = vrot.lane.b32.xlu0 %v4837, 64
    %v5630 = vpop.permute.xlu0 %5629
    %5631 = vrot.lane.b32.xlu0 %v4838, 64
    %v5632 = vpop.permute.xlu0 %5631
    %5633 = vrot.lane.b32.xlu0 %v4839, 64
    %v5634 = vpop.permute.xlu0 %5633
    %5635 = vrot.lane.b32.xlu0 %v4840, 64
    %v5636 = vpop.permute.xlu0 %5635
    %5637 = vrot.lane.b32.xlu0 %v4841, 64
    %v5638 = vpop.permute.xlu0 %5637
    %5639 = vrot.lane.b32.xlu0 %v4842, 64
    %v5640 = vpop.permute.xlu0 %5639
    %5641 = vrot.lane.b32.xlu0 %v4843, 64
    %v5642 = vpop.permute.xlu0 %5641
    %5643 = vrot.lane.b32.xlu0 %v4844, 64
    %v5644 = vpop.permute.xlu0 %5643
    %5645 = vrot.lane.b32.xlu0 %v4845, 64
    %v5646 = vpop.permute.xlu0 %5645
    %5647 = vrot.lane.b32.xlu0 %v4846, 64
    %v5648 = vpop.permute.xlu0 %5647
    %5649 = vrot.lane.b32.xlu0 %v4847, 64
    %v5650 = vpop.permute.xlu0 %5649
    %5651 = vrot.lane.b32.xlu0 %v4848, 64
    %v5652 = vpop.permute.xlu0 %5651
    %5653 = vrot.lane.b32.xlu0 %v4849, 64
    %v5654 = vpop.permute.xlu0 %5653
    %5655 = vrot.lane.b32.xlu0 %v4850, 64
    %v5656 = vpop.permute.xlu0 %5655
    %5657 = vrot.lane.b32.xlu0 %v4851, 64
    %v5658 = vpop.permute.xlu0 %5657
    %5659 = vrot.lane.b32.xlu0 %v4852, 64
    %v5660 = vpop.permute.xlu0 %5659
    %5661 = vrot.lane.b32.xlu0 %v4853, 64
    %v5662 = vpop.permute.xlu0 %5661
    %5663 = vrot.lane.b32.xlu0 %v4854, 64
    %v5664 = vpop.permute.xlu0 %5663
    %5665 = vrot.lane.b32.xlu0 %v4855, 64
    %v5666 = vpop.permute.xlu0 %5665
    %5667 = vrot.lane.b32.xlu0 %v4856, 64
    %v5668 = vpop.permute.xlu0 %5667
    %5669 = vrot.lane.b32.xlu0 %v4857, 64
    %v5670 = vpop.permute.xlu0 %5669
    %5671 = vrot.lane.b32.xlu0 %v4858, 64
    %v5672 = vpop.permute.xlu0 %5671
    %5673 = vrot.lane.b32.xlu0 %v4859, 64
    %v5674 = vpop.permute.xlu0 %5673
    %5675 = vrot.lane.b32.xlu0 %v4860, 64
    %v5676 = vpop.permute.xlu0 %5675
    %5677 = vrot.lane.b32.xlu0 %v4861, 64
    %v5678 = vpop.permute.xlu0 %5677
    %5679 = vrot.lane.b32.xlu0 %v4862, 64
    %v5680 = vpop.permute.xlu0 %5679
    %5681 = vrot.lane.b32.xlu0 %v4863, 64
    %v5682 = vpop.permute.xlu0 %5681
    %5683 = vrot.lane.b32.xlu0 %v4864, 64
    %v5684 = vpop.permute.xlu0 %5683
    %5685 = vrot.lane.b32.xlu0 %v4865, 64
    %v5686 = vpop.permute.xlu0 %5685
    %5687 = vrot.lane.b32.xlu0 %v4866, 64
    %v5688 = vpop.permute.xlu0 %5687
    %5689 = vrot.lane.b32.xlu0 %v4867, 64
    %v5690 = vpop.permute.xlu0 %5689
    %5691 = vrot.lane.b32.xlu0 %v4868, 64
    %v5692 = vpop.permute.xlu0 %5691
    %5693 = vrot.lane.b32.xlu0 %v4869, 64
    %v5694 = vpop.permute.xlu0 %5693
    %5695 = vrot.lane.b32.xlu0 %v4870, 64
    %v5696 = vpop.permute.xlu0 %5695
    %5697 = vrot.lane.b32.xlu0 %v4871, 64
    %v5698 = vpop.permute.xlu0 %5697
    %5699 = vrot.lane.b32.xlu0 %v4872, 64
    %v5700 = vpop.permute.xlu0 %5699
    %5701 = vrot.lane.b32.xlu0 %v4873, 64
    %v5702 = vpop.permute.xlu0 %5701
    %5703 = vrot.lane.b32.xlu0 %v4874, 64
    %v5704 = vpop.permute.xlu0 %5703
    %5705 = vrot.lane.b32.xlu0 %v4875, 64
    %v5706 = vpop.permute.xlu0 %5705
    %5707 = vrot.lane.b32.xlu0 %v4876, 64
    %v5708 = vpop.permute.xlu0 %5707
    %5709 = vrot.lane.b32.xlu0 %v4877, 64
    %v5710 = vpop.permute.xlu0 %5709
    %5839 = vrot.lane.b32.xlu0 %v4878, 96
    %v5840 = vpop.permute.xlu0 %5839
    %5841 = vrot.lane.b32.xlu0 %v4879, 96
    %v5842 = vpop.permute.xlu0 %5841
    %5843 = vrot.lane.b32.xlu0 %v4880, 96
    %v5844 = vpop.permute.xlu0 %5843
    %5845 = vrot.lane.b32.xlu0 %v4881, 96
    %v5846 = vpop.permute.xlu0 %5845
    %5847 = vrot.lane.b32.xlu0 %v4882, 96
    %v5848 = vpop.permute.xlu0 %5847
    %5849 = vrot.lane.b32.xlu0 %v4883, 96
    %v5850 = vpop.permute.xlu0 %5849
    %5851 = vrot.lane.b32.xlu0 %v4884, 96
    %v5852 = vpop.permute.xlu0 %5851
    %5853 = vrot.lane.b32.xlu0 %v4885, 96
    %v5854 = vpop.permute.xlu0 %5853
    %5855 = vrot.lane.b32.xlu0 %v4886, 96
    %v5856 = vpop.permute.xlu0 %5855
    %5857 = vrot.lane.b32.xlu0 %v4887, 96
    %v5858 = vpop.permute.xlu0 %5857
    %5859 = vrot.lane.b32.xlu0 %v4888, 96
    %v5860 = vpop.permute.xlu0 %5859
    %5861 = vrot.lane.b32.xlu0 %v4889, 96
    %v5862 = vpop.permute.xlu0 %5861
    %5863 = vrot.lane.b32.xlu0 %v4890, 96
    %v5864 = vpop.permute.xlu0 %5863
    %5865 = vrot.lane.b32.xlu0 %v4891, 96
    %v5866 = vpop.permute.xlu0 %5865
    %5867 = vrot.lane.b32.xlu0 %v4892, 96
    %v5868 = vpop.permute.xlu0 %5867
    %5869 = vrot.lane.b32.xlu0 %v4893, 96
    %v5870 = vpop.permute.xlu0 %5869
    %5871 = vrot.lane.b32.xlu0 %v4894, 96
    %v5872 = vpop.permute.xlu0 %5871
    %5873 = vrot.lane.b32.xlu0 %v4895, 96
    %v5874 = vpop.permute.xlu0 %5873
    %5875 = vrot.lane.b32.xlu0 %v4896, 96
    %v5876 = vpop.permute.xlu0 %5875
    %5877 = vrot.lane.b32.xlu0 %v4897, 96
    %v5878 = vpop.permute.xlu0 %5877
    %5879 = vrot.lane.b32.xlu0 %v4898, 96
    %v5880 = vpop.permute.xlu0 %5879
    %5881 = vrot.lane.b32.xlu0 %v4899, 96
    %v5882 = vpop.permute.xlu0 %5881
    %5883 = vrot.lane.b32.xlu0 %v4900, 96
    %v5884 = vpop.permute.xlu0 %5883
    %5885 = vrot.lane.b32.xlu0 %v4901, 96
    %v5886 = vpop.permute.xlu0 %5885
    %5887 = vrot.lane.b32.xlu0 %v4902, 96
    %v5888 = vpop.permute.xlu0 %5887
    %5889 = vrot.lane.b32.xlu0 %v4903, 96
    %v5890 = vpop.permute.xlu0 %5889
    %5891 = vrot.lane.b32.xlu0 %v4904, 96
    %v5892 = vpop.permute.xlu0 %5891
    %5893 = vrot.lane.b32.xlu0 %v4905, 96
    %v5894 = vpop.permute.xlu0 %5893
    %5895 = vrot.lane.b32.xlu0 %v4906, 96
    %v5896 = vpop.permute.xlu0 %5895
    %5897 = vrot.lane.b32.xlu0 %v4907, 96
    %v5898 = vpop.permute.xlu0 %5897
    %5899 = vrot.lane.b32.xlu0 %v4908, 96
    %v5900 = vpop.permute.xlu0 %5899
    %5901 = vrot.lane.b32.xlu0 %v4909, 96
    %v5902 = vpop.permute.xlu0 %5901
    %5903 = vrot.lane.b32.xlu0 %v4910, 96
    %v5904 = vpop.permute.xlu0 %5903
    %5905 = vrot.lane.b32.xlu0 %v4911, 96
    %v5906 = vpop.permute.xlu0 %5905
    %5907 = vrot.lane.b32.xlu0 %v4912, 96
    %v5908 = vpop.permute.xlu0 %5907
    %5909 = vrot.lane.b32.xlu0 %v4913, 96
    %v5910 = vpop.permute.xlu0 %5909
    %5911 = vrot.lane.b32.xlu0 %v4914, 96
    %v5912 = vpop.permute.xlu0 %5911
    %5913 = vrot.lane.b32.xlu0 %v4915, 96
    %v5914 = vpop.permute.xlu0 %5913
    %5915 = vrot.lane.b32.xlu0 %v4916, 96
    %v5916 = vpop.permute.xlu0 %5915
    %5917 = vrot.lane.b32.xlu0 %v4917, 96
    %v5918 = vpop.permute.xlu0 %5917
    %5919 = vrot.lane.b32.xlu0 %v4918, 96
    %v5920 = vpop.permute.xlu0 %5919
    %5921 = vrot.lane.b32.xlu0 %v4919, 96
    %v5922 = vpop.permute.xlu0 %5921
    %5923 = vrot.lane.b32.xlu0 %v4920, 96
    %v5924 = vpop.permute.xlu0 %5923
    %5925 = vrot.lane.b32.xlu0 %v4921, 96
    %v5926 = vpop.permute.xlu0 %5925
    %5927 = vrot.lane.b32.xlu0 %v4922, 96
    %v5928 = vpop.permute.xlu0 %5927
    %5929 = vrot.lane.b32.xlu0 %v4923, 96
    %v5930 = vpop.permute.xlu0 %5929
    %5931 = vrot.lane.b32.xlu0 %v4924, 96
    %v5932 = vpop.permute.xlu0 %5931
    %5933 = vrot.lane.b32.xlu0 %v4925, 96
    %v5934 = vpop.permute.xlu0 %5933
    %5935 = vrot.lane.b32.xlu0 %v4926, 96
    %v5936 = vpop.permute.xlu0 %5935
    %5937 = vrot.lane.b32.xlu0 %v4927, 96
    %v5938 = vpop.permute.xlu0 %5937
    %5939 = vrot.lane.b32.xlu0 %v4928, 96
    %v5940 = vpop.permute.xlu0 %5939
    %5941 = vrot.lane.b32.xlu0 %v4929, 96
    %v5942 = vpop.permute.xlu0 %5941
    %5943 = vrot.lane.b32.xlu0 %v4930, 96
    %v5944 = vpop.permute.xlu0 %5943
    %5945 = vrot.lane.b32.xlu0 %v4931, 96
    %v5946 = vpop.permute.xlu0 %5945
    %5947 = vrot.lane.b32.xlu0 %v4932, 96
    %v5948 = vpop.permute.xlu0 %5947
    %5949 = vrot.lane.b32.xlu0 %v4933, 96
    %v5950 = vpop.permute.xlu0 %5949
    %5951 = vrot.lane.b32.xlu0 %v4934, 96
    %v5952 = vpop.permute.xlu0 %5951
    %5953 = vrot.lane.b32.xlu0 %v4935, 96
    %v5954 = vpop.permute.xlu0 %5953
    %5955 = vrot.lane.b32.xlu0 %v4936, 96
    %v5956 = vpop.permute.xlu0 %5955
    %5957 = vrot.lane.b32.xlu0 %v4937, 96
    %v5958 = vpop.permute.xlu0 %5957
    %5959 = vrot.lane.b32.xlu0 %v4938, 96
    %v5960 = vpop.permute.xlu0 %5959
    %5961 = vrot.lane.b32.xlu0 %v4939, 96
    %v5962 = vpop.permute.xlu0 %5961
    %5963 = vrot.lane.b32.xlu0 %v4940, 96
    %v5964 = vpop.permute.xlu0 %5963
    %5965 = vrot.lane.b32.xlu0 %v4941, 96
    %v5966 = vpop.permute.xlu0 %5965
    %6095 = vrot.lane.b32.xlu0 %v5006, 32
    %v6096 = vpop.permute.xlu0 %6095
    %6097 = vrot.lane.b32.xlu0 %v5007, 32
    %v6098 = vpop.permute.xlu0 %6097
    %6099 = vrot.lane.b32.xlu0 %v5008, 32
    %v6100 = vpop.permute.xlu0 %6099
    %6101 = vrot.lane.b32.xlu0 %v5009, 32
    %v6102 = vpop.permute.xlu0 %6101
    %6103 = vrot.lane.b32.xlu0 %v5010, 32
    %v6104 = vpop.permute.xlu0 %6103
    %6105 = vrot.lane.b32.xlu0 %v5011, 32
    %v6106 = vpop.permute.xlu0 %6105
    %6107 = vrot.lane.b32.xlu0 %v5012, 32
    %v6108 = vpop.permute.xlu0 %6107
    %6109 = vrot.lane.b32.xlu0 %v5013, 32
    %v6110 = vpop.permute.xlu0 %6109
    %6111 = vrot.lane.b32.xlu0 %v5014, 32
    %v6112 = vpop.permute.xlu0 %6111
    %6113 = vrot.lane.b32.xlu0 %v5015, 32
    %v6114 = vpop.permute.xlu0 %6113
    %6115 = vrot.lane.b32.xlu0 %v5016, 32
    %v6116 = vpop.permute.xlu0 %6115
    %6117 = vrot.lane.b32.xlu0 %v5017, 32
    %v6118 = vpop.permute.xlu0 %6117
    %6119 = vrot.lane.b32.xlu0 %v5018, 32
    %v6120 = vpop.permute.xlu0 %6119
    %6121 = vrot.lane.b32.xlu0 %v5019, 32
    %v6122 = vpop.permute.xlu0 %6121
    %6123 = vrot.lane.b32.xlu0 %v5020, 32
    %v6124 = vpop.permute.xlu0 %6123
    %6125 = vrot.lane.b32.xlu0 %v5021, 32
    %v6126 = vpop.permute.xlu0 %6125
    %6127 = vrot.lane.b32.xlu0 %v5022, 32
    %v6128 = vpop.permute.xlu0 %6127
    %6129 = vrot.lane.b32.xlu0 %v5023, 32
    %v6130 = vpop.permute.xlu0 %6129
    %6131 = vrot.lane.b32.xlu0 %v5024, 32
    %v6132 = vpop.permute.xlu0 %6131
    %6133 = vrot.lane.b32.xlu0 %v5025, 32
    %v6134 = vpop.permute.xlu0 %6133
    %6135 = vrot.lane.b32.xlu0 %v5026, 32
    %v6136 = vpop.permute.xlu0 %6135
    %6137 = vrot.lane.b32.xlu0 %v5027, 32
    %v6138 = vpop.permute.xlu0 %6137
    %6139 = vrot.lane.b32.xlu0 %v5028, 32
    %v6140 = vpop.permute.xlu0 %6139
    %6141 = vrot.lane.b32.xlu0 %v5029, 32
    %v6142 = vpop.permute.xlu0 %6141
    %6143 = vrot.lane.b32.xlu0 %v5030, 32
    %v6144 = vpop.permute.xlu0 %6143
    %6145 = vrot.lane.b32.xlu0 %v5031, 32
    %v6146 = vpop.permute.xlu0 %6145
    %6147 = vrot.lane.b32.xlu0 %v5032, 32
    %v6148 = vpop.permute.xlu0 %6147
    %6149 = vrot.lane.b32.xlu0 %v5033, 32
    %v6150 = vpop.permute.xlu0 %6149
    %6151 = vrot.lane.b32.xlu0 %v5034, 32
    %v6152 = vpop.permute.xlu0 %6151
    %6153 = vrot.lane.b32.xlu0 %v5035, 32
    %v6154 = vpop.permute.xlu0 %6153
    %6155 = vrot.lane.b32.xlu0 %v5036, 32
    %v6156 = vpop.permute.xlu0 %6155
    %6157 = vrot.lane.b32.xlu0 %v5037, 32
    %v6158 = vpop.permute.xlu0 %6157
    %6159 = vrot.lane.b32.xlu0 %v5038, 32
    %v6160 = vpop.permute.xlu0 %6159
    %6161 = vrot.lane.b32.xlu0 %v5039, 32
    %v6162 = vpop.permute.xlu0 %6161
    %6163 = vrot.lane.b32.xlu0 %v5040, 32
    %v6164 = vpop.permute.xlu0 %6163
    %6165 = vrot.lane.b32.xlu0 %v5041, 32
    %v6166 = vpop.permute.xlu0 %6165
    %6167 = vrot.lane.b32.xlu0 %v5042, 32
    %v6168 = vpop.permute.xlu0 %6167
    %6169 = vrot.lane.b32.xlu0 %v5043, 32
    %v6170 = vpop.permute.xlu0 %6169
    %6171 = vrot.lane.b32.xlu0 %v5044, 32
    %v6172 = vpop.permute.xlu0 %6171
    %6173 = vrot.lane.b32.xlu0 %v5045, 32
    %v6174 = vpop.permute.xlu0 %6173
    %6175 = vrot.lane.b32.xlu0 %v5046, 32
    %v6176 = vpop.permute.xlu0 %6175
    %6177 = vrot.lane.b32.xlu0 %v5047, 32
    %v6178 = vpop.permute.xlu0 %6177
    %6179 = vrot.lane.b32.xlu0 %v5048, 32
    %v6180 = vpop.permute.xlu0 %6179
    %6181 = vrot.lane.b32.xlu0 %v5049, 32
    %v6182 = vpop.permute.xlu0 %6181
    %6183 = vrot.lane.b32.xlu0 %v5050, 32
    %v6184 = vpop.permute.xlu0 %6183
    %6185 = vrot.lane.b32.xlu0 %v5051, 32
    %v6186 = vpop.permute.xlu0 %6185
    %6187 = vrot.lane.b32.xlu0 %v5052, 32
    %v6188 = vpop.permute.xlu0 %6187
    %6189 = vrot.lane.b32.xlu0 %v5053, 32
    %v6190 = vpop.permute.xlu0 %6189
    %6191 = vrot.lane.b32.xlu0 %v5054, 32
    %v6192 = vpop.permute.xlu0 %6191
    %6193 = vrot.lane.b32.xlu0 %v5055, 32
    %v6194 = vpop.permute.xlu0 %6193
    %6195 = vrot.lane.b32.xlu0 %v5056, 32
    %v6196 = vpop.permute.xlu0 %6195
    %6197 = vrot.lane.b32.xlu0 %v5057, 32
    %v6198 = vpop.permute.xlu0 %6197
    %6199 = vrot.lane.b32.xlu0 %v5058, 32
    %v6200 = vpop.permute.xlu0 %6199
    %6201 = vrot.lane.b32.xlu0 %v5059, 32
    %v6202 = vpop.permute.xlu0 %6201
    %6203 = vrot.lane.b32.xlu0 %v5060, 32
    %v6204 = vpop.permute.xlu0 %6203
    %6205 = vrot.lane.b32.xlu0 %v5061, 32
    %v6206 = vpop.permute.xlu0 %6205
    %6207 = vrot.lane.b32.xlu0 %v5062, 32
    %v6208 = vpop.permute.xlu0 %6207
    %6209 = vrot.lane.b32.xlu0 %v5063, 32
    %v6210 = vpop.permute.xlu0 %6209
    %6211 = vrot.lane.b32.xlu0 %v5064, 32
    %v6212 = vpop.permute.xlu0 %6211
    %6213 = vrot.lane.b32.xlu0 %v5065, 32
    %v6214 = vpop.permute.xlu0 %6213
    %6215 = vrot.lane.b32.xlu0 %v5066, 32
    %v6216 = vpop.permute.xlu0 %6215
    %6217 = vrot.lane.b32.xlu0 %v5067, 32
    %v6218 = vpop.permute.xlu0 %6217
    %6219 = vrot.lane.b32.xlu0 %v5068, 32
    %v6220 = vpop.permute.xlu0 %6219
    %6221 = vrot.lane.b32.xlu0 %v5069, 32
    %v6222 = vpop.permute.xlu0 %6221
    %6351 = vrot.lane.b32.xlu0 %v5071, 64
    %v6352 = vpop.permute.xlu0 %6351
    %6353 = vrot.lane.b32.xlu0 %v5072, 64
    %v6354 = vpop.permute.xlu0 %6353
    %6355 = vrot.lane.b32.xlu0 %v5073, 64
    %v6356 = vpop.permute.xlu0 %6355
    %6357 = vrot.lane.b32.xlu0 %v5074, 64
    %v6358 = vpop.permute.xlu0 %6357
    %6359 = vrot.lane.b32.xlu0 %v5075, 64
    %v6360 = vpop.permute.xlu0 %6359
    %6361 = vrot.lane.b32.xlu0 %v5076, 64
    %v6362 = vpop.permute.xlu0 %6361
    %6363 = vrot.lane.b32.xlu0 %v5077, 64
    %v6364 = vpop.permute.xlu0 %6363
    %6365 = vrot.lane.b32.xlu0 %v5078, 64
    %v6366 = vpop.permute.xlu0 %6365
    %6367 = vrot.lane.b32.xlu0 %v5079, 64
    %v6368 = vpop.permute.xlu0 %6367
    %6369 = vrot.lane.b32.xlu0 %v5080, 64
    %v6370 = vpop.permute.xlu0 %6369
    %6371 = vrot.lane.b32.xlu0 %v5081, 64
    %v6372 = vpop.permute.xlu0 %6371
    %6373 = vrot.lane.b32.xlu0 %v5082, 64
    %v6374 = vpop.permute.xlu0 %6373
    %6375 = vrot.lane.b32.xlu0 %v5083, 64
    %v6376 = vpop.permute.xlu0 %6375
    %6377 = vrot.lane.b32.xlu0 %v5084, 64
    %v6378 = vpop.permute.xlu0 %6377
    %6379 = vrot.lane.b32.xlu0 %v5085, 64
    %v6380 = vpop.permute.xlu0 %6379
    %6381 = vrot.lane.b32.xlu0 %v5086, 64
    %v6382 = vpop.permute.xlu0 %6381
    %6383 = vrot.lane.b32.xlu0 %v5087, 64
    %v6384 = vpop.permute.xlu0 %6383
    %6385 = vrot.lane.b32.xlu0 %v5088, 64
    %v6386 = vpop.permute.xlu0 %6385
    %6387 = vrot.lane.b32.xlu0 %v5089, 64
    %v6388 = vpop.permute.xlu0 %6387
    %6389 = vrot.lane.b32.xlu0 %v5090, 64
    %v6390 = vpop.permute.xlu0 %6389
    %6391 = vrot.lane.b32.xlu0 %v5091, 64
    %v6392 = vpop.permute.xlu0 %6391
    %6393 = vrot.lane.b32.xlu0 %v5092, 64
    %v6394 = vpop.permute.xlu0 %6393
    %6395 = vrot.lane.b32.xlu0 %v5093, 64
    %v6396 = vpop.permute.xlu0 %6395
    %6397 = vrot.lane.b32.xlu0 %v5094, 64
    %v6398 = vpop.permute.xlu0 %6397
    %6399 = vrot.lane.b32.xlu0 %v5095, 64
    %v6400 = vpop.permute.xlu0 %6399
    %6401 = vrot.lane.b32.xlu0 %v5096, 64
    %v6402 = vpop.permute.xlu0 %6401
    %6403 = vrot.lane.b32.xlu0 %v5097, 64
    %v6404 = vpop.permute.xlu0 %6403
    %6405 = vrot.lane.b32.xlu0 %v5098, 64
    %v6406 = vpop.permute.xlu0 %6405
    %6407 = vrot.lane.b32.xlu0 %v5099, 64
    %v6408 = vpop.permute.xlu0 %6407
    %6409 = vrot.lane.b32.xlu0 %v5100, 64
    %v6410 = vpop.permute.xlu0 %6409
    %6411 = vrot.lane.b32.xlu0 %v5101, 64
    %v6412 = vpop.permute.xlu0 %6411
    %6413 = vrot.lane.b32.xlu0 %v5102, 64
    %v6414 = vpop.permute.xlu0 %6413
    %6415 = vrot.lane.b32.xlu0 %v5103, 64
    %v6416 = vpop.permute.xlu0 %6415
    %6417 = vrot.lane.b32.xlu0 %v5104, 64
    %v6418 = vpop.permute.xlu0 %6417
    %6419 = vrot.lane.b32.xlu0 %v5105, 64
    %v6420 = vpop.permute.xlu0 %6419
    %6421 = vrot.lane.b32.xlu0 %v5106, 64
    %v6422 = vpop.permute.xlu0 %6421
    %6423 = vrot.lane.b32.xlu0 %v5107, 64
    %v6424 = vpop.permute.xlu0 %6423
    %6425 = vrot.lane.b32.xlu0 %v5108, 64
    %v6426 = vpop.permute.xlu0 %6425
    %6427 = vrot.lane.b32.xlu0 %v5109, 64
    %v6428 = vpop.permute.xlu0 %6427
    %6429 = vrot.lane.b32.xlu0 %v5110, 64
    %v6430 = vpop.permute.xlu0 %6429
    %6431 = vrot.lane.b32.xlu0 %v5111, 64
    %v6432 = vpop.permute.xlu0 %6431
    %6433 = vrot.lane.b32.xlu0 %v5112, 64
    %v6434 = vpop.permute.xlu0 %6433
    %6435 = vrot.lane.b32.xlu0 %v5113, 64
    %v6436 = vpop.permute.xlu0 %6435
    %6437 = vrot.lane.b32.xlu0 %v5114, 64
    %v6438 = vpop.permute.xlu0 %6437
    %6439 = vrot.lane.b32.xlu0 %v5115, 64
    %v6440 = vpop.permute.xlu0 %6439
    %6441 = vrot.lane.b32.xlu0 %v5116, 64
    %v6442 = vpop.permute.xlu0 %6441
    %6443 = vrot.lane.b32.xlu0 %v5117, 64
    %v6444 = vpop.permute.xlu0 %6443
    %6445 = vrot.lane.b32.xlu0 %v5118, 64
    %v6446 = vpop.permute.xlu0 %6445
    %6447 = vrot.lane.b32.xlu0 %v5119, 64
    %v6448 = vpop.permute.xlu0 %6447
    %6449 = vrot.lane.b32.xlu0 %v5120, 64
    %v6450 = vpop.permute.xlu0 %6449
    %6451 = vrot.lane.b32.xlu0 %v5121, 64
    %v6452 = vpop.permute.xlu0 %6451
    %6453 = vrot.lane.b32.xlu0 %v5122, 64
    %v6454 = vpop.permute.xlu0 %6453
    %6455 = vrot.lane.b32.xlu0 %v5123, 64
    %v6456 = vpop.permute.xlu0 %6455
    %6457 = vrot.lane.b32.xlu0 %v5124, 64
    %v6458 = vpop.permute.xlu0 %6457
    %6459 = vrot.lane.b32.xlu0 %v5125, 64
    %v6460 = vpop.permute.xlu0 %6459
    %6461 = vrot.lane.b32.xlu0 %v5126, 64
    %v6462 = vpop.permute.xlu0 %6461
    %6463 = vrot.lane.b32.xlu0 %v5127, 64
    %v6464 = vpop.permute.xlu0 %6463
    %6465 = vrot.lane.b32.xlu0 %v5128, 64
    %v6466 = vpop.permute.xlu0 %6465
    %6467 = vrot.lane.b32.xlu0 %v5129, 64
    %v6468 = vpop.permute.xlu0 %6467
    %6469 = vrot.lane.b32.xlu0 %v5130, 64
    %v6470 = vpop.permute.xlu0 %6469
    %6471 = vrot.lane.b32.xlu0 %v5131, 64
    %v6472 = vpop.permute.xlu0 %6471
    %6473 = vrot.lane.b32.xlu0 %v5132, 64
    %v6474 = vpop.permute.xlu0 %6473
    %6475 = vrot.lane.b32.xlu0 %v5133, 64
    %v6476 = vpop.permute.xlu0 %6475
    %6477 = vrot.lane.b32.xlu0 %v5134, 64
    %v6478 = vpop.permute.xlu0 %6477
    %6607 = vrot.lane.b32.xlu0 %v5135, 96
    %v6608 = vpop.permute.xlu0 %6607
    %6609 = vrot.lane.b32.xlu0 %v5136, 96
    %v6610 = vpop.permute.xlu0 %6609
    %6611 = vrot.lane.b32.xlu0 %v5137, 96
    %v6612 = vpop.permute.xlu0 %6611
    %6613 = vrot.lane.b32.xlu0 %v5138, 96
    %v6614 = vpop.permute.xlu0 %6613
    %6615 = vrot.lane.b32.xlu0 %v5139, 96
    %v6616 = vpop.permute.xlu0 %6615
    %6617 = vrot.lane.b32.xlu0 %v5140, 96
    %v6618 = vpop.permute.xlu0 %6617
    %6619 = vrot.lane.b32.xlu0 %v5141, 96
    %v6620 = vpop.permute.xlu0 %6619
    %6621 = vrot.lane.b32.xlu0 %v5142, 96
    %v6622 = vpop.permute.xlu0 %6621
    %6623 = vrot.lane.b32.xlu0 %v5143, 96
    %v6624 = vpop.permute.xlu0 %6623
    %6625 = vrot.lane.b32.xlu0 %v5144, 96
    %v6626 = vpop.permute.xlu0 %6625
    %6627 = vrot.lane.b32.xlu0 %v5145, 96
    %v6628 = vpop.permute.xlu0 %6627
    %6629 = vrot.lane.b32.xlu0 %v5146, 96
    %v6630 = vpop.permute.xlu0 %6629
    %6631 = vrot.lane.b32.xlu0 %v5147, 96
    %v6632 = vpop.permute.xlu0 %6631
    %6633 = vrot.lane.b32.xlu0 %v5148, 96
    %v6634 = vpop.permute.xlu0 %6633
    %6635 = vrot.lane.b32.xlu0 %v5149, 96
    %v6636 = vpop.permute.xlu0 %6635
    %6637 = vrot.lane.b32.xlu0 %v5150, 96
    %v6638 = vpop.permute.xlu0 %6637
    %6639 = vrot.lane.b32.xlu0 %v5151, 96
    %v6640 = vpop.permute.xlu0 %6639
    %6641 = vrot.lane.b32.xlu0 %v5152, 96
    %v6642 = vpop.permute.xlu0 %6641
    %6643 = vrot.lane.b32.xlu0 %v5153, 96
    %v6644 = vpop.permute.xlu0 %6643
    %6645 = vrot.lane.b32.xlu0 %v5154, 96
    %v6646 = vpop.permute.xlu0 %6645
    %6647 = vrot.lane.b32.xlu0 %v5155, 96
    %v6648 = vpop.permute.xlu0 %6647
    %6649 = vrot.lane.b32.xlu0 %v5156, 96
    %v6650 = vpop.permute.xlu0 %6649
    %6651 = vrot.lane.b32.xlu0 %v5157, 96
    %v6652 = vpop.permute.xlu0 %6651
    %6653 = vrot.lane.b32.xlu0 %v5158, 96
    %v6654 = vpop.permute.xlu0 %6653
    %6655 = vrot.lane.b32.xlu0 %v5159, 96
    %v6656 = vpop.permute.xlu0 %6655
    %6657 = vrot.lane.b32.xlu0 %v5160, 96
    %v6658 = vpop.permute.xlu0 %6657
    %6659 = vrot.lane.b32.xlu0 %v5161, 96
    %v6660 = vpop.permute.xlu0 %6659
    %6661 = vrot.lane.b32.xlu0 %v5162, 96
    %v6662 = vpop.permute.xlu0 %6661
    %6663 = vrot.lane.b32.xlu0 %v5163, 96
    %v6664 = vpop.permute.xlu0 %6663
    %6665 = vrot.lane.b32.xlu0 %v5164, 96
    %v6666 = vpop.permute.xlu0 %6665
    %6667 = vrot.lane.b32.xlu0 %v5165, 96
    %v6668 = vpop.permute.xlu0 %6667
    %6669 = vrot.lane.b32.xlu0 %v5166, 96
    %v6670 = vpop.permute.xlu0 %6669
    %6671 = vrot.lane.b32.xlu0 %v5167, 96
    %v6672 = vpop.permute.xlu0 %6671
    %6673 = vrot.lane.b32.xlu0 %v5168, 96
    %v6674 = vpop.permute.xlu0 %6673
    %6675 = vrot.lane.b32.xlu0 %v5169, 96
    %v6676 = vpop.permute.xlu0 %6675
    %6677 = vrot.lane.b32.xlu0 %v5170, 96
    %v6678 = vpop.permute.xlu0 %6677
    %6679 = vrot.lane.b32.xlu0 %v5171, 96
    %v6680 = vpop.permute.xlu0 %6679
    %6681 = vrot.lane.b32.xlu0 %v5172, 96
    %v6682 = vpop.permute.xlu0 %6681
    %6683 = vrot.lane.b32.xlu0 %v5173, 96
    %v6684 = vpop.permute.xlu0 %6683
    %6685 = vrot.lane.b32.xlu0 %v5174, 96
    %v6686 = vpop.permute.xlu0 %6685
    %6687 = vrot.lane.b32.xlu0 %v5175, 96
    %v6688 = vpop.permute.xlu0 %6687
    %6689 = vrot.lane.b32.xlu0 %v5176, 96
    %v6690 = vpop.permute.xlu0 %6689
    %6691 = vrot.lane.b32.xlu0 %v5177, 96
    %v6692 = vpop.permute.xlu0 %6691
    %6693 = vrot.lane.b32.xlu0 %v5178, 96
    %v6694 = vpop.permute.xlu0 %6693
    %6695 = vrot.lane.b32.xlu0 %v5179, 96
    %v6696 = vpop.permute.xlu0 %6695
    %6697 = vrot.lane.b32.xlu0 %v5180, 96
    %v6698 = vpop.permute.xlu0 %6697
    %6699 = vrot.lane.b32.xlu0 %v5181, 96
    %v6700 = vpop.permute.xlu0 %6699
    %6701 = vrot.lane.b32.xlu0 %v5182, 96
    %v6702 = vpop.permute.xlu0 %6701
    %6703 = vrot.lane.b32.xlu0 %v5183, 96
    %v6704 = vpop.permute.xlu0 %6703
    %6705 = vrot.lane.b32.xlu0 %v5184, 96
    %v6706 = vpop.permute.xlu0 %6705
    %6707 = vrot.lane.b32.xlu0 %v5185, 96
    %v6708 = vpop.permute.xlu0 %6707
    %6709 = vrot.lane.b32.xlu0 %v5186, 96
    %v6710 = vpop.permute.xlu0 %6709
    %6711 = vrot.lane.b32.xlu0 %v5187, 96
    %v6712 = vpop.permute.xlu0 %6711
    %6713 = vrot.lane.b32.xlu0 %v5188, 96
    %v6714 = vpop.permute.xlu0 %6713
    %6715 = vrot.lane.b32.xlu0 %v5189, 96
    %v6716 = vpop.permute.xlu0 %6715
    %6717 = vrot.lane.b32.xlu0 %v5190, 96
    %v6718 = vpop.permute.xlu0 %6717
    %6719 = vrot.lane.b32.xlu0 %v5191, 96
    %v6720 = vpop.permute.xlu0 %6719
    %6721 = vrot.lane.b32.xlu0 %v5192, 96
    %v6722 = vpop.permute.xlu0 %6721
    %6723 = vrot.lane.b32.xlu0 %v5193, 96
    %v6724 = vpop.permute.xlu0 %6723
    %6725 = vrot.lane.b32.xlu0 %v5194, 96
    %v6726 = vpop.permute.xlu0 %6725
    %6727 = vrot.lane.b32.xlu0 %v5195, 96
    %v6728 = vpop.permute.xlu0 %6727
    %6729 = vrot.lane.b32.xlu0 %v5196, 96
    %v6730 = vpop.permute.xlu0 %6729
    %6731 = vrot.lane.b32.xlu0 %v5197, 96
    %v6732 = vpop.permute.xlu0 %6731
    %6733 = vrot.lane.b32.xlu0 %v5198, 96
    %v6734 = vpop.permute.xlu0 %6733
    %v6799 = vsel %vm3988, %v4686, %v5328
    %v6800 = vsel %vm3988, %v4687, %v5330
    %v6801 = vsel %vm3988, %v4688, %v5332
    %v6802 = vsel %vm3988, %v4689, %v5334
    %v6803 = vsel %vm3988, %v4690, %v5336
    %v6804 = vsel %vm3988, %v4691, %v5338
    %v6805 = vsel %vm3988, %v4692, %v5340
    %v6806 = vsel %vm3988, %v4693, %v5342
    %v6807 = vsel %vm3988, %v4694, %v5344
    %v6808 = vsel %vm3988, %v4695, %v5346
    %v6809 = vsel %vm3988, %v4696, %v5348
    %v6810 = vsel %vm3988, %v4697, %v5350
    %v6811 = vsel %vm3988, %v4698, %v5352
    %v6812 = vsel %vm3988, %v4699, %v5354
    %v6813 = vsel %vm3988, %v4700, %v5356
    %v6814 = vsel %vm3988, %v4701, %v5358
    %v6815 = vsel %vm3988, %v4702, %v5360
    %v6816 = vsel %vm3988, %v4703, %v5362
    %v6817 = vsel %vm3988, %v4704, %v5364
    %v6818 = vsel %vm3988, %v4705, %v5366
    %v6819 = vsel %vm3988, %v4706, %v5368
    %v6820 = vsel %vm3988, %v4707, %v5370
    %v6821 = vsel %vm3988, %v4708, %v5372
    %v6822 = vsel %vm3988, %v4709, %v5374
    %v6823 = vsel %vm3988, %v4710, %v5376
    %v6824 = vsel %vm3988, %v4711, %v5378
    %v6825 = vsel %vm3988, %v4712, %v5380
    %v6826 = vsel %vm3988, %v4713, %v5382
    %v6827 = vsel %vm3988, %v4714, %v5384
    %v6828 = vsel %vm3988, %v4715, %v5386
    %v6829 = vsel %vm3988, %v4716, %v5388
    %v6830 = vsel %vm3988, %v4717, %v5390
    %v6831 = vsel %vm3988, %v4718, %v5392
    %v6832 = vsel %vm3988, %v4719, %v5394
    %v6833 = vsel %vm3988, %v4720, %v5396
    %v6834 = vsel %vm3988, %v4721, %v5398
    %v6835 = vsel %vm3988, %v4722, %v5400
    %v6836 = vsel %vm3988, %v4723, %v5402
    %v6837 = vsel %vm3988, %v4724, %v5404
    %v6838 = vsel %vm3988, %v4725, %v5406
    %v6839 = vsel %vm3988, %v4726, %v5408
    %v6840 = vsel %vm3988, %v4727, %v5410
    %v6841 = vsel %vm3988, %v4728, %v5412
    %v6842 = vsel %vm3988, %v4729, %v5414
    %v6843 = vsel %vm3988, %v4730, %v5416
    %v6844 = vsel %vm3988, %v4731, %v5418
    %v6845 = vsel %vm3988, %v4732, %v5420
    %v6846 = vsel %vm3988, %v4733, %v5422
    %v6847 = vsel %vm3988, %v4734, %v5424
    %v6848 = vsel %vm3988, %v4735, %v5426
    %v6849 = vsel %vm3988, %v4736, %v5428
    %v6850 = vsel %vm3988, %v4737, %v5430
    %v6851 = vsel %vm3988, %v4738, %v5432
    %v6852 = vsel %vm3988, %v4739, %v5434
    %v6853 = vsel %vm3988, %v4740, %v5436
    %v6854 = vsel %vm3988, %v4741, %v5438
    %v6855 = vsel %vm3988, %v4742, %v5440
    %v6856 = vsel %vm3988, %v4743, %v5442
    %v6857 = vsel %vm3988, %v4744, %v5444
    %v6858 = vsel %vm3988, %v4745, %v5446
    %v6859 = vsel %vm3988, %v4746, %v5448
    %v6860 = vsel %vm3988, %v4747, %v5450
    %v6861 = vsel %vm3988, %v4748, %v5452
    %v6862 = vsel %vm3988, %v4749, %v5454
    %vm6863 = vcmask 523264
    %v6864 = vsel %vm6863, %v6799, %v5584
    %v6865 = vsel %vm6863, %v6800, %v5586
    %v6866 = vsel %vm6863, %v6801, %v5588
    %v6867 = vsel %vm6863, %v6802, %v5590
    %v6868 = vsel %vm6863, %v6803, %v5592
    %v6869 = vsel %vm6863, %v6804, %v5594
    %v6870 = vsel %vm6863, %v6805, %v5596
    %v6871 = vsel %vm6863, %v6806, %v5598
    %v6872 = vsel %vm6863, %v6807, %v5600
    %v6873 = vsel %vm6863, %v6808, %v5602
    %v6874 = vsel %vm6863, %v6809, %v5604
    %v6875 = vsel %vm6863, %v6810, %v5606
    %v6876 = vsel %vm6863, %v6811, %v5608
    %v6877 = vsel %vm6863, %v6812, %v5610
    %v6878 = vsel %vm6863, %v6813, %v5612
    %v6879 = vsel %vm6863, %v6814, %v5614
    %v6880 = vsel %vm6863, %v6815, %v5616
    %v6881 = vsel %vm6863, %v6816, %v5618
    %v6882 = vsel %vm6863, %v6817, %v5620
    %v6883 = vsel %vm6863, %v6818, %v5622
    %v6884 = vsel %vm6863, %v6819, %v5624
    %v6885 = vsel %vm6863, %v6820, %v5626
    %v6886 = vsel %vm6863, %v6821, %v5628
    %v6887 = vsel %vm6863, %v6822, %v5630
    %v6888 = vsel %vm6863, %v6823, %v5632
    %v6889 = vsel %vm6863, %v6824, %v5634
    %v6890 = vsel %vm6863, %v6825, %v5636
    %v6891 = vsel %vm6863, %v6826, %v5638
    %v6892 = vsel %vm6863, %v6827, %v5640
    %v6893 = vsel %vm6863, %v6828, %v5642
    %v6894 = vsel %vm6863, %v6829, %v5644
    %v6895 = vsel %vm6863, %v6830, %v5646
    %v6896 = vsel %vm6863, %v6831, %v5648
    %v6897 = vsel %vm6863, %v6832, %v5650
    %v6898 = vsel %vm6863, %v6833, %v5652
    %v6899 = vsel %vm6863, %v6834, %v5654
    %v6900 = vsel %vm6863, %v6835, %v5656
    %v6901 = vsel %vm6863, %v6836, %v5658
    %v6902 = vsel %vm6863, %v6837, %v5660
    %v6903 = vsel %vm6863, %v6838, %v5662
    %v6904 = vsel %vm6863, %v6839, %v5664
    %v6905 = vsel %vm6863, %v6840, %v5666
    %v6906 = vsel %vm6863, %v6841, %v5668
    %v6907 = vsel %vm6863, %v6842, %v5670
    %v6908 = vsel %vm6863, %v6843, %v5672
    %v6909 = vsel %vm6863, %v6844, %v5674
    %v6910 = vsel %vm6863, %v6845, %v5676
    %v6911 = vsel %vm6863, %v6846, %v5678
    %v6912 = vsel %vm6863, %v6847, %v5680
    %v6913 = vsel %vm6863, %v6848, %v5682
    %v6914 = vsel %vm6863, %v6849, %v5684
    %v6915 = vsel %vm6863, %v6850, %v5686
    %v6916 = vsel %vm6863, %v6851, %v5688
    %v6917 = vsel %vm6863, %v6852, %v5690
    %v6918 = vsel %vm6863, %v6853, %v5692
    %v6919 = vsel %vm6863, %v6854, %v5694
    %v6920 = vsel %vm6863, %v6855, %v5696
    %v6921 = vsel %vm6863, %v6856, %v5698
    %v6922 = vsel %vm6863, %v6857, %v5700
    %v6923 = vsel %vm6863, %v6858, %v5702
    %v6924 = vsel %vm6863, %v6859, %v5704
    %v6925 = vsel %vm6863, %v6860, %v5706
    %v6926 = vsel %vm6863, %v6861, %v5708
    %v6927 = vsel %vm6863, %v6862, %v5710
    %vm6928 = vcmask 785408
    %v6929 = vsel %vm6928, %v6864, %v5840
    %v6930 = vsel %vm6928, %v6865, %v5842
    %v6931 = vsel %vm6928, %v6866, %v5844
    %v6932 = vsel %vm6928, %v6867, %v5846
    %v6933 = vsel %vm6928, %v6868, %v5848
    %v6934 = vsel %vm6928, %v6869, %v5850
    %v6935 = vsel %vm6928, %v6870, %v5852
    %v6936 = vsel %vm6928, %v6871, %v5854
    %v6937 = vsel %vm6928, %v6872, %v5856
    %v6938 = vsel %vm6928, %v6873, %v5858
    %v6939 = vsel %vm6928, %v6874, %v5860
    %v6940 = vsel %vm6928, %v6875, %v5862
    %v6941 = vsel %vm6928, %v6876, %v5864
    %v6942 = vsel %vm6928, %v6877, %v5866
    %v6943 = vsel %vm6928, %v6878, %v5868
    %v6944 = vsel %vm6928, %v6879, %v5870
    %v6945 = vsel %vm6928, %v6880, %v5872
    %v6946 = vsel %vm6928, %v6881, %v5874
    %v6947 = vsel %vm6928, %v6882, %v5876
    %v6948 = vsel %vm6928, %v6883, %v5878
    %v6949 = vsel %vm6928, %v6884, %v5880
    %v6950 = vsel %vm6928, %v6885, %v5882
    %v6951 = vsel %vm6928, %v6886, %v5884
    %v6952 = vsel %vm6928, %v6887, %v5886
    %v6953 = vsel %vm6928, %v6888, %v5888
    %v6954 = vsel %vm6928, %v6889, %v5890
    %v6955 = vsel %vm6928, %v6890, %v5892
    %v6956 = vsel %vm6928, %v6891, %v5894
    %v6957 = vsel %vm6928, %v6892, %v5896
    %v6958 = vsel %vm6928, %v6893, %v5898
    %v6959 = vsel %vm6928, %v6894, %v5900
    %v6960 = vsel %vm6928, %v6895, %v5902
    %v6961 = vsel %vm6928, %v6896, %v5904
    %v6962 = vsel %vm6928, %v6897, %v5906
    %v6963 = vsel %vm6928, %v6898, %v5908
    %v6964 = vsel %vm6928, %v6899, %v5910
    %v6965 = vsel %vm6928, %v6900, %v5912
    %v6966 = vsel %vm6928, %v6901, %v5914
    %v6967 = vsel %vm6928, %v6902, %v5916
    %v6968 = vsel %vm6928, %v6903, %v5918
    %v6969 = vsel %vm6928, %v6904, %v5920
    %v6970 = vsel %vm6928, %v6905, %v5922
    %v6971 = vsel %vm6928, %v6906, %v5924
    %v6972 = vsel %vm6928, %v6907, %v5926
    %v6973 = vsel %vm6928, %v6908, %v5928
    %v6974 = vsel %vm6928, %v6909, %v5930
    %v6975 = vsel %vm6928, %v6910, %v5932
    %v6976 = vsel %vm6928, %v6911, %v5934
    %v6977 = vsel %vm6928, %v6912, %v5936
    %v6978 = vsel %vm6928, %v6913, %v5938
    %v6979 = vsel %vm6928, %v6914, %v5940
    %v6980 = vsel %vm6928, %v6915, %v5942
    %v6981 = vsel %vm6928, %v6916, %v5944
    %v6982 = vsel %vm6928, %v6917, %v5946
    %v6983 = vsel %vm6928, %v6918, %v5948
    %v6984 = vsel %vm6928, %v6919, %v5950
    %v6985 = vsel %vm6928, %v6920, %v5952
    %v6986 = vsel %vm6928, %v6921, %v5954
    %v6987 = vsel %vm6928, %v6922, %v5956
    %v6988 = vsel %vm6928, %v6923, %v5958
    %v6989 = vsel %vm6928, %v6924, %v5960
    %v6990 = vsel %vm6928, %v6925, %v5962
    %v6991 = vsel %vm6928, %v6926, %v5964
    %v6992 = vsel %vm6928, %v6927, %v5966
    %v6993 = vsel %vm3988, %v4942, %v6096
    %v6994 = vsel %vm3988, %v4943, %v6098
    %v6995 = vsel %vm3988, %v4944, %v6100
    %v6996 = vsel %vm3988, %v4945, %v6102
    %v6997 = vsel %vm3988, %v4946, %v6104
    %v6998 = vsel %vm3988, %v4947, %v6106
    %v6999 = vsel %vm3988, %v4948, %v6108
    %v7000 = vsel %vm3988, %v4949, %v6110
    %v7001 = vsel %vm3988, %v4950, %v6112
    %v7002 = vsel %vm3988, %v4951, %v6114
    %v7003 = vsel %vm3988, %v4952, %v6116
    %v7004 = vsel %vm3988, %v4953, %v6118
    %v7005 = vsel %vm3988, %v4954, %v6120
    %v7006 = vsel %vm3988, %v4955, %v6122
    %v7007 = vsel %vm3988, %v4956, %v6124
    %v7008 = vsel %vm3988, %v4957, %v6126
    %v7009 = vsel %vm3988, %v4958, %v6128
    %v7010 = vsel %vm3988, %v4959, %v6130
    %v7011 = vsel %vm3988, %v4960, %v6132
    %v7012 = vsel %vm3988, %v4961, %v6134
    %v7013 = vsel %vm3988, %v4962, %v6136
    %v7014 = vsel %vm3988, %v4963, %v6138
    %v7015 = vsel %vm3988, %v4964, %v6140
    %v7016 = vsel %vm3988, %v4965, %v6142
    %v7017 = vsel %vm3988, %v4966, %v6144
    %v7018 = vsel %vm3988, %v4967, %v6146
    %v7019 = vsel %vm3988, %v4968, %v6148
    %v7020 = vsel %vm3988, %v4969, %v6150
    %v7021 = vsel %vm3988, %v4970, %v6152
    %v7022 = vsel %vm3988, %v4971, %v6154
    %v7023 = vsel %vm3988, %v4972, %v6156
    %v7024 = vsel %vm3988, %v4973, %v6158
    %v7025 = vsel %vm3988, %v4974, %v6160
    %v7026 = vsel %vm3988, %v4975, %v6162
    %v7027 = vsel %vm3988, %v4976, %v6164
    %v7028 = vsel %vm3988, %v4977, %v6166
    %v7029 = vsel %vm3988, %v4978, %v6168
    %v7030 = vsel %vm3988, %v4979, %v6170
    %v7031 = vsel %vm3988, %v4980, %v6172
    %v7032 = vsel %vm3988, %v4981, %v6174
    %v7033 = vsel %vm3988, %v4982, %v6176
    %v7034 = vsel %vm3988, %v4983, %v6178
    %v7035 = vsel %vm3988, %v4984, %v6180
    %v7036 = vsel %vm3988, %v4985, %v6182
    %v7037 = vsel %vm3988, %v4986, %v6184
    %v7038 = vsel %vm3988, %v4987, %v6186
    %v7039 = vsel %vm3988, %v4988, %v6188
    %v7040 = vsel %vm3988, %v4989, %v6190
    %v7041 = vsel %vm3988, %v4990, %v6192
    %v7042 = vsel %vm3988, %v4991, %v6194
    %v7043 = vsel %vm3988, %v4992, %v6196
    %v7044 = vsel %vm3988, %v4993, %v6198
    %v7045 = vsel %vm3988, %v4994, %v6200
    %v7046 = vsel %vm3988, %v4995, %v6202
    %v7047 = vsel %vm3988, %v4996, %v6204
    %v7048 = vsel %vm3988, %v4997, %v6206
    %v7049 = vsel %vm3988, %v4998, %v6208
    %v7050 = vsel %vm3988, %v4999, %v6210
    %v7051 = vsel %vm3988, %v5000, %v6212
    %v7052 = vsel %vm3988, %v5001, %v6214
    %v7053 = vsel %vm3988, %v5002, %v6216
    %v7054 = vsel %vm3988, %v5003, %v6218
    %v7055 = vsel %vm3988, %v5004, %v6220
    %v7056 = vsel %vm3988, %v5005, %v6222
    %v7057 = vsel %vm6863, %v6993, %v6352
    %v7058 = vsel %vm6863, %v6994, %v6354
    %v7059 = vsel %vm6863, %v6995, %v6356
    %v7060 = vsel %vm6863, %v6996, %v6358
    %v7061 = vsel %vm6863, %v6997, %v6360
    %v7062 = vsel %vm6863, %v6998, %v6362
    %v7063 = vsel %vm6863, %v6999, %v6364
    %v7064 = vsel %vm6863, %v7000, %v6366
    %v7065 = vsel %vm6863, %v7001, %v6368
    %v7066 = vsel %vm6863, %v7002, %v6370
    %v7067 = vsel %vm6863, %v7003, %v6372
    %v7068 = vsel %vm6863, %v7004, %v6374
    %v7069 = vsel %vm6863, %v7005, %v6376
    %v7070 = vsel %vm6863, %v7006, %v6378
    %v7071 = vsel %vm6863, %v7007, %v6380
    %v7072 = vsel %vm6863, %v7008, %v6382
    %v7073 = vsel %vm6863, %v7009, %v6384
    %v7074 = vsel %vm6863, %v7010, %v6386
    %v7075 = vsel %vm6863, %v7011, %v6388
    %v7076 = vsel %vm6863, %v7012, %v6390
    %v7077 = vsel %vm6863, %v7013, %v6392
    %v7078 = vsel %vm6863, %v7014, %v6394
    %v7079 = vsel %vm6863, %v7015, %v6396
    %v7080 = vsel %vm6863, %v7016, %v6398
    %v7081 = vsel %vm6863, %v7017, %v6400
    %v7082 = vsel %vm6863, %v7018, %v6402
    %v7083 = vsel %vm6863, %v7019, %v6404
    %v7084 = vsel %vm6863, %v7020, %v6406
    %v7085 = vsel %vm6863, %v7021, %v6408
    %v7086 = vsel %vm6863, %v7022, %v6410
    %v7087 = vsel %vm6863, %v7023, %v6412
    %v7088 = vsel %vm6863, %v7024, %v6414
    %v7089 = vsel %vm6863, %v7025, %v6416
    %v7090 = vsel %vm6863, %v7026, %v6418
    %v7091 = vsel %vm6863, %v7027, %v6420
    %v7092 = vsel %vm6863, %v7028, %v6422
    %v7093 = vsel %vm6863, %v7029, %v6424
    %v7094 = vsel %vm6863, %v7030, %v6426
    %v7095 = vsel %vm6863, %v7031, %v6428
    %v7096 = vsel %vm6863, %v7032, %v6430
    %v7097 = vsel %vm6863, %v7033, %v6432
    %v7098 = vsel %vm6863, %v7034, %v6434
    %v7099 = vsel %vm6863, %v7035, %v6436
    %v7100 = vsel %vm6863, %v7036, %v6438
    %v7101 = vsel %vm6863, %v7037, %v6440
    %v7102 = vsel %vm6863, %v7038, %v6442
    %v7103 = vsel %vm6863, %v7039, %v6444
    %v7104 = vsel %vm6863, %v7040, %v6446
    %v7105 = vsel %vm6863, %v7041, %v6448
    %v7106 = vsel %vm6863, %v7042, %v6450
    %v7107 = vsel %vm6863, %v7043, %v6452
    %v7108 = vsel %vm6863, %v7044, %v6454
    %v7109 = vsel %vm6863, %v7045, %v6456
    %v7110 = vsel %vm6863, %v7046, %v6458
    %v7111 = vsel %vm6863, %v7047, %v6460
    %v7112 = vsel %vm6863, %v7048, %v6462
    %v7113 = vsel %vm6863, %v7049, %v6464
    %v7114 = vsel %vm6863, %v7050, %v6466
    %v7115 = vsel %vm6863, %v7051, %v6468
    %v7116 = vsel %vm6863, %v7052, %v6470
    %v7117 = vsel %vm6863, %v7053, %v6472
    %v7118 = vsel %vm6863, %v7054, %v6474
    %v7119 = vsel %vm6863, %v7055, %v6476
    %v7120 = vsel %vm6863, %v7056, %v6478
    %v7121 = vsel %vm6928, %v7057, %v6608
    %v7122 = vsel %vm6928, %v7058, %v6610
    %v7123 = vsel %vm6928, %v7059, %v6612
    %v7124 = vsel %vm6928, %v7060, %v6614
    %v7125 = vsel %vm6928, %v7061, %v6616
    %v7126 = vsel %vm6928, %v7062, %v6618
    %v7127 = vsel %vm6928, %v7063, %v6620
    %v7128 = vsel %vm6928, %v7064, %v6622
    %v7129 = vsel %vm6928, %v7065, %v6624
    %v7130 = vsel %vm6928, %v7066, %v6626
    %v7131 = vsel %vm6928, %v7067, %v6628
    %v7132 = vsel %vm6928, %v7068, %v6630
    %v7133 = vsel %vm6928, %v7069, %v6632
    %v7134 = vsel %vm6928, %v7070, %v6634
    %v7135 = vsel %vm6928, %v7071, %v6636
    %v7136 = vsel %vm6928, %v7072, %v6638
    %v7137 = vsel %vm6928, %v7073, %v6640
    %v7138 = vsel %vm6928, %v7074, %v6642
    %v7139 = vsel %vm6928, %v7075, %v6644
    %v7140 = vsel %vm6928, %v7076, %v6646
    %v7141 = vsel %vm6928, %v7077, %v6648
    %v7142 = vsel %vm6928, %v7078, %v6650
    %v7143 = vsel %vm6928, %v7079, %v6652
    %v7144 = vsel %vm6928, %v7080, %v6654
    %v7145 = vsel %vm6928, %v7081, %v6656
    %v7146 = vsel %vm6928, %v7082, %v6658
    %v7147 = vsel %vm6928, %v7083, %v6660
    %v7148 = vsel %vm6928, %v7084, %v6662
    %v7149 = vsel %vm6928, %v7085, %v6664
    %v7150 = vsel %vm6928, %v7086, %v6666
    %v7151 = vsel %vm6928, %v7087, %v6668
    %v7152 = vsel %vm6928, %v7088, %v6670
    %v7153 = vsel %vm6928, %v7089, %v6672
    %v7154 = vsel %vm6928, %v7090, %v6674
    %v7155 = vsel %vm6928, %v7091, %v6676
    %v7156 = vsel %vm6928, %v7092, %v6678
    %v7157 = vsel %vm6928, %v7093, %v6680
    %v7158 = vsel %vm6928, %v7094, %v6682
    %v7159 = vsel %vm6928, %v7095, %v6684
    %v7160 = vsel %vm6928, %v7096, %v6686
    %v7161 = vsel %vm6928, %v7097, %v6688
    %v7162 = vsel %vm6928, %v7098, %v6690
    %v7163 = vsel %vm6928, %v7099, %v6692
    %v7164 = vsel %vm6928, %v7100, %v6694
    %v7165 = vsel %vm6928, %v7101, %v6696
    %v7166 = vsel %vm6928, %v7102, %v6698
    %v7167 = vsel %vm6928, %v7103, %v6700
    %v7168 = vsel %vm6928, %v7104, %v6702
    %v7169 = vsel %vm6928, %v7105, %v6704
    %v7170 = vsel %vm6928, %v7106, %v6706
    %v7171 = vsel %vm6928, %v7107, %v6708
    %v7172 = vsel %vm6928, %v7108, %v6710
    %v7173 = vsel %vm6928, %v7109, %v6712
    %v7174 = vsel %vm6928, %v7110, %v6714
    %v7175 = vsel %vm6928, %v7111, %v6716
    %v7176 = vsel %vm6928, %v7112, %v6718
    %v7177 = vsel %vm6928, %v7113, %v6720
    %v7178 = vsel %vm6928, %v7114, %v6722
    %v7179 = vsel %vm6928, %v7115, %v6724
    %v7180 = vsel %vm6928, %v7116, %v6726
    %v7181 = vsel %vm6928, %v7117, %v6728
    %v7182 = vsel %vm6928, %v7118, %v6730
    %v7183 = vsel %vm6928, %v7119, %v6732
    %v7184 = vsel %vm6928, %v7120, %v6734
    %v7185 = vld [vmem:[%s7] sm:$0xff]
    %v7186 = vld [vmem:[%s7 + $0x8] sm:$0xff]
    %v7187 = vld [vmem:[%s7 + $0x10] sm:$0xff]
    %v7188 = vld [vmem:[%s7 + $0x18] sm:$0xff]
    %v7189 = vld [vmem:[%s7 + $0x20] sm:$0xff]
    %v7190 = vld [vmem:[%s7 + $0x28] sm:$0xff]
    %v7191 = vld [vmem:[%s7 + $0x30] sm:$0xff]
    %v7192 = vld [vmem:[%s7 + $0x38] sm:$0xff]
    %v7193 = vld [vmem:[%s7 + $0x40] sm:$0xff]
    %v7194 = vld [vmem:[%s7 + $0x48] sm:$0xff]
    %v7195 = vld [vmem:[%s7 + $0x50] sm:$0xff]
    %v7196 = vld [vmem:[%s7 + $0x58] sm:$0xff]
    %v7197 = vld [vmem:[%s7 + $0x60] sm:$0xff]
    %v7198 = vld [vmem:[%s7 + $0x68] sm:$0xff]
    %v7199 = vld [vmem:[%s7 + $0x70] sm:$0xff]
    %v7200 = vld [vmem:[%s7 + $0x78] sm:$0xff]
    %v7201 = vld [vmem:[%s7 + $0x80] sm:$0xff]
    %v7202 = vld [vmem:[%s7 + $0x88] sm:$0xff]
    %v7203 = vld [vmem:[%s7 + $0x90] sm:$0xff]
    %v7204 = vld [vmem:[%s7 + $0x98] sm:$0xff]
    %v7205 = vld [vmem:[%s7 + $0xa0] sm:$0xff]
    %v7206 = vld [vmem:[%s7 + $0xa8] sm:$0xff]
    %v7207 = vld [vmem:[%s7 + $0xb0] sm:$0xff]
    %v7208 = vld [vmem:[%s7 + $0xb8] sm:$0xff]
    %v7209 = vld [vmem:[%s7 + $0xc0] sm:$0xff]
    %v7210 = vld [vmem:[%s7 + $0xc8] sm:$0xff]
    %v7211 = vld [vmem:[%s7 + $0xd0] sm:$0xff]
    %v7212 = vld [vmem:[%s7 + $0xd8] sm:$0xff]
    %v7213 = vld [vmem:[%s7 + $0xe0] sm:$0xff]
    %v7214 = vld [vmem:[%s7 + $0xe8] sm:$0xff]
    %v7215 = vld [vmem:[%s7 + $0xf0] sm:$0xff]
    %v7216 = vld [vmem:[%s7 + $0xf8] sm:$0xff]
    %v7217 = vld [vmem:[%s7 + $0x100] sm:$0xff]
    %v7218 = vld [vmem:[%s7 + $0x108] sm:$0xff]
    %v7219 = vld [vmem:[%s7 + $0x110] sm:$0xff]
    %v7220 = vld [vmem:[%s7 + $0x118] sm:$0xff]
    %v7221 = vld [vmem:[%s8] sm:$0x1]
    %v7223 = vlaneseq
    %v7224 = vshrl.u32 %v7223, 7
    %v7225 = vsub.s32 0, %v7224
    %v7226 = vrot.slane %v7221, %v7225
    %v7229 = vsel %vm3988, %v5199, 0
    %v7232 = vsel %vm3988, %v5200, 0
    %v7235 = vsel %vm3988, %v5201, 0
    %v7238 = vsel %vm3988, %v5202, 0
    %v7241 = vsel %vm3988, %v5203, 0
    %v7244 = vsel %vm3988, %v5204, 0
    %v7247 = vsel %vm3988, %v5205, 0
    %v7250 = vsel %vm3988, %v5206, 0
    %v7253 = vsel %vm3988, %v5207, 0
    %v7256 = vsel %vm3988, %v5208, 0
    %v7259 = vsel %vm3988, %v5209, 0
    %v7262 = vsel %vm3988, %v5210, 0
    %v7265 = vsel %vm3988, %v5211, 0
    %v7268 = vsel %vm3988, %v5212, 0
    %v7271 = vsel %vm3988, %v5213, 0
    %v7274 = vsel %vm3988, %v5214, 0
    %v7277 = vsel %vm3988, %v5215, 0
    %v7280 = vsel %vm3988, %v5216, 0
    %v7283 = vsel %vm3988, %v5217, 0
    %v7286 = vsel %vm3988, %v5218, 0
    %v7289 = vsel %vm3988, %v5219, 0
    %v7292 = vsel %vm3988, %v5220, 0
    %v7295 = vsel %vm3988, %v5221, 0
    %v7298 = vsel %vm3988, %v5222, 0
    %v7301 = vsel %vm3988, %v5223, 0
    %v7304 = vsel %vm3988, %v5224, 0
    %v7307 = vsel %vm3988, %v5225, 0
    %v7310 = vsel %vm3988, %v5226, 0
    %v7313 = vsel %vm3988, %v5227, 0
    %v7316 = vsel %vm3988, %v5228, 0
    %v7319 = vsel %vm3988, %v5229, 0
    %v7322 = vsel %vm3988, %v5230, 0
    %v7325 = vsel %vm3988, %v5231, 0
    %v7328 = vsel %vm3988, %v5232, 0
    %v7331 = vsel %vm3988, %v5233, 0
    %v7334 = vsel %vm3988, %v5234, 0
    %v7337 = vsel %vm3988, %v5235, 0
    %v7340 = vsel %vm3988, %v5236, 0
    %v7343 = vsel %vm3988, %v5237, 0
    %v7346 = vsel %vm3988, %v5238, 0
    %v7349 = vsel %vm3988, %v5239, 0
    %v7352 = vsel %vm3988, %v5240, 0
    %v7355 = vsel %vm3988, %v5241, 0
    %v7358 = vsel %vm3988, %v5242, 0
    %v7361 = vsel %vm3988, %v5243, 0
    %v7364 = vsel %vm3988, %v5244, 0
    %v7367 = vsel %vm3988, %v5245, 0
    %v7370 = vsel %vm3988, %v5246, 0
    %v7373 = vsel %vm3988, %v5247, 0
    %v7376 = vsel %vm3988, %v5248, 0
    %v7379 = vsel %vm3988, %v5249, 0
    %v7382 = vsel %vm3988, %v5250, 0
    %v7385 = vsel %vm3988, %v5251, 0
    %v7388 = vsel %vm3988, %v5252, 0
    %v7391 = vsel %vm3988, %v5253, 0
    %v7394 = vsel %vm3988, %v5254, 0
    %v7397 = vsel %vm3988, %v5255, 0
    %v7400 = vsel %vm3988, %v5256, 0
    %v7403 = vsel %vm3988, %v5257, 0
    %v7406 = vsel %vm3988, %v5258, 0
    %v7409 = vsel %vm3988, %v5259, 0
    %v7412 = vsel %vm3988, %v5260, 0
    %v7415 = vsel %vm3988, %v5261, 0
    %v7418 = vsel %vm3988, %v5262, 0
    %7420 = vmatprep.subr.mxu0 0.0
    %7421 = vmatpush1.msra.mxu0 %v7185
    %7422 = vmatprep.subr.mxu0 0.0
    %7423 = vmatpush1.msra.mxu0 %v7186
    %7424 = vmatprep.subr.mxu0 0.0
    %7425 = vmatpush1.msra.mxu0 %v7187
    %7426 = vmatprep.subr.mxu0 0.0
    %7427 = vmatpush1.msra.mxu0 %v7188
    %7428 = vmatprep.subr.mxu0 0.0
    %7429 = vmatpush1.msra.mxu0 %v7189
    %7430 = vmatprep.subr.mxu0 0.0
    %7431 = vmatpush1.msra.mxu0 %v7190
    %7432 = vmatprep.subr.mxu0 0.0
    %7433 = vmatpush1.msra.mxu0 %v7191
    %7434 = vmatprep.subr.mxu0 0.0
    %7435 = vmatpush1.msra.mxu0 %v7192
    %7436 = vmatprep.subr.mxu0 0.0
    %7437 = vmatpush1.msra.mxu0 %v7193
    %7438 = vmatprep.subr.mxu0 0.0
    %7439 = vmatpush1.msra.mxu0 %v7194
    %7440 = vmatprep.subr.mxu0 0.0
    %7441 = vmatpush1.msra.mxu0 %v7195
    %7442 = vmatprep.subr.mxu0 0.0
    %7443 = vmatpush1.msra.mxu0 %v7196
    %7444 = vmatprep.subr.mxu0 0.0
    %7445 = vmatpush1.msra.mxu0 %v7197
    %7446 = vmatprep.subr.mxu0 0.0
    %7447 = vmatpush1.msra.mxu0 %v7198
    %7448 = vmatprep.subr.mxu0 0.0
    %7449 = vmatpush1.msra.mxu0 %v7199
    %7450 = vmatprep.subr.mxu0 0.0
    %7451 = vmatpush1.msra.mxu0 %v7200
    %7452 = vmatprep.subr.mxu0 0.0
    %7453 = vmatpush1.msra.mxu0 %v7201
    %7454 = vmatprep.subr.mxu0 0.0
    %7455 = vmatpush1.msra.mxu0 %v7202
    %7456 = vmatprep.subr.mxu0 0.0
    %7457 = vmatpush1.msra.mxu0 %v7203
    %7458 = vmatprep.subr.mxu0 0.0
    %7459 = vmatpush1.msra.mxu0 %v7204
    %7460 = vmatprep.subr.mxu0 0.0
    %7461 = vmatpush1.msra.mxu0 %v7205
    %7462 = vmatprep.subr.mxu0 0.0
    %7463 = vmatpush1.msra.mxu0 %v7206
    %7464 = vmatprep.subr.mxu0 0.0
    %7465 = vmatpush1.msra.mxu0 %v7207
    %7466 = vmatprep.subr.mxu0 0.0
    %7467 = vmatpush1.msra.mxu0 %v7208
    %7468 = vmatprep.subr.mxu0 0.0
    %7469 = vmatpush1.msra.mxu0 %v7209
    %7470 = vmatprep.subr.mxu0 0.0
    %7471 = vmatpush1.msra.mxu0 %v7210
    %7472 = vmatprep.subr.mxu0 0.0
    %7473 = vmatpush1.msra.mxu0 %v7211
    %7474 = vmatprep.subr.mxu0 0.0
    %7475 = vmatpush1.msra.mxu0 %v7212
    %7476 = vmatprep.subr.mxu0 0.0
    %7477 = vmatpush1.msra.mxu0 %v7213
    %7478 = vmatprep.subr.mxu0 0.0
    %7479 = vmatpush1.msra.mxu0 %v7214
    %7480 = vmatprep.subr.mxu0 0.0
    %7481 = vmatpush1.msra.mxu0 %v7215
    %7482 = vmatprep.subr.mxu0 0.0
    %7483 = vmatpush1.msra.mxu0 %v7216
    %7484 = vmatprep.mubr.f32.mxu0 %v7121
    %7485 = vmatmul.mubr.f32.gmra.mrb[0].mxu0 %v6929
    %v7486 = vpop.f32.mrb[0].mxu0
    %v7487 = vadd.f32 %v7226, %v7486
    %v7488 = vpop.f32.mrb[0].mxu0
    %7489 = vmatprep.mubr.f32.mxu0 %v7122
    %7490 = vmatmul.mubr.f32.gmra.mrb[0].mxu0 %v6930
    %v7491 = vpop.f32.mrb[0].mxu0
    %v7492 = vadd.f32 %v7226, %v7491
    %v7493 = vpop.f32.mrb[0].mxu0
    %7494 = vmatprep.mubr.f32.mxu0 %v7123
    %7495 = vmatmul.mubr.f32.gmra.mrb[0].mxu0 %v6931
    %v7496 = vpop.f32.mrb[0].mxu0
    %v7497 = vadd.f32 %v7226, %v7496
    %v7498 = vpop.f32.mrb[0].mxu0
    %7499 = vmatprep.mubr.f32.mxu0 %v7124
    %7500 = vmatmul.mubr.f32.gmra.mrb[0].mxu0 %v6932
    %v7501 = vpop.f32.mrb[0].mxu0
    %v7502 = vadd.f32 %v7226, %v7501
    %v7503 = vpop.f32.mrb[0].mxu0
    %7504 = vmatprep.mubr.f32.mxu0 %v7125
    %7505 = vmatmul.mubr.f32.gmra.mrb[0].mxu0 %v6933
    %v7506 = vpop.f32.mrb[0].mxu0
    %v7507 = vadd.f32 %v7226, %v7506
    %v7508 = vpop.f32.mrb[0].mxu0
    %7509 = vmatprep.mubr.f32.mxu0 %v7126
    %7510 = vmatmul.mubr.f32.gmra.mrb[0].mxu0 %v6934
    %v7511 = vpop.f32.mrb[0].mxu0
    %v7512 = vadd.f32 %v7226, %v7511
    %v7513 = vpop.f32.mrb[0].mxu0
    %7514 = vmatprep.mubr.f32.mxu0 %v7127
    %7515 = vmatmul.mubr.f32.gmra.mrb[0].mxu0 %v6935
    %v7516 = vpop.f32.mrb[0].mxu0
    %v7517 = vadd.f32 %v7226, %v7516
    %v7518 = vpop.f32.mrb[0].mxu0
    %7519 = vmatprep.mubr.f32.mxu0 %v7128
    %7520 = vmatmul.mubr.f32.gmra.mrb[0].mxu0 %v6936
    %v7521 = vpop.f32.mrb[0].mxu0
    %v7522 = vadd.f32 %v7226, %v7521
    %v7523 = vpop.f32.mrb[0].mxu0
    %7524 = vmatprep.mubr.f32.mxu0 %v7129
    %7525 = vmatmul.mubr.f32.gmra.mrb[0].mxu0 %v6937
    %v7526 = vpop.f32.mrb[0].mxu0
    %v7527 = vadd.f32 %v7226, %v7526
    %v7528 = vpop.f32.mrb[0].mxu0
    %7529 = vmatprep.mubr.f32.mxu0 %v7130
    %7530 = vmatmul.mubr.f32.gmra.mrb[0].mxu0 %v6938
    %v7531 = vpop.f32.mrb[0].mxu0
    %v7532 = vadd.f32 %v7226, %v7531
    %v7533 = vpop.f32.mrb[0].mxu0
    %7534 = vmatprep.mubr.f32.mxu0 %v7131
    %7535 = vmatmul.mubr.f32.gmra.mrb[0].mxu0 %v6939
    %v7536 = vpop.f32.mrb[0].mxu0
    %v7537 = vadd.f32 %v7226, %v7536
    %v7538 = vpop.f32.mrb[0].mxu0
    %7539 = vmatprep.mubr.f32.mxu0 %v7132
    %7540 = vmatmul.mubr.f32.gmra.mrb[0].mxu0 %v6940
    %v7541 = vpop.f32.mrb[0].mxu0
    %v7542 = vadd.f32 %v7226, %v7541
    %v7543 = vpop.f32.mrb[0].mxu0
    %7544 = vmatprep.mubr.f32.mxu0 %v7133
    %7545 = vmatmul.mubr.f32.gmra.mrb[0].mxu0 %v6941
    %v7546 = vpop.f32.mrb[0].mxu0
    %v7547 = vadd.f32 %v7226, %v7546
    %v7548 = vpop.f32.mrb[0].mxu0
    %7549 = vmatprep.mubr.f32.mxu0 %v7134
    %7550 = vmatmul.mubr.f32.gmra.mrb[0].mxu0 %v6942
    %v7551 = vpop.f32.mrb[0].mxu0
    %v7552 = vadd.f32 %v7226, %v7551
    %v7553 = vpop.f32.mrb[0].mxu0
    %7554 = vmatprep.mubr.f32.mxu0 %v7135
    %7555 = vmatmul.mubr.f32.gmra.mrb[0].mxu0 %v6943
    %v7556 = vpop.f32.mrb[0].mxu0
    %v7557 = vadd.f32 %v7226, %v7556
    %v7558 = vpop.f32.mrb[0].mxu0
    %7559 = vmatprep.mubr.f32.mxu0 %v7136
    %7560 = vmatmul.mubr.f32.gmra.mrb[0].mxu0 %v6944
    %v7561 = vpop.f32.mrb[0].mxu0
    %v7562 = vadd.f32 %v7226, %v7561
    %v7563 = vpop.f32.mrb[0].mxu0
    %7564 = vmatprep.mubr.f32.mxu0 %v7137
    %7565 = vmatmul.mubr.f32.gmra.mrb[0].mxu0 %v6945
    %v7566 = vpop.f32.mrb[0].mxu0
    %v7567 = vadd.f32 %v7226, %v7566
    %v7568 = vpop.f32.mrb[0].mxu0
    %7569 = vmatprep.mubr.f32.mxu0 %v7138
    %7570 = vmatmul.mubr.f32.gmra.mrb[0].mxu0 %v6946
    %v7571 = vpop.f32.mrb[0].mxu0
    %v7572 = vadd.f32 %v7226, %v7571
    %v7573 = vpop.f32.mrb[0].mxu0
    %7574 = vmatprep.mubr.f32.mxu0 %v7139
    %7575 = vmatmul.mubr.f32.gmra.mrb[0].mxu0 %v6947
    %v7576 = vpop.f32.mrb[0].mxu0
    %v7577 = vadd.f32 %v7226, %v7576
    %v7578 = vpop.f32.mrb[0].mxu0
    %7579 = vmatprep.mubr.f32.mxu0 %v7140
    %7580 = vmatmul.mubr.f32.gmra.mrb[0].mxu0 %v6948
    %v7581 = vpop.f32.mrb[0].mxu0
    %v7582 = vadd.f32 %v7226, %v7581
    %v7583 = vpop.f32.mrb[0].mxu0
    %7584 = vmatprep.mubr.f32.mxu0 %v7141
    %7585 = vmatmul.mubr.f32.gmra.mrb[0].mxu0 %v6949
    %v7586 = vpop.f32.mrb[0].mxu0
    %v7587 = vadd.f32 %v7226, %v7586
    %v7588 = vpop.f32.mrb[0].mxu0
    %7589 = vmatprep.mubr.f32.mxu0 %v7142
    %7590 = vmatmul.mubr.f32.gmra.mrb[0].mxu0 %v6950
    %v7591 = vpop.f32.mrb[0].mxu0
    %v7592 = vadd.f32 %v7226, %v7591
    %v7593 = vpop.f32.mrb[0].mxu0
    %7594 = vmatprep.mubr.f32.mxu0 %v7143
    %7595 = vmatmul.mubr.f32.gmra.mrb[0].mxu0 %v6951
    %v7596 = vpop.f32.mrb[0].mxu0
    %v7597 = vadd.f32 %v7226, %v7596
    %v7598 = vpop.f32.mrb[0].mxu0
    %7599 = vmatprep.mubr.f32.mxu0 %v7144
    %7600 = vmatmul.mubr.f32.gmra.mrb[0].mxu0 %v6952
    %v7601 = vpop.f32.mrb[0].mxu0
    %v7602 = vadd.f32 %v7226, %v7601
    %v7603 = vpop.f32.mrb[0].mxu0
    %7604 = vmatprep.mubr.f32.mxu0 %v7145
    %7605 = vmatmul.mubr.f32.gmra.mrb[0].mxu0 %v6953
    %v7606 = vpop.f32.mrb[0].mxu0
    %v7607 = vadd.f32 %v7226, %v7606
    %v7608 = vpop.f32.mrb[0].mxu0
    %7609 = vmatprep.mubr.f32.mxu0 %v7146
    %7610 = vmatmul.mubr.f32.gmra.mrb[0].mxu0 %v6954
    %v7611 = vpop.f32.mrb[0].mxu0
    %v7612 = vadd.f32 %v7226, %v7611
    %v7613 = vpop.f32.mrb[0].mxu0
    %7614 = vmatprep.mubr.f32.mxu0 %v7147
    %7615 = vmatmul.mubr.f32.gmra.mrb[0].mxu0 %v6955
    %v7616 = vpop.f32.mrb[0].mxu0
    %v7617 = vadd.f32 %v7226, %v7616
    %v7618 = vpop.f32.mrb[0].mxu0
    %7619 = vmatprep.mubr.f32.mxu0 %v7148
    %7620 = vmatmul.mubr.f32.gmra.mrb[0].mxu0 %v6956
    %v7621 = vpop.f32.mrb[0].mxu0
    %v7622 = vadd.f32 %v7226, %v7621
    %v7623 = vpop.f32.mrb[0].mxu0
    %7624 = vmatprep.mubr.f32.mxu0 %v7149
    %7625 = vmatmul.mubr.f32.gmra.mrb[0].mxu0 %v6957
    %v7626 = vpop.f32.mrb[0].mxu0
    %v7627 = vadd.f32 %v7226, %v7626
    %v7628 = vpop.f32.mrb[0].mxu0
    %7629 = vmatprep.mubr.f32.mxu0 %v7150
    %7630 = vmatmul.mubr.f32.gmra.mrb[0].mxu0 %v6958
    %v7631 = vpop.f32.mrb[0].mxu0
    %v7632 = vadd.f32 %v7226, %v7631
    %v7633 = vpop.f32.mrb[0].mxu0
    %7634 = vmatprep.mubr.f32.mxu0 %v7151
    %7635 = vmatmul.mubr.f32.gmra.mrb[0].mxu0 %v6959
    %v7636 = vpop.f32.mrb[0].mxu0
    %v7637 = vadd.f32 %v7226, %v7636
    %v7638 = vpop.f32.mrb[0].mxu0
    %7639 = vmatprep.mubr.f32.mxu0 %v7152
    %7640 = vmatmul.mubr.f32.gmra.mrb[0].mxu0 %v6960
    %v7641 = vpop.f32.mrb[0].mxu0
    %v7642 = vadd.f32 %v7226, %v7641
    %v7643 = vpop.f32.mrb[0].mxu0
    %7644 = vmatprep.mubr.f32.mxu0 %v7153
    %7645 = vmatmul.mubr.f32.gmra.mrb[0].mxu0 %v6961
    %v7646 = vpop.f32.mrb[0].mxu0
    %v7647 = vadd.f32 %v7226, %v7646
    %v7648 = vpop.f32.mrb[0].mxu0
    %7649 = vmatprep.mubr.f32.mxu0 %v7154
    %7650 = vmatmul.mubr.f32.gmra.mrb[0].mxu0 %v6962
    %v7651 = vpop.f32.mrb[0].mxu0
    %v7652 = vadd.f32 %v7226, %v7651
    %v7653 = vpop.f32.mrb[0].mxu0
    %7654 = vmatprep.mubr.f32.mxu0 %v7155
    %7655 = vmatmul.mubr.f32.gmra.mrb[0].mxu0 %v6963
    %v7656 = vpop.f32.mrb[0].mxu0
    %v7657 = vadd.f32 %v7226, %v7656
    %v7658 = vpop.f32.mrb[0].mxu0
    %7659 = vmatprep.mubr.f32.mxu0 %v7156
    %7660 = vmatmul.mubr.f32.gmra.mrb[0].mxu0 %v6964
    %v7661 = vpop.f32.mrb[0].mxu0
    %v7662 = vadd.f32 %v7226, %v7661
    %v7663 = vpop.f32.mrb[0].mxu0
    %7664 = vmatprep.mubr.f32.mxu0 %v7157
    %7665 = vmatmul.mubr.f32.gmra.mrb[0].mxu0 %v6965
    %v7666 = vpop.f32.mrb[0].mxu0
    %v7667 = vadd.f32 %v7226, %v7666
    %v7668 = vpop.f32.mrb[0].mxu0
    %7669 = vmatprep.mubr.f32.mxu0 %v7158
    %7670 = vmatmul.mubr.f32.gmra.mrb[0].mxu0 %v6966
    %v7671 = vpop.f32.mrb[0].mxu0
    %v7672 = vadd.f32 %v7226, %v7671
    %v7673 = vpop.f32.mrb[0].mxu0
    %7674 = vmatprep.mubr.f32.mxu0 %v7159
    %7675 = vmatmul.mubr.f32.gmra.mrb[0].mxu0 %v6967
    %v7676 = vpop.f32.mrb[0].mxu0
    %v7677 = vadd.f32 %v7226, %v7676
    %v7678 = vpop.f32.mrb[0].mxu0
    %7679 = vmatprep.mubr.f32.mxu0 %v7160
    %7680 = vmatmul.mubr.f32.gmra.mrb[0].mxu0 %v6968
    %v7681 = vpop.f32.mrb[0].mxu0
    %v7682 = vadd.f32 %v7226, %v7681
    %v7683 = vpop.f32.mrb[0].mxu0
    %7684 = vmatprep.mubr.f32.mxu0 %v7161
    %7685 = vmatmul.mubr.f32.gmra.mrb[0].mxu0 %v6969
    %v7686 = vpop.f32.mrb[0].mxu0
    %v7687 = vadd.f32 %v7226, %v7686
    %v7688 = vpop.f32.mrb[0].mxu0
    %7689 = vmatprep.mubr.f32.mxu0 %v7162
    %7690 = vmatmul.mubr.f32.gmra.mrb[0].mxu0 %v6970
    %v7691 = vpop.f32.mrb[0].mxu0
    %v7692 = vadd.f32 %v7226, %v7691
    %v7693 = vpop.f32.mrb[0].mxu0
    %7694 = vmatprep.mubr.f32.mxu0 %v7163
    %7695 = vmatmul.mubr.f32.gmra.mrb[0].mxu0 %v6971
    %v7696 = vpop.f32.mrb[0].mxu0
    %v7697 = vadd.f32 %v7226, %v7696
    %v7698 = vpop.f32.mrb[0].mxu0
    %7699 = vmatprep.mubr.f32.mxu0 %v7164
    %7700 = vmatmul.mubr.f32.gmra.mrb[0].mxu0 %v6972
    %v7701 = vpop.f32.mrb[0].mxu0
    %v7702 = vadd.f32 %v7226, %v7701
    %v7703 = vpop.f32.mrb[0].mxu0
    %7704 = vmatprep.mubr.f32.mxu0 %v7165
    %7705 = vmatmul.mubr.f32.gmra.mrb[0].mxu0 %v6973
    %v7706 = vpop.f32.mrb[0].mxu0
    %v7707 = vadd.f32 %v7226, %v7706
    %v7708 = vpop.f32.mrb[0].mxu0
    %7709 = vmatprep.mubr.f32.mxu0 %v7166
    %7710 = vmatmul.mubr.f32.gmra.mrb[0].mxu0 %v6974
    %v7711 = vpop.f32.mrb[0].mxu0
    %v7712 = vadd.f32 %v7226, %v7711
    %v7713 = vpop.f32.mrb[0].mxu0
    %7714 = vmatprep.mubr.f32.mxu0 %v7167
    %7715 = vmatmul.mubr.f32.gmra.mrb[0].mxu0 %v6975
    %v7716 = vpop.f32.mrb[0].mxu0
    %v7717 = vadd.f32 %v7226, %v7716
    %v7718 = vpop.f32.mrb[0].mxu0
    %7719 = vmatprep.mubr.f32.mxu0 %v7168
    %7720 = vmatmul.mubr.f32.gmra.mrb[0].mxu0 %v6976
    %v7721 = vpop.f32.mrb[0].mxu0
    %v7722 = vadd.f32 %v7226, %v7721
    %v7723 = vpop.f32.mrb[0].mxu0
    %7724 = vmatprep.mubr.f32.mxu0 %v7169
    %7725 = vmatmul.mubr.f32.gmra.mrb[0].mxu0 %v6977
    %v7726 = vpop.f32.mrb[0].mxu0
    %v7727 = vadd.f32 %v7226, %v7726
    %v7728 = vpop.f32.mrb[0].mxu0
    %7729 = vmatprep.mubr.f32.mxu0 %v7170
    %7730 = vmatmul.mubr.f32.gmra.mrb[0].mxu0 %v6978
    %v7731 = vpop.f32.mrb[0].mxu0
    %v7732 = vadd.f32 %v7226, %v7731
    %v7733 = vpop.f32.mrb[0].mxu0
    %7734 = vmatprep.mubr.f32.mxu0 %v7171
    %7735 = vmatmul.mubr.f32.gmra.mrb[0].mxu0 %v6979
    %v7736 = vpop.f32.mrb[0].mxu0
    %v7737 = vadd.f32 %v7226, %v7736
    %v7738 = vpop.f32.mrb[0].mxu0
    %7739 = vmatprep.mubr.f32.mxu0 %v7172
    %7740 = vmatmul.mubr.f32.gmra.mrb[0].mxu0 %v6980
    %v7741 = vpop.f32.mrb[0].mxu0
    %v7742 = vadd.f32 %v7226, %v7741
    %v7743 = vpop.f32.mrb[0].mxu0
    %7744 = vmatprep.mubr.f32.mxu0 %v7173
    %7745 = vmatmul.mubr.f32.gmra.mrb[0].mxu0 %v6981
    %v7746 = vpop.f32.mrb[0].mxu0
    %v7747 = vadd.f32 %v7226, %v7746
    %v7748 = vpop.f32.mrb[0].mxu0
    %7749 = vmatprep.mubr.f32.mxu0 %v7174
    %7750 = vmatmul.mubr.f32.gmra.mrb[0].mxu0 %v6982
    %v7751 = vpop.f32.mrb[0].mxu0
    %v7752 = vadd.f32 %v7226, %v7751
    %v7753 = vpop.f32.mrb[0].mxu0
    %7754 = vmatprep.mubr.f32.mxu0 %v7175
    %7755 = vmatmul.mubr.f32.gmra.mrb[0].mxu0 %v6983
    %v7756 = vpop.f32.mrb[0].mxu0
    %v7757 = vadd.f32 %v7226, %v7756
    %v7758 = vpop.f32.mrb[0].mxu0
    %7759 = vmatprep.mubr.f32.mxu0 %v7176
    %7760 = vmatmul.mubr.f32.gmra.mrb[0].mxu0 %v6984
    %v7761 = vpop.f32.mrb[0].mxu0
    %v7762 = vadd.f32 %v7226, %v7761
    %v7763 = vpop.f32.mrb[0].mxu0
    %7764 = vmatprep.mubr.f32.mxu0 %v7177
    %7765 = vmatmul.mubr.f32.gmra.mrb[0].mxu0 %v6985
    %v7766 = vpop.f32.mrb[0].mxu0
    %v7767 = vadd.f32 %v7226, %v7766
    %v7768 = vpop.f32.mrb[0].mxu0
    %7769 = vmatprep.mubr.f32.mxu0 %v7178
    %7770 = vmatmul.mubr.f32.gmra.mrb[0].mxu0 %v6986
    %v7771 = vpop.f32.mrb[0].mxu0
    %v7772 = vadd.f32 %v7226, %v7771
    %v7773 = vpop.f32.mrb[0].mxu0
    %7774 = vmatprep.mubr.f32.mxu0 %v7179
    %7775 = vmatmul.mubr.f32.gmra.mrb[0].mxu0 %v6987
    %v7776 = vpop.f32.mrb[0].mxu0
    %v7777 = vadd.f32 %v7226, %v7776
    %v7778 = vpop.f32.mrb[0].mxu0
    %7779 = vmatprep.mubr.f32.mxu0 %v7180
    %7780 = vmatmul.mubr.f32.gmra.mrb[0].mxu0 %v6988
    %v7781 = vpop.f32.mrb[0].mxu0
    %v7782 = vadd.f32 %v7226, %v7781
    %v7783 = vpop.f32.mrb[0].mxu0
    %7784 = vmatprep.mubr.f32.mxu0 %v7181
    %7785 = vmatmul.mubr.f32.gmra.mrb[0].mxu0 %v6989
    %v7786 = vpop.f32.mrb[0].mxu0
    %v7787 = vadd.f32 %v7226, %v7786
    %v7788 = vpop.f32.mrb[0].mxu0
    %7789 = vmatprep.mubr.f32.mxu0 %v7182
    %7790 = vmatmul.mubr.f32.gmra.mrb[0].mxu0 %v6990
    %v7791 = vpop.f32.mrb[0].mxu0
    %v7792 = vadd.f32 %v7226, %v7791
    %v7793 = vpop.f32.mrb[0].mxu0
    %7794 = vmatprep.mubr.f32.mxu0 %v7183
    %7795 = vmatmul.mubr.f32.gmra.mrb[0].mxu0 %v6991
    %v7796 = vpop.f32.mrb[0].mxu0
    %v7797 = vadd.f32 %v7226, %v7796
    %v7798 = vpop.f32.mrb[0].mxu0
    %7799 = vmatprep.mubr.f32.mxu0 %v7184
    %7800 = vmatmul.mubr.f32.gmra.mrb[0].mxu0 %v6992
    %v7801 = vpop.f32.mrb[0].mxu0
    %v7802 = vadd.f32 %v7226, %v7801
    %v7803 = vpop.f32.mrb[0].mxu0
    %7804 = vdwg.mxu0
    %7805 = vmatprep.subr.mxu0 0.0
    %7806 = vmatpush1.msra.mxu0 %v7217
    %7807 = vmatprep.subr.mxu0 0.0
    %7808 = vmatpush1.msra.mxu0 %v7218
    %7809 = vmatprep.subr.mxu0 0.0
    %7810 = vmatpush1.msra.mxu0 %v7219
    %7811 = vmatprep.subr.mxu0 0.0
    %7812 = vmatpush1.msra.mxu0 %v7220
    %7813 = vmatprep.subr.mxu0 0.0
    %7814 = vmatpush1.msra.mxu0 0.0
    %7815 = vmatprep.subr.mxu0 0.0
    %7816 = vmatpush1.msra.mxu0 0.0
    %7817 = vmatprep.subr.mxu0 0.0
    %7818 = vmatpush1.msra.mxu0 0.0
    %7819 = vmatprep.subr.mxu0 0.0
    %7820 = vmatpush1.msra.mxu0 0.0
    %7821 = vmatprep.subr.mxu0 0.0
    %7822 = vmatpush1.msra.mxu0 0.0
    %7823 = vmatprep.subr.mxu0 0.0
    %7824 = vmatpush1.msra.mxu0 0.0
    %7825 = vmatprep.subr.mxu0 0.0
    %7826 = vmatpush1.msra.mxu0 0.0
    %7827 = vmatprep.subr.mxu0 0.0
    %7828 = vmatpush1.msra.mxu0 0.0
    %7829 = vmatprep.subr.mxu0 0.0
    %7830 = vmatpush1.msra.mxu0 0.0
    %7831 = vmatprep.subr.mxu0 0.0
    %7832 = vmatpush1.msra.mxu0 0.0
    %7833 = vmatprep.subr.mxu0 0.0
    %7834 = vmatpush1.msra.mxu0 0.0
    %7835 = vmatprep.subr.mxu0 0.0
    %7836 = vmatpush1.msra.mxu0 0.0
    %7837 = vmatprep.subr.mxu0 0.0
    %7838 = vmatpush1.msra.mxu0 0.0
    %7839 = vmatprep.subr.mxu0 0.0
    %7840 = vmatpush1.msra.mxu0 0.0
    %7841 = vmatprep.subr.mxu0 0.0
    %7842 = vmatpush1.msra.mxu0 0.0
    %7843 = vmatprep.subr.mxu0 0.0
    %7844 = vmatpush1.msra.mxu0 0.0
    %7845 = vmatprep.subr.mxu0 0.0
    %7846 = vmatpush1.msra.mxu0 0.0
    %7847 = vmatprep.subr.mxu0 0.0
    %7848 = vmatpush1.msra.mxu0 0.0
    %7849 = vmatprep.subr.mxu0 0.0
    %7850 = vmatpush1.msra.mxu0 0.0
    %7851 = vmatprep.subr.mxu0 0.0
    %7852 = vmatpush1.msra.mxu0 0.0
    %7853 = vmatprep.subr.mxu0 0.0
    %7854 = vmatpush1.msra.mxu0 0.0
    %7855 = vmatprep.subr.mxu0 0.0
    %7856 = vmatpush1.msra.mxu0 0.0
    %7857 = vmatprep.subr.mxu0 0.0
    %7858 = vmatpush1.msra.mxu0 0.0
    %7859 = vmatprep.subr.mxu0 0.0
    %7860 = vmatpush1.msra.mxu0 0.0
    %7861 = vmatprep.subr.mxu0 0.0
    %7862 = vmatpush1.msra.mxu0 0.0
    %7863 = vmatprep.subr.mxu0 0.0
    %7864 = vmatpush1.msra.mxu0 0.0
    %7865 = vmatprep.subr.mxu0 0.0
    %7866 = vmatpush1.msra.mxu0 0.0
    %7867 = vmatprep.subr.mxu0 0.0
    %7868 = vmatpush1.msra.mxu0 0.0
    %7869 = vmatprep.mubr.f32.mxu0 0.0
    %7870 = vmatmul.mubr.f32.gmra.mrb[0].mxu0 %v7229
    %v7871 = vpop.f32.mrb[0].mxu0
    %v7872 = vadd.f32 %v7487, %v7871
    %v7873 = vpop.f32.mrb[0].mxu0
    %7874 = vmatprep.mubr.f32.mxu0 0.0
    %7875 = vmatmul.mubr.f32.gmra.mrb[0].mxu0 %v7232
    %v7876 = vpop.f32.mrb[0].mxu0
    %v7877 = vadd.f32 %v7492, %v7876
    %v7878 = vpop.f32.mrb[0].mxu0
    %7879 = vmatprep.mubr.f32.mxu0 0.0
    %7880 = vmatmul.mubr.f32.gmra.mrb[0].mxu0 %v7235
    %v7881 = vpop.f32.mrb[0].mxu0
    %v7882 = vadd.f32 %v7497, %v7881
    %v7883 = vpop.f32.mrb[0].mxu0
    %7884 = vmatprep.mubr.f32.mxu0 0.0
    %7885 = vmatmul.mubr.f32.gmra.mrb[0].mxu0 %v7238
    %v7886 = vpop.f32.mrb[0].mxu0
    %v7887 = vadd.f32 %v7502, %v7886
    %v7888 = vpop.f32.mrb[0].mxu0
    %7889 = vmatprep.mubr.f32.mxu0 0.0
    %7890 = vmatmul.mubr.f32.gmra.mrb[0].mxu0 %v7241
    %v7891 = vpop.f32.mrb[0].mxu0
    %v7892 = vadd.f32 %v7507, %v7891
    %v7893 = vpop.f32.mrb[0].mxu0
    %7894 = vmatprep.mubr.f32.mxu0 0.0
    %7895 = vmatmul.mubr.f32.gmra.mrb[0].mxu0 %v7244
    %v7896 = vpop.f32.mrb[0].mxu0
    %v7897 = vadd.f32 %v7512, %v7896
    %v7898 = vpop.f32.mrb[0].mxu0
    %7899 = vmatprep.mubr.f32.mxu0 0.0
    %7900 = vmatmul.mubr.f32.gmra.mrb[0].mxu0 %v7247
    %v7901 = vpop.f32.mrb[0].mxu0
    %v7902 = vadd.f32 %v7517, %v7901
    %v7903 = vpop.f32.mrb[0].mxu0
    %7904 = vmatprep.mubr.f32.mxu0 0.0
    %7905 = vmatmul.mubr.f32.gmra.mrb[0].mxu0 %v7250
    %v7906 = vpop.f32.mrb[0].mxu0
    %v7907 = vadd.f32 %v7522, %v7906
    %v7908 = vpop.f32.mrb[0].mxu0
    %7909 = vmatprep.mubr.f32.mxu0 0.0
    %7910 = vmatmul.mubr.f32.gmra.mrb[0].mxu0 %v7253
    %v7911 = vpop.f32.mrb[0].mxu0
    %v7912 = vadd.f32 %v7527, %v7911
    %v7913 = vpop.f32.mrb[0].mxu0
    %7914 = vmatprep.mubr.f32.mxu0 0.0
    %7915 = vmatmul.mubr.f32.gmra.mrb[0].mxu0 %v7256
    %v7916 = vpop.f32.mrb[0].mxu0
    %v7917 = vadd.f32 %v7532, %v7916
    %v7918 = vpop.f32.mrb[0].mxu0
    %7919 = vmatprep.mubr.f32.mxu0 0.0
    %7920 = vmatmul.mubr.f32.gmra.mrb[0].mxu0 %v7259
    %v7921 = vpop.f32.mrb[0].mxu0
    %v7922 = vadd.f32 %v7537, %v7921
    %v7923 = vpop.f32.mrb[0].mxu0
    %7924 = vmatprep.mubr.f32.mxu0 0.0
    %7925 = vmatmul.mubr.f32.gmra.mrb[0].mxu0 %v7262
    %v7926 = vpop.f32.mrb[0].mxu0
    %v7927 = vadd.f32 %v7542, %v7926
    %v7928 = vpop.f32.mrb[0].mxu0
    %7929 = vmatprep.mubr.f32.mxu0 0.0
    %7930 = vmatmul.mubr.f32.gmra.mrb[0].mxu0 %v7265
    %v7931 = vpop.f32.mrb[0].mxu0
    %v7932 = vadd.f32 %v7547, %v7931
    %v7933 = vpop.f32.mrb[0].mxu0
    %7934 = vmatprep.mubr.f32.mxu0 0.0
    %7935 = vmatmul.mubr.f32.gmra.mrb[0].mxu0 %v7268
    %v7936 = vpop.f32.mrb[0].mxu0
    %v7937 = vadd.f32 %v7552, %v7936
    %v7938 = vpop.f32.mrb[0].mxu0
    %7939 = vmatprep.mubr.f32.mxu0 0.0
    %7940 = vmatmul.mubr.f32.gmra.mrb[0].mxu0 %v7271
    %v7941 = vpop.f32.mrb[0].mxu0
    %v7942 = vadd.f32 %v7557, %v7941
    %v7943 = vpop.f32.mrb[0].mxu0
    %7944 = vmatprep.mubr.f32.mxu0 0.0
    %7945 = vmatmul.mubr.f32.gmra.mrb[0].mxu0 %v7274
    %v7946 = vpop.f32.mrb[0].mxu0
    %v7947 = vadd.f32 %v7562, %v7946
    %v7948 = vpop.f32.mrb[0].mxu0
    %7949 = vmatprep.mubr.f32.mxu0 0.0
    %7950 = vmatmul.mubr.f32.gmra.mrb[0].mxu0 %v7277
    %v7951 = vpop.f32.mrb[0].mxu0
    %v7952 = vadd.f32 %v7567, %v7951
    %v7953 = vpop.f32.mrb[0].mxu0
    %7954 = vmatprep.mubr.f32.mxu0 0.0
    %7955 = vmatmul.mubr.f32.gmra.mrb[0].mxu0 %v7280
    %v7956 = vpop.f32.mrb[0].mxu0
    %v7957 = vadd.f32 %v7572, %v7956
    %v7958 = vpop.f32.mrb[0].mxu0
    %7959 = vmatprep.mubr.f32.mxu0 0.0
    %7960 = vmatmul.mubr.f32.gmra.mrb[0].mxu0 %v7283
    %v7961 = vpop.f32.mrb[0].mxu0
    %v7962 = vadd.f32 %v7577, %v7961
    %v7963 = vpop.f32.mrb[0].mxu0
    %7964 = vmatprep.mubr.f32.mxu0 0.0
    %7965 = vmatmul.mubr.f32.gmra.mrb[0].mxu0 %v7286
    %v7966 = vpop.f32.mrb[0].mxu0
    %v7967 = vadd.f32 %v7582, %v7966
    %v7968 = vpop.f32.mrb[0].mxu0
    %7969 = vmatprep.mubr.f32.mxu0 0.0
    %7970 = vmatmul.mubr.f32.gmra.mrb[0].mxu0 %v7289
    %v7971 = vpop.f32.mrb[0].mxu0
    %v7972 = vadd.f32 %v7587, %v7971
    %v7973 = vpop.f32.mrb[0].mxu0
    %7974 = vmatprep.mubr.f32.mxu0 0.0
    %7975 = vmatmul.mubr.f32.gmra.mrb[0].mxu0 %v7292
    %v7976 = vpop.f32.mrb[0].mxu0
    %v7977 = vadd.f32 %v7592, %v7976
    %v7978 = vpop.f32.mrb[0].mxu0
    %7979 = vmatprep.mubr.f32.mxu0 0.0
    %7980 = vmatmul.mubr.f32.gmra.mrb[0].mxu0 %v7295
    %v7981 = vpop.f32.mrb[0].mxu0
    %v7982 = vadd.f32 %v7597, %v7981
    %v7983 = vpop.f32.mrb[0].mxu0
    %7984 = vmatprep.mubr.f32.mxu0 0.0
    %7985 = vmatmul.mubr.f32.gmra.mrb[0].mxu0 %v7298
    %v7986 = vpop.f32.mrb[0].mxu0
    %v7987 = vadd.f32 %v7602, %v7986
    %v7988 = vpop.f32.mrb[0].mxu0
    %7989 = vmatprep.mubr.f32.mxu0 0.0
    %7990 = vmatmul.mubr.f32.gmra.mrb[0].mxu0 %v7301
    %v7991 = vpop.f32.mrb[0].mxu0
    %v7992 = vadd.f32 %v7607, %v7991
    %v7993 = vpop.f32.mrb[0].mxu0
    %7994 = vmatprep.mubr.f32.mxu0 0.0
    %7995 = vmatmul.mubr.f32.gmra.mrb[0].mxu0 %v7304
    %v7996 = vpop.f32.mrb[0].mxu0
    %v7997 = vadd.f32 %v7612, %v7996
    %v7998 = vpop.f32.mrb[0].mxu0
    %7999 = vmatprep.mubr.f32.mxu0 0.0
    %8000 = vmatmul.mubr.f32.gmra.mrb[0].mxu0 %v7307
    %v8001 = vpop.f32.mrb[0].mxu0
    %v8002 = vadd.f32 %v7617, %v8001
    %v8003 = vpop.f32.mrb[0].mxu0
    %8004 = vmatprep.mubr.f32.mxu0 0.0
    %8005 = vmatmul.mubr.f32.gmra.mrb[0].mxu0 %v7310
    %v8006 = vpop.f32.mrb[0].mxu0
    %v8007 = vadd.f32 %v7622, %v8006
    %v8008 = vpop.f32.mrb[0].mxu0
    %8009 = vmatprep.mubr.f32.mxu0 0.0
    %8010 = vmatmul.mubr.f32.gmra.mrb[0].mxu0 %v7313
    %v8011 = vpop.f32.mrb[0].mxu0
    %v8012 = vadd.f32 %v7627, %v8011
    %v8013 = vpop.f32.mrb[0].mxu0
    %8014 = vmatprep.mubr.f32.mxu0 0.0
    %8015 = vmatmul.mubr.f32.gmra.mrb[0].mxu0 %v7316
    %v8016 = vpop.f32.mrb[0].mxu0
    %v8017 = vadd.f32 %v7632, %v8016
    %v8018 = vpop.f32.mrb[0].mxu0
    %8019 = vmatprep.mubr.f32.mxu0 0.0
    %8020 = vmatmul.mubr.f32.gmra.mrb[0].mxu0 %v7319
    %v8021 = vpop.f32.mrb[0].mxu0
    %v8022 = vadd.f32 %v7637, %v8021
    %v8023 = vpop.f32.mrb[0].mxu0
    %8024 = vmatprep.mubr.f32.mxu0 0.0
    %8025 = vmatmul.mubr.f32.gmra.mrb[0].mxu0 %v7322
    %v8026 = vpop.f32.mrb[0].mxu0
    %v8027 = vadd.f32 %v7642, %v8026
    %v8028 = vpop.f32.mrb[0].mxu0
    %8029 = vmatprep.mubr.f32.mxu0 0.0
    %8030 = vmatmul.mubr.f32.gmra.mrb[0].mxu0 %v7325
    %v8031 = vpop.f32.mrb[0].mxu0
    %v8032 = vadd.f32 %v7647, %v8031
    %v8033 = vpop.f32.mrb[0].mxu0
    %8034 = vmatprep.mubr.f32.mxu0 0.0
    %8035 = vmatmul.mubr.f32.gmra.mrb[0].mxu0 %v7328
    %v8036 = vpop.f32.mrb[0].mxu0
    %v8037 = vadd.f32 %v7652, %v8036
    %v8038 = vpop.f32.mrb[0].mxu0
    %8039 = vmatprep.mubr.f32.mxu0 0.0
    %8040 = vmatmul.mubr.f32.gmra.mrb[0].mxu0 %v7331
    %v8041 = vpop.f32.mrb[0].mxu0
    %v8042 = vadd.f32 %v7657, %v8041
    %v8043 = vpop.f32.mrb[0].mxu0
    %8044 = vmatprep.mubr.f32.mxu0 0.0
    %8045 = vmatmul.mubr.f32.gmra.mrb[0].mxu0 %v7334
    %v8046 = vpop.f32.mrb[0].mxu0
    %v8047 = vadd.f32 %v7662, %v8046
    %v8048 = vpop.f32.mrb[0].mxu0
    %8049 = vmatprep.mubr.f32.mxu0 0.0
    %8050 = vmatmul.mubr.f32.gmra.mrb[0].mxu0 %v7337
    %v8051 = vpop.f32.mrb[0].mxu0
    %v8052 = vadd.f32 %v7667, %v8051
    %v8053 = vpop.f32.mrb[0].mxu0
    %8054 = vmatprep.mubr.f32.mxu0 0.0
    %8055 = vmatmul.mubr.f32.gmra.mrb[0].mxu0 %v7340
    %v8056 = vpop.f32.mrb[0].mxu0
    %v8057 = vadd.f32 %v7672, %v8056
    %v8058 = vpop.f32.mrb[0].mxu0
    %8059 = vmatprep.mubr.f32.mxu0 0.0
    %8060 = vmatmul.mubr.f32.gmra.mrb[0].mxu0 %v7343
    %v8061 = vpop.f32.mrb[0].mxu0
    %v8062 = vadd.f32 %v7677, %v8061
    %v8063 = vpop.f32.mrb[0].mxu0
    %8064 = vmatprep.mubr.f32.mxu0 0.0
    %8065 = vmatmul.mubr.f32.gmra.mrb[0].mxu0 %v7346
    %v8066 = vpop.f32.mrb[0].mxu0
    %v8067 = vadd.f32 %v7682, %v8066
    %v8068 = vpop.f32.mrb[0].mxu0
    %8069 = vmatprep.mubr.f32.mxu0 0.0
    %8070 = vmatmul.mubr.f32.gmra.mrb[0].mxu0 %v7349
    %v8071 = vpop.f32.mrb[0].mxu0
    %v8072 = vadd.f32 %v7687, %v8071
    %v8073 = vpop.f32.mrb[0].mxu0
    %8074 = vmatprep.mubr.f32.mxu0 0.0
    %8075 = vmatmul.mubr.f32.gmra.mrb[0].mxu0 %v7352
    %v8076 = vpop.f32.mrb[0].mxu0
    %v8077 = vadd.f32 %v7692, %v8076
    %v8078 = vpop.f32.mrb[0].mxu0
    %8079 = vmatprep.mubr.f32.mxu0 0.0
    %8080 = vmatmul.mubr.f32.gmra.mrb[0].mxu0 %v7355
    %v8081 = vpop.f32.mrb[0].mxu0
    %v8082 = vadd.f32 %v7697, %v8081
    %v8083 = vpop.f32.mrb[0].mxu0
    %8084 = vmatprep.mubr.f32.mxu0 0.0
    %8085 = vmatmul.mubr.f32.gmra.mrb[0].mxu0 %v7358
    %v8086 = vpop.f32.mrb[0].mxu0
    %v8087 = vadd.f32 %v7702, %v8086
    %v8088 = vpop.f32.mrb[0].mxu0
    %8089 = vmatprep.mubr.f32.mxu0 0.0
    %8090 = vmatmul.mubr.f32.gmra.mrb[0].mxu0 %v7361
    %v8091 = vpop.f32.mrb[0].mxu0
    %v8092 = vadd.f32 %v7707, %v8091
    %v8093 = vpop.f32.mrb[0].mxu0
    %8094 = vmatprep.mubr.f32.mxu0 0.0
    %8095 = vmatmul.mubr.f32.gmra.mrb[0].mxu0 %v7364
    %v8096 = vpop.f32.mrb[0].mxu0
    %v8097 = vadd.f32 %v7712, %v8096
    %v8098 = vpop.f32.mrb[0].mxu0
    %8099 = vmatprep.mubr.f32.mxu0 0.0
    %8100 = vmatmul.mubr.f32.gmra.mrb[0].mxu0 %v7367
    %v8101 = vpop.f32.mrb[0].mxu0
    %v8102 = vadd.f32 %v7717, %v8101
    %v8103 = vpop.f32.mrb[0].mxu0
    %8104 = vmatprep.mubr.f32.mxu0 0.0
    %8105 = vmatmul.mubr.f32.gmra.mrb[0].mxu0 %v7370
    %v8106 = vpop.f32.mrb[0].mxu0
    %v8107 = vadd.f32 %v7722, %v8106
    %v8108 = vpop.f32.mrb[0].mxu0
    %8109 = vmatprep.mubr.f32.mxu0 0.0
    %8110 = vmatmul.mubr.f32.gmra.mrb[0].mxu0 %v7373
    %v8111 = vpop.f32.mrb[0].mxu0
    %v8112 = vadd.f32 %v7727, %v8111
    %v8113 = vpop.f32.mrb[0].mxu0
    %8114 = vmatprep.mubr.f32.mxu0 0.0
    %8115 = vmatmul.mubr.f32.gmra.mrb[0].mxu0 %v7376
    %v8116 = vpop.f32.mrb[0].mxu0
    %v8117 = vadd.f32 %v7732, %v8116
    %v8118 = vpop.f32.mrb[0].mxu0
    %8119 = vmatprep.mubr.f32.mxu0 0.0
    %8120 = vmatmul.mubr.f32.gmra.mrb[0].mxu0 %v7379
    %v8121 = vpop.f32.mrb[0].mxu0
    %v8122 = vadd.f32 %v7737, %v8121
    %v8123 = vpop.f32.mrb[0].mxu0
    %8124 = vmatprep.mubr.f32.mxu0 0.0
    %8125 = vmatmul.mubr.f32.gmra.mrb[0].mxu0 %v7382
    %v8126 = vpop.f32.mrb[0].mxu0
    %v8127 = vadd.f32 %v7742, %v8126
    %v8128 = vpop.f32.mrb[0].mxu0
    %8129 = vmatprep.mubr.f32.mxu0 0.0
    %8130 = vmatmul.mubr.f32.gmra.mrb[0].mxu0 %v7385
    %v8131 = vpop.f32.mrb[0].mxu0
    %v8132 = vadd.f32 %v7747, %v8131
    %v8133 = vpop.f32.mrb[0].mxu0
    %8134 = vmatprep.mubr.f32.mxu0 0.0
    %8135 = vmatmul.mubr.f32.gmra.mrb[0].mxu0 %v7388
    %v8136 = vpop.f32.mrb[0].mxu0
    %v8137 = vadd.f32 %v7752, %v8136
    %v8138 = vpop.f32.mrb[0].mxu0
    %8139 = vmatprep.mubr.f32.mxu0 0.0
    %8140 = vmatmul.mubr.f32.gmra.mrb[0].mxu0 %v7391
    %v8141 = vpop.f32.mrb[0].mxu0
    %v8142 = vadd.f32 %v7757, %v8141
    %v8143 = vpop.f32.mrb[0].mxu0
    %8144 = vmatprep.mubr.f32.mxu0 0.0
    %8145 = vmatmul.mubr.f32.gmra.mrb[0].mxu0 %v7394
    %v8146 = vpop.f32.mrb[0].mxu0
    %v8147 = vadd.f32 %v7762, %v8146
    %v8148 = vpop.f32.mrb[0].mxu0
    %8149 = vmatprep.mubr.f32.mxu0 0.0
    %8150 = vmatmul.mubr.f32.gmra.mrb[0].mxu0 %v7397
    %v8151 = vpop.f32.mrb[0].mxu0
    %v8152 = vadd.f32 %v7767, %v8151
    %v8153 = vpop.f32.mrb[0].mxu0
    %8154 = vmatprep.mubr.f32.mxu0 0.0
    %8155 = vmatmul.mubr.f32.gmra.mrb[0].mxu0 %v7400
    %v8156 = vpop.f32.mrb[0].mxu0
    %v8157 = vadd.f32 %v7772, %v8156
    %v8158 = vpop.f32.mrb[0].mxu0
    %8159 = vmatprep.mubr.f32.mxu0 0.0
    %8160 = vmatmul.mubr.f32.gmra.mrb[0].mxu0 %v7403
    %v8161 = vpop.f32.mrb[0].mxu0
    %v8162 = vadd.f32 %v7777, %v8161
    %v8163 = vpop.f32.mrb[0].mxu0
    %8164 = vmatprep.mubr.f32.mxu0 0.0
    %8165 = vmatmul.mubr.f32.gmra.mrb[0].mxu0 %v7406
    %v8166 = vpop.f32.mrb[0].mxu0
    %v8167 = vadd.f32 %v7782, %v8166
    %v8168 = vpop.f32.mrb[0].mxu0
    %8169 = vmatprep.mubr.f32.mxu0 0.0
    %8170 = vmatmul.mubr.f32.gmra.mrb[0].mxu0 %v7409
    %v8171 = vpop.f32.mrb[0].mxu0
    %v8172 = vadd.f32 %v7787, %v8171
    %v8173 = vpop.f32.mrb[0].mxu0
    %8174 = vmatprep.mubr.f32.mxu0 0.0
    %8175 = vmatmul.mubr.f32.gmra.mrb[0].mxu0 %v7412
    %v8176 = vpop.f32.mrb[0].mxu0
    %v8177 = vadd.f32 %v7792, %v8176
    %v8178 = vpop.f32.mrb[0].mxu0
    %8179 = vmatprep.mubr.f32.mxu0 0.0
    %8180 = vmatmul.mubr.f32.gmra.mrb[0].mxu0 %v7415
    %v8181 = vpop.f32.mrb[0].mxu0
    %v8182 = vadd.f32 %v7797, %v8181
    %v8183 = vpop.f32.mrb[0].mxu0
    %8184 = vmatprep.mubr.f32.mxu0 0.0
    %8185 = vmatmul.mubr.f32.gmra.mrb[0].mxu0 %v7418
    %v8186 = vpop.f32.mrb[0].mxu0
    %v8187 = vadd.f32 %v7802, %v8186
    %v8188 = vpop.f32.mrb[0].mxu0
    %8189 = vdwg.mxu0
    %8190 = vxpose.xlu0.b32.start [1/16] %v7872, 128
    %8191 = vxpose.xlu0.b32.cont [2/16] %v7877, 128
    %8192 = vxpose.xlu0.b32.cont [3/16] %v7882, 128
    %8193 = vxpose.xlu0.b32.cont [4/16] %v7887, 128
    %8194 = vxpose.xlu0.b32.cont [5/16] %v7892, 128
    %8195 = vxpose.xlu0.b32.cont [6/16] %v7897, 128
    %8196 = vxpose.xlu0.b32.cont [7/16] %v7902, 128
    %8197 = vxpose.xlu0.b32.cont [8/16] %v7907, 128
    %8198 = vxpose.xlu0.b32.cont [9/16] %v7912, 128
    %8199 = vxpose.xlu0.b32.cont [10/16] %v7917, 128
    %8200 = vxpose.xlu0.b32.cont [11/16] %v7922, 128
    %8201 = vxpose.xlu0.b32.cont [12/16] %v7927, 128
    %8202 = vxpose.xlu0.b32.cont [13/16] %v7932, 128
    %8203 = vxpose.xlu0.b32.cont [14/16] %v7937, 128
    %8204 = vxpose.xlu0.b32.cont [15/16] %v7942, 128
    %8205 = vxpose.xlu0.b32.end [16/16] %v7947, 128
    %v8206 = vpop.trf.xlu0
    %v8207 = vpop.trf.xlu0
    %v8208 = vpop.trf.xlu0
    %v8209 = vpop.trf.xlu0
    %v8210 = vpop.trf.xlu0
    %v8211 = vpop.trf.xlu0
    %v8212 = vpop.trf.xlu0
    %v8213 = vpop.trf.xlu0
    %v8214 = vpop.trf.xlu0
    %v8215 = vpop.trf.xlu0
    %v8216 = vpop.trf.xlu0
    %v8217 = vpop.trf.xlu0
    %v8218 = vpop.trf.xlu0
    %v8219 = vpop.trf.xlu0
    %v8220 = vpop.trf.xlu0
    %v8221 = vpop.trf.xlu0
    %8222 = vxpose.xlu0.b32.start [1/16] %v7952, 128
    %8223 = vxpose.xlu0.b32.cont [2/16] %v7957, 128
    %8224 = vxpose.xlu0.b32.cont [3/16] %v7962, 128
    %8225 = vxpose.xlu0.b32.cont [4/16] %v7967, 128
    %8226 = vxpose.xlu0.b32.cont [5/16] %v7972, 128
    %8227 = vxpose.xlu0.b32.cont [6/16] %v7977, 128
    %8228 = vxpose.xlu0.b32.cont [7/16] %v7982, 128
    %8229 = vxpose.xlu0.b32.cont [8/16] %v7987, 128
    %8230 = vxpose.xlu0.b32.cont [9/16] %v7992, 128
    %8231 = vxpose.xlu0.b32.cont [10/16] %v7997, 128
    %8232 = vxpose.xlu0.b32.cont [11/16] %v8002, 128
    %8233 = vxpose.xlu0.b32.cont [12/16] %v8007, 128
    %8234 = vxpose.xlu0.b32.cont [13/16] %v8012, 128
    %8235 = vxpose.xlu0.b32.cont [14/16] %v8017, 128
    %8236 = vxpose.xlu0.b32.cont [15/16] %v8022, 128
    %8237 = vxpose.xlu0.b32.end [16/16] %v8027, 128
    %v8238 = vpop.trf.xlu0
    %v8239 = vpop.trf.xlu0
    %v8240 = vpop.trf.xlu0
    %v8241 = vpop.trf.xlu0
    %v8242 = vpop.trf.xlu0
    %v8243 = vpop.trf.xlu0
    %v8244 = vpop.trf.xlu0
    %v8245 = vpop.trf.xlu0
    %v8246 = vpop.trf.xlu0
    %v8247 = vpop.trf.xlu0
    %v8248 = vpop.trf.xlu0
    %v8249 = vpop.trf.xlu0
    %v8250 = vpop.trf.xlu0
    %v8251 = vpop.trf.xlu0
    %v8252 = vpop.trf.xlu0
    %v8253 = vpop.trf.xlu0
    %8254 = vxpose.xlu0.b32.start [1/16] %v8032, 128
    %8255 = vxpose.xlu0.b32.cont [2/16] %v8037, 128
    %8256 = vxpose.xlu0.b32.cont [3/16] %v8042, 128
    %8257 = vxpose.xlu0.b32.cont [4/16] %v8047, 128
    %8258 = vxpose.xlu0.b32.cont [5/16] %v8052, 128
    %8259 = vxpose.xlu0.b32.cont [6/16] %v8057, 128
    %8260 = vxpose.xlu0.b32.cont [7/16] %v8062, 128
    %8261 = vxpose.xlu0.b32.cont [8/16] %v8067, 128
    %8262 = vxpose.xlu0.b32.cont [9/16] %v8072, 128
    %8263 = vxpose.xlu0.b32.cont [10/16] %v8077, 128
    %8264 = vxpose.xlu0.b32.cont [11/16] %v8082, 128
    %8265 = vxpose.xlu0.b32.cont [12/16] %v8087, 128
    %8266 = vxpose.xlu0.b32.cont [13/16] %v8092, 128
    %8267 = vxpose.xlu0.b32.cont [14/16] %v8097, 128
    %8268 = vxpose.xlu0.b32.cont [15/16] %v8102, 128
    %8269 = vxpose.xlu0.b32.end [16/16] %v8107, 128
    %v8270 = vpop.trf.xlu0
    %v8271 = vpop.trf.xlu0
    %v8272 = vpop.trf.xlu0
    %v8273 = vpop.trf.xlu0
    %v8274 = vpop.trf.xlu0
    %v8275 = vpop.trf.xlu0
    %v8276 = vpop.trf.xlu0
    %v8277 = vpop.trf.xlu0
    %v8278 = vpop.trf.xlu0
    %v8279 = vpop.trf.xlu0
    %v8280 = vpop.trf.xlu0
    %v8281 = vpop.trf.xlu0
    %v8282 = vpop.trf.xlu0
    %v8283 = vpop.trf.xlu0
    %v8284 = vpop.trf.xlu0
    %v8285 = vpop.trf.xlu0
    %8286 = vxpose.xlu0.b32.start [1/16] %v8112, 128
    %8287 = vxpose.xlu0.b32.cont [2/16] %v8117, 128
    %8288 = vxpose.xlu0.b32.cont [3/16] %v8122, 128
    %8289 = vxpose.xlu0.b32.cont [4/16] %v8127, 128
    %8290 = vxpose.xlu0.b32.cont [5/16] %v8132, 128
    %8291 = vxpose.xlu0.b32.cont [6/16] %v8137, 128
    %8292 = vxpose.xlu0.b32.cont [7/16] %v8142, 128
    %8293 = vxpose.xlu0.b32.cont [8/16] %v8147, 128
    %8294 = vxpose.xlu0.b32.cont [9/16] %v8152, 128
    %8295 = vxpose.xlu0.b32.cont [10/16] %v8157, 128
    %8296 = vxpose.xlu0.b32.cont [11/16] %v8162, 128
    %8297 = vxpose.xlu0.b32.cont [12/16] %v8167, 128
    %8298 = vxpose.xlu0.b32.cont [13/16] %v8172, 128
    %8299 = vxpose.xlu0.b32.cont [14/16] %v8177, 128
    %8300 = vxpose.xlu0.b32.cont [15/16] %v8182, 128
    %8301 = vxpose.xlu0.b32.end [16/16] %v8187, 128
    %v8302 = vpop.trf.xlu0
    %v8303 = vpop.trf.xlu0
    %v8304 = vpop.trf.xlu0
    %v8305 = vpop.trf.xlu0
    %v8306 = vpop.trf.xlu0
    %v8307 = vpop.trf.xlu0
    %v8308 = vpop.trf.xlu0
    %v8309 = vpop.trf.xlu0
    %v8310 = vpop.trf.xlu0
    %v8311 = vpop.trf.xlu0
    %v8312 = vpop.trf.xlu0
    %v8313 = vpop.trf.xlu0
    %v8314 = vpop.trf.xlu0
    %v8315 = vpop.trf.xlu0
    %v8316 = vpop.trf.xlu0
    %v8317 = vpop.trf.xlu0
    %v8318 = vxor.u32 %v8206, 2147483648
    %v8319 = vxor.u32 %v8238, 2147483648
    %v8320 = vxor.u32 %v8270, 2147483648
    %v8321 = vxor.u32 %v8302, 2147483648
    %v8322 = vmul.f32 %v8318, 1.442695
    %v8323 = vpow.pop %v8322
    %v8324 = vmul.f32 %v8319, 1.442695
    %v8325 = vpow.pop %v8324
    %v8326 = vmul.f32 %v8320, 1.442695
    %v8327 = vpow.pop %v8326
    %v8328 = vmul.f32 %v8321, 1.442695
    %v8329 = vpow.pop %v8328
    %v8330 = vadd.f32 %v8323, 1.0
    %v8331 = vadd.f32 %v8325, 1.0
    %v8332 = vadd.f32 %v8327, 1.0
    %v8333 = vadd.f32 %v8329, 1.0
    %v8334 = vrcp.pop %v8330
    %v8335 = vmul.f32 1.0, %v8334
    %v8336 = vrcp.pop %v8331
    %v8337 = vmul.f32 1.0, %v8336
    %v8338 = vrcp.pop %v8332
    %v8339 = vmul.f32 1.0, %v8338
    %v8340 = vrcp.pop %v8333
    %v8341 = vmul.f32 1.0, %v8340
    %v8342 = vld [vmem:[%s2] sm:$0xf]
    %v8343 = vld [vmem:[%s2 + $0x4] sm:$0xf]
    %v8348 = vcombine.low %v8206, %v8238
    %v8350 = vunpack.c.l.s4 1983009808
    %v8351 = vunpack.c.0.s8 %v8350
    %v8352 = vlaneseq
    %v8353 = vshrl.u32 %v8352, 7
    %v8354 = vsub.s32 %v8351, %v8353
    %v8355 = vrot.slane %v8348, %v8354
    %v8356 = vcombine.high %v8355, %v8355
    %v8357 = vcombine.low %v8270, %v8302
    %v8359 = vunpack.c.l.s4 1983009808
    %v8360 = vunpack.c.0.s8 %v8359
    %v8361 = vlaneseq
    %v8362 = vshrl.u32 %v8361, 7
    %v8363 = vsub.s32 %v8360, %v8362
    %v8364 = vrot.slane %v8357, %v8363
    %v8365 = vcombine.high %v8364, %v8364
    %v8368 = vadd.f32 %v8342, %v8356
    %v8369 = vadd.f32 %v8343, %v8365
    %v8374 = vcombine.low %v8335, %v8337
    %v8376 = vunpack.c.l.s4 1983009808
    %v8377 = vunpack.c.0.s8 %v8376
    %v8378 = vlaneseq
    %v8379 = vshrl.u32 %v8378, 7
    %v8380 = vsub.s32 %v8377, %v8379
    %v8381 = vrot.slane %v8374, %v8380
    %v8382 = vcombine.low %v8339, %v8341
    %v8384 = vunpack.c.l.s4 1983009808
    %v8385 = vunpack.c.0.s8 %v8384
    %v8386 = vlaneseq
    %v8387 = vshrl.u32 %v8386, 7
    %v8388 = vsub.s32 %v8385, %v8387
    %v8389 = vrot.slane %v8382, %v8388
    %v8392 = vmul.f32 %v8368, %v8381
    %v8393 = vmul.f32 %v8369, %v8389
    %v8394 = vld [vmem:[%s0] sm:$0xf]
    %v8395 = vld [vmem:[%s0 + $0x4] sm:$0xf]
    %v8399 = vunpack.c.l.s4 1983009808
    %v8400 = vunpack.c.0.s8 %v8399
    %v8401 = vlaneseq
    %v8402 = vshrl.u32 %v8401, 7
    %v8403 = vsub.s32 %v8400, %v8402
    %v8404 = vrot.slane %v8394, %v8403
    %v8406 = vunpack.c.l.s4 1983009808
    %v8407 = vunpack.c.0.s8 %v8406
    %v8408 = vlaneseq
    %v8409 = vshrl.u32 %v8408, 7
    %v8410 = vsub.s32 %v8407, %v8409
    %v8411 = vrot.slane %v8395, %v8410
    %8414 = vst [vmem:[#allocation4] sm:$0x33] %v8404
    %8415 = vst [vmem:[#allocation4 + $0x8] sm:$0x33] %v8411
    %v8418 = vcombine.low %v8392, %v8392
    %v8420 = vunpack.c.l.s4 1983009808
    %v8421 = vunpack.c.0.s8 %v8420
    %v8422 = vlaneseq
    %v8423 = vshrl.u32 %v8422, 7
    %v8424 = vsub.s32 %v8421, %v8423
    %v8425 = vrot.slane %v8418, %v8424
    %v8426 = vcombine.low %v8393, %v8393
    %v8428 = vunpack.c.l.s4 1983009808
    %v8429 = vunpack.c.0.s8 %v8428
    %v8430 = vlaneseq
    %v8431 = vshrl.u32 %v8430, 7
    %v8432 = vsub.s32 %v8429, %v8431
    %v8433 = vrot.slane %v8426, %v8432
    %8436 = vst [vmem:[#allocation4] sm:$0xcc] %v8425
    %8437 = vst [vmem:[#allocation4 + $0x8] sm:$0xcc] %v8433
    %v8438 = vsub.f32 0.0, %v8206
    %v8439 = vsub.f32 0.0, %v8238
    %v8440 = vsub.f32 0.0, %v8270
    %v8441 = vsub.f32 0.0, %v8302
    %v8442 = vmax.f32 %v8438, 0.0
    %v8443 = vmax.f32 %v8439, 0.0
    %v8444 = vmax.f32 %v8440, 0.0
    %v8445 = vmax.f32 %v8441, 0.0
    %v8446 = vand.u32 2147483647, %v8206
    %v8447 = vand.u32 2147483647, %v8238
    %v8448 = vand.u32 2147483647, %v8270
    %v8449 = vand.u32 2147483647, %v8302
    %v8450 = vsub.f32 0.0, %v8446
    %v8451 = vsub.f32 0.0, %v8447
    %v8452 = vsub.f32 0.0, %v8448
    %v8453 = vsub.f32 0.0, %v8449
    %v8454 = vmul.f32 %v8450, 1.442695
    %v8455 = vpow.pop %v8454
    %v8456 = vmul.f32 %v8451, 1.442695
    %v8457 = vpow.pop %v8456
    %v8458 = vmul.f32 %v8452, 1.442695
    %v8459 = vpow.pop %v8458
    %v8460 = vmul.f32 %v8453, 1.442695
    %v8461 = vpow.pop %v8460
    %v8462 = vadd.f32 %v8455, 1.0
    %v8463 = vadd.f32 %v8457, 1.0
    %v8464 = vadd.f32 %v8459, 1.0
    %v8465 = vadd.f32 %v8461, 1.0
    %v8466 = vlog2.pop %v8462
    %v8467 = vmul.f32 %v8466, 0.6931472
    %v8468 = vlog2.pop %v8463
    %v8469 = vmul.f32 %v8468, 0.6931472
    %v8470 = vlog2.pop %v8464
    %v8471 = vmul.f32 %v8470, 0.6931472
    %v8472 = vlog2.pop %v8465
    %v8473 = vmul.f32 %v8472, 0.6931472
    %v8474 = vadd.f32 %v8442, %v8467
    %v8475 = vadd.f32 %v8443, %v8469
    %v8476 = vadd.f32 %v8444, %v8471
    %v8477 = vadd.f32 %v8445, %v8473
    %v8478 = vsub.f32 0.0, %v8474
    %v8479 = vsub.f32 0.0, %v8475
    %v8480 = vsub.f32 0.0, %v8476
    %v8481 = vsub.f32 0.0, %v8477
    %v8482 = vsel %vm3599, %v8478, 0.0
    %v8483 = vsel %vm3599, %v8479, 0.0
    %v8484 = vadd.f32 %v8482, %v8483
    %8485 = vadd.xlane.f32.xlu0 %v8484
    %v8486 = vpop.xlane.xlu0 %8485
    %v8487 = vsel %vm3599, %v8480, 0.0
    %v8488 = vsel %vm3599, %v8481, 0.0
    %v8489 = vadd.f32 %v8487, %v8488
    %8490 = vadd.xlane.f32.xlu0 %v8489
    %v8491 = vpop.xlane.xlu0 %8490
    %v8494 = vlaneseq
    %v8495 = vand.u32 %v8494, 127
    %v8496 = vlaneseq
    %v8497 = vshrl.u32 %v8496, 7
    %v8498 = vsub.s32 %v8495, %v8497
    %v8499 = vrot.slane %v8486, %v8498
    %v8500 = vlaneseq
    %v8501 = vshrl.u32 %v8500, 7
    %v8502 = vsub.s32 %v8495, %v8501
    %v8503 = vrot.slane %v8491, %v8502
    %vm8504 = vcmask 1041409
    %v8505 = vsel %vm8504, %v8503, %v8499
    %v8507 = vsel %vm102, %v8505, 0.0
    %8508 = vadd.xlane.f32.xlu0 %v8507
    %v8509 = vpop.xlane.xlu0 %8508
    %vm8510 = vcmask 1024
    %8511 = vst.msk [vmem:[%s10] sm:$0x3] %vm8510, %v8509
    // Predicated region
    $region38: #{tpu_custom_call.1} parent=1 // pred_check
      _
    $region39: #{tpu_custom_call.1} parent=1 // pred_check_branch
      %8513 = sbr.rel (0) target = $region41
    $region40: #{tpu_custom_call.1} parent=1 // pred_region
      %s8515 = ssub.s32 256, 256
      %8516 = vsyncadd [#allocation5], %s8515
      %s8517 = sshll.u32 [#allocation4], 4
      %s8518 = int_to_ptr.vmem [resolvable:$true] %s8517
      %8523 = dma.vmem_to_hbm [thread:$0]  %s8518, 256, %s9, [#allocation5], 128, 128, 8
    $region41: #{tpu_custom_call.1} parent=1 // pred_fallthru
      _
    // Predicated region
    $region42: #{tpu_custom_call.1} parent=1 // pred_check
      _
    $region43: #{tpu_custom_call.1} parent=1 // pred_check_branch
      %8525 = sbr.rel (0) target = $region45
    $region44: #{tpu_custom_call.1} parent=1 // pred_region
      _
    $region45: #{tpu_custom_call.1} parent=1 // pred_fallthru
      _
    // Predicated region
    $region46: #{tpu_custom_call.1} parent=1 // pred_check
      _
    $region47: #{tpu_custom_call.1} parent=1 // pred_check_branch
      %8527 = sbr.rel (0) target = $region49
    $region48: #{tpu_custom_call.1} parent=1 // pred_region
      %8528 = dma.done [#allocation5], 256
    $region49: #{tpu_custom_call.1} parent=1 // pred_fallthru
      _
    // Predicated region
    $region50: #{tpu_custom_call.1} parent=1 // pred_check
      _
    $region51: #{tpu_custom_call.1} parent=1 // pred_check_branch
      %8530 = sbr.rel (0) target = $region53
    $region52: #{tpu_custom_call.1} parent=1 // pred_region
      _
    $region53: #{tpu_custom_call.1} parent=1 // pred_fallthru
      _
    %8531 = vsyncpa [#allocation5], 1

</llo_original>
